<compile_context>
chip_gen: v7x
topology: tpu7x:2x2x1
jax: 0.10.0
libtpu: 0.0.40
codegen_flags: <defaults>
</compile_context>

<pallas_src>
import jax
import jax.numpy as jnp
from jax.experimental import pallas as pl
from jax.experimental.pallas import tpu as pltpu


def _default_vmem_limit():
    """Per-generation scoped-VMEM cap: ~3/4 of physical VMEM, capped at 100 MiB."""
    try:
        info = pltpu.get_tpu_info()
        cap = getattr(info, "vmem_capacity_bytes", None)
        if cap:
            return int(min(cap * 3 // 4, 100 * 1024 * 1024))
    except Exception:
        pass
    return 48 * 1024 * 1024


_VMEM_LIMIT = _default_vmem_limit()


# ----------------------------------------------------------------------------
# In-kernel helpers
# ----------------------------------------------------------------------------

def _pad_hw1(v):
    """Zero-pad an (H, W, C) VMEM value by 1 on H and W (no HBM traffic)."""
    H, W, C = v.shape
    zr = jnp.zeros((1, W, C), v.dtype)
    v = jnp.concatenate([zr, v, zr], axis=0)          # (H+2, W, C)
    zc = jnp.zeros((H + 2, 1, C), v.dtype)
    return jnp.concatenate([zc, v, zc], axis=1)       # (H+2, W+2, C)


# ----------------------------------------------------------------------------
# Kernels
# ----------------------------------------------------------------------------

def upsample_kernel(x_ref, w_ref, o_ref):
    """ConvTranspose2d(k=2, s=2, bias=False) for one image, both row parities.

    x_ref: (1, H, W, Cin) bf16
    w_ref: (2, Cin, 2*Cf) bf16  -- [a][ci, b*Cf+co] = W_up[ci, co, a, b] (resident)
    o_ref: (1, H, 2, W, 2*Cf) bf16  parity-major; wrapper reshape -> (2H, 2W, Cf)
    """
    H, W, Cin = x_ref.shape[1], x_ref.shape[2], x_ref.shape[3]
    C2 = w_ref.shape[2]
    x2d = x_ref[0].reshape(H * W, Cin)
    rows = [
        jnp.dot(x2d, w_ref[a], preferred_element_type=jnp.float32)
        .astype(o_ref.dtype)
        .reshape(H, 1, W, C2)
        for a in (0, 1)
    ]
    o_ref[...] = jnp.concatenate(rows, axis=1).reshape(1, H, 2, W, C2)


def conv1_stats_kernel(up_ref, y_ref, wa_ref, wb_ref, o_ref, sum_ref, ssq_ref):
    """concat([up, y], channel) + Conv3x3(pad=1) + per-image BN1 partial stats.

    The channel concat is never materialized: split weights wa (up) / wb (y).
    up_ref/y_ref: (1, Ho+2, Wo+2, Cf) bf16  (spatially pre-padded in the wrapper)
    wa_ref/wb_ref: (3, 3, Cf, Co) bf16
    o_ref: (1, Ho, Wo, Co) bf16    sum_ref/ssq_ref: (1, 1, Co) f32
    """
    Ho, Wo, Co = o_ref.shape[1], o_ref.shape[2], o_ref.shape[3]
    Cu = up_ref.shape[3]
    Cy = y_ref.shape[3]
    up = up_ref[0]
    yv = y_ref[0]

    acc = None                                        # local f32 accumulator
    for dy in range(3):
        for dx in range(3):
            pu = up[dy:dy + Ho, dx:dx + Wo, :].reshape(Ho * Wo, Cu)
            py = yv[dy:dy + Ho, dx:dx + Wo, :].reshape(Ho * Wo, Cy)
            d = (jnp.dot(pu, wa_ref[dy, dx], preferred_element_type=jnp.float32)
                 + jnp.dot(py, wb_ref[dy, dx], preferred_element_type=jnp.float32))
            acc = d if acc is None else acc + d

    o_ref[...] = acc.reshape(1, Ho, Wo, Co).astype(o_ref.dtype)
    sum_ref[...] = jnp.sum(acc, axis=0).reshape(1, 1, Co)
    ssq_ref[...] = jnp.sum(acc * acc, axis=0).reshape(1, 1, Co)


def bnrelu_conv2_stats_kernel(x_ref, s_ref, b_ref, w_ref, o_ref, sum_ref, ssq_ref):
    """BN1-affine + ReLU (on the incoming tile) + Conv3x3(pad=1) + BN2 partial stats.

    x_ref: (1, Ho, Wo, C) bf16   s_ref/b_ref: (1, C) f32   w_ref: (3, 3, C, Co) bf16
    o_ref: (1, Ho, Wo, Co) bf16  sum_ref/ssq_ref: (1, 1, Co) f32

    NOTE: BN1 stats were computed from the f32 conv1 accumulator while a1 was
    stored bf16 -> tiny stats/data mismatch bounded by bf16 rounding.
    """
    Ho, Wo, Co = o_ref.shape[1], o_ref.shape[2], o_ref.shape[3]
    C = x_ref.shape[3]

    # BN affine + ReLU in f32 (VPU); zero padding AFTER the pointwise op, matching
    # Conv2d(padding=1) semantics (must pad h1, not a1).
    h = jnp.maximum(x_ref[0].astype(jnp.float32) * s_ref[0] + b_ref[0], 0.0)
    hp = _pad_hw1(h.astype(jnp.bfloat16))             # (Ho+2, Wo+2, C) bf16

    acc = None                                        # local f32 accumulator
    for dy in range(3):
        for dx in range(3):
            p = hp[dy:dy + Ho, dx:dx + Wo, :].reshape(Ho * Wo, C)
            d = jnp.dot(p, w_ref[dy, dx], preferred_element_type=jnp.float32)
            acc = d if acc is None else acc + d

    o_ref[...] = acc.reshape(1, Ho, Wo, Co).astype(o_ref.dtype)
    sum_ref[...] = jnp.sum(acc, axis=0).reshape(1, 1, Co)
    ssq_ref[...] = jnp.sum(acc * acc, axis=0).reshape(1, 1, Co)


def bn_relu_flat_kernel(x_ref, s_ref, b_ref, o_ref):
    """Final BN2-affine + ReLU on a lane-dense (rows, Wo*Co) tile (bf16 in, f32 out)."""
    o_ref[...] = jnp.maximum(
        x_ref[...].astype(jnp.float32) * s_ref[...] + b_ref[...], 0.0)


# ----------------------------------------------------------------------------
# Wrapper helpers
# ----------------------------------------------------------------------------

def _bn_scale_bias(psum, psumsq, count, gamma, beta, eps=1e-5):
    """Fold per-image partial sums into a single BN scale/bias (training forward)."""
    s = jnp.sum(psum, axis=0)[0]                      # (C,)
    q = jnp.sum(psumsq, axis=0)[0]
    mean = s / count
    # TODO(synk): shifted / Welford accumulation to avoid E[x^2]-E[x]^2 cancellation
    #             for very large activations; clamp guards tiny negatives.
    var = jnp.maximum(q / count - mean * mean, 0.0)
    scale = gamma * jax.lax.rsqrt(var + eps)
    bias = beta - mean * scale
    return scale, bias


def _row_tile(total_rows, row_bytes, budget=8 * 1024 * 1024):
    """Largest row-tile (multiple of 8, divisor of total_rows) under a VMEM budget."""
    if total_rows * row_bytes <= budget:
        return total_rows
    max_rows = max(8, budget // row_bytes)
    best = None
    d = 8
    while d <= max_rows:
        if total_rows % d == 0:
            best = d
        d += 8
    return best if best is not None else total_rows


def _cparams(sem):
    return pltpu.CompilerParams(dimension_semantics=sem,
                                vmem_limit_bytes=_VMEM_LIMIT)


# ----------------------------------------------------------------------------
# Forward
# ----------------------------------------------------------------------------

@jax.jit
def upblock_forward(x_nchw, y_nchw, params):
    """UpBlock forward.  Inputs/outputs are NCHW (PyTorch convention)."""
    # NCHW -> NHWC and bf16 cast, fused by XLA into single relayout passes.
    x = jnp.transpose(x_nchw, (0, 2, 3, 1)).astype(jnp.bfloat16)   # (N, H, W, Cin)
    y = jnp.transpose(y_nchw, (0, 2, 3, 1)).astype(jnp.bfloat16)   # (N, 2H, 2W, Cf)
    N, H, W, Cin = x.shape
    _, Ho, Wo, Cf = y.shape
    Co = Cf

    # ---- 1. ConvTranspose2d(k=2,s=2): both parities per grid step, resident weight ----
    up_raw = pl.pallas_call(
        upsample_kernel,
        out_shape=jax.ShapeDtypeStruct((N, H, 2, W, 2 * Cf), jnp.bfloat16),
        grid=(N,),
        in_specs=[
            pl.BlockSpec((1, H, W, Cin), lambda n: (n, 0, 0, 0)),
            pl.BlockSpec((2, Cin, 2 * Cf), lambda n: (0, 0, 0)),
        ],
        out_specs=pl.BlockSpec((1, H, 2, W, 2 * Cf), lambda n: (n, 0, 0, 0, 0)),
        compiler_params=_cparams(("parallel",)),
    )(x, params["up_w2"])

    # Interleave (reshape) + halo pad on the XLA side; one fused relayout pass.
    up_p = jnp.pad(up_raw.reshape(N, Ho, Wo, Cf),
                   ((0, 0), (1, 1), (1, 1), (0, 0)))               # (N, Ho+2, Wo+2, Cf)
    y_p = jnp.pad(y, ((0, 0), (1, 1), (1, 1), (0, 0)))             # (N, Ho+2, Wo+2, Cf)

    # ---- 2. conv1 (split weights, concat never materialized) + BN1 partial stats ----
    a1, s1p, q1p = pl.pallas_call(
        conv1_stats_kernel,
        out_shape=(jax.ShapeDtypeStruct((N, Ho, Wo, Co), jnp.bfloat16),
                   jax.ShapeDtypeStruct((N, 1, Co), jnp.float32),
                   jax.ShapeDtypeStruct((N, 1, Co), jnp.float32)),
        grid=(N,),
        in_specs=[
            pl.BlockSpec((1, Ho + 2, Wo + 2, Cf), lambda n: (n, 0, 0, 0)),
            pl.BlockSpec((1, Ho + 2, Wo + 2, Cf), lambda n: (n, 0, 0, 0)),
            pl.BlockSpec((3, 3, Cf, Co), lambda n: (0, 0, 0, 0)),
            pl.BlockSpec((3, 3, Cf, Co), lambda n: (0, 0, 0, 0)),
        ],
        out_specs=(pl.BlockSpec((1, Ho, Wo, Co), lambda n: (n, 0, 0, 0)),
                   pl.BlockSpec((1, 1, Co), lambda n: (n, 0, 0)),
                   pl.BlockSpec((1, 1, Co), lambda n: (n, 0, 0))),
        compiler_params=_cparams(("parallel",)),
    )(up_p, y_p, params["w1a"], params["w1b"])

    cnt = float(N * Ho * Wo)
    scale1, bias1 = _bn_scale_bias(s1p, q1p, cnt, params["g1"], params["b1"])

    # ---- 3. fused BN1-affine + ReLU + conv2 + BN2 partial stats (a2 stored bf16) ----
    a2, s2p, q2p = pl.pallas_call(
        bnrelu_conv2_stats_kernel,
        out_shape=(jax.ShapeDtypeStruct((N, Ho, Wo, Co), jnp.bfloat16),
                   jax.ShapeDtypeStruct((N, 1, Co), jnp.float32),
                   jax.ShapeDtypeStruct((N, 1, Co), jnp.float32)),
        grid=(N,),
        in_specs=[
            pl.BlockSpec((1, Ho, Wo, Co), lambda n: (n, 0, 0, 0)),
            pl.BlockSpec((1, Co), lambda n: (0, 0)),
            pl.BlockSpec((1, Co), lambda n: (0, 0)),
            pl.BlockSpec((3, 3, Co, Co), lambda n: (0, 0, 0, 0)),
        ],
        out_specs=(pl.BlockSpec((1, Ho, Wo, Co), lambda n: (n, 0, 0, 0)),
                   pl.BlockSpec((1, 1, Co), lambda n: (n, 0, 0)),
                   pl.BlockSpec((1, 1, Co), lambda n: (n, 0, 0))),
        compiler_params=_cparams(("parallel",)),
    )(a1, scale1.reshape(1, Co), bias1.reshape(1, Co), params["w2"])

    scale2, bias2 = _bn_scale_bias(s2p, q2p, cnt, params["g2"], params["b2"])

    # ---- 4. final BN2-affine + ReLU: large lane-dense tiles over a flat row axis ----
    WC = Wo * Co
    rows = N * Ho
    a2f = a2.reshape(rows, WC)                         # lane-dense input
    sflat = jnp.tile(scale2, Wo).reshape(1, WC)
    bflat = jnp.tile(bias2, Wo).reshape(1, WC)
    Tr = _row_tile(rows, WC * 4)
    out_f = pl.pallas_call(
        bn_relu_flat_kernel,
        out_shape=jax.ShapeDtypeStruct((rows, WC), jnp.float32),
        grid=(rows // Tr,),
        in_specs=[
            pl.BlockSpec((Tr, WC), lambda t: (t, 0)),
            pl.BlockSpec((1, WC), lambda t: (0, 0)),
            pl.BlockSpec((1, WC), lambda t: (0, 0)),
        ],
        out_specs=pl.BlockSpec((Tr, WC), lambda t: (t, 0)),
        compiler_params=_cparams(("parallel",)),
    )(a2f, sflat, bflat)

    out = out_f.reshape(N, Ho, Wo, Co)
    return jnp.transpose(out, (0, 3, 1, 2))            # -> NCHW


# ----------------------------------------------------------------------------
# Parameters
# ----------------------------------------------------------------------------

def init_params(key, in_features, out_features):
    """Raw PyTorch-layout parameters (float32)."""
    k1, k2, k3, k4, k5 = jax.random.split(key, 5)
    return {
        "up_w": 0.1 * jax.random.normal(
            k1, (in_features, out_features, 2, 2), jnp.float32),        # (Cin,Cout,2,2)
        "w1": 0.1 * jax.random.normal(
            k2, (out_features, 2 * out_features, 3, 3), jnp.float32),   # OIHW
        "w2": 0.1 * jax.random.normal(
            k3, (out_features, out_features, 3, 3), jnp.float32),       # OIHW
        "g1": 1.0 + 0.1 * jax.random.normal(k4, (out_features,), jnp.float32),
        "b1": 0.1 * jax.random.normal(k5, (out_features,), jnp.float32),
        "g2": jnp.ones((out_features,), jnp.float32),
        "b2": jnp.zeros((out_features,), jnp.float32),
    }


def prepare_params(raw):
    """One-time weight prep: parity-stacked up-weights, HWIO conv weights (bf16)."""
    Cin, Cf = raw["up_w"].shape[0], raw["up_w"].shape[1]
    # up_w2[a][ci, b*Cf + co] = up_w[ci, co, a, b]
    up_w2 = jnp.transpose(raw["up_w"], (2, 0, 3, 1)).reshape(2, Cin, 2 * Cf)
    w1_hwio = jnp.transpose(raw["w1"], (2, 3, 1, 0))   # (3,3,2Cf,Cf)
    w2_hwio = jnp.transpose(raw["w2"], (2, 3, 1, 0))   # (3,3,Cf,Cf)
    return {
        "up_w2": up_w2.astype(jnp.bfloat16),
        "w1a": w1_hwio[:, :, :Cf, :].astype(jnp.bfloat16),   # acts on `up`
        "w1b": w1_hwio[:, :, Cf:, :].astype(jnp.bfloat16),   # acts on skip `y`
        "w2": w2_hwio.astype(jnp.bfloat16),
        "g1": raw["g1"], "b1": raw["b1"],
        "g2": raw["g2"], "b2": raw["b2"],
    }


# ----------------------------------------------------------------------------
# Pure-JAX reference (f32) for a numerical sanity check
# ----------------------------------------------------------------------------

def _reference_upblock(x_nchw, y_nchw, raw, eps=1e-5):
    x = jnp.transpose(x_nchw, (0, 2, 3, 1))
    y = jnp.transpose(y_nchw, (0, 2, 3, 1))
    N, H, W, _ = x.shape
    Cf = raw["up_w"].shape[1]
    up = jnp.einsum('nhwi,ioab->nhawbo', x, raw["up_w"],
                    precision=jax.lax.Precision.HIGHEST).reshape(N, 2 * H, 2 * W, Cf)
    cat = jnp.concatenate([up, y], axis=-1)

    def cbr(v, w_oihw, g, b):
        w = jnp.transpose(w_oihw, (2, 3, 1, 0))        # HWIO
        c = jax.lax.conv_general_dilated(
            v, w, window_strides=(1, 1), padding=((1, 1), (1, 1)),
            dimension_numbers=('NHWC', 'HWIO', 'NHWC'),
            precision=jax.lax.Precision.HIGHEST)
        mean = jnp.mean(c, axis=(0, 1, 2))
        var = jnp.mean((c - mean) ** 2, axis=(0, 1, 2))
        return jnp.maximum((c - mean) * jax.lax.rsqrt(var + eps) * g + b, 0.0)

    h1 = cbr(cat, raw["w1"], raw["g1"], raw["b1"])
    h2 = cbr(h1, raw["w2"], raw["g2"], raw["b2"])
    return jnp.transpose(h2, (0, 3, 1, 2))


# ----------------------------------------------------------------------------
# Main
# ----------------------------------------------------------------------------

if __name__ == "__main__":
    in_features, out_features = 8, 4
    N, H, W = 2, 8, 8                                   # x is the coarse feature map

    key = jax.random.PRNGKey(0)
    kx, ky, kp = jax.random.split(key, 3)
    x = jax.random.normal(kx, (N, in_features, H, W), dtype=jnp.float32)             # NCHW
    y = jax.random.normal(ky, (N, out_features, 2 * H, 2 * W), dtype=jnp.float32)    # skip

    raw = init_params(kp, in_features, out_features)
    params = prepare_params(raw)

    out = upblock_forward(x, y, params)
    out = jax.block_until_ready(out)

    assert out.shape == (N, out_features, 2 * H, 2 * W), out.shape
    assert bool(jnp.all(out >= 0.0))                    # ReLU output

    ref = _reference_upblock(x, y, raw)
    err = float(jnp.max(jnp.abs(out - ref)))
    # bf16 matmuls + bf16 storage of a1/a2 intermediates bound the deviation.
    assert err < 0.35, f"max abs error vs f32 reference: {err}"

    print("KERNEL_OK")
</pallas_src>

<mosaic_0001>
module attributes {stable_mosaic.version = 11 : i64} {
  func.func @upsample_kernel(%arg0: i32, %arg1: memref<1x8x8x8xbf16, #tpu.memory_space<vmem>>, %arg2: memref<2x8x8xbf16, #tpu.memory_space<vmem>>, %arg3: memref<1x8x2x8x8xbf16, #tpu.memory_space<vmem>>) attributes {dimension_semantics = [#tpu.dimension_semantics<parallel>], iteration_bounds = array<i64: 2>, scalar_prefetch = 0 : i64, scratch_operands = 0 : i64, tpu.core_type = #tpu.core_type<tc>, window_params = [{transform_indices = @transform_0, window_bounds = array<i64: 1, 8, 8, 8>}, {pipeline_mode = #tpu.pipeline_mode<synchronous>, transform_indices = @transform_1, window_bounds = array<i64: 2, 8, 8>}, {transform_indices = @transform_2, window_bounds = array<i64: 1, 8, 2, 8, 8>}]} {
    %c0 = arith.constant 0 : index
    %c0_0 = arith.constant 0 : index
    %c0_1 = arith.constant 0 : index
    %c0_2 = arith.constant 0 : index
    %0 = vector.load %arg1[%c0, %c0_0, %c0_1, %c0_2] : memref<1x8x8x8xbf16, #tpu.memory_space<vmem>>, vector<1x8x8x8xbf16>
    %1 = vector.shape_cast %0 : vector<1x8x8x8xbf16> to vector<8x8x8xbf16>
    %2 = vector.shape_cast %1 : vector<8x8x8xbf16> to vector<64x8xbf16>
    %c0_3 = arith.constant 0 : index
    %c0_4 = arith.constant 0 : index
    %c0_5 = arith.constant 0 : index
    %3 = vector.load %arg2[%c0_3, %c0_4, %c0_5] : memref<2x8x8xbf16, #tpu.memory_space<vmem>>, vector<1x8x8xbf16>
    %4 = vector.shape_cast %3 : vector<1x8x8xbf16> to vector<8x8xbf16>
    %cst = arith.constant dense<0.000000e+00> : vector<64x8xf32>
    %5 = tpu.matmul %2, %4, %cst {dimension_numbers = #tpu.dot_dimension_numbers<[1], [0], [0], [1], [0, 0, 1, 1], [], []>} : vector<64x8xbf16>, vector<8x8xbf16>, vector<64x8xf32> -> vector<64x8xf32>
    %6 = arith.truncf %5 : vector<64x8xf32> to vector<64x8xbf16>
    %7 = vector.shape_cast %6 : vector<64x8xbf16> to vector<8x1x8x8xbf16>
    %c1 = arith.constant 1 : index
    %c0_6 = arith.constant 0 : index
    %c0_7 = arith.constant 0 : index
    %8 = vector.load %arg2[%c1, %c0_6, %c0_7] : memref<2x8x8xbf16, #tpu.memory_space<vmem>>, vector<1x8x8xbf16>
    %9 = vector.shape_cast %8 : vector<1x8x8xbf16> to vector<8x8xbf16>
    %cst_8 = arith.constant dense<0.000000e+00> : vector<64x8xf32>
    %10 = tpu.matmul %2, %9, %cst_8 {dimension_numbers = #tpu.dot_dimension_numbers<[1], [0], [0], [1], [0, 0, 1, 1], [], []>} : vector<64x8xbf16>, vector<8x8xbf16>, vector<64x8xf32> -> vector<64x8xf32>
    %11 = arith.truncf %10 : vector<64x8xf32> to vector<64x8xbf16>
    %12 = vector.shape_cast %11 : vector<64x8xbf16> to vector<8x1x8x8xbf16>
    %13 = tpu.concatenate %7, %12 in 1 : vector<8x1x8x8xbf16>, vector<8x1x8x8xbf16> -> vector<8x2x8x8xbf16>
    %14 = vector.shape_cast %13 : vector<8x2x8x8xbf16> to vector<1x8x2x8x8xbf16>
    %c0_9 = arith.constant 0 : index
    %c0_10 = arith.constant 0 : index
    %c0_11 = arith.constant 0 : index
    %c0_12 = arith.constant 0 : index
    %c0_13 = arith.constant 0 : index
    %15 = vector.load %arg3[%c0_9, %c0_10, %c0_11, %c0_12, %c0_13] : memref<1x8x2x8x8xbf16, #tpu.memory_space<vmem>>, vector<1x8x2x8x8xbf16>
    tpu.vector_store %arg3[%c0_9, %c0_10, %c0_11, %c0_12, %c0_13], %14 {strides = array<i32>} : memref<1x8x2x8x8xbf16, #tpu.memory_space<vmem>>, vector<1x8x2x8x8xbf16>,
    return
  }
  func.func @transform_0(%arg0: i32) -> (i32, i32, i32, i32) {
    %c0_i32 = arith.constant 0 : i32
    %c0_i32_0 = arith.constant 0 : i32
    %c0_i32_1 = arith.constant 0 : i32
    %c0_i32_2 = arith.constant 0 : i32
    return %arg0, %c0_i32, %c0_i32_0, %c0_i32_1 : i32, i32, i32, i32
  }
  func.func @transform_1(%arg0: i32) -> (i32, i32, i32) {
    %c0_i32 = arith.constant 0 : i32
    %c0_i32_0 = arith.constant 0 : i32
    %c0_i32_1 = arith.constant 0 : i32
    %c0_i32_2 = arith.constant 0 : i32
    return %c0_i32, %c0_i32_0, %c0_i32_1 : i32, i32, i32
  }
  func.func @transform_2(%arg0: i32) -> (i32, i32, i32, i32, i32) {
    %c0_i32 = arith.constant 0 : i32
    %c0_i32_0 = arith.constant 0 : i32
    %c0_i32_1 = arith.constant 0 : i32
    %c0_i32_2 = arith.constant 0 : i32
    %c0_i32_3 = arith.constant 0 : i32
    return %arg0, %c0_i32, %c0_i32_0, %c0_i32_1, %c0_i32_2 : i32, i32, i32, i32, i32
  }
}

module attributes {stable_mosaic.version = 11 : i64} {
  func.func @conv1_stats_kernel(%arg0: i32, %arg1: memref<1x18x18x4xbf16, #tpu.memory_space<vmem>>, %arg2: memref<1x18x18x4xbf16, #tpu.memory_space<vmem>>, %arg3: memref<3x3x4x4xbf16, #tpu.memory_space<vmem>>, %arg4: memref<3x3x4x4xbf16, #tpu.memory_space<vmem>>, %arg5: memref<1x16x16x4xbf16, #tpu.memory_space<vmem>>, %arg6: memref<1x1x4xf32, #tpu.memory_space<vmem>>, %arg7: memref<1x1x4xf32, #tpu.memory_space<vmem>>) attributes {dimension_semantics = [#tpu.dimension_semantics<parallel>], iteration_bounds = array<i64: 2>, scalar_prefetch = 0 : i64, scratch_operands = 0 : i64, tpu.core_type = #tpu.core_type<tc>, window_params = [{transform_indices = @transform_0, window_bounds = array<i64: 1, 18, 18, 4>}, {transform_indices = @transform_1, window_bounds = array<i64: 1, 18, 18, 4>}, {pipeline_mode = #tpu.pipeline_mode<synchronous>, transform_indices = @transform_2, window_bounds = array<i64: 3, 3, 4, 4>}, {pipeline_mode = #tpu.pipeline_mode<synchronous>, transform_indices = @transform_3, window_bounds = array<i64: 3, 3, 4, 4>}, {transform_indices = @transform_4, window_bounds = array<i64: 1, 16, 16, 4>}, {transform_indices = @transform_5, window_bounds = array<i64: 1, 1, 4>}, {transform_indices = @transform_6, window_bounds = array<i64: 1, 1, 4>}]} {
    %c0 = arith.constant 0 : index
    %c0_0 = arith.constant 0 : index
    %c0_1 = arith.constant 0 : index
    %c0_2 = arith.constant 0 : index
    %0 = vector.load %arg1[%c0, %c0_0, %c0_1, %c0_2] : memref<1x18x18x4xbf16, #tpu.memory_space<vmem>>, vector<1x18x18x4xbf16>
    %1 = vector.shape_cast %0 : vector<1x18x18x4xbf16> to vector<18x18x4xbf16>
    %c0_3 = arith.constant 0 : index
    %c0_4 = arith.constant 0 : index
    %c0_5 = arith.constant 0 : index
    %c0_6 = arith.constant 0 : index
    %2 = vector.load %arg2[%c0_3, %c0_4, %c0_5, %c0_6] : memref<1x18x18x4xbf16, #tpu.memory_space<vmem>>, vector<1x18x18x4xbf16>
    %3 = vector.shape_cast %2 : vector<1x18x18x4xbf16> to vector<18x18x4xbf16>
    %4 = vector.extract_strided_slice %1 {offsets = [0, 0, 0], sizes = [16, 16, 4], strides = [1, 1, 1]} : vector<18x18x4xbf16> to vector<16x16x4xbf16>
    %5 = vector.shape_cast %4 : vector<16x16x4xbf16> to vector<256x4xbf16>
    %6 = vector.extract_strided_slice %3 {offsets = [0, 0, 0], sizes = [16, 16, 4], strides = [1, 1, 1]} : vector<18x18x4xbf16> to vector<16x16x4xbf16>
    %7 = vector.shape_cast %6 : vector<16x16x4xbf16> to vector<256x4xbf16>
    %c0_7 = arith.constant 0 : index
    %c0_8 = arith.constant 0 : index
    %c0_9 = arith.constant 0 : index
    %c0_10 = arith.constant 0 : index
    %8 = vector.load %arg3[%c0_7, %c0_8, %c0_9, %c0_10] : memref<3x3x4x4xbf16, #tpu.memory_space<vmem>>, vector<1x1x4x4xbf16>
    %9 = vector.shape_cast %8 : vector<1x1x4x4xbf16> to vector<4x4xbf16>
    %cst = arith.constant dense<0.000000e+00> : vector<256x4xf32>
    %10 = tpu.matmul %5, %9, %cst {dimension_numbers = #tpu.dot_dimension_numbers<[1], [0], [0], [1], [0, 0, 1, 1], [], []>} : vector<256x4xbf16>, vector<4x4xbf16>, vector<256x4xf32> -> vector<256x4xf32>
    %c0_11 = arith.constant 0 : index
    %c0_12 = arith.constant 0 : index
    %c0_13 = arith.constant 0 : index
    %c0_14 = arith.constant 0 : index
    %11 = vector.load %arg4[%c0_11, %c0_12, %c0_13, %c0_14] : memref<3x3x4x4xbf16, #tpu.memory_space<vmem>>, vector<1x1x4x4xbf16>
    %12 = vector.shape_cast %11 : vector<1x1x4x4xbf16> to vector<4x4xbf16>
    %cst_15 = arith.constant dense<0.000000e+00> : vector<256x4xf32>
    %13 = tpu.matmul %7, %12, %cst_15 {dimension_numbers = #tpu.dot_dimension_numbers<[1], [0], [0], [1], [0, 0, 1, 1], [], []>} : vector<256x4xbf16>, vector<4x4xbf16>, vector<256x4xf32> -> vector<256x4xf32>
    %14 = arith.addf %10, %13 : vector<256x4xf32>
    %15 = vector.extract_strided_slice %1 {offsets = [0, 1, 0], sizes = [16, 16, 4], strides = [1, 1, 1]} : vector<18x18x4xbf16> to vector<16x16x4xbf16>
    %16 = vector.shape_cast %15 : vector<16x16x4xbf16> to vector<256x4xbf16>
    %17 = vector.extract_strided_slice %3 {offsets = [0, 1, 0], sizes = [16, 16, 4], strides = [1, 1, 1]} : vector<18x18x4xbf16> to vector<16x16x4xbf16>
    %18 = vector.shape_cast %17 : vector<16x16x4xbf16> to vector<256x4xbf16>
    %c0_16 = arith.constant 0 : index
    %c1 = arith.constant 1 : index
    %c0_17 = arith.constant 0 : index
    %c0_18 = arith.constant 0 : index
    %19 = vector.load %arg3[%c0_16, %c1, %c0_17, %c0_18] : memref<3x3x4x4xbf16, #tpu.memory_space<vmem>>, vector<1x1x4x4xbf16>
    %20 = vector.shape_cast %19 : vector<1x1x4x4xbf16> to vector<4x4xbf16>
    %cst_19 = arith.constant dense<0.000000e+00> : vector<256x4xf32>
    %21 = tpu.matmul %16, %20, %cst_19 {dimension_numbers = #tpu.dot_dimension_numbers<[1], [0], [0], [1], [0, 0, 1, 1], [], []>} : vector<256x4xbf16>, vector<4x4xbf16>, vector<256x4xf32> -> vector<256x4xf32>
    %c0_20 = arith.constant 0 : index
    %c1_21 = arith.constant 1 : index
    %c0_22 = arith.constant 0 : index
    %c0_23 = arith.constant 0 : index
    %22 = vector.load %arg4[%c0_20, %c1_21, %c0_22, %c0_23] : memref<3x3x4x4xbf16, #tpu.memory_space<vmem>>, vector<1x1x4x4xbf16>
    %23 = vector.shape_cast %22 : vector<1x1x4x4xbf16> to vector<4x4xbf16>
    %cst_24 = arith.constant dense<0.000000e+00> : vector<256x4xf32>
    %24 = tpu.matmul %18, %23, %cst_24 {dimension_numbers = #tpu.dot_dimension_numbers<[1], [0], [0], [1], [0, 0, 1, 1], [], []>} : vector<256x4xbf16>, vector<4x4xbf16>, vector<256x4xf32> -> vector<256x4xf32>
    %25 = arith.addf %21, %24 : vector<256x4xf32>
    %26 = arith.addf %14, %25 : vector<256x4xf32>
    %27 = vector.extract_strided_slice %1 {offsets = [0, 2, 0], sizes = [16, 16, 4], strides = [1, 1, 1]} : vector<18x18x4xbf16> to vector<16x16x4xbf16>
    %28 = vector.shape_cast %27 : vector<16x16x4xbf16> to vector<256x4xbf16>
    %29 = vector.extract_strided_slice %3 {offsets = [0, 2, 0], sizes = [16, 16, 4], strides = [1, 1, 1]} : vector<18x18x4xbf16> to vector<16x16x4xbf16>
    %30 = vector.shape_cast %29 : vector<16x16x4xbf16> to vector<256x4xbf16>
    %c0_25 = arith.constant 0 : index
    %c2 = arith.constant 2 : index
    %c0_26 = arith.constant 0 : index
    %c0_27 = arith.constant 0 : index
    %31 = vector.load %arg3[%c0_25, %c2, %c0_26, %c0_27] : memref<3x3x4x4xbf16, #tpu.memory_space<vmem>>, vector<1x1x4x4xbf16>
    %32 = vector.shape_cast %31 : vector<1x1x4x4xbf16> to vector<4x4xbf16>
    %cst_28 = arith.constant dense<0.000000e+00> : vector<256x4xf32>
    %33 = tpu.matmul %28, %32, %cst_28 {dimension_numbers = #tpu.dot_dimension_numbers<[1], [0], [0], [1], [0, 0, 1, 1], [], []>} : vector<256x4xbf16>, vector<4x4xbf16>, vector<256x4xf32> -> vector<256x4xf32>
    %c0_29 = arith.constant 0 : index
    %c2_30 = arith.constant 2 : index
    %c0_31 = arith.constant 0 : index
    %c0_32 = arith.constant 0 : index
    %34 = vector.load %arg4[%c0_29, %c2_30, %c0_31, %c0_32] : memref<3x3x4x4xbf16, #tpu.memory_space<vmem>>, vector<1x1x4x4xbf16>
    %35 = vector.shape_cast %34 : vector<1x1x4x4xbf16> to vector<4x4xbf16>
    %cst_33 = arith.constant dense<0.000000e+00> : vector<256x4xf32>
    %36 = tpu.matmul %30, %35, %cst_33 {dimension_numbers = #tpu.dot_dimension_numbers<[1], [0], [0], [1], [0, 0, 1, 1], [], []>} : vector<256x4xbf16>, vector<4x4xbf16>, vector<256x4xf32> -> vector<256x4xf32>
    %37 = arith.addf %33, %36 : vector<256x4xf32>
    %38 = arith.addf %26, %37 : vector<256x4xf32>
    %39 = vector.extract_strided_slice %1 {offsets = [1, 0, 0], sizes = [16, 16, 4], strides = [1, 1, 1]} : vector<18x18x4xbf16> to vector<16x16x4xbf16>
    %40 = vector.shape_cast %39 : vector<16x16x4xbf16> to vector<256x4xbf16>
    %41 = vector.extract_strided_slice %3 {offsets = [1, 0, 0], sizes = [16, 16, 4], strides = [1, 1, 1]} : vector<18x18x4xbf16> to vector<16x16x4xbf16>
    %42 = vector.shape_cast %41 : vector<16x16x4xbf16> to vector<256x4xbf16>
    %c1_34 = arith.constant 1 : index
    %c0_35 = arith.constant 0 : index
    %c0_36 = arith.constant 0 : index
    %c0_37 = arith.constant 0 : index
    %43 = vector.load %arg3[%c1_34, %c0_35, %c0_36, %c0_37] : memref<3x3x4x4xbf16, #tpu.memory_space<vmem>>, vector<1x1x4x4xbf16>
    %44 = vector.shape_cast %43 : vector<1x1x4x4xbf16> to vector<4x4xbf16>
    %cst_38 = arith.constant dense<0.000000e+00> : vector<256x4xf32>
    %45 = tpu.matmul %40, %44, %cst_38 {dimension_numbers = #tpu.dot_dimension_numbers<[1], [0], [0], [1], [0, 0, 1, 1], [], []>} : vector<256x4xbf16>, vector<4x4xbf16>, vector<256x4xf32> -> vector<256x4xf32>
    %c1_39 = arith.constant 1 : index
    %c0_40 = arith.constant 0 : index
    %c0_41 = arith.constant 0 : index
    %c0_42 = arith.constant 0 : index
    %46 = vector.load %arg4[%c1_39, %c0_40, %c0_41, %c0_42] : memref<3x3x4x4xbf16, #tpu.memory_space<vmem>>, vector<1x1x4x4xbf16>
    %47 = vector.shape_cast %46 : vector<1x1x4x4xbf16> to vector<4x4xbf16>
    %cst_43 = arith.constant dense<0.000000e+00> : vector<256x4xf32>
    %48 = tpu.matmul %42, %47, %cst_43 {dimension_numbers = #tpu.dot_dimension_numbers<[1], [0], [0], [1], [0, 0, 1, 1], [], []>} : vector<256x4xbf16>, vector<4x4xbf16>, vector<256x4xf32> -> vector<256x4xf32>
    %49 = arith.addf %45, %48 : vector<256x4xf32>
    %50 = arith.addf %38, %49 : vector<256x4xf32>
    %51 = vector.extract_strided_slice %1 {offsets = [1, 1, 0], sizes = [16, 16, 4], strides = [1, 1, 1]} : vector<18x18x4xbf16> to vector<16x16x4xbf16>
    %52 = vector.shape_cast %51 : vector<16x16x4xbf16> to vector<256x4xbf16>
    %53 = vector.extract_strided_slice %3 {offsets = [1, 1, 0], sizes = [16, 16, 4], strides = [1, 1, 1]} : vector<18x18x4xbf16> to vector<16x16x4xbf16>
    %54 = vector.shape_cast %53 : vector<16x16x4xbf16> to vector<256x4xbf16>
    %c1_44 = arith.constant 1 : index
    %c1_45 = arith.constant 1 : index
    %c0_46 = arith.constant 0 : index
    %c0_47 = arith.constant 0 : index
    %55 = vector.load %arg3[%c1_44, %c1_45, %c0_46, %c0_47] : memref<3x3x4x4xbf16, #tpu.memory_space<vmem>>, vector<1x1x4x4xbf16>
    %56 = vector.shape_cast %55 : vector<1x1x4x4xbf16> to vector<4x4xbf16>
    %cst_48 = arith.constant dense<0.000000e+00> : vector<256x4xf32>
    %57 = tpu.matmul %52, %56, %cst_48 {dimension_numbers = #tpu.dot_dimension_numbers<[1], [0], [0], [1], [0, 0, 1, 1], [], []>} : vector<256x4xbf16>, vector<4x4xbf16>, vector<256x4xf32> -> vector<256x4xf32>
    %c1_49 = arith.constant 1 : index
    %c1_50 = arith.constant 1 : index
    %c0_51 = arith.constant 0 : index
    %c0_52 = arith.constant 0 : index
    %58 = vector.load %arg4[%c1_49, %c1_50, %c0_51, %c0_52] : memref<3x3x4x4xbf16, #tpu.memory_space<vmem>>, vector<1x1x4x4xbf16>
    %59 = vector.shape_cast %58 : vector<1x1x4x4xbf16> to vector<4x4xbf16>
    %cst_53 = arith.constant dense<0.000000e+00> : vector<256x4xf32>
    %60 = tpu.matmul %54, %59, %cst_53 {dimension_numbers = #tpu.dot_dimension_numbers<[1], [0], [0], [1], [0, 0, 1, 1], [], []>} : vector<256x4xbf16>, vector<4x4xbf16>, vector<256x4xf32> -> vector<256x4xf32>
    %61 = arith.addf %57, %60 : vector<256x4xf32>
    %62 = arith.addf %50, %61 : vector<256x4xf32>
    %63 = vector.extract_strided_slice %1 {offsets = [1, 2, 0], sizes = [16, 16, 4], strides = [1, 1, 1]} : vector<18x18x4xbf16> to vector<16x16x4xbf16>
    %64 = vector.shape_cast %63 : vector<16x16x4xbf16> to vector<256x4xbf16>
    %65 = vector.extract_strided_slice %3 {offsets = [1, 2, 0], sizes = [16, 16, 4], strides = [1, 1, 1]} : vector<18x18x4xbf16> to vector<16x16x4xbf16>
    %66 = vector.shape_cast %65 : vector<16x16x4xbf16> to vector<256x4xbf16>
    %c1_54 = arith.constant 1 : index
    %c2_55 = arith.constant 2 : index
    %c0_56 = arith.constant 0 : index
    %c0_57 = arith.constant 0 : index
    %67 = vector.load %arg3[%c1_54, %c2_55, %c0_56, %c0_57] : memref<3x3x4x4xbf16, #tpu.memory_space<vmem>>, vector<1x1x4x4xbf16>
    %68 = vector.shape_cast %67 : vector<1x1x4x4xbf16> to vector<4x4xbf16>
    %cst_58 = arith.constant dense<0.000000e+00> : vector<256x4xf32>
    %69 = tpu.matmul %64, %68, %cst_58 {dimension_numbers = #tpu.dot_dimension_numbers<[1], [0], [0], [1], [0, 0, 1, 1], [], []>} : vector<256x4xbf16>, vector<4x4xbf16>, vector<256x4xf32> -> vector<256x4xf32>
    %c1_59 = arith.constant 1 : index
    %c2_60 = arith.constant 2 : index
    %c0_61 = arith.constant 0 : index
    %c0_62 = arith.constant 0 : index
    %70 = vector.load %arg4[%c1_59, %c2_60, %c0_61, %c0_62] : memref<3x3x4x4xbf16, #tpu.memory_space<vmem>>, vector<1x1x4x4xbf16>
    %71 = vector.shape_cast %70 : vector<1x1x4x4xbf16> to vector<4x4xbf16>
    %cst_63 = arith.constant dense<0.000000e+00> : vector<256x4xf32>
    %72 = tpu.matmul %66, %71, %cst_63 {dimension_numbers = #tpu.dot_dimension_numbers<[1], [0], [0], [1], [0, 0, 1, 1], [], []>} : vector<256x4xbf16>, vector<4x4xbf16>, vector<256x4xf32> -> vector<256x4xf32>
    %73 = arith.addf %69, %72 : vector<256x4xf32>
    %74 = arith.addf %62, %73 : vector<256x4xf32>
    %75 = vector.extract_strided_slice %1 {offsets = [2, 0, 0], sizes = [16, 16, 4], strides = [1, 1, 1]} : vector<18x18x4xbf16> to vector<16x16x4xbf16>
    %76 = vector.shape_cast %75 : vector<16x16x4xbf16> to vector<256x4xbf16>
    %77 = vector.extract_strided_slice %3 {offsets = [2, 0, 0], sizes = [16, 16, 4], strides = [1, 1, 1]} : vector<18x18x4xbf16> to vector<16x16x4xbf16>
    %78 = vector.shape_cast %77 : vector<16x16x4xbf16> to vector<256x4xbf16>
    %c2_64 = arith.constant 2 : index
    %c0_65 = arith.constant 0 : index
    %c0_66 = arith.constant 0 : index
    %c0_67 = arith.constant 0 : index
    %79 = vector.load %arg3[%c2_64, %c0_65, %c0_66, %c0_67] : memref<3x3x4x4xbf16, #tpu.memory_space<vmem>>, vector<1x1x4x4xbf16>
    %80 = vector.shape_cast %79 : vector<1x1x4x4xbf16> to vector<4x4xbf16>
    %cst_68 = arith.constant dense<0.000000e+00> : vector<256x4xf32>
    %81 = tpu.matmul %76, %80, %cst_68 {dimension_numbers = #tpu.dot_dimension_numbers<[1], [0], [0], [1], [0, 0, 1, 1], [], []>} : vector<256x4xbf16>, vector<4x4xbf16>, vector<256x4xf32> -> vector<256x4xf32>
    %c2_69 = arith.constant 2 : index
    %c0_70 = arith.constant 0 : index
    %c0_71 = arith.constant 0 : index
    %c0_72 = arith.constant 0 : index
    %82 = vector.load %arg4[%c2_69, %c0_70, %c0_71, %c0_72] : memref<3x3x4x4xbf16, #tpu.memory_space<vmem>>, vector<1x1x4x4xbf16>
    %83 = vector.shape_cast %82 : vector<1x1x4x4xbf16> to vector<4x4xbf16>
    %cst_73 = arith.constant dense<0.000000e+00> : vector<256x4xf32>
    %84 = tpu.matmul %78, %83, %cst_73 {dimension_numbers = #tpu.dot_dimension_numbers<[1], [0], [0], [1], [0, 0, 1, 1], [], []>} : vector<256x4xbf16>, vector<4x4xbf16>, vector<256x4xf32> -> vector<256x4xf32>
    %85 = arith.addf %81, %84 : vector<256x4xf32>
    %86 = arith.addf %74, %85 : vector<256x4xf32>
    %87 = vector.extract_strided_slice %1 {offsets = [2, 1, 0], sizes = [16, 16, 4], strides = [1, 1, 1]} : vector<18x18x4xbf16> to vector<16x16x4xbf16>
    %88 = vector.shape_cast %87 : vector<16x16x4xbf16> to vector<256x4xbf16>
    %89 = vector.extract_strided_slice %3 {offsets = [2, 1, 0], sizes = [16, 16, 4], strides = [1, 1, 1]} : vector<18x18x4xbf16> to vector<16x16x4xbf16>
    %90 = vector.shape_cast %89 : vector<16x16x4xbf16> to vector<256x4xbf16>
    %c2_74 = arith.constant 2 : index
    %c1_75 = arith.constant 1 : index
    %c0_76 = arith.constant 0 : index
    %c0_77 = arith.constant 0 : index
    %91 = vector.load %arg3[%c2_74, %c1_75, %c0_76, %c0_77] : memref<3x3x4x4xbf16, #tpu.memory_space<vmem>>, vector<1x1x4x4xbf16>
    %92 = vector.shape_cast %91 : vector<1x1x4x4xbf16> to vector<4x4xbf16>
    %cst_78 = arith.constant dense<0.000000e+00> : vector<256x4xf32>
    %93 = tpu.matmul %88, %92, %cst_78 {dimension_numbers = #tpu.dot_dimension_numbers<[1], [0], [0], [1], [0, 0, 1, 1], [], []>} : vector<256x4xbf16>, vector<4x4xbf16>, vector<256x4xf32> -> vector<256x4xf32>
    %c2_79 = arith.constant 2 : index
    %c1_80 = arith.constant 1 : index
    %c0_81 = arith.constant 0 : index
    %c0_82 = arith.constant 0 : index
    %94 = vector.load %arg4[%c2_79, %c1_80, %c0_81, %c0_82] : memref<3x3x4x4xbf16, #tpu.memory_space<vmem>>, vector<1x1x4x4xbf16>
    %95 = vector.shape_cast %94 : vector<1x1x4x4xbf16> to vector<4x4xbf16>
    %cst_83 = arith.constant dense<0.000000e+00> : vector<256x4xf32>
    %96 = tpu.matmul %90, %95, %cst_83 {dimension_numbers = #tpu.dot_dimension_numbers<[1], [0], [0], [1], [0, 0, 1, 1], [], []>} : vector<256x4xbf16>, vector<4x4xbf16>, vector<256x4xf32> -> vector<256x4xf32>
    %97 = arith.addf %93, %96 : vector<256x4xf32>
    %98 = arith.addf %86, %97 : vector<256x4xf32>
    %99 = vector.extract_strided_slice %1 {offsets = [2, 2, 0], sizes = [16, 16, 4], strides = [1, 1, 1]} : vector<18x18x4xbf16> to vector<16x16x4xbf16>
    %100 = vector.shape_cast %99 : vector<16x16x4xbf16> to vector<256x4xbf16>
    %101 = vector.extract_strided_slice %3 {offsets = [2, 2, 0], sizes = [16, 16, 4], strides = [1, 1, 1]} : vector<18x18x4xbf16> to vector<16x16x4xbf16>
    %102 = vector.shape_cast %101 : vector<16x16x4xbf16> to vector<256x4xbf16>
    %c2_84 = arith.constant 2 : index
    %c2_85 = arith.constant 2 : index
    %c0_86 = arith.constant 0 : index
    %c0_87 = arith.constant 0 : index
    %103 = vector.load %arg3[%c2_84, %c2_85, %c0_86, %c0_87] : memref<3x3x4x4xbf16, #tpu.memory_space<vmem>>, vector<1x1x4x4xbf16>
    %104 = vector.shape_cast %103 : vector<1x1x4x4xbf16> to vector<4x4xbf16>
    %cst_88 = arith.constant dense<0.000000e+00> : vector<256x4xf32>
    %105 = tpu.matmul %100, %104, %cst_88 {dimension_numbers = #tpu.dot_dimension_numbers<[1], [0], [0], [1], [0, 0, 1, 1], [], []>} : vector<256x4xbf16>, vector<4x4xbf16>, vector<256x4xf32> -> vector<256x4xf32>
    %c2_89 = arith.constant 2 : index
    %c2_90 = arith.constant 2 : index
    %c0_91 = arith.constant 0 : index
    %c0_92 = arith.constant 0 : index
    %106 = vector.load %arg4[%c2_89, %c2_90, %c0_91, %c0_92] : memref<3x3x4x4xbf16, #tpu.memory_space<vmem>>, vector<1x1x4x4xbf16>
    %107 = vector.shape_cast %106 : vector<1x1x4x4xbf16> to vector<4x4xbf16>
    %cst_93 = arith.constant dense<0.000000e+00> : vector<256x4xf32>
    %108 = tpu.matmul %102, %107, %cst_93 {dimension_numbers = #tpu.dot_dimension_numbers<[1], [0], [0], [1], [0, 0, 1, 1], [], []>} : vector<256x4xbf16>, vector<4x4xbf16>, vector<256x4xf32> -> vector<256x4xf32>
    %109 = arith.addf %105, %108 : vector<256x4xf32>
    %110 = arith.addf %98, %109 : vector<256x4xf32>
    %111 = vector.shape_cast %110 : vector<256x4xf32> to vector<1x16x16x4xf32>
    %112 = arith.truncf %111 : vector<1x16x16x4xf32> to vector<1x16x16x4xbf16>
    %c0_94 = arith.constant 0 : index
    %c0_95 = arith.constant 0 : index
    %c0_96 = arith.constant 0 : index
    %c0_97 = arith.constant 0 : index
    %113 = vector.load %arg5[%c0_94, %c0_95, %c0_96, %c0_97] : memref<1x16x16x4xbf16, #tpu.memory_space<vmem>>, vector<1x16x16x4xbf16>
    tpu.vector_store %arg5[%c0_94, %c0_95, %c0_96, %c0_97], %112 {strides = array<i32>} : memref<1x16x16x4xbf16, #tpu.memory_space<vmem>>, vector<1x16x16x4xbf16>,
    %cst_98 = arith.constant dense<0.000000e+00> : vector<4xf32>
    %114 = vector.multi_reduction <add>, %110, %cst_98 [0] : vector<256x4xf32> to vector<4xf32>
    %115 = vector.shape_cast %114 : vector<4xf32> to vector<1x1x4xf32>
    %c0_99 = arith.constant 0 : index
    %c0_100 = arith.constant 0 : index
    %c0_101 = arith.constant 0 : index
    %116 = vector.load %arg6[%c0_99, %c0_100, %c0_101] : memref<1x1x4xf32, #tpu.memory_space<vmem>>, vector<1x1x4xf32>
    tpu.vector_store %arg6[%c0_99, %c0_100, %c0_101], %115 {strides = array<i32>} : memref<1x1x4xf32, #tpu.memory_space<vmem>>, vector<1x1x4xf32>,
    %117 = arith.mulf %110, %110 : vector<256x4xf32>
    %cst_102 = arith.constant dense<0.000000e+00> : vector<4xf32>
    %118 = vector.multi_reduction <add>, %117, %cst_102 [0] : vector<256x4xf32> to vector<4xf32>
    %119 = vector.shape_cast %118 : vector<4xf32> to vector<1x1x4xf32>
    %c0_103 = arith.constant 0 : index
    %c0_104 = arith.constant 0 : index
    %c0_105 = arith.constant 0 : index
    %120 = vector.load %arg7[%c0_103, %c0_104, %c0_105] : memref<1x1x4xf32, #tpu.memory_space<vmem>>, vector<1x1x4xf32>
    tpu.vector_store %arg7[%c0_103, %c0_104, %c0_105], %119 {strides = array<i32>} : memref<1x1x4xf32, #tpu.memory_space<vmem>>, vector<1x1x4xf32>,
    return
  }
  func.func @transform_0(%arg0: i32) -> (i32, i32, i32, i32) {
    %c0_i32 = arith.constant 0 : i32
    %c0_i32_0 = arith.constant 0 : i32
    %c0_i32_1 = arith.constant 0 : i32
    %c0_i32_2 = arith.constant 0 : i32
    return %arg0, %c0_i32, %c0_i32_0, %c0_i32_1 : i32, i32, i32, i32
  }
  func.func @transform_1(%arg0: i32) -> (i32, i32, i32, i32) {
    %c0_i32 = arith.constant 0 : i32
    %c0_i32_0 = arith.constant 0 : i32
    %c0_i32_1 = arith.constant 0 : i32
    %c0_i32_2 = arith.constant 0 : i32
    return %arg0, %c0_i32, %c0_i32_0, %c0_i32_1 : i32, i32, i32, i32
  }
  func.func @transform_2(%arg0: i32) -> (i32, i32, i32, i32) {
    %c0_i32 = arith.constant 0 : i32
    %c0_i32_0 = arith.constant 0 : i32
    %c0_i32_1 = arith.constant 0 : i32
    %c0_i32_2 = arith.constant 0 : i32
    %c0_i32_3 = arith.constant 0 : i32
    return %c0_i32, %c0_i32_0, %c0_i32_1, %c0_i32_2 : i32, i32, i32, i32
  }
  func.func @transform_3(%arg0: i32) -> (i32, i32, i32, i32) {
    %c0_i32 = arith.constant 0 : i32
    %c0_i32_0 = arith.constant 0 : i32
    %c0_i32_1 = arith.constant 0 : i32
    %c0_i32_2 = arith.constant 0 : i32
    %c0_i32_3 = arith.constant 0 : i32
    return %c0_i32, %c0_i32_0, %c0_i32_1, %c0_i32_2 : i32, i32, i32, i32
  }
  func.func @transform_4(%arg0: i32) -> (i32, i32, i32, i32) {
    %c0_i32 = arith.constant 0 : i32
    %c0_i32_0 = arith.constant 0 : i32
    %c0_i32_1 = arith.constant 0 : i32
    %c0_i32_2 = arith.constant 0 : i32
    return %arg0, %c0_i32, %c0_i32_0, %c0_i32_1 : i32, i32, i32, i32
  }
  func.func @transform_5(%arg0: i32) -> (i32, i32, i32) {
    %c0_i32 = arith.constant 0 : i32
    %c0_i32_0 = arith.constant 0 : i32
    %c0_i32_1 = arith.constant 0 : i32
    return %arg0, %c0_i32, %c0_i32_0 : i32, i32, i32
  }
  func.func @transform_6(%arg0: i32) -> (i32, i32, i32) {
    %c0_i32 = arith.constant 0 : i32
    %c0_i32_0 = arith.constant 0 : i32
    %c0_i32_1 = arith.constant 0 : i32
    return %arg0, %c0_i32, %c0_i32_0 : i32, i32, i32
  }
}

module attributes {stable_mosaic.version = 11 : i64} {
  func.func @bnrelu_conv2_stats_kernel(%arg0: i32, %arg1: memref<1x16x16x4xbf16, #tpu.memory_space<vmem>>, %arg2: memref<1x4xf32, #tpu.memory_space<vmem>>, %arg3: memref<1x4xf32, #tpu.memory_space<vmem>>, %arg4: memref<3x3x4x4xbf16, #tpu.memory_space<vmem>>, %arg5: memref<1x16x16x4xbf16, #tpu.memory_space<vmem>>, %arg6: memref<1x1x4xf32, #tpu.memory_space<vmem>>, %arg7: memref<1x1x4xf32, #tpu.memory_space<vmem>>) attributes {dimension_semantics = [#tpu.dimension_semantics<parallel>], iteration_bounds = array<i64: 2>, scalar_prefetch = 0 : i64, scratch_operands = 0 : i64, tpu.core_type = #tpu.core_type<tc>, window_params = [{transform_indices = @transform_0, window_bounds = array<i64: 1, 16, 16, 4>}, {pipeline_mode = #tpu.pipeline_mode<synchronous>, transform_indices = @transform_1, window_bounds = array<i64: 1, 4>}, {pipeline_mode = #tpu.pipeline_mode<synchronous>, transform_indices = @transform_2, window_bounds = array<i64: 1, 4>}, {pipeline_mode = #tpu.pipeline_mode<synchronous>, transform_indices = @transform_3, window_bounds = array<i64: 3, 3, 4, 4>}, {transform_indices = @transform_4, window_bounds = array<i64: 1, 16, 16, 4>}, {transform_indices = @transform_5, window_bounds = array<i64: 1, 1, 4>}, {transform_indices = @transform_6, window_bounds = array<i64: 1, 1, 4>}]} {
    %c0 = arith.constant 0 : index
    %c0_0 = arith.constant 0 : index
    %c0_1 = arith.constant 0 : index
    %c0_2 = arith.constant 0 : index
    %0 = vector.load %arg1[%c0, %c0_0, %c0_1, %c0_2] : memref<1x16x16x4xbf16, #tpu.memory_space<vmem>>, vector<1x16x16x4xbf16>
    %1 = vector.shape_cast %0 : vector<1x16x16x4xbf16> to vector<16x16x4xbf16>
    %2 = arith.extf %1 : vector<16x16x4xbf16> to vector<16x16x4xf32>
    %c0_3 = arith.constant 0 : index
    %c0_4 = arith.constant 0 : index
    %3 = vector.load %arg2[%c0_3, %c0_4] : memref<1x4xf32, #tpu.memory_space<vmem>>, vector<1x4xf32>
    %4 = vector.shape_cast %3 : vector<1x4xf32> to vector<4xf32>
    %5 = vector.shape_cast %4 : vector<4xf32> to vector<1x1x4xf32>
    %6 = vector.broadcast %5 : vector<1x1x4xf32> to vector<16x16x4xf32>
    %7 = arith.mulf %2, %6 : vector<16x16x4xf32>
    %c0_5 = arith.constant 0 : index
    %c0_6 = arith.constant 0 : index
    %8 = vector.load %arg3[%c0_5, %c0_6] : memref<1x4xf32, #tpu.memory_space<vmem>>, vector<1x4xf32>
    %9 = vector.shape_cast %8 : vector<1x4xf32> to vector<4xf32>
    %10 = vector.shape_cast %9 : vector<4xf32> to vector<1x1x4xf32>
    %11 = vector.broadcast %10 : vector<1x1x4xf32> to vector<16x16x4xf32>
    %12 = arith.addf %7, %11 : vector<16x16x4xf32>
    %cst = arith.constant 0.000000e+00 : f32
    %13 = vector.broadcast %cst : f32 to vector<16x16x4xf32>
    %14 = arith.maximumf %12, %13 : vector<16x16x4xf32>
    %15 = arith.truncf %14 : vector<16x16x4xf32> to vector<16x16x4xbf16>
    %cst_7 = arith.constant 0.000000e+00 : bf16
    %16 = vector.broadcast %cst_7 : bf16 to vector<1x16x4xbf16>
    %17 = tpu.concatenate %16, %15, %16 in 0 : vector<1x16x4xbf16>, vector<16x16x4xbf16>, vector<1x16x4xbf16> -> vector<18x16x4xbf16>
    %cst_8 = arith.constant 0.000000e+00 : bf16
    %18 = vector.broadcast %cst_8 : bf16 to vector<18x1x4xbf16>
    %19 = tpu.concatenate %18, %17, %18 in 1 : vector<18x1x4xbf16>, vector<18x16x4xbf16>, vector<18x1x4xbf16> -> vector<18x18x4xbf16>
    %20 = vector.extract_strided_slice %19 {offsets = [0, 0, 0], sizes = [16, 16, 4], strides = [1, 1, 1]} : vector<18x18x4xbf16> to vector<16x16x4xbf16>
    %21 = vector.shape_cast %20 : vector<16x16x4xbf16> to vector<256x4xbf16>
    %c0_9 = arith.constant 0 : index
    %c0_10 = arith.constant 0 : index
    %c0_11 = arith.constant 0 : index
    %c0_12 = arith.constant 0 : index
    %22 = vector.load %arg4[%c0_9, %c0_10, %c0_11, %c0_12] : memref<3x3x4x4xbf16, #tpu.memory_space<vmem>>, vector<1x1x4x4xbf16>
    %23 = vector.shape_cast %22 : vector<1x1x4x4xbf16> to vector<4x4xbf16>
    %cst_13 = arith.constant dense<0.000000e+00> : vector<256x4xf32>
    %24 = tpu.matmul %21, %23, %cst_13 {dimension_numbers = #tpu.dot_dimension_numbers<[1], [0], [0], [1], [0, 0, 1, 1], [], []>} : vector<256x4xbf16>, vector<4x4xbf16>, vector<256x4xf32> -> vector<256x4xf32>
    %25 = vector.extract_strided_slice %19 {offsets = [0, 1, 0], sizes = [16, 16, 4], strides = [1, 1, 1]} : vector<18x18x4xbf16> to vector<16x16x4xbf16>
    %26 = vector.shape_cast %25 : vector<16x16x4xbf16> to vector<256x4xbf16>
    %c0_14 = arith.constant 0 : index
    %c1 = arith.constant 1 : index
    %c0_15 = arith.constant 0 : index
    %c0_16 = arith.constant 0 : index
    %27 = vector.load %arg4[%c0_14, %c1, %c0_15, %c0_16] : memref<3x3x4x4xbf16, #tpu.memory_space<vmem>>, vector<1x1x4x4xbf16>
    %28 = vector.shape_cast %27 : vector<1x1x4x4xbf16> to vector<4x4xbf16>
    %cst_17 = arith.constant dense<0.000000e+00> : vector<256x4xf32>
    %29 = tpu.matmul %26, %28, %cst_17 {dimension_numbers = #tpu.dot_dimension_numbers<[1], [0], [0], [1], [0, 0, 1, 1], [], []>} : vector<256x4xbf16>, vector<4x4xbf16>, vector<256x4xf32> -> vector<256x4xf32>
    %30 = arith.addf %24, %29 : vector<256x4xf32>
    %31 = vector.extract_strided_slice %19 {offsets = [0, 2, 0], sizes = [16, 16, 4], strides = [1, 1, 1]} : vector<18x18x4xbf16> to vector<16x16x4xbf16>
    %32 = vector.shape_cast %31 : vector<16x16x4xbf16> to vector<256x4xbf16>
    %c0_18 = arith.constant 0 : index
    %c2 = arith.constant 2 : index
    %c0_19 = arith.constant 0 : index
    %c0_20 = arith.constant 0 : index
    %33 = vector.load %arg4[%c0_18, %c2, %c0_19, %c0_20] : memref<3x3x4x4xbf16, #tpu.memory_space<vmem>>, vector<1x1x4x4xbf16>
    %34 = vector.shape_cast %33 : vector<1x1x4x4xbf16> to vector<4x4xbf16>
    %cst_21 = arith.constant dense<0.000000e+00> : vector<256x4xf32>
    %35 = tpu.matmul %32, %34, %cst_21 {dimension_numbers = #tpu.dot_dimension_numbers<[1], [0], [0], [1], [0, 0, 1, 1], [], []>} : vector<256x4xbf16>, vector<4x4xbf16>, vector<256x4xf32> -> vector<256x4xf32>
    %36 = arith.addf %30, %35 : vector<256x4xf32>
    %37 = vector.extract_strided_slice %19 {offsets = [1, 0, 0], sizes = [16, 16, 4], strides = [1, 1, 1]} : vector<18x18x4xbf16> to vector<16x16x4xbf16>
    %38 = vector.shape_cast %37 : vector<16x16x4xbf16> to vector<256x4xbf16>
    %c1_22 = arith.constant 1 : index
    %c0_23 = arith.constant 0 : index
    %c0_24 = arith.constant 0 : index
    %c0_25 = arith.constant 0 : index
    %39 = vector.load %arg4[%c1_22, %c0_23, %c0_24, %c0_25] : memref<3x3x4x4xbf16, #tpu.memory_space<vmem>>, vector<1x1x4x4xbf16>
    %40 = vector.shape_cast %39 : vector<1x1x4x4xbf16> to vector<4x4xbf16>
    %cst_26 = arith.constant dense<0.000000e+00> : vector<256x4xf32>
    %41 = tpu.matmul %38, %40, %cst_26 {dimension_numbers = #tpu.dot_dimension_numbers<[1], [0], [0], [1], [0, 0, 1, 1], [], []>} : vector<256x4xbf16>, vector<4x4xbf16>, vector<256x4xf32> -> vector<256x4xf32>
    %42 = arith.addf %36, %41 : vector<256x4xf32>
    %43 = vector.extract_strided_slice %19 {offsets = [1, 1, 0], sizes = [16, 16, 4], strides = [1, 1, 1]} : vector<18x18x4xbf16> to vector<16x16x4xbf16>
    %44 = vector.shape_cast %43 : vector<16x16x4xbf16> to vector<256x4xbf16>
    %c1_27 = arith.constant 1 : index
    %c1_28 = arith.constant 1 : index
    %c0_29 = arith.constant 0 : index
    %c0_30 = arith.constant 0 : index
    %45 = vector.load %arg4[%c1_27, %c1_28, %c0_29, %c0_30] : memref<3x3x4x4xbf16, #tpu.memory_space<vmem>>, vector<1x1x4x4xbf16>
    %46 = vector.shape_cast %45 : vector<1x1x4x4xbf16> to vector<4x4xbf16>
    %cst_31 = arith.constant dense<0.000000e+00> : vector<256x4xf32>
    %47 = tpu.matmul %44, %46, %cst_31 {dimension_numbers = #tpu.dot_dimension_numbers<[1], [0], [0], [1], [0, 0, 1, 1], [], []>} : vector<256x4xbf16>, vector<4x4xbf16>, vector<256x4xf32> -> vector<256x4xf32>
    %48 = arith.addf %42, %47 : vector<256x4xf32>
    %49 = vector.extract_strided_slice %19 {offsets = [1, 2, 0], sizes = [16, 16, 4], strides = [1, 1, 1]} : vector<18x18x4xbf16> to vector<16x16x4xbf16>
    %50 = vector.shape_cast %49 : vector<16x16x4xbf16> to vector<256x4xbf16>
    %c1_32 = arith.constant 1 : index
    %c2_33 = arith.constant 2 : index
    %c0_34 = arith.constant 0 : index
    %c0_35 = arith.constant 0 : index
    %51 = vector.load %arg4[%c1_32, %c2_33, %c0_34, %c0_35] : memref<3x3x4x4xbf16, #tpu.memory_space<vmem>>, vector<1x1x4x4xbf16>
    %52 = vector.shape_cast %51 : vector<1x1x4x4xbf16> to vector<4x4xbf16>
    %cst_36 = arith.constant dense<0.000000e+00> : vector<256x4xf32>
    %53 = tpu.matmul %50, %52, %cst_36 {dimension_numbers = #tpu.dot_dimension_numbers<[1], [0], [0], [1], [0, 0, 1, 1], [], []>} : vector<256x4xbf16>, vector<4x4xbf16>, vector<256x4xf32> -> vector<256x4xf32>
    %54 = arith.addf %48, %53 : vector<256x4xf32>
    %55 = vector.extract_strided_slice %19 {offsets = [2, 0, 0], sizes = [16, 16, 4], strides = [1, 1, 1]} : vector<18x18x4xbf16> to vector<16x16x4xbf16>
    %56 = vector.shape_cast %55 : vector<16x16x4xbf16> to vector<256x4xbf16>
    %c2_37 = arith.constant 2 : index
    %c0_38 = arith.constant 0 : index
    %c0_39 = arith.constant 0 : index
    %c0_40 = arith.constant 0 : index
    %57 = vector.load %arg4[%c2_37, %c0_38, %c0_39, %c0_40] : memref<3x3x4x4xbf16, #tpu.memory_space<vmem>>, vector<1x1x4x4xbf16>
    %58 = vector.shape_cast %57 : vector<1x1x4x4xbf16> to vector<4x4xbf16>
    %cst_41 = arith.constant dense<0.000000e+00> : vector<256x4xf32>
    %59 = tpu.matmul %56, %58, %cst_41 {dimension_numbers = #tpu.dot_dimension_numbers<[1], [0], [0], [1], [0, 0, 1, 1], [], []>} : vector<256x4xbf16>, vector<4x4xbf16>, vector<256x4xf32> -> vector<256x4xf32>
    %60 = arith.addf %54, %59 : vector<256x4xf32>
    %61 = vector.extract_strided_slice %19 {offsets = [2, 1, 0], sizes = [16, 16, 4], strides = [1, 1, 1]} : vector<18x18x4xbf16> to vector<16x16x4xbf16>
    %62 = vector.shape_cast %61 : vector<16x16x4xbf16> to vector<256x4xbf16>
    %c2_42 = arith.constant 2 : index
    %c1_43 = arith.constant 1 : index
    %c0_44 = arith.constant 0 : index
    %c0_45 = arith.constant 0 : index
    %63 = vector.load %arg4[%c2_42, %c1_43, %c0_44, %c0_45] : memref<3x3x4x4xbf16, #tpu.memory_space<vmem>>, vector<1x1x4x4xbf16>
    %64 = vector.shape_cast %63 : vector<1x1x4x4xbf16> to vector<4x4xbf16>
    %cst_46 = arith.constant dense<0.000000e+00> : vector<256x4xf32>
    %65 = tpu.matmul %62, %64, %cst_46 {dimension_numbers = #tpu.dot_dimension_numbers<[1], [0], [0], [1], [0, 0, 1, 1], [], []>} : vector<256x4xbf16>, vector<4x4xbf16>, vector<256x4xf32> -> vector<256x4xf32>
    %66 = arith.addf %60, %65 : vector<256x4xf32>
    %67 = vector.extract_strided_slice %19 {offsets = [2, 2, 0], sizes = [16, 16, 4], strides = [1, 1, 1]} : vector<18x18x4xbf16> to vector<16x16x4xbf16>
    %68 = vector.shape_cast %67 : vector<16x16x4xbf16> to vector<256x4xbf16>
    %c2_47 = arith.constant 2 : index
    %c2_48 = arith.constant 2 : index
    %c0_49 = arith.constant 0 : index
    %c0_50 = arith.constant 0 : index
    %69 = vector.load %arg4[%c2_47, %c2_48, %c0_49, %c0_50] : memref<3x3x4x4xbf16, #tpu.memory_space<vmem>>, vector<1x1x4x4xbf16>
    %70 = vector.shape_cast %69 : vector<1x1x4x4xbf16> to vector<4x4xbf16>
    %cst_51 = arith.constant dense<0.000000e+00> : vector<256x4xf32>
    %71 = tpu.matmul %68, %70, %cst_51 {dimension_numbers = #tpu.dot_dimension_numbers<[1], [0], [0], [1], [0, 0, 1, 1], [], []>} : vector<256x4xbf16>, vector<4x4xbf16>, vector<256x4xf32> -> vector<256x4xf32>
    %72 = arith.addf %66, %71 : vector<256x4xf32>
    %73 = vector.shape_cast %72 : vector<256x4xf32> to vector<1x16x16x4xf32>
    %74 = arith.truncf %73 : vector<1x16x16x4xf32> to vector<1x16x16x4xbf16>
    %c0_52 = arith.constant 0 : index
    %c0_53 = arith.constant 0 : index
    %c0_54 = arith.constant 0 : index
    %c0_55 = arith.constant 0 : index
    %75 = vector.load %arg5[%c0_52, %c0_53, %c0_54, %c0_55] : memref<1x16x16x4xbf16, #tpu.memory_space<vmem>>, vector<1x16x16x4xbf16>
    tpu.vector_store %arg5[%c0_52, %c0_53, %c0_54, %c0_55], %74 {strides = array<i32>} : memref<1x16x16x4xbf16, #tpu.memory_space<vmem>>, vector<1x16x16x4xbf16>,
    %cst_56 = arith.constant dense<0.000000e+00> : vector<4xf32>
    %76 = vector.multi_reduction <add>, %72, %cst_56 [0] : vector<256x4xf32> to vector<4xf32>
    %77 = vector.shape_cast %76 : vector<4xf32> to vector<1x1x4xf32>
    %c0_57 = arith.constant 0 : index
    %c0_58 = arith.constant 0 : index
    %c0_59 = arith.constant 0 : index
    %78 = vector.load %arg6[%c0_57, %c0_58, %c0_59] : memref<1x1x4xf32, #tpu.memory_space<vmem>>, vector<1x1x4xf32>
    tpu.vector_store %arg6[%c0_57, %c0_58, %c0_59], %77 {strides = array<i32>} : memref<1x1x4xf32, #tpu.memory_space<vmem>>, vector<1x1x4xf32>,
    %79 = arith.mulf %72, %72 : vector<256x4xf32>
    %cst_60 = arith.constant dense<0.000000e+00> : vector<4xf32>
    %80 = vector.multi_reduction <add>, %79, %cst_60 [0] : vector<256x4xf32> to vector<4xf32>
    %81 = vector.shape_cast %80 : vector<4xf32> to vector<1x1x4xf32>
    %c0_61 = arith.constant 0 : index
    %c0_62 = arith.constant 0 : index
    %c0_63 = arith.constant 0 : index
    %82 = vector.load %arg7[%c0_61, %c0_62, %c0_63] : memref<1x1x4xf32, #tpu.memory_space<vmem>>, vector<1x1x4xf32>
    tpu.vector_store %arg7[%c0_61, %c0_62, %c0_63], %81 {strides = array<i32>} : memref<1x1x4xf32, #tpu.memory_space<vmem>>, vector<1x1x4xf32>,
    return
  }
  func.func @transform_0(%arg0: i32) -> (i32, i32, i32, i32) {
    %c0_i32 = arith.constant 0 : i32
    %c0_i32_0 = arith.constant 0 : i32
    %c0_i32_1 = arith.constant 0 : i32
    %c0_i32_2 = arith.constant 0 : i32
    return %arg0, %c0_i32, %c0_i32_0, %c0_i32_1 : i32, i32, i32, i32
  }
  func.func @transform_1(%arg0: i32) -> (i32, i32) {
    %c0_i32 = arith.constant 0 : i32
    %c0_i32_0 = arith.constant 0 : i32
    %c0_i32_1 = arith.constant 0 : i32
    return %c0_i32, %c0_i32_0 : i32, i32
  }
  func.func @transform_2(%arg0: i32) -> (i32, i32) {
    %c0_i32 = arith.constant 0 : i32
    %c0_i32_0 = arith.constant 0 : i32
    %c0_i32_1 = arith.constant 0 : i32
    return %c0_i32, %c0_i32_0 : i32, i32
  }
  func.func @transform_3(%arg0: i32) -> (i32, i32, i32, i32) {
    %c0_i32 = arith.constant 0 : i32
    %c0_i32_0 = arith.constant 0 : i32
    %c0_i32_1 = arith.constant 0 : i32
    %c0_i32_2 = arith.constant 0 : i32
    %c0_i32_3 = arith.constant 0 : i32
    return %c0_i32, %c0_i32_0, %c0_i32_1, %c0_i32_2 : i32, i32, i32, i32
  }
  func.func @transform_4(%arg0: i32) -> (i32, i32, i32, i32) {
    %c0_i32 = arith.constant 0 : i32
    %c0_i32_0 = arith.constant 0 : i32
    %c0_i32_1 = arith.constant 0 : i32
    %c0_i32_2 = arith.constant 0 : i32
    return %arg0, %c0_i32, %c0_i32_0, %c0_i32_1 : i32, i32, i32, i32
  }
  func.func @transform_5(%arg0: i32) -> (i32, i32, i32) {
    %c0_i32 = arith.constant 0 : i32
    %c0_i32_0 = arith.constant 0 : i32
    %c0_i32_1 = arith.constant 0 : i32
    return %arg0, %c0_i32, %c0_i32_0 : i32, i32, i32
  }
  func.func @transform_6(%arg0: i32) -> (i32, i32, i32) {
    %c0_i32 = arith.constant 0 : i32
    %c0_i32_0 = arith.constant 0 : i32
    %c0_i32_1 = arith.constant 0 : i32
    return %arg0, %c0_i32, %c0_i32_0 : i32, i32, i32
  }
}

module attributes {stable_mosaic.version = 11 : i64} {
  func.func @bn_relu_flat_kernel(%arg0: i32, %arg1: memref<32x64xbf16, #tpu.memory_space<vmem>>, %arg2: memref<1x64xf32, #tpu.memory_space<vmem>>, %arg3: memref<1x64xf32, #tpu.memory_space<vmem>>, %arg4: memref<32x64xf32, #tpu.memory_space<vmem>>) attributes {dimension_semantics = [#tpu.dimension_semantics<parallel>], iteration_bounds = array<i64: 1>, scalar_prefetch = 0 : i64, scratch_operands = 0 : i64, tpu.core_type = #tpu.core_type<tc>, window_params = [{transform_indices = @transform_0, window_bounds = array<i64: 32, 64>}, {pipeline_mode = #tpu.pipeline_mode<synchronous>, transform_indices = @transform_1, window_bounds = array<i64: 1, 64>}, {pipeline_mode = #tpu.pipeline_mode<synchronous>, transform_indices = @transform_2, window_bounds = array<i64: 1, 64>}, {transform_indices = @transform_3, window_bounds = array<i64: 32, 64>}]} {
    %c0 = arith.constant 0 : index
    %c0_0 = arith.constant 0 : index
    %0 = vector.load %arg1[%c0, %c0_0] : memref<32x64xbf16, #tpu.memory_space<vmem>>, vector<32x64xbf16>
    %1 = arith.extf %0 : vector<32x64xbf16> to vector<32x64xf32>
    %c0_1 = arith.constant 0 : index
    %c0_2 = arith.constant 0 : index
    %2 = vector.load %arg2[%c0_1, %c0_2] : memref<1x64xf32, #tpu.memory_space<vmem>>, vector<1x64xf32>
    %3 = vector.broadcast %2 : vector<1x64xf32> to vector<32x64xf32>
    %4 = arith.mulf %1, %3 : vector<32x64xf32>
    %c0_3 = arith.constant 0 : index
    %c0_4 = arith.constant 0 : index
    %5 = vector.load %arg3[%c0_3, %c0_4] : memref<1x64xf32, #tpu.memory_space<vmem>>, vector<1x64xf32>
    %6 = vector.broadcast %5 : vector<1x64xf32> to vector<32x64xf32>
    %7 = arith.addf %4, %6 : vector<32x64xf32>
    %cst = arith.constant 0.000000e+00 : f32
    %8 = vector.broadcast %cst : f32 to vector<32x64xf32>
    %9 = arith.maximumf %7, %8 : vector<32x64xf32>
    %c0_5 = arith.constant 0 : index
    %c0_6 = arith.constant 0 : index
    %10 = vector.load %arg4[%c0_5, %c0_6] : memref<32x64xf32, #tpu.memory_space<vmem>>, vector<32x64xf32>
    tpu.vector_store %arg4[%c0_5, %c0_6], %9 {strides = array<i32>} : memref<32x64xf32, #tpu.memory_space<vmem>>, vector<32x64xf32>,
    return
  }
  func.func @transform_0(%arg0: i32) -> (i32, i32) {
    %c0_i32 = arith.constant 0 : i32
    %c0_i32_0 = arith.constant 0 : i32
    return %arg0, %c0_i32 : i32, i32
  }
  func.func @transform_1(%arg0: i32) -> (i32, i32) {
    %c0_i32 = arith.constant 0 : i32
    %c0_i32_0 = arith.constant 0 : i32
    %c0_i32_1 = arith.constant 0 : i32
    return %c0_i32, %c0_i32_0 : i32, i32
  }
  func.func @transform_2(%arg0: i32) -> (i32, i32) {
    %c0_i32 = arith.constant 0 : i32
    %c0_i32_0 = arith.constant 0 : i32
    %c0_i32_1 = arith.constant 0 : i32
    return %c0_i32, %c0_i32_0 : i32, i32
  }
  func.func @transform_3(%arg0: i32) -> (i32, i32) {
    %c0_i32 = arith.constant 0 : i32
    %c0_i32_0 = arith.constant 0 : i32
    return %arg0, %c0_i32 : i32, i32
  }
}

</mosaic_0001>

<llo_original>
// kernel: upblock_forward.4
$region0: #{upblock_forward.4}
  #allocation0 [shape = 'u32[]', space=smem, size = 0x4, offset = 0x4, fixed_abs, tag = 'smem constant byte address 0x4 - core index']
  #allocation1 [shape = 'u32[144,128]{1,0:T(1,128)}', space=vmem, size = 0x12000, scoped, tag = 'internal scratch']
  %s0 = inlined_call_operand.vmem [shape: bf16[2,8,8,8], index: 0, kind: input, shape index: {}]
  %s1 = inlined_call_operand.vmem [shape: bf16[2,8,8], index: 1, kind: input, shape index: {}]
  %s2 = inlined_call_operand.vmem [shape: bf16[2,8,2,8,8], index: 2, kind: output, shape index: {}]
  %s3 = sld [smem:[#allocation0]]
  $region41: #{upblock_forward.4} parent=0
    _
  %s5 = ssub.s32 1, %s3
  %s6 = scalar_select 0, %s5, %s3
  loop: start=0, step=1, limit=4
  $region2: #{upblock_forward.4} parent=0 // loop_pre_header
    _
  $region3: #{upblock_forward.4} parent=0 // loop_header
    %s8 = sphi 0, %s12
    %p9 = scmp.ge.s32.totalorder %s8, 4
    %s18 = sphi 0, %s20
    %s21 = sphi 0, %s18
    %s22 = sphi 0, %s21
    %s38 = sphi 0, %s22
    %s42 = sphi 0, %s42
    %s44 = sphi 0, %s42
    %s45 = sphi 0, %s44
    %s59 = sphi 0, %s45
    %s65 = sphi 0, %s67
    %s68 = sphi 0, %s65
    %s69 = sphi 0, %s68
    %s85 = sphi 0, %s69
  $region4: #{upblock_forward.4} parent=0 // loop_header_branch
    %11 = sbr.rel (%p9) target = $region8
  $region5: #{upblock_forward.4} parent=0 // loop_body
    %s13 = ssub.s32 %s8, 1
    %s14 = ssub.s32 %s8, 2
    %s15 = sadd.s32 %s8, 1
    %s16 = ssub.s32 %s8, %s15
    %p17 = scmp.eq.s32.totalorder %s16, 0
    %s19 = sadd.s32 %s18, 1
    %s20 = scalar_select %p17, %s18, %s19
    %p23 = pneg %p17
    %p24 = scmp.eq.s32.totalorder %s8, 1
    %p25 = por %p23, %p24
    %p26 = scmp.ne.s32.totalorder %s18, %s21
    %p27 = scmp.eq.s32.totalorder %s8, 0
    %p28 = por %p26, %p27
    %p29 = scmp.ne.s32.totalorder %s18, %s21
    %p30 = scmp.eq.s32.totalorder %s13, 1
    %p31 = por %p29, %p30
    %p32 = scmp.ne.s32.totalorder %s21, %s22
    %p33 = scmp.eq.s32.totalorder %s13, 0
    %p34 = por %p32, %p33
    %p35 = scmp.ne.s32.totalorder %s21, %s22
    %p36 = scmp.eq.s32.totalorder %s14, 1
    %p37 = por %p35, %p36
    %p39 = scmp.ne.s32.totalorder %s22, %s38
    %p40 = scmp.eq.s32.totalorder %s14, 0
    %p41 = por %p39, %p40
    %s43 = sadd.s32 %s42, 1
    %p46 = scmp.eq.s32.totalorder %s8, 1
    %p47 = scmp.ne.s32.totalorder %s42, %s44
    %p48 = scmp.eq.s32.totalorder %s8, 0
    %p49 = por %p47, %p48
    %p50 = scmp.ne.s32.totalorder %s42, %s44
    %p51 = scmp.eq.s32.totalorder %s13, 1
    %p52 = por %p50, %p51
    %p53 = scmp.ne.s32.totalorder %s44, %s45
    %p54 = scmp.eq.s32.totalorder %s13, 0
    %p55 = por %p53, %p54
    %p56 = scmp.ne.s32.totalorder %s44, %s45
    %p57 = scmp.eq.s32.totalorder %s14, 1
    %p58 = por %p56, %p57
    %p60 = scmp.ne.s32.totalorder %s45, %s59
    %p61 = scmp.eq.s32.totalorder %s14, 0
    %p62 = por %p60, %p61
    %s63 = ssub.s32 %s8, %s15
    %p64 = scmp.eq.s32.totalorder %s63, 0
    %s66 = sadd.s32 %s65, 1
    %s67 = scalar_select %p64, %s65, %s66
    %p70 = pneg %p64
    %p71 = scmp.eq.s32.totalorder %s8, 1
    %p72 = por %p70, %p71
    %p73 = scmp.ne.s32.totalorder %s65, %s68
    %p74 = scmp.eq.s32.totalorder %s8, 0
    %p75 = por %p73, %p74
    %p76 = scmp.ne.s32.totalorder %s65, %s68
    %p77 = scmp.eq.s32.totalorder %s13, 1
    %p78 = por %p76, %p77
    %p79 = scmp.ne.s32.totalorder %s68, %s69
    %p80 = scmp.eq.s32.totalorder %s13, 0
    %p81 = por %p79, %p80
    %p82 = scmp.ne.s32.totalorder %s68, %s69
    %p83 = scmp.eq.s32.totalorder %s14, 1
    %p84 = por %p82, %p83
    %p86 = scmp.ne.s32.totalorder %s69, %s85
    %p87 = scmp.eq.s32.totalorder %s14, 0
    %p88 = por %p86, %p87
    %p89 = scmp.le.s32.totalorder 1, %s8
    %p90 = scmp.lt.s32.totalorder %s8, 3
    %p91 = pnand %p89, %p90
    %p92 = pneg %p91
    // Predicated region
    $region9: #{upblock_forward.4} parent=5 // pred_check
      _
    $region10: #{upblock_forward.4} parent=5 // pred_check_branch
      %94 = sbr.rel (%p91) target = $region12
    $region11: #{upblock_forward.4} parent=5 // pred_region
      %s95 = ssub.s32 %s8, 1
      // Predicated region
      $region13: #{upblock_forward.4} parent=11 // pred_check
        %p96 = pneg %p55
      $region14: #{upblock_forward.4} parent=11 // pred_check_branch
        %98 = sbr.rel (%p96) target = $region16
      $region15: #{upblock_forward.4} parent=11 // pred_region
        _
      $region16: #{upblock_forward.4} parent=11 // pred_fallthru
        _
    $region12: #{upblock_forward.4} parent=5 // pred_fallthru
      _
    %p99 = scmp.lt.s32.totalorder %s8, 2
    // Predicated region
    $region17: #{upblock_forward.4} parent=5 // pred_check
      %p100 = pneg %p99
    $region18: #{upblock_forward.4} parent=5 // pred_check_branch
      %102 = sbr.rel (%p100) target = $region20
    $region19: #{upblock_forward.4} parent=5 // pred_region
      // Predicated region
      $region21: #{upblock_forward.4} parent=19 // pred_check
        %p103 = pneg %p28
      $region22: #{upblock_forward.4} parent=19 // pred_check_branch
        %105 = sbr.rel (%p103) target = $region24
      $region23: #{upblock_forward.4} parent=19 // pred_region
        %p106 = scmp.lt.s32.totalorder %s8, 1
        %s107 = scalar_select %p106, %s8, 1
        %s108 = smul.addr %s107, 8
        %s109 = smul.addr %s108, 4
        %s110 = scalar_lea.vmem %s0, %s109
      $region24: #{upblock_forward.4} parent=19 // pred_fallthru
        _
    $region20: #{upblock_forward.4} parent=5 // pred_fallthru
      _
    %p111 = scmp.le.s32.totalorder 1, %s8
    %p112 = scmp.lt.s32.totalorder %s8, 3
    %p113 = pnand %p111, %p112
    %p114 = pneg %p113
    // Predicated region
    $region25: #{upblock_forward.4} parent=5 // pred_check
      _
    $region26: #{upblock_forward.4} parent=5 // pred_check_branch
      %116 = sbr.rel (%p113) target = $region28
    $region27: #{upblock_forward.4} parent=5 // pred_region
      %s117 = ssub.s32 %s8, 1
      %p118 = scmp.lt.s32.totalorder %s13, 1
      %s119 = scalar_select %p118, %s13, 1
      %s120 = smul.addr %s119, 8
      %s121 = smul.addr %s120, 4
      %s122 = scalar_lea.vmem %s0, %s121
      %p123 = pneg %p34
      %p124 = pneg %p31
      %p125 = pneg %p55
      %p126 = pneg %p52
      %p127 = pneg %p81
      %p128 = pneg %p78
      %p129 = scmp.lt.s32.totalorder %s13, 1
      %s130 = scalar_select %p129, %s13, 1
      %s131 = smul.addr %s130, 16
      %s132 = smul.addr %s131, 4
      %s133 = scalar_lea.vmem %s2, %s132
      %p134 = scmp.lt.s32.totalorder %s13, 1
      %s135 = scalar_select %p134, %s13, 1
      %s136 = smul.addr %s135, 8
      %s137 = smul.addr %s136, 4
      %s138 = scalar_lea.vmem %s0, %s137
      %p139 = scmp.lt.s32.totalorder %s13, 1
      %s140 = scalar_select %p139, %s13, 1
      %s141 = smul.addr %s140, 16
      %s142 = smul.addr %s141, 4
      %s143 = scalar_lea.vmem %s2, %s142
      %v145 = vld [vmem:[%s138] sm:$0xf]
      %v146 = vld [vmem:[%s138 + $0x4] sm:$0xf]
      %v147 = vld [vmem:[%s138 + $0x8] sm:$0xf]
      %v148 = vld [vmem:[%s138 + $0xc] sm:$0xf]
      %v149 = vld [vmem:[%s138 + $0x10] sm:$0xf]
      %v150 = vld [vmem:[%s138 + $0x14] sm:$0xf]
      %v151 = vld [vmem:[%s138 + $0x18] sm:$0xf]
      %v152 = vld [vmem:[%s138 + $0x1c] sm:$0xf]
      %v153 = vld [vmem:[%s1] sm:$0xf]
      %v162 = vunpack.c.l.b16 %v145
      %v163 = vunpack.c.l.b16 %v146
      %v164 = vunpack.c.l.b16 %v147
      %v165 = vunpack.c.l.b16 %v148
      %v166 = vunpack.c.l.b16 %v149
      %v167 = vunpack.c.l.b16 %v150
      %v168 = vunpack.c.l.b16 %v151
      %v169 = vunpack.c.l.b16 %v152
      %v170 = vpack.c.b16 %v163, %v162
      %v171 = vpack.c.b16 %v165, %v164
      %v172 = vpack.c.b16 %v167, %v166
      %v173 = vpack.c.b16 %v169, %v168
      %vm174 = vcmask 64512
      %v176 = vsel %vm174, %v170, 0
      %v179 = vsel %vm174, %v171, 0
      %v182 = vsel %vm174, %v172, 0
      %v185 = vsel %vm174, %v173, 0
      %vm187 = vcmask 1043456
      %v189 = vsel %vm187, %v153, 0
      %191 = vmatprep.subr.bf16.mxu0 0
      %192 = vmatpush1.bf16.msra.mxu0 %v189
      %193 = vmatprep.subr.bf16.mxu0 0
      %194 = vmatpush1.bf16.msra.mxu0 0
      %195 = vmatprep.subr.bf16.mxu0 0
      %196 = vmatpush1.bf16.msra.mxu0 0
      %197 = vmatprep.subr.bf16.mxu0 0
      %198 = vmatpush1.bf16.msra.mxu0 0
      %199 = vmatprep.subr.bf16.mxu0 0
      %200 = vmatpush1.bf16.msra.mxu0 0
      %201 = vmatprep.subr.bf16.mxu0 0
      %202 = vmatpush1.bf16.msra.mxu0 0
      %203 = vmatprep.subr.bf16.mxu0 0
      %204 = vmatpush1.bf16.msra.mxu0 0
      %205 = vmatprep.subr.bf16.mxu0 0
      %206 = vmatpush1.bf16.msra.mxu0 0
      %207 = vmatprep.subr.bf16.mxu0 0
      %208 = vmatpush1.bf16.msra.mxu0 0
      %209 = vmatprep.subr.bf16.mxu0 0
      %210 = vmatpush1.bf16.msra.mxu0 0
      %211 = vmatprep.subr.bf16.mxu0 0
      %212 = vmatpush1.bf16.msra.mxu0 0
      %213 = vmatprep.subr.bf16.mxu0 0
      %214 = vmatpush1.bf16.msra.mxu0 0
      %215 = vmatprep.subr.bf16.mxu0 0
      %216 = vmatpush1.bf16.msra.mxu0 0
      %217 = vmatprep.subr.bf16.mxu0 0
      %218 = vmatpush1.bf16.msra.mxu0 0
      %219 = vmatprep.subr.bf16.mxu0 0
      %220 = vmatpush1.bf16.msra.mxu0 0
      %221 = vmatprep.subr.bf16.mxu0 0
      %222 = vmatpush1.bf16.msra.mxu0 0
      %223 = vmatprep.mubr.bf16.mxu0 0
      %224 = vmatmul.mubr.bf16.gmra.mrb[0].mxu0 %v176
      %v225 = vpop.f32.mrb[0].mxu0
      %v226 = vadd.f32 0.0, %v225
      %v227 = vpop.f32.mrb[0].mxu0
      %v228 = vpop.f32.mrb[0].mxu0
      %v229 = vadd.f32 0.0, %v228
      %v230 = vpop.f32.mrb[0].mxu0
      %231 = vmatprep.mubr.bf16.mxu0 0
      %232 = vmatmul.mubr.bf16.gmra.mrb[0].mxu0 %v179
      %v233 = vpop.f32.mrb[0].mxu0
      %v234 = vadd.f32 0.0, %v233
      %v235 = vpop.f32.mrb[0].mxu0
      %v236 = vpop.f32.mrb[0].mxu0
      %v237 = vadd.f32 0.0, %v236
      %v238 = vpop.f32.mrb[0].mxu0
      %239 = vmatprep.mubr.bf16.mxu0 0
      %240 = vmatmul.mubr.bf16.gmra.mrb[0].mxu0 %v182
      %v241 = vpop.f32.mrb[0].mxu0
      %v242 = vadd.f32 0.0, %v241
      %v243 = vpop.f32.mrb[0].mxu0
      %v244 = vpop.f32.mrb[0].mxu0
      %v245 = vadd.f32 0.0, %v244
      %v246 = vpop.f32.mrb[0].mxu0
      %247 = vmatprep.mubr.bf16.mxu0 0
      %248 = vmatmul.mubr.bf16.gmra.mrb[0].mxu0 %v185
      %v249 = vpop.f32.mrb[0].mxu0
      %v250 = vadd.f32 0.0, %v249
      %v251 = vpop.f32.mrb[0].mxu0
      %v252 = vpop.f32.mrb[0].mxu0
      %v253 = vadd.f32 0.0, %v252
      %v254 = vpop.f32.mrb[0].mxu0
      %255 = vdwg.mxu0
      %v256 = vpack.c.bf16 %v229, %v226
      %v257 = vpack.c.bf16 %v237, %v234
      %v258 = vpack.c.bf16 %v245, %v242
      %v259 = vpack.c.bf16 %v253, %v250
      %v264 = vunpack.c.l.b16 %v256
      %v265 = vunpack.c.h.b16 %v256
      %v266 = vunpack.c.l.b16 %v257
      %v267 = vunpack.c.h.b16 %v257
      %v268 = vunpack.c.l.b16 %v258
      %v269 = vunpack.c.h.b16 %v258
      %v270 = vunpack.c.l.b16 %v259
      %v271 = vunpack.c.h.b16 %v259
      %v272 = vpack.c.b16 %v264, %v264
      %v273 = vpack.c.b16 %v265, %v265
      %v274 = vpack.c.b16 %v266, %v266
      %v275 = vpack.c.b16 %v267, %v267
      %v276 = vpack.c.b16 %v268, %v268
      %v277 = vpack.c.b16 %v269, %v269
      %v278 = vpack.c.b16 %v270, %v270
      %v279 = vpack.c.b16 %v271, %v271
      %s288 = scalar_lea.vmem %s1, 4
      %v289 = vld [vmem:[%s288] sm:$0xf]
      %v291 = vsel %vm187, %v289, 0
      %293 = vmatprep.subr.bf16.mxu0 0
      %294 = vmatpush1.bf16.msra.mxu0 %v291
      %295 = vmatprep.subr.bf16.mxu0 0
      %296 = vmatpush1.bf16.msra.mxu0 0
      %297 = vmatprep.subr.bf16.mxu0 0
      %298 = vmatpush1.bf16.msra.mxu0 0
      %299 = vmatprep.subr.bf16.mxu0 0
      %300 = vmatpush1.bf16.msra.mxu0 0
      %301 = vmatprep.subr.bf16.mxu0 0
      %302 = vmatpush1.bf16.msra.mxu0 0
      %303 = vmatprep.subr.bf16.mxu0 0
      %304 = vmatpush1.bf16.msra.mxu0 0
      %305 = vmatprep.subr.bf16.mxu0 0
      %306 = vmatpush1.bf16.msra.mxu0 0
      %307 = vmatprep.subr.bf16.mxu0 0
      %308 = vmatpush1.bf16.msra.mxu0 0
      %309 = vmatprep.subr.bf16.mxu0 0
      %310 = vmatpush1.bf16.msra.mxu0 0
      %311 = vmatprep.subr.bf16.mxu0 0
      %312 = vmatpush1.bf16.msra.mxu0 0
      %313 = vmatprep.subr.bf16.mxu0 0
      %314 = vmatpush1.bf16.msra.mxu0 0
      %315 = vmatprep.subr.bf16.mxu0 0
      %316 = vmatpush1.bf16.msra.mxu0 0
      %317 = vmatprep.subr.bf16.mxu0 0
      %318 = vmatpush1.bf16.msra.mxu0 0
      %319 = vmatprep.subr.bf16.mxu0 0
      %320 = vmatpush1.bf16.msra.mxu0 0
      %321 = vmatprep.subr.bf16.mxu0 0
      %322 = vmatpush1.bf16.msra.mxu0 0
      %323 = vmatprep.subr.bf16.mxu0 0
      %324 = vmatpush1.bf16.msra.mxu0 0
      %325 = vmatprep.mubr.bf16.mxu0 0
      %326 = vmatmul.mubr.bf16.gmra.mrb[0].mxu0 %v176
      %v327 = vpop.f32.mrb[0].mxu0
      %v328 = vadd.f32 0.0, %v327
      %v329 = vpop.f32.mrb[0].mxu0
      %v330 = vpop.f32.mrb[0].mxu0
      %v331 = vadd.f32 0.0, %v330
      %v332 = vpop.f32.mrb[0].mxu0
      %333 = vmatprep.mubr.bf16.mxu0 0
      %334 = vmatmul.mubr.bf16.gmra.mrb[0].mxu0 %v179
      %v335 = vpop.f32.mrb[0].mxu0
      %v336 = vadd.f32 0.0, %v335
      %v337 = vpop.f32.mrb[0].mxu0
      %v338 = vpop.f32.mrb[0].mxu0
      %v339 = vadd.f32 0.0, %v338
      %v340 = vpop.f32.mrb[0].mxu0
      %341 = vmatprep.mubr.bf16.mxu0 0
      %342 = vmatmul.mubr.bf16.gmra.mrb[0].mxu0 %v182
      %v343 = vpop.f32.mrb[0].mxu0
      %v344 = vadd.f32 0.0, %v343
      %v345 = vpop.f32.mrb[0].mxu0
      %v346 = vpop.f32.mrb[0].mxu0
      %v347 = vadd.f32 0.0, %v346
      %v348 = vpop.f32.mrb[0].mxu0
      %349 = vmatprep.mubr.bf16.mxu0 0
      %350 = vmatmul.mubr.bf16.gmra.mrb[0].mxu0 %v185
      %v351 = vpop.f32.mrb[0].mxu0
      %v352 = vadd.f32 0.0, %v351
      %v353 = vpop.f32.mrb[0].mxu0
      %v354 = vpop.f32.mrb[0].mxu0
      %v355 = vadd.f32 0.0, %v354
      %v356 = vpop.f32.mrb[0].mxu0
      %357 = vdwg.mxu0
      %v358 = vpack.c.bf16 %v331, %v328
      %v359 = vpack.c.bf16 %v339, %v336
      %v360 = vpack.c.bf16 %v347, %v344
      %v361 = vpack.c.bf16 %v355, %v352
      %v366 = vunpack.c.l.b16 %v358
      %v367 = vunpack.c.h.b16 %v358
      %v368 = vunpack.c.l.b16 %v359
      %v369 = vunpack.c.h.b16 %v359
      %v370 = vunpack.c.l.b16 %v360
      %v371 = vunpack.c.h.b16 %v360
      %v372 = vunpack.c.l.b16 %v361
      %v373 = vunpack.c.h.b16 %v361
      %v374 = vpack.c.b16 %v366, %v366
      %v375 = vpack.c.b16 %v367, %v367
      %v376 = vpack.c.b16 %v368, %v368
      %v377 = vpack.c.b16 %v369, %v369
      %v378 = vpack.c.b16 %v370, %v370
      %v379 = vpack.c.b16 %v371, %v371
      %v380 = vpack.c.b16 %v372, %v372
      %v381 = vpack.c.b16 %v373, %v373
      %vm390 = vcmask 60416
      %391 = vst.msk [vmem:[%s143] sm:$0xf] %vm390, %v272
      %392 = vst.msk [vmem:[%s143 + $0x4] sm:$0xf] %vm390, %v374
      %393 = vst.msk [vmem:[%s143 + $0x8] sm:$0xf] %vm390, %v273
      %394 = vst.msk [vmem:[%s143 + $0xc] sm:$0xf] %vm390, %v375
      %395 = vst.msk [vmem:[%s143 + $0x10] sm:$0xf] %vm390, %v274
      %396 = vst.msk [vmem:[%s143 + $0x14] sm:$0xf] %vm390, %v376
      %397 = vst.msk [vmem:[%s143 + $0x18] sm:$0xf] %vm390, %v275
      %398 = vst.msk [vmem:[%s143 + $0x1c] sm:$0xf] %vm390, %v377
      %399 = vst.msk [vmem:[%s143 + $0x20] sm:$0xf] %vm390, %v276
      %400 = vst.msk [vmem:[%s143 + $0x24] sm:$0xf] %vm390, %v378
      %401 = vst.msk [vmem:[%s143 + $0x28] sm:$0xf] %vm390, %v277
      %402 = vst.msk [vmem:[%s143 + $0x2c] sm:$0xf] %vm390, %v379
      %403 = vst.msk [vmem:[%s143 + $0x30] sm:$0xf] %vm390, %v278
      %404 = vst.msk [vmem:[%s143 + $0x34] sm:$0xf] %vm390, %v380
      %405 = vst.msk [vmem:[%s143 + $0x38] sm:$0xf] %vm390, %v279
      %406 = vst.msk [vmem:[%s143 + $0x3c] sm:$0xf] %vm390, %v381
      %p407 = scmp.lt.s32.totalorder %s13, 1
      %s408 = scalar_select %p407, %s13, 1
      %s409 = smul.addr %s408, 16
      %s410 = smul.addr %s409, 4
      %s411 = scalar_lea.vmem %s2, %s410
      // Predicated region
      $region29: #{upblock_forward.4} parent=27 // pred_check
        %p412 = pneg %p78
      $region30: #{upblock_forward.4} parent=27 // pred_check_branch
        %414 = sbr.rel (%p412) target = $region32
      $region31: #{upblock_forward.4} parent=27 // pred_region
        _
      $region32: #{upblock_forward.4} parent=27 // pred_fallthru
        _
    $region28: #{upblock_forward.4} parent=5 // pred_fallthru
      _
    %p415 = scmp.le.s32.totalorder 2, %s8
    // Predicated region
    $region33: #{upblock_forward.4} parent=5 // pred_check
      %p416 = pneg %p415
    $region34: #{upblock_forward.4} parent=5 // pred_check_branch
      %418 = sbr.rel (%p416) target = $region36
    $region35: #{upblock_forward.4} parent=5 // pred_region
      %s419 = ssub.s32 %s8, 2
      // Predicated region
      $region37: #{upblock_forward.4} parent=35 // pred_check
        %p420 = pneg %p84
      $region38: #{upblock_forward.4} parent=35 // pred_check_branch
        %422 = sbr.rel (%p420) target = $region40
      $region39: #{upblock_forward.4} parent=35 // pred_region
        %p423 = scmp.lt.s32.totalorder %s14, 1
        %s424 = scalar_select %p423, %s14, 1
        %s425 = smul.addr %s424, 16
        %s426 = smul.addr %s425, 4
        %s427 = scalar_lea.vmem %s2, %s426
      $region40: #{upblock_forward.4} parent=35 // pred_fallthru
        _
    $region36: #{upblock_forward.4} parent=5 // pred_fallthru
      _
  $region6: #{upblock_forward.4} parent=0 // loop_footer
    %s12 = sadd.s32 1, %s8
  $region7: #{upblock_forward.4} parent=0 // loop_footer_branch
    %7 = sbr.rel target = $region3
  $region8: #{upblock_forward.4} parent=0 // loop_exit
    _

// kernel: tile.18
$region0: #{tile.18}
  #allocation0 [shape = 's32[1]{0}', space=sflag, size = 0x4, scoped, tag = 'scoped memory for tile.18']
  %s0 = inlined_call_operand.vmem [shape: f32[4], index: 0, kind: input, shape index: {}]
  %s1 = inlined_call_operand.vmem [shape: f32[16,4], index: 1, kind: output, shape index: {}]
  // Predicated region
  $region2: #{tile.18} parent=0 // pred_check
    _
  $region3: #{tile.18} parent=0 // pred_check_branch
    %3 = sbr.rel (0) target = $region5
  $region4: #{tile.18} parent=0 // pred_region
    _
  $region5: #{tile.18} parent=0 // pred_fallthru
    _
  %v4 = vld [vmem:[%s0] ss:$0 sm:$0xff]
  %5 = vst [vmem:[%s1] sm:$0xff] %v4
  %s6 = scalar_lea.vmem %s1, 8
  %7 = vst [vmem:[%s6] sm:$0xff] %v4

// kernel: tile.19
$region0: #{tile.19}
  %s0 = inlined_call_operand.vmem [shape: f32[16,4], index: 0, kind: input, shape index: {}]
  %s1 = inlined_call_operand.vmem [shape: f32[1,64], index: 1, kind: output, shape index: {}]
  $region1: #{tile.19} parent=0
    #allocation0 [shape = 'u8[4096]{0}', space=vmem, size = 0x1000, scoped, tag = 'scoped mem for output reshape']
    %v2 = vld [vmem:[%s0] sm:$0x1]
    %vm3 = vcmask 31744
    %4 = vst.msk [vmem:[#allocation0] sm:$0x1] %vm3, %v2
    %s5 = scalar_lea.vmem %s0, 15
    %v6 = vld [vmem:[%s5] sm:$0x1]
    %7 = vrot.lane.b32.xlu0 %v6, 60
    %v8 = vpop.permute.xlu0 %7
    %vm9 = vcmask 523744
    %10 = vst.msk [vmem:[#allocation0] sm:$0x1] %vm9, %v8
    %s11 = scalar_lea.vmem %s0, 14
    %v12 = vld [vmem:[%s11] sm:$0x1]
    %13 = vrot.lane.b32.xlu0 %v12, 56
    %v14 = vpop.permute.xlu0 %13
    %vm15 = vcmask 490944
    %16 = vst.msk [vmem:[#allocation0] sm:$0x1] %vm15, %v14
    %s17 = scalar_lea.vmem %s0, 13
    %v18 = vld [vmem:[%s17] sm:$0x1]
    %19 = vrot.lane.b32.xlu0 %v18, 52
    %v20 = vpop.permute.xlu0 %19
    %vm21 = vcmask 458144
    %22 = vst.msk [vmem:[#allocation0] sm:$0x1] %vm21, %v20
    %s23 = scalar_lea.vmem %s0, 12
    %v24 = vld [vmem:[%s23] sm:$0x1]
    %25 = vrot.lane.b32.xlu0 %v24, 48
    %v26 = vpop.permute.xlu0 %25
    %vm27 = vcmask 425344
    %28 = vst.msk [vmem:[#allocation0] sm:$0x1] %vm27, %v26
    %s29 = scalar_lea.vmem %s0, 11
    %v30 = vld [vmem:[%s29] sm:$0x1]
    %31 = vrot.lane.b32.xlu0 %v30, 44
    %v32 = vpop.permute.xlu0 %31
    %vm33 = vcmask 392544
    %34 = vst.msk [vmem:[#allocation0] sm:$0x1] %vm33, %v32
    %s35 = scalar_lea.vmem %s0, 10
    %v36 = vld [vmem:[%s35] sm:$0x1]
    %37 = vrot.lane.b32.xlu0 %v36, 40
    %v38 = vpop.permute.xlu0 %37
    %vm39 = vcmask 359744
    %40 = vst.msk [vmem:[#allocation0] sm:$0x1] %vm39, %v38
    %s41 = scalar_lea.vmem %s0, 9
    %v42 = vld [vmem:[%s41] sm:$0x1]
    %43 = vrot.lane.b32.xlu0 %v42, 36
    %v44 = vpop.permute.xlu0 %43
    %vm45 = vcmask 326944
    %46 = vst.msk [vmem:[#allocation0] sm:$0x1] %vm45, %v44
    %s47 = scalar_lea.vmem %s0, 8
    %v48 = vld [vmem:[%s47] sm:$0x1]
    %49 = vrot.lane.b32.xlu0 %v48, 32
    %v50 = vpop.permute.xlu0 %49
    %vm51 = vcmask 294144
    %52 = vst.msk [vmem:[#allocation0] sm:$0x1] %vm51, %v50
    %s53 = scalar_lea.vmem %s0, 7
    %v54 = vld [vmem:[%s53] sm:$0x1]
    %55 = vrot.lane.b32.xlu0 %v54, 28
    %v56 = vpop.permute.xlu0 %55
    %vm57 = vcmask 261344
    %58 = vst.msk [vmem:[#allocation0] sm:$0x1] %vm57, %v56
    %s59 = scalar_lea.vmem %s0, 6
    %v60 = vld [vmem:[%s59] sm:$0x1]
    %61 = vrot.lane.b32.xlu0 %v60, 24
    %v62 = vpop.permute.xlu0 %61
    %vm63 = vcmask 228544
    %64 = vst.msk [vmem:[#allocation0] sm:$0x1] %vm63, %v62
    %s65 = scalar_lea.vmem %s0, 5
    %v66 = vld [vmem:[%s65] sm:$0x1]
    %67 = vrot.lane.b32.xlu0 %v66, 20
    %v68 = vpop.permute.xlu0 %67
    %vm69 = vcmask 195744
    %70 = vst.msk [vmem:[#allocation0] sm:$0x1] %vm69, %v68
    %s71 = scalar_lea.vmem %s0, 4
    %v72 = vld [vmem:[%s71] sm:$0x1]
    %73 = vrot.lane.b32.xlu0 %v72, 16
    %v74 = vpop.permute.xlu0 %73
    %vm75 = vcmask 162944
    %76 = vst.msk [vmem:[#allocation0] sm:$0x1] %vm75, %v74
    %s77 = scalar_lea.vmem %s0, 3
    %v78 = vld [vmem:[%s77] sm:$0x1]
    %79 = vrot.lane.b32.xlu0 %v78, 12
    %v80 = vpop.permute.xlu0 %79
    %vm81 = vcmask 130144
    %82 = vst.msk [vmem:[#allocation0] sm:$0x1] %vm81, %v80
    %s83 = scalar_lea.vmem %s0, 2
    %v84 = vld [vmem:[%s83] sm:$0x1]
    %85 = vrot.lane.b32.xlu0 %v84, 8
    %v86 = vpop.permute.xlu0 %85
    %vm87 = vcmask 97344
    %88 = vst.msk [vmem:[#allocation0] sm:$0x1] %vm87, %v86
    %s89 = scalar_lea.vmem %s0, 1
    %v90 = vld [vmem:[%s89] sm:$0x1]
    %91 = vrot.lane.b32.xlu0 %v90, 4
    %v92 = vpop.permute.xlu0 %91
    %vm93 = vcmask 64544
    %94 = vst.msk [vmem:[#allocation0] sm:$0x1] %vm93, %v92
    %s96 = sshllo.u32 0, 1
    %v98 = vld [vmem:[#allocation0] sm:%s96]
    %s99 = sshllo.u32 0, 1
    %100 = vst [vmem:[%s1] sm:%s99] %v98

// kernel: upblock_forward.7
$region0: #{upblock_forward.7}
  #allocation0 [shape = 'u32[]', space=smem, size = 0x4, offset = 0x4, fixed_abs, tag = 'smem constant byte address 0x4 - core index']
  #allocation1 [shape = 'u32[144,128]{1,0:T(1,128)}', space=vmem, size = 0x12000, scoped, tag = 'internal scratch']
  %s0 = inlined_call_operand.vmem [shape: bf16[32,64], index: 0, kind: input, shape index: {}]
  %s1 = inlined_call_operand.vmem [shape: f32[1,64], index: 1, kind: input, shape index: {}]
  %s2 = inlined_call_operand.vmem [shape: f32[1,64], index: 2, kind: input, shape index: {}]
  %s3 = inlined_call_operand.vmem [shape: f32[32,64], index: 3, kind: output, shape index: {}]
  %s4 = sld [smem:[#allocation0]]
  $region22: #{upblock_forward.7} parent=0
    _
  %s6 = ssub.s32 1, %s4
  %s7 = scalar_select 0, %s6, %s4
  // Predicated region
  $region2: #{upblock_forward.7} parent=0 // pred_check
    _
  $region3: #{upblock_forward.7} parent=0 // pred_check_branch
    %9 = sbr.rel (0) target = $region5
  $region4: #{upblock_forward.7} parent=0 // pred_region
    _
  $region5: #{upblock_forward.7} parent=0 // pred_fallthru
    _
  // Predicated region
  $region6: #{upblock_forward.7} parent=0 // pred_check
    _
  $region7: #{upblock_forward.7} parent=0 // pred_check_branch
    %11 = sbr.rel (0) target = $region9
  $region8: #{upblock_forward.7} parent=0 // pred_region
    _
  $region9: #{upblock_forward.7} parent=0 // pred_fallthru
    _
  // Predicated region
  $region10: #{upblock_forward.7} parent=0 // pred_check
    _
  $region11: #{upblock_forward.7} parent=0 // pred_check_branch
    %13 = sbr.rel (0) target = $region13
  $region12: #{upblock_forward.7} parent=0 // pred_region
    _
  $region13: #{upblock_forward.7} parent=0 // pred_fallthru
    _
  %v14 = vld [vmem:[%s0] sm:$0xf]
  %v15 = vld [vmem:[%s0 + $0x4] sm:$0xf]
  %v16 = vld [vmem:[%s0 + $0x8] sm:$0xf]
  %v17 = vld [vmem:[%s0 + $0xc] sm:$0xf]
  %v18 = vunpack.c.l.bf16 %v14
  %v19 = vunpack.c.l.bf16 %v15
  %v20 = vunpack.c.l.bf16 %v16
  %v21 = vunpack.c.l.bf16 %v17
  %v22 = vld [vmem:[%s1] sm:$0x1]
  %v24 = vlaneseq
  %v25 = vshrl.u32 %v24, 7
  %v26 = vsub.s32 0, %v25
  %v27 = vrot.slane %v22, %v26
  %v29 = vmul.f32 %v18, %v27
  %v30 = vmul.f32 %v19, %v27
  %v31 = vmul.f32 %v20, %v27
  %v32 = vmul.f32 %v21, %v27
  %v33 = vld [vmem:[%s2] sm:$0x1]
  %v35 = vlaneseq
  %v36 = vshrl.u32 %v35, 7
  %v37 = vsub.s32 0, %v36
  %v38 = vrot.slane %v33, %v37
  %v40 = vadd.f32 %v29, %v38
  %v41 = vadd.f32 %v30, %v38
  %v42 = vadd.f32 %v31, %v38
  %v43 = vadd.f32 %v32, %v38
  %v44 = vmax.f32 %v40, 0.0
  %v45 = vmax.f32 %v41, 0.0
  %v46 = vmax.f32 %v42, 0.0
  %v47 = vmax.f32 %v43, 0.0
  %vm48 = vcmask 523264
  %49 = vst.msk [vmem:[%s3] sm:$0xff] %vm48, %v44
  %50 = vst.msk [vmem:[%s3 + $0x8] sm:$0xff] %vm48, %v45
  %51 = vst.msk [vmem:[%s3 + $0x10] sm:$0xff] %vm48, %v46
  %52 = vst.msk [vmem:[%s3 + $0x18] sm:$0xff] %vm48, %v47
  // Predicated region
  $region14: #{upblock_forward.7} parent=0 // pred_check
    _
  $region15: #{upblock_forward.7} parent=0 // pred_check_branch
    %54 = sbr.rel (0) target = $region17
  $region16: #{upblock_forward.7} parent=0 // pred_region
    _
  $region17: #{upblock_forward.7} parent=0 // pred_fallthru
    _
  // Predicated region
  $region18: #{upblock_forward.7} parent=0 // pred_check
    _
  $region19: #{upblock_forward.7} parent=0 // pred_check_branch
    %56 = sbr.rel (0) target = $region21
  $region20: #{upblock_forward.7} parent=0 // pred_region
    _
  $region21: #{upblock_forward.7} parent=0 // pred_fallthru
    _

// kernel: upblock_forward.6
$region0: #{upblock_forward.6}
  #allocation0 [shape = 'u32[]', space=smem, size = 0x4, offset = 0x4, fixed_abs, tag = 'smem constant byte address 0x4 - core index']
  #allocation1 [shape = 'u32[144,128]{1,0:T(1,128)}', space=vmem, size = 0x12000, scoped, tag = 'internal scratch']
  %s0 = inlined_call_operand.vmem [shape: bf16[2,16,16,4], index: 0, kind: input, shape index: {}]
  %s1 = inlined_call_operand.vmem [shape: f32[1,4], index: 1, kind: input, shape index: {}]
  %s2 = inlined_call_operand.vmem [shape: f32[1,4], index: 2, kind: input, shape index: {}]
  %s3 = inlined_call_operand.vmem [shape: bf16[3,3,4,4], index: 3, kind: input, shape index: {}]
  %s4 = inlined_call_operand.vmem [shape: bf16[2,16,16,4], index: 4, kind: output, shape index: {0}]
  %s5 = inlined_call_operand.vmem [shape: f32[2,1,4], index: 5, kind: output, shape index: {1}]
  %s6 = inlined_call_operand.vmem [shape: f32[2,1,4], index: 6, kind: output, shape index: {2}]
  %7 = xla_tuple %s4, %s5, %s6
  %s8 = sld [smem:[#allocation0]]
  $region65: #{upblock_forward.6} parent=0
    _
  %s10 = ssub.s32 1, %s8
  %s11 = scalar_select 0, %s10, %s8
  loop: start=0, step=1, limit=4
  $region2: #{upblock_forward.6} parent=0 // loop_pre_header
    _
  $region3: #{upblock_forward.6} parent=0 // loop_header
    %s13 = sphi 0, %s17
    %p14 = scmp.ge.s32.totalorder %s13, 4
    %s23 = sphi 0, %s25
    %s26 = sphi 0, %s23
    %s27 = sphi 0, %s26
    %s43 = sphi 0, %s27
    %s47 = sphi 0, %s47
    %s49 = sphi 0, %s47
    %s50 = sphi 0, %s49
    %s64 = sphi 0, %s50
    %s68 = sphi 0, %s68
    %s70 = sphi 0, %s68
    %s71 = sphi 0, %s70
    %s85 = sphi 0, %s71
    %s89 = sphi 0, %s89
    %s91 = sphi 0, %s89
    %s92 = sphi 0, %s91
    %s106 = sphi 0, %s92
    %s112 = sphi 0, %s114
    %s115 = sphi 0, %s112
    %s116 = sphi 0, %s115
    %s132 = sphi 0, %s116
    %s138 = sphi 0, %s140
    %s141 = sphi 0, %s138
    %s142 = sphi 0, %s141
    %s158 = sphi 0, %s142
    %s164 = sphi 0, %s166
    %s167 = sphi 0, %s164
    %s168 = sphi 0, %s167
    %s184 = sphi 0, %s168
  $region4: #{upblock_forward.6} parent=0 // loop_header_branch
    %16 = sbr.rel (%p14) target = $region8
  $region5: #{upblock_forward.6} parent=0 // loop_body
    %s18 = ssub.s32 %s13, 1
    %s19 = ssub.s32 %s13, 2
    %s20 = sadd.s32 %s13, 1
    %s21 = ssub.s32 %s13, %s20
    %p22 = scmp.eq.s32.totalorder %s21, 0
    %s24 = sadd.s32 %s23, 1
    %s25 = scalar_select %p22, %s23, %s24
    %p28 = pneg %p22
    %p29 = scmp.eq.s32.totalorder %s13, 1
    %p30 = por %p28, %p29
    %p31 = scmp.ne.s32.totalorder %s23, %s26
    %p32 = scmp.eq.s32.totalorder %s13, 0
    %p33 = por %p31, %p32
    %p34 = scmp.ne.s32.totalorder %s23, %s26
    %p35 = scmp.eq.s32.totalorder %s18, 1
    %p36 = por %p34, %p35
    %p37 = scmp.ne.s32.totalorder %s26, %s27
    %p38 = scmp.eq.s32.totalorder %s18, 0
    %p39 = por %p37, %p38
    %p40 = scmp.ne.s32.totalorder %s26, %s27
    %p41 = scmp.eq.s32.totalorder %s19, 1
    %p42 = por %p40, %p41
    %p44 = scmp.ne.s32.totalorder %s27, %s43
    %p45 = scmp.eq.s32.totalorder %s19, 0
    %p46 = por %p44, %p45
    %s48 = sadd.s32 %s47, 1
    %p51 = scmp.eq.s32.totalorder %s13, 1
    %p52 = scmp.ne.s32.totalorder %s47, %s49
    %p53 = scmp.eq.s32.totalorder %s13, 0
    %p54 = por %p52, %p53
    %p55 = scmp.ne.s32.totalorder %s47, %s49
    %p56 = scmp.eq.s32.totalorder %s18, 1
    %p57 = por %p55, %p56
    %p58 = scmp.ne.s32.totalorder %s49, %s50
    %p59 = scmp.eq.s32.totalorder %s18, 0
    %p60 = por %p58, %p59
    %p61 = scmp.ne.s32.totalorder %s49, %s50
    %p62 = scmp.eq.s32.totalorder %s19, 1
    %p63 = por %p61, %p62
    %p65 = scmp.ne.s32.totalorder %s50, %s64
    %p66 = scmp.eq.s32.totalorder %s19, 0
    %p67 = por %p65, %p66
    %s69 = sadd.s32 %s68, 1
    %p72 = scmp.eq.s32.totalorder %s13, 1
    %p73 = scmp.ne.s32.totalorder %s68, %s70
    %p74 = scmp.eq.s32.totalorder %s13, 0
    %p75 = por %p73, %p74
    %p76 = scmp.ne.s32.totalorder %s68, %s70
    %p77 = scmp.eq.s32.totalorder %s18, 1
    %p78 = por %p76, %p77
    %p79 = scmp.ne.s32.totalorder %s70, %s71
    %p80 = scmp.eq.s32.totalorder %s18, 0
    %p81 = por %p79, %p80
    %p82 = scmp.ne.s32.totalorder %s70, %s71
    %p83 = scmp.eq.s32.totalorder %s19, 1
    %p84 = por %p82, %p83
    %p86 = scmp.ne.s32.totalorder %s71, %s85
    %p87 = scmp.eq.s32.totalorder %s19, 0
    %p88 = por %p86, %p87
    %s90 = sadd.s32 %s89, 1
    %p93 = scmp.eq.s32.totalorder %s13, 1
    %p94 = scmp.ne.s32.totalorder %s89, %s91
    %p95 = scmp.eq.s32.totalorder %s13, 0
    %p96 = por %p94, %p95
    %p97 = scmp.ne.s32.totalorder %s89, %s91
    %p98 = scmp.eq.s32.totalorder %s18, 1
    %p99 = por %p97, %p98
    %p100 = scmp.ne.s32.totalorder %s91, %s92
    %p101 = scmp.eq.s32.totalorder %s18, 0
    %p102 = por %p100, %p101
    %p103 = scmp.ne.s32.totalorder %s91, %s92
    %p104 = scmp.eq.s32.totalorder %s19, 1
    %p105 = por %p103, %p104
    %p107 = scmp.ne.s32.totalorder %s92, %s106
    %p108 = scmp.eq.s32.totalorder %s19, 0
    %p109 = por %p107, %p108
    %s110 = ssub.s32 %s13, %s20
    %p111 = scmp.eq.s32.totalorder %s110, 0
    %s113 = sadd.s32 %s112, 1
    %s114 = scalar_select %p111, %s112, %s113
    %p117 = pneg %p111
    %p118 = scmp.eq.s32.totalorder %s13, 1
    %p119 = por %p117, %p118
    %p120 = scmp.ne.s32.totalorder %s112, %s115
    %p121 = scmp.eq.s32.totalorder %s13, 0
    %p122 = por %p120, %p121
    %p123 = scmp.ne.s32.totalorder %s112, %s115
    %p124 = scmp.eq.s32.totalorder %s18, 1
    %p125 = por %p123, %p124
    %p126 = scmp.ne.s32.totalorder %s115, %s116
    %p127 = scmp.eq.s32.totalorder %s18, 0
    %p128 = por %p126, %p127
    %p129 = scmp.ne.s32.totalorder %s115, %s116
    %p130 = scmp.eq.s32.totalorder %s19, 1
    %p131 = por %p129, %p130
    %p133 = scmp.ne.s32.totalorder %s116, %s132
    %p134 = scmp.eq.s32.totalorder %s19, 0
    %p135 = por %p133, %p134
    %s136 = ssub.s32 %s13, %s20
    %p137 = scmp.eq.s32.totalorder %s136, 0
    %s139 = sadd.s32 %s138, 1
    %s140 = scalar_select %p137, %s138, %s139
    %p143 = pneg %p137
    %p144 = scmp.eq.s32.totalorder %s13, 1
    %p145 = por %p143, %p144
    %p146 = scmp.ne.s32.totalorder %s138, %s141
    %p147 = scmp.eq.s32.totalorder %s13, 0
    %p148 = por %p146, %p147
    %p149 = scmp.ne.s32.totalorder %s138, %s141
    %p150 = scmp.eq.s32.totalorder %s18, 1
    %p151 = por %p149, %p150
    %p152 = scmp.ne.s32.totalorder %s141, %s142
    %p153 = scmp.eq.s32.totalorder %s18, 0
    %p154 = por %p152, %p153
    %p155 = scmp.ne.s32.totalorder %s141, %s142
    %p156 = scmp.eq.s32.totalorder %s19, 1
    %p157 = por %p155, %p156
    %p159 = scmp.ne.s32.totalorder %s142, %s158
    %p160 = scmp.eq.s32.totalorder %s19, 0
    %p161 = por %p159, %p160
    %s162 = ssub.s32 %s13, %s20
    %p163 = scmp.eq.s32.totalorder %s162, 0
    %s165 = sadd.s32 %s164, 1
    %s166 = scalar_select %p163, %s164, %s165
    %p169 = pneg %p163
    %p170 = scmp.eq.s32.totalorder %s13, 1
    %p171 = por %p169, %p170
    %p172 = scmp.ne.s32.totalorder %s164, %s167
    %p173 = scmp.eq.s32.totalorder %s13, 0
    %p174 = por %p172, %p173
    %p175 = scmp.ne.s32.totalorder %s164, %s167
    %p176 = scmp.eq.s32.totalorder %s18, 1
    %p177 = por %p175, %p176
    %p178 = scmp.ne.s32.totalorder %s167, %s168
    %p179 = scmp.eq.s32.totalorder %s18, 0
    %p180 = por %p178, %p179
    %p181 = scmp.ne.s32.totalorder %s167, %s168
    %p182 = scmp.eq.s32.totalorder %s19, 1
    %p183 = por %p181, %p182
    %p185 = scmp.ne.s32.totalorder %s168, %s184
    %p186 = scmp.eq.s32.totalorder %s19, 0
    %p187 = por %p185, %p186
    %p188 = scmp.le.s32.totalorder 1, %s13
    %p189 = scmp.lt.s32.totalorder %s13, 3
    %p190 = pnand %p188, %p189
    %p191 = pneg %p190
    // Predicated region
    $region9: #{upblock_forward.6} parent=5 // pred_check
      _
    $region10: #{upblock_forward.6} parent=5 // pred_check_branch
      %193 = sbr.rel (%p190) target = $region12
    $region11: #{upblock_forward.6} parent=5 // pred_region
      %s194 = ssub.s32 %s13, 1
      // Predicated region
      $region13: #{upblock_forward.6} parent=11 // pred_check
        %p195 = pneg %p60
      $region14: #{upblock_forward.6} parent=11 // pred_check_branch
        %197 = sbr.rel (%p195) target = $region16
      $region15: #{upblock_forward.6} parent=11 // pred_region
        _
      $region16: #{upblock_forward.6} parent=11 // pred_fallthru
        _
      // Predicated region
      $region17: #{upblock_forward.6} parent=11 // pred_check
        %p198 = pneg %p81
      $region18: #{upblock_forward.6} parent=11 // pred_check_branch
        %200 = sbr.rel (%p198) target = $region20
      $region19: #{upblock_forward.6} parent=11 // pred_region
        _
      $region20: #{upblock_forward.6} parent=11 // pred_fallthru
        _
      // Predicated region
      $region21: #{upblock_forward.6} parent=11 // pred_check
        %p201 = pneg %p102
      $region22: #{upblock_forward.6} parent=11 // pred_check_branch
        %203 = sbr.rel (%p201) target = $region24
      $region23: #{upblock_forward.6} parent=11 // pred_region
        _
      $region24: #{upblock_forward.6} parent=11 // pred_fallthru
        _
    $region12: #{upblock_forward.6} parent=5 // pred_fallthru
      _
    %p204 = scmp.lt.s32.totalorder %s13, 2
    // Predicated region
    $region25: #{upblock_forward.6} parent=5 // pred_check
      %p205 = pneg %p204
    $region26: #{upblock_forward.6} parent=5 // pred_check_branch
      %207 = sbr.rel (%p205) target = $region28
    $region27: #{upblock_forward.6} parent=5 // pred_region
      // Predicated region
      $region29: #{upblock_forward.6} parent=27 // pred_check
        %p208 = pneg %p33
      $region30: #{upblock_forward.6} parent=27 // pred_check_branch
        %210 = sbr.rel (%p208) target = $region32
      $region31: #{upblock_forward.6} parent=27 // pred_region
        %p211 = scmp.lt.s32.totalorder %s13, 1
        %s212 = scalar_select %p211, %s13, 1
        %s213 = smul.addr %s212, 32
        %s214 = smul.addr %s213, 4
        %s215 = scalar_lea.vmem %s0, %s214
      $region32: #{upblock_forward.6} parent=27 // pred_fallthru
        _
    $region28: #{upblock_forward.6} parent=5 // pred_fallthru
      _
    %p216 = scmp.le.s32.totalorder 1, %s13
    %p217 = scmp.lt.s32.totalorder %s13, 3
    %p218 = pnand %p216, %p217
    %p219 = pneg %p218
    // Predicated region
    $region33: #{upblock_forward.6} parent=5 // pred_check
      _
    $region34: #{upblock_forward.6} parent=5 // pred_check_branch
      %221 = sbr.rel (%p218) target = $region36
    $region35: #{upblock_forward.6} parent=5 // pred_region
      %s222 = ssub.s32 %s13, 1
      %p223 = scmp.lt.s32.totalorder %s18, 1
      %s224 = scalar_select %p223, %s18, 1
      %s225 = smul.addr %s224, 32
      %s226 = smul.addr %s225, 4
      %s227 = scalar_lea.vmem %s0, %s226
      %p228 = pneg %p39
      %p229 = pneg %p36
      %p230 = pneg %p60
      %p231 = pneg %p57
      %p232 = pneg %p81
      %p233 = pneg %p78
      %p234 = pneg %p102
      %p235 = pneg %p99
      %p236 = pneg %p128
      %p237 = pneg %p125
      %p238 = scmp.lt.s32.totalorder %s18, 1
      %s239 = scalar_select %p238, %s18, 1
      %s240 = smul.addr %s239, 32
      %s241 = smul.addr %s240, 4
      %s242 = scalar_lea.vmem %s4, %s241
      %p243 = pneg %p154
      %p244 = pneg %p151
      %p245 = scmp.lt.s32.totalorder %s18, 1
      %s246 = scalar_select %p245, %s18, 1
      %s247 = scalar_lea.vmem %s5, %s246
      %p248 = pneg %p180
      %p249 = pneg %p177
      %p250 = scmp.lt.s32.totalorder %s18, 1
      %s251 = scalar_select %p250, %s18, 1
      %s252 = scalar_lea.vmem %s6, %s251
      %p253 = scmp.lt.s32.totalorder %s18, 1
      %s254 = scalar_select %p253, %s18, 1
      %s255 = smul.addr %s254, 32
      %s256 = smul.addr %s255, 4
      %s257 = scalar_lea.vmem %s0, %s256
      %p258 = scmp.lt.s32.totalorder %s18, 1
      %s259 = scalar_select %p258, %s18, 1
      %s260 = smul.addr %s259, 32
      %s261 = smul.addr %s260, 4
      %s262 = scalar_lea.vmem %s4, %s261
      %p263 = scmp.lt.s32.totalorder %s18, 1
      %s264 = scalar_select %p263, %s18, 1
      %s265 = scalar_lea.vmem %s5, %s264
      %p266 = scmp.lt.s32.totalorder %s18, 1
      %s267 = scalar_select %p266, %s18, 1
      %s268 = scalar_lea.vmem %s6, %s267
      %v270 = vld [vmem:[%s257] sm:$0xf]
      %v271 = vld [vmem:[%s257 + $0x4] sm:$0xf]
      %v272 = vld [vmem:[%s257 + $0x8] sm:$0xf]
      %v273 = vld [vmem:[%s257 + $0xc] sm:$0xf]
      %v274 = vld [vmem:[%s257 + $0x10] sm:$0xf]
      %v275 = vld [vmem:[%s257 + $0x14] sm:$0xf]
      %v276 = vld [vmem:[%s257 + $0x18] sm:$0xf]
      %v277 = vld [vmem:[%s257 + $0x1c] sm:$0xf]
      %v278 = vld [vmem:[%s257 + $0x20] sm:$0xf]
      %v279 = vld [vmem:[%s257 + $0x24] sm:$0xf]
      %v280 = vld [vmem:[%s257 + $0x28] sm:$0xf]
      %v281 = vld [vmem:[%s257 + $0x2c] sm:$0xf]
      %v282 = vld [vmem:[%s257 + $0x30] sm:$0xf]
      %v283 = vld [vmem:[%s257 + $0x34] sm:$0xf]
      %v284 = vld [vmem:[%s257 + $0x38] sm:$0xf]
      %v285 = vld [vmem:[%s257 + $0x3c] sm:$0xf]
      %v286 = vld [vmem:[%s257 + $0x40] sm:$0xf]
      %v287 = vld [vmem:[%s257 + $0x44] sm:$0xf]
      %v288 = vld [vmem:[%s257 + $0x48] sm:$0xf]
      %v289 = vld [vmem:[%s257 + $0x4c] sm:$0xf]
      %v290 = vld [vmem:[%s257 + $0x50] sm:$0xf]
      %v291 = vld [vmem:[%s257 + $0x54] sm:$0xf]
      %v292 = vld [vmem:[%s257 + $0x58] sm:$0xf]
      %v293 = vld [vmem:[%s257 + $0x5c] sm:$0xf]
      %v294 = vld [vmem:[%s257 + $0x60] sm:$0xf]
      %v295 = vld [vmem:[%s257 + $0x64] sm:$0xf]
      %v296 = vld [vmem:[%s257 + $0x68] sm:$0xf]
      %v297 = vld [vmem:[%s257 + $0x6c] sm:$0xf]
      %v298 = vld [vmem:[%s257 + $0x70] sm:$0xf]
      %v299 = vld [vmem:[%s257 + $0x74] sm:$0xf]
      %v300 = vld [vmem:[%s257 + $0x78] sm:$0xf]
      %v301 = vld [vmem:[%s257 + $0x7c] sm:$0xf]
      %v302 = vunpack.c.l.bf16 %v270
      %v303 = vunpack.c.l.bf16 %v271
      %v304 = vunpack.c.l.bf16 %v272
      %v305 = vunpack.c.l.bf16 %v273
      %v306 = vunpack.c.l.bf16 %v274
      %v307 = vunpack.c.l.bf16 %v275
      %v308 = vunpack.c.l.bf16 %v276
      %v309 = vunpack.c.l.bf16 %v277
      %v310 = vunpack.c.l.bf16 %v278
      %v311 = vunpack.c.l.bf16 %v279
      %v312 = vunpack.c.l.bf16 %v280
      %v313 = vunpack.c.l.bf16 %v281
      %v314 = vunpack.c.l.bf16 %v282
      %v315 = vunpack.c.l.bf16 %v283
      %v316 = vunpack.c.l.bf16 %v284
      %v317 = vunpack.c.l.bf16 %v285
      %v318 = vunpack.c.l.bf16 %v286
      %v319 = vunpack.c.l.bf16 %v287
      %v320 = vunpack.c.l.bf16 %v288
      %v321 = vunpack.c.l.bf16 %v289
      %v322 = vunpack.c.l.bf16 %v290
      %v323 = vunpack.c.l.bf16 %v291
      %v324 = vunpack.c.l.bf16 %v292
      %v325 = vunpack.c.l.bf16 %v293
      %v326 = vunpack.c.l.bf16 %v294
      %v327 = vunpack.c.l.bf16 %v295
      %v328 = vunpack.c.l.bf16 %v296
      %v329 = vunpack.c.l.bf16 %v297
      %v330 = vunpack.c.l.bf16 %v298
      %v331 = vunpack.c.l.bf16 %v299
      %v332 = vunpack.c.l.bf16 %v300
      %v333 = vunpack.c.l.bf16 %v301
      %v334 = vld [vmem:[%s1] sm:$0x1]
      %v336 = vlaneseq
      %v337 = vshrl.u32 %v336, 7
      %v338 = vsub.s32 0, %v337
      %v339 = vrot.slane %v334, %v338
      %v341 = vmul.f32 %v302, %v339
      %v342 = vmul.f32 %v303, %v339
      %v343 = vmul.f32 %v304, %v339
      %v344 = vmul.f32 %v305, %v339
      %v345 = vmul.f32 %v306, %v339
      %v346 = vmul.f32 %v307, %v339
      %v347 = vmul.f32 %v308, %v339
      %v348 = vmul.f32 %v309, %v339
      %v349 = vmul.f32 %v310, %v339
      %v350 = vmul.f32 %v311, %v339
      %v351 = vmul.f32 %v312, %v339
      %v352 = vmul.f32 %v313, %v339
      %v353 = vmul.f32 %v314, %v339
      %v354 = vmul.f32 %v315, %v339
      %v355 = vmul.f32 %v316, %v339
      %v356 = vmul.f32 %v317, %v339
      %v357 = vmul.f32 %v318, %v339
      %v358 = vmul.f32 %v319, %v339
      %v359 = vmul.f32 %v320, %v339
      %v360 = vmul.f32 %v321, %v339
      %v361 = vmul.f32 %v322, %v339
      %v362 = vmul.f32 %v323, %v339
      %v363 = vmul.f32 %v324, %v339
      %v364 = vmul.f32 %v325, %v339
      %v365 = vmul.f32 %v326, %v339
      %v366 = vmul.f32 %v327, %v339
      %v367 = vmul.f32 %v328, %v339
      %v368 = vmul.f32 %v329, %v339
      %v369 = vmul.f32 %v330, %v339
      %v370 = vmul.f32 %v331, %v339
      %v371 = vmul.f32 %v332, %v339
      %v372 = vmul.f32 %v333, %v339
      %v373 = vld [vmem:[%s2] sm:$0x1]
      %v375 = vlaneseq
      %v376 = vshrl.u32 %v375, 7
      %v377 = vsub.s32 0, %v376
      %v378 = vrot.slane %v373, %v377
      %v380 = vadd.f32 %v341, %v378
      %v381 = vadd.f32 %v342, %v378
      %v382 = vadd.f32 %v343, %v378
      %v383 = vadd.f32 %v344, %v378
      %v384 = vadd.f32 %v345, %v378
      %v385 = vadd.f32 %v346, %v378
      %v386 = vadd.f32 %v347, %v378
      %v387 = vadd.f32 %v348, %v378
      %v388 = vadd.f32 %v349, %v378
      %v389 = vadd.f32 %v350, %v378
      %v390 = vadd.f32 %v351, %v378
      %v391 = vadd.f32 %v352, %v378
      %v392 = vadd.f32 %v353, %v378
      %v393 = vadd.f32 %v354, %v378
      %v394 = vadd.f32 %v355, %v378
      %v395 = vadd.f32 %v356, %v378
      %v396 = vadd.f32 %v357, %v378
      %v397 = vadd.f32 %v358, %v378
      %v398 = vadd.f32 %v359, %v378
      %v399 = vadd.f32 %v360, %v378
      %v400 = vadd.f32 %v361, %v378
      %v401 = vadd.f32 %v362, %v378
      %v402 = vadd.f32 %v363, %v378
      %v403 = vadd.f32 %v364, %v378
      %v404 = vadd.f32 %v365, %v378
      %v405 = vadd.f32 %v366, %v378
      %v406 = vadd.f32 %v367, %v378
      %v407 = vadd.f32 %v368, %v378
      %v408 = vadd.f32 %v369, %v378
      %v409 = vadd.f32 %v370, %v378
      %v410 = vadd.f32 %v371, %v378
      %v411 = vadd.f32 %v372, %v378
      %v412 = vmax.f32 %v380, 0.0
      %v413 = vmax.f32 %v381, 0.0
      %v414 = vmax.f32 %v382, 0.0
      %v415 = vmax.f32 %v383, 0.0
      %v416 = vmax.f32 %v384, 0.0
      %v417 = vmax.f32 %v385, 0.0
      %v418 = vmax.f32 %v386, 0.0
      %v419 = vmax.f32 %v387, 0.0
      %v420 = vmax.f32 %v388, 0.0
      %v421 = vmax.f32 %v389, 0.0
      %v422 = vmax.f32 %v390, 0.0
      %v423 = vmax.f32 %v391, 0.0
      %v424 = vmax.f32 %v392, 0.0
      %v425 = vmax.f32 %v393, 0.0
      %v426 = vmax.f32 %v394, 0.0
      %v427 = vmax.f32 %v395, 0.0
      %v428 = vmax.f32 %v396, 0.0
      %v429 = vmax.f32 %v397, 0.0
      %v430 = vmax.f32 %v398, 0.0
      %v431 = vmax.f32 %v399, 0.0
      %v432 = vmax.f32 %v400, 0.0
      %v433 = vmax.f32 %v401, 0.0
      %v434 = vmax.f32 %v402, 0.0
      %v435 = vmax.f32 %v403, 0.0
      %v436 = vmax.f32 %v404, 0.0
      %v437 = vmax.f32 %v405, 0.0
      %v438 = vmax.f32 %v406, 0.0
      %v439 = vmax.f32 %v407, 0.0
      %v440 = vmax.f32 %v408, 0.0
      %v441 = vmax.f32 %v409, 0.0
      %v442 = vmax.f32 %v410, 0.0
      %v443 = vmax.f32 %v411, 0.0
      %v444 = vpack.c.bf16 %v413, %v412
      %v445 = vpack.c.bf16 %v415, %v414
      %v446 = vpack.c.bf16 %v417, %v416
      %v447 = vpack.c.bf16 %v419, %v418
      %v448 = vpack.c.bf16 %v421, %v420
      %v449 = vpack.c.bf16 %v423, %v422
      %v450 = vpack.c.bf16 %v425, %v424
      %v451 = vpack.c.bf16 %v427, %v426
      %v452 = vpack.c.bf16 %v429, %v428
      %v453 = vpack.c.bf16 %v431, %v430
      %v454 = vpack.c.bf16 %v433, %v432
      %v455 = vpack.c.bf16 %v435, %v434
      %v456 = vpack.c.bf16 %v437, %v436
      %v457 = vpack.c.bf16 %v439, %v438
      %v458 = vpack.c.bf16 %v441, %v440
      %v459 = vpack.c.bf16 %v443, %v442
      %v461 = vshrl.u32 0, 16
      %v463 = vrot.slane %v461, 7
      %v464 = vshll.u32 0, 16
      %v466 = vor.u32 %v463, %v464
      %v468 = vshrl.u32 %v444, 16
      %v470 = vrot.slane %v468, 7
      %v471 = vshll.u32 %v444, 16
      %v473 = vor.u32 %v470, %v471
      %v475 = vshrl.u32 %v445, 16
      %v477 = vrot.slane %v475, 7
      %v478 = vshll.u32 %v445, 16
      %v480 = vor.u32 %v477, %v478
      %v482 = vshrl.u32 %v446, 16
      %v484 = vrot.slane %v482, 7
      %v485 = vshll.u32 %v446, 16
      %v487 = vor.u32 %v484, %v485
      %v489 = vshrl.u32 %v447, 16
      %v491 = vrot.slane %v489, 7
      %v492 = vshll.u32 %v447, 16
      %v494 = vor.u32 %v491, %v492
      %v496 = vshrl.u32 %v448, 16
      %v498 = vrot.slane %v496, 7
      %v499 = vshll.u32 %v448, 16
      %v501 = vor.u32 %v498, %v499
      %v503 = vshrl.u32 %v449, 16
      %v505 = vrot.slane %v503, 7
      %v506 = vshll.u32 %v449, 16
      %v508 = vor.u32 %v505, %v506
      %v510 = vshrl.u32 %v450, 16
      %v512 = vrot.slane %v510, 7
      %v513 = vshll.u32 %v450, 16
      %v515 = vor.u32 %v512, %v513
      %v517 = vshrl.u32 %v451, 16
      %v519 = vrot.slane %v517, 7
      %v520 = vshll.u32 %v451, 16
      %v522 = vor.u32 %v519, %v520
      %v524 = vshrl.u32 %v452, 16
      %v526 = vrot.slane %v524, 7
      %v527 = vshll.u32 %v452, 16
      %v529 = vor.u32 %v526, %v527
      %v531 = vshrl.u32 %v453, 16
      %v533 = vrot.slane %v531, 7
      %v534 = vshll.u32 %v453, 16
      %v536 = vor.u32 %v533, %v534
      %v538 = vshrl.u32 %v454, 16
      %v540 = vrot.slane %v538, 7
      %v541 = vshll.u32 %v454, 16
      %v543 = vor.u32 %v540, %v541
      %v545 = vshrl.u32 %v455, 16
      %v547 = vrot.slane %v545, 7
      %v548 = vshll.u32 %v455, 16
      %v550 = vor.u32 %v547, %v548
      %v552 = vshrl.u32 %v456, 16
      %v554 = vrot.slane %v552, 7
      %v555 = vshll.u32 %v456, 16
      %v557 = vor.u32 %v554, %v555
      %v559 = vshrl.u32 %v457, 16
      %v561 = vrot.slane %v559, 7
      %v562 = vshll.u32 %v457, 16
      %v564 = vor.u32 %v561, %v562
      %v566 = vshrl.u32 %v458, 16
      %v568 = vrot.slane %v566, 7
      %v569 = vshll.u32 %v458, 16
      %v571 = vor.u32 %v568, %v569
      %v573 = vshrl.u32 %v459, 16
      %v575 = vrot.slane %v573, 7
      %v576 = vshll.u32 %v459, 16
      %v578 = vor.u32 %v575, %v576
      %vm613 = vcmask 1040384
      %vm614 = vsmask.f32 256
      %vm615 = vmand %vm613, %vm614
      %v616 = vsel %vm615, 0, %v466
      %v617 = vsel %vm615, 0, %v473
      %v618 = vsel %vm615, 0, %v480
      %v619 = vsel %vm615, 0, %v487
      %v620 = vsel %vm615, 0, %v494
      %v621 = vsel %vm615, 0, %v501
      %v622 = vsel %vm615, 0, %v508
      %v623 = vsel %vm615, 0, %v515
      %v624 = vsel %vm615, 0, %v522
      %v625 = vsel %vm615, 0, %v529
      %v626 = vsel %vm615, 0, %v536
      %v627 = vsel %vm615, 0, %v543
      %v628 = vsel %vm615, 0, %v550
      %v629 = vsel %vm615, 0, %v557
      %v630 = vsel %vm615, 0, %v564
      %v631 = vsel %vm615, 0, %v571
      %v632 = vsel %vm615, 0, %v578
      %v633 = vsel %vm615, %v463, 0
      %v634 = vsel %vm615, %v470, 0
      %v635 = vsel %vm615, %v477, 0
      %v636 = vsel %vm615, %v484, 0
      %v637 = vsel %vm615, %v491, 0
      %v638 = vsel %vm615, %v498, 0
      %v639 = vsel %vm615, %v505, 0
      %v640 = vsel %vm615, %v512, 0
      %v641 = vsel %vm615, %v519, 0
      %v642 = vsel %vm615, %v526, 0
      %v643 = vsel %vm615, %v533, 0
      %v644 = vsel %vm615, %v540, 0
      %v645 = vsel %vm615, %v547, 0
      %v646 = vsel %vm615, %v554, 0
      %v647 = vsel %vm615, %v561, 0
      %v648 = vsel %vm615, %v568, 0
      %v649 = vsel %vm615, %v575, 0
      %v650 = vld [vmem:[%s3] sm:$0x3]
      %vm651 = vsmask.f32 7424
      %v653 = vshrl.u32 %v616, 16
      %v655 = vshll.u32 %v616, 16
      %v657 = vrot.slane %v655, 1
      %v658 = vor.u32 %v653, %v657
      %v660 = vshll.u32 %v633, 16
      %v662 = vrot.slane %v660, 1
      %v663 = vsel %vm651, %v658, %v662
      %v665 = vshrl.u32 %v617, 16
      %v667 = vshll.u32 %v617, 16
      %v669 = vrot.slane %v667, 1
      %v670 = vor.u32 %v665, %v669
      %v672 = vshll.u32 %v634, 16
      %v674 = vrot.slane %v672, 1
      %v675 = vsel %vm651, %v670, %v674
      %v677 = vshrl.u32 %v618, 16
      %v679 = vshll.u32 %v618, 16
      %v681 = vrot.slane %v679, 1
      %v682 = vor.u32 %v677, %v681
      %v684 = vshll.u32 %v635, 16
      %v686 = vrot.slane %v684, 1
      %v687 = vsel %vm651, %v682, %v686
      %v689 = vshrl.u32 %v619, 16
      %v691 = vshll.u32 %v619, 16
      %v693 = vrot.slane %v691, 1
      %v694 = vor.u32 %v689, %v693
      %v696 = vshll.u32 %v636, 16
      %v698 = vrot.slane %v696, 1
      %v699 = vsel %vm651, %v694, %v698
      %v701 = vshrl.u32 %v620, 16
      %v703 = vshll.u32 %v620, 16
      %v705 = vrot.slane %v703, 1
      %v706 = vor.u32 %v701, %v705
      %v708 = vshll.u32 %v637, 16
      %v710 = vrot.slane %v708, 1
      %v711 = vsel %vm651, %v706, %v710
      %v713 = vshrl.u32 %v621, 16
      %v715 = vshll.u32 %v621, 16
      %v717 = vrot.slane %v715, 1
      %v718 = vor.u32 %v713, %v717
      %v720 = vshll.u32 %v638, 16
      %v722 = vrot.slane %v720, 1
      %v723 = vsel %vm651, %v718, %v722
      %v725 = vshrl.u32 %v622, 16
      %v727 = vshll.u32 %v622, 16
      %v729 = vrot.slane %v727, 1
      %v730 = vor.u32 %v725, %v729
      %v732 = vshll.u32 %v639, 16
      %v734 = vrot.slane %v732, 1
      %v735 = vsel %vm651, %v730, %v734
      %v737 = vshrl.u32 %v623, 16
      %v739 = vshll.u32 %v623, 16
      %v741 = vrot.slane %v739, 1
      %v742 = vor.u32 %v737, %v741
      %v744 = vshll.u32 %v640, 16
      %v746 = vrot.slane %v744, 1
      %v747 = vsel %vm651, %v742, %v746
      %v749 = vshrl.u32 %v624, 16
      %v751 = vshll.u32 %v624, 16
      %v753 = vrot.slane %v751, 1
      %v754 = vor.u32 %v749, %v753
      %v756 = vshll.u32 %v641, 16
      %v758 = vrot.slane %v756, 1
      %v759 = vsel %vm651, %v754, %v758
      %v761 = vshrl.u32 %v625, 16
      %v763 = vshll.u32 %v625, 16
      %v765 = vrot.slane %v763, 1
      %v766 = vor.u32 %v761, %v765
      %v768 = vshll.u32 %v642, 16
      %v770 = vrot.slane %v768, 1
      %v771 = vsel %vm651, %v766, %v770
      %v773 = vshrl.u32 %v626, 16
      %v775 = vshll.u32 %v626, 16
      %v777 = vrot.slane %v775, 1
      %v778 = vor.u32 %v773, %v777
      %v780 = vshll.u32 %v643, 16
      %v782 = vrot.slane %v780, 1
      %v783 = vsel %vm651, %v778, %v782
      %v785 = vshrl.u32 %v627, 16
      %v787 = vshll.u32 %v627, 16
      %v789 = vrot.slane %v787, 1
      %v790 = vor.u32 %v785, %v789
      %v792 = vshll.u32 %v644, 16
      %v794 = vrot.slane %v792, 1
      %v795 = vsel %vm651, %v790, %v794
      %v797 = vshrl.u32 %v628, 16
      %v799 = vshll.u32 %v628, 16
      %v801 = vrot.slane %v799, 1
      %v802 = vor.u32 %v797, %v801
      %v804 = vshll.u32 %v645, 16
      %v806 = vrot.slane %v804, 1
      %v807 = vsel %vm651, %v802, %v806
      %v809 = vshrl.u32 %v629, 16
      %v811 = vshll.u32 %v629, 16
      %v813 = vrot.slane %v811, 1
      %v814 = vor.u32 %v809, %v813
      %v816 = vshll.u32 %v646, 16
      %v818 = vrot.slane %v816, 1
      %v819 = vsel %vm651, %v814, %v818
      %v821 = vshrl.u32 %v630, 16
      %v823 = vshll.u32 %v630, 16
      %v825 = vrot.slane %v823, 1
      %v826 = vor.u32 %v821, %v825
      %v828 = vshll.u32 %v647, 16
      %v830 = vrot.slane %v828, 1
      %v831 = vsel %vm651, %v826, %v830
      %v833 = vshrl.u32 %v631, 16
      %v835 = vshll.u32 %v631, 16
      %v837 = vrot.slane %v835, 1
      %v838 = vor.u32 %v833, %v837
      %v840 = vshll.u32 %v648, 16
      %v842 = vrot.slane %v840, 1
      %v843 = vsel %vm651, %v838, %v842
      %s844 = scalar_lea.vmem %s3, 2
      %v845 = vld [vmem:[%s844] sm:$0x3]
      %vm846 = vcmask 31744
      %v848 = vsel %vm846, %v663, 0
      %v851 = vsel %vm846, %v675, 0
      %v854 = vsel %vm846, %v687, 0
      %v857 = vsel %vm846, %v699, 0
      %v860 = vsel %vm846, %v711, 0
      %v863 = vsel %vm846, %v723, 0
      %v866 = vsel %vm846, %v735, 0
      %v869 = vsel %vm846, %v747, 0
      %v872 = vsel %vm846, %v759, 0
      %v875 = vsel %vm846, %v771, 0
      %v878 = vsel %vm846, %v783, 0
      %v881 = vsel %vm846, %v795, 0
      %v884 = vsel %vm846, %v807, 0
      %v887 = vsel %vm846, %v819, 0
      %v890 = vsel %vm846, %v831, 0
      %v893 = vsel %vm846, %v843, 0
      %vm895 = vcmask 1041408
      %v897 = vsel %vm895, %v845, 0
      %899 = vmatprep.subr.bf16.mxu0 0
      %900 = vmatpush1.bf16.msra.mxu0 %v897
      %901 = vmatprep.subr.bf16.mxu0 0
      %902 = vmatpush1.bf16.msra.mxu0 0
      %903 = vmatprep.subr.bf16.mxu0 0
      %904 = vmatpush1.bf16.msra.mxu0 0
      %905 = vmatprep.subr.bf16.mxu0 0
      %906 = vmatpush1.bf16.msra.mxu0 0
      %907 = vmatprep.subr.bf16.mxu0 0
      %908 = vmatpush1.bf16.msra.mxu0 0
      %909 = vmatprep.subr.bf16.mxu0 0
      %910 = vmatpush1.bf16.msra.mxu0 0
      %911 = vmatprep.subr.bf16.mxu0 0
      %912 = vmatpush1.bf16.msra.mxu0 0
      %913 = vmatprep.subr.bf16.mxu0 0
      %914 = vmatpush1.bf16.msra.mxu0 0
      %915 = vmatprep.subr.bf16.mxu0 0
      %916 = vmatpush1.bf16.msra.mxu0 0
      %917 = vmatprep.subr.bf16.mxu0 0
      %918 = vmatpush1.bf16.msra.mxu0 0
      %919 = vmatprep.subr.bf16.mxu0 0
      %920 = vmatpush1.bf16.msra.mxu0 0
      %921 = vmatprep.subr.bf16.mxu0 0
      %922 = vmatpush1.bf16.msra.mxu0 0
      %923 = vmatprep.subr.bf16.mxu0 0
      %924 = vmatpush1.bf16.msra.mxu0 0
      %925 = vmatprep.subr.bf16.mxu0 0
      %926 = vmatpush1.bf16.msra.mxu0 0
      %927 = vmatprep.subr.bf16.mxu0 0
      %928 = vmatpush1.bf16.msra.mxu0 0
      %929 = vmatprep.subr.bf16.mxu0 0
      %930 = vmatpush1.bf16.msra.mxu0 0
      %931 = vmatprep.mubr.bf16.mxu0 0
      %932 = vmatmul.mubr.bf16.gmra.mrb[0].mxu0 %v848
      %v933 = vpop.f32.mrb[0].mxu0
      %v934 = vadd.f32 0.0, %v933
      %v935 = vpop.f32.mrb[0].mxu0
      %v936 = vpop.f32.mrb[0].mxu0
      %v937 = vadd.f32 0.0, %v936
      %v938 = vpop.f32.mrb[0].mxu0
      %939 = vmatprep.mubr.bf16.mxu0 0
      %940 = vmatmul.mubr.bf16.gmra.mrb[0].mxu0 %v851
      %v941 = vpop.f32.mrb[0].mxu0
      %v942 = vadd.f32 0.0, %v941
      %v943 = vpop.f32.mrb[0].mxu0
      %v944 = vpop.f32.mrb[0].mxu0
      %v945 = vadd.f32 0.0, %v944
      %v946 = vpop.f32.mrb[0].mxu0
      %947 = vmatprep.mubr.bf16.mxu0 0
      %948 = vmatmul.mubr.bf16.gmra.mrb[0].mxu0 %v854
      %v949 = vpop.f32.mrb[0].mxu0
      %v950 = vadd.f32 0.0, %v949
      %v951 = vpop.f32.mrb[0].mxu0
      %v952 = vpop.f32.mrb[0].mxu0
      %v953 = vadd.f32 0.0, %v952
      %v954 = vpop.f32.mrb[0].mxu0
      %955 = vmatprep.mubr.bf16.mxu0 0
      %956 = vmatmul.mubr.bf16.gmra.mrb[0].mxu0 %v857
      %v957 = vpop.f32.mrb[0].mxu0
      %v958 = vadd.f32 0.0, %v957
      %v959 = vpop.f32.mrb[0].mxu0
      %v960 = vpop.f32.mrb[0].mxu0
      %v961 = vadd.f32 0.0, %v960
      %v962 = vpop.f32.mrb[0].mxu0
      %963 = vmatprep.mubr.bf16.mxu0 0
      %964 = vmatmul.mubr.bf16.gmra.mrb[0].mxu0 %v860
      %v965 = vpop.f32.mrb[0].mxu0
      %v966 = vadd.f32 0.0, %v965
      %v967 = vpop.f32.mrb[0].mxu0
      %v968 = vpop.f32.mrb[0].mxu0
      %v969 = vadd.f32 0.0, %v968
      %v970 = vpop.f32.mrb[0].mxu0
      %971 = vmatprep.mubr.bf16.mxu0 0
      %972 = vmatmul.mubr.bf16.gmra.mrb[0].mxu0 %v863
      %v973 = vpop.f32.mrb[0].mxu0
      %v974 = vadd.f32 0.0, %v973
      %v975 = vpop.f32.mrb[0].mxu0
      %v976 = vpop.f32.mrb[0].mxu0
      %v977 = vadd.f32 0.0, %v976
      %v978 = vpop.f32.mrb[0].mxu0
      %979 = vmatprep.mubr.bf16.mxu0 0
      %980 = vmatmul.mubr.bf16.gmra.mrb[0].mxu0 %v866
      %v981 = vpop.f32.mrb[0].mxu0
      %v982 = vadd.f32 0.0, %v981
      %v983 = vpop.f32.mrb[0].mxu0
      %v984 = vpop.f32.mrb[0].mxu0
      %v985 = vadd.f32 0.0, %v984
      %v986 = vpop.f32.mrb[0].mxu0
      %987 = vmatprep.mubr.bf16.mxu0 0
      %988 = vmatmul.mubr.bf16.gmra.mrb[0].mxu0 %v869
      %v989 = vpop.f32.mrb[0].mxu0
      %v990 = vadd.f32 0.0, %v989
      %v991 = vpop.f32.mrb[0].mxu0
      %v992 = vpop.f32.mrb[0].mxu0
      %v993 = vadd.f32 0.0, %v992
      %v994 = vpop.f32.mrb[0].mxu0
      %995 = vmatprep.mubr.bf16.mxu0 0
      %996 = vmatmul.mubr.bf16.gmra.mrb[0].mxu0 %v872
      %v997 = vpop.f32.mrb[0].mxu0
      %v998 = vadd.f32 0.0, %v997
      %v999 = vpop.f32.mrb[0].mxu0
      %v1000 = vpop.f32.mrb[0].mxu0
      %v1001 = vadd.f32 0.0, %v1000
      %v1002 = vpop.f32.mrb[0].mxu0
      %1003 = vmatprep.mubr.bf16.mxu0 0
      %1004 = vmatmul.mubr.bf16.gmra.mrb[0].mxu0 %v875
      %v1005 = vpop.f32.mrb[0].mxu0
      %v1006 = vadd.f32 0.0, %v1005
      %v1007 = vpop.f32.mrb[0].mxu0
      %v1008 = vpop.f32.mrb[0].mxu0
      %v1009 = vadd.f32 0.0, %v1008
      %v1010 = vpop.f32.mrb[0].mxu0
      %1011 = vmatprep.mubr.bf16.mxu0 0
      %1012 = vmatmul.mubr.bf16.gmra.mrb[0].mxu0 %v878
      %v1013 = vpop.f32.mrb[0].mxu0
      %v1014 = vadd.f32 0.0, %v1013
      %v1015 = vpop.f32.mrb[0].mxu0
      %v1016 = vpop.f32.mrb[0].mxu0
      %v1017 = vadd.f32 0.0, %v1016
      %v1018 = vpop.f32.mrb[0].mxu0
      %1019 = vmatprep.mubr.bf16.mxu0 0
      %1020 = vmatmul.mubr.bf16.gmra.mrb[0].mxu0 %v881
      %v1021 = vpop.f32.mrb[0].mxu0
      %v1022 = vadd.f32 0.0, %v1021
      %v1023 = vpop.f32.mrb[0].mxu0
      %v1024 = vpop.f32.mrb[0].mxu0
      %v1025 = vadd.f32 0.0, %v1024
      %v1026 = vpop.f32.mrb[0].mxu0
      %1027 = vmatprep.mubr.bf16.mxu0 0
      %1028 = vmatmul.mubr.bf16.gmra.mrb[0].mxu0 %v884
      %v1029 = vpop.f32.mrb[0].mxu0
      %v1030 = vadd.f32 0.0, %v1029
      %v1031 = vpop.f32.mrb[0].mxu0
      %v1032 = vpop.f32.mrb[0].mxu0
      %v1033 = vadd.f32 0.0, %v1032
      %v1034 = vpop.f32.mrb[0].mxu0
      %1035 = vmatprep.mubr.bf16.mxu0 0
      %1036 = vmatmul.mubr.bf16.gmra.mrb[0].mxu0 %v887
      %v1037 = vpop.f32.mrb[0].mxu0
      %v1038 = vadd.f32 0.0, %v1037
      %v1039 = vpop.f32.mrb[0].mxu0
      %v1040 = vpop.f32.mrb[0].mxu0
      %v1041 = vadd.f32 0.0, %v1040
      %v1042 = vpop.f32.mrb[0].mxu0
      %1043 = vmatprep.mubr.bf16.mxu0 0
      %1044 = vmatmul.mubr.bf16.gmra.mrb[0].mxu0 %v890
      %v1045 = vpop.f32.mrb[0].mxu0
      %v1046 = vadd.f32 0.0, %v1045
      %v1047 = vpop.f32.mrb[0].mxu0
      %v1048 = vpop.f32.mrb[0].mxu0
      %v1049 = vadd.f32 0.0, %v1048
      %v1050 = vpop.f32.mrb[0].mxu0
      %1051 = vmatprep.mubr.bf16.mxu0 0
      %1052 = vmatmul.mubr.bf16.gmra.mrb[0].mxu0 %v893
      %v1053 = vpop.f32.mrb[0].mxu0
      %v1054 = vadd.f32 0.0, %v1053
      %v1055 = vpop.f32.mrb[0].mxu0
      %v1056 = vpop.f32.mrb[0].mxu0
      %v1057 = vadd.f32 0.0, %v1056
      %v1058 = vpop.f32.mrb[0].mxu0
      %1059 = vdwg.mxu0
      %v1060 = vsel %vm846, %v616, 0
      %v1062 = vsel %vm846, %v617, 0
      %v1064 = vsel %vm846, %v618, 0
      %v1066 = vsel %vm846, %v619, 0
      %v1068 = vsel %vm846, %v620, 0
      %v1070 = vsel %vm846, %v621, 0
      %v1072 = vsel %vm846, %v622, 0
      %v1074 = vsel %vm846, %v623, 0
      %v1076 = vsel %vm846, %v624, 0
      %v1078 = vsel %vm846, %v625, 0
      %v1080 = vsel %vm846, %v626, 0
      %v1082 = vsel %vm846, %v627, 0
      %v1084 = vsel %vm846, %v628, 0
      %v1086 = vsel %vm846, %v629, 0
      %v1088 = vsel %vm846, %v630, 0
      %v1090 = vsel %vm846, %v631, 0
      %v1093 = vsel %vm895, %v650, 0
      %1095 = vmatprep.subr.bf16.mxu0 0
      %1096 = vmatpush1.bf16.msra.mxu0 %v1093
      %1097 = vmatprep.subr.bf16.mxu0 0
      %1098 = vmatpush1.bf16.msra.mxu0 0
      %1099 = vmatprep.subr.bf16.mxu0 0
      %1100 = vmatpush1.bf16.msra.mxu0 0
      %1101 = vmatprep.subr.bf16.mxu0 0
      %1102 = vmatpush1.bf16.msra.mxu0 0
      %1103 = vmatprep.subr.bf16.mxu0 0
      %1104 = vmatpush1.bf16.msra.mxu0 0
      %1105 = vmatprep.subr.bf16.mxu0 0
      %1106 = vmatpush1.bf16.msra.mxu0 0
      %1107 = vmatprep.subr.bf16.mxu0 0
      %1108 = vmatpush1.bf16.msra.mxu0 0
      %1109 = vmatprep.subr.bf16.mxu0 0
      %1110 = vmatpush1.bf16.msra.mxu0 0
      %1111 = vmatprep.subr.bf16.mxu0 0
      %1112 = vmatpush1.bf16.msra.mxu0 0
      %1113 = vmatprep.subr.bf16.mxu0 0
      %1114 = vmatpush1.bf16.msra.mxu0 0
      %1115 = vmatprep.subr.bf16.mxu0 0
      %1116 = vmatpush1.bf16.msra.mxu0 0
      %1117 = vmatprep.subr.bf16.mxu0 0
      %1118 = vmatpush1.bf16.msra.mxu0 0
      %1119 = vmatprep.subr.bf16.mxu0 0
      %1120 = vmatpush1.bf16.msra.mxu0 0
      %1121 = vmatprep.subr.bf16.mxu0 0
      %1122 = vmatpush1.bf16.msra.mxu0 0
      %1123 = vmatprep.subr.bf16.mxu0 0
      %1124 = vmatpush1.bf16.msra.mxu0 0
      %1125 = vmatprep.subr.bf16.mxu0 0
      %1126 = vmatpush1.bf16.msra.mxu0 0
      %1127 = vmatprep.mubr.bf16.mxu0 0
      %1128 = vmatmul.mubr.bf16.gmra.mrb[0].mxu0 %v1060
      %v1129 = vpop.f32.mrb[0].mxu0
      %v1130 = vadd.f32 %v934, %v1129
      %v1131 = vpop.f32.mrb[0].mxu0
      %v1132 = vpop.f32.mrb[0].mxu0
      %v1133 = vadd.f32 %v937, %v1132
      %v1134 = vpop.f32.mrb[0].mxu0
      %1135 = vmatprep.mubr.bf16.mxu0 0
      %1136 = vmatmul.mubr.bf16.gmra.mrb[0].mxu0 %v1062
      %v1137 = vpop.f32.mrb[0].mxu0
      %v1138 = vadd.f32 %v942, %v1137
      %v1139 = vpop.f32.mrb[0].mxu0
      %v1140 = vpop.f32.mrb[0].mxu0
      %v1141 = vadd.f32 %v945, %v1140
      %v1142 = vpop.f32.mrb[0].mxu0
      %1143 = vmatprep.mubr.bf16.mxu0 0
      %1144 = vmatmul.mubr.bf16.gmra.mrb[0].mxu0 %v1064
      %v1145 = vpop.f32.mrb[0].mxu0
      %v1146 = vadd.f32 %v950, %v1145
      %v1147 = vpop.f32.mrb[0].mxu0
      %v1148 = vpop.f32.mrb[0].mxu0
      %v1149 = vadd.f32 %v953, %v1148
      %v1150 = vpop.f32.mrb[0].mxu0
      %1151 = vmatprep.mubr.bf16.mxu0 0
      %1152 = vmatmul.mubr.bf16.gmra.mrb[0].mxu0 %v1066
      %v1153 = vpop.f32.mrb[0].mxu0
      %v1154 = vadd.f32 %v958, %v1153
      %v1155 = vpop.f32.mrb[0].mxu0
      %v1156 = vpop.f32.mrb[0].mxu0
      %v1157 = vadd.f32 %v961, %v1156
      %v1158 = vpop.f32.mrb[0].mxu0
      %1159 = vmatprep.mubr.bf16.mxu0 0
      %1160 = vmatmul.mubr.bf16.gmra.mrb[0].mxu0 %v1068
      %v1161 = vpop.f32.mrb[0].mxu0
      %v1162 = vadd.f32 %v966, %v1161
      %v1163 = vpop.f32.mrb[0].mxu0
      %v1164 = vpop.f32.mrb[0].mxu0
      %v1165 = vadd.f32 %v969, %v1164
      %v1166 = vpop.f32.mrb[0].mxu0
      %1167 = vmatprep.mubr.bf16.mxu0 0
      %1168 = vmatmul.mubr.bf16.gmra.mrb[0].mxu0 %v1070
      %v1169 = vpop.f32.mrb[0].mxu0
      %v1170 = vadd.f32 %v974, %v1169
      %v1171 = vpop.f32.mrb[0].mxu0
      %v1172 = vpop.f32.mrb[0].mxu0
      %v1173 = vadd.f32 %v977, %v1172
      %v1174 = vpop.f32.mrb[0].mxu0
      %1175 = vmatprep.mubr.bf16.mxu0 0
      %1176 = vmatmul.mubr.bf16.gmra.mrb[0].mxu0 %v1072
      %v1177 = vpop.f32.mrb[0].mxu0
      %v1178 = vadd.f32 %v982, %v1177
      %v1179 = vpop.f32.mrb[0].mxu0
      %v1180 = vpop.f32.mrb[0].mxu0
      %v1181 = vadd.f32 %v985, %v1180
      %v1182 = vpop.f32.mrb[0].mxu0
      %1183 = vmatprep.mubr.bf16.mxu0 0
      %1184 = vmatmul.mubr.bf16.gmra.mrb[0].mxu0 %v1074
      %v1185 = vpop.f32.mrb[0].mxu0
      %v1186 = vadd.f32 %v990, %v1185
      %v1187 = vpop.f32.mrb[0].mxu0
      %v1188 = vpop.f32.mrb[0].mxu0
      %v1189 = vadd.f32 %v993, %v1188
      %v1190 = vpop.f32.mrb[0].mxu0
      %1191 = vmatprep.mubr.bf16.mxu0 0
      %1192 = vmatmul.mubr.bf16.gmra.mrb[0].mxu0 %v1076
      %v1193 = vpop.f32.mrb[0].mxu0
      %v1194 = vadd.f32 %v998, %v1193
      %v1195 = vpop.f32.mrb[0].mxu0
      %v1196 = vpop.f32.mrb[0].mxu0
      %v1197 = vadd.f32 %v1001, %v1196
      %v1198 = vpop.f32.mrb[0].mxu0
      %1199 = vmatprep.mubr.bf16.mxu0 0
      %1200 = vmatmul.mubr.bf16.gmra.mrb[0].mxu0 %v1078
      %v1201 = vpop.f32.mrb[0].mxu0
      %v1202 = vadd.f32 %v1006, %v1201
      %v1203 = vpop.f32.mrb[0].mxu0
      %v1204 = vpop.f32.mrb[0].mxu0
      %v1205 = vadd.f32 %v1009, %v1204
      %v1206 = vpop.f32.mrb[0].mxu0
      %1207 = vmatprep.mubr.bf16.mxu0 0
      %1208 = vmatmul.mubr.bf16.gmra.mrb[0].mxu0 %v1080
      %v1209 = vpop.f32.mrb[0].mxu0
      %v1210 = vadd.f32 %v1014, %v1209
      %v1211 = vpop.f32.mrb[0].mxu0
      %v1212 = vpop.f32.mrb[0].mxu0
      %v1213 = vadd.f32 %v1017, %v1212
      %v1214 = vpop.f32.mrb[0].mxu0
      %1215 = vmatprep.mubr.bf16.mxu0 0
      %1216 = vmatmul.mubr.bf16.gmra.mrb[0].mxu0 %v1082
      %v1217 = vpop.f32.mrb[0].mxu0
      %v1218 = vadd.f32 %v1022, %v1217
      %v1219 = vpop.f32.mrb[0].mxu0
      %v1220 = vpop.f32.mrb[0].mxu0
      %v1221 = vadd.f32 %v1025, %v1220
      %v1222 = vpop.f32.mrb[0].mxu0
      %1223 = vmatprep.mubr.bf16.mxu0 0
      %1224 = vmatmul.mubr.bf16.gmra.mrb[0].mxu0 %v1084
      %v1225 = vpop.f32.mrb[0].mxu0
      %v1226 = vadd.f32 %v1030, %v1225
      %v1227 = vpop.f32.mrb[0].mxu0
      %v1228 = vpop.f32.mrb[0].mxu0
      %v1229 = vadd.f32 %v1033, %v1228
      %v1230 = vpop.f32.mrb[0].mxu0
      %1231 = vmatprep.mubr.bf16.mxu0 0
      %1232 = vmatmul.mubr.bf16.gmra.mrb[0].mxu0 %v1086
      %v1233 = vpop.f32.mrb[0].mxu0
      %v1234 = vadd.f32 %v1038, %v1233
      %v1235 = vpop.f32.mrb[0].mxu0
      %v1236 = vpop.f32.mrb[0].mxu0
      %v1237 = vadd.f32 %v1041, %v1236
      %v1238 = vpop.f32.mrb[0].mxu0
      %1239 = vmatprep.mubr.bf16.mxu0 0
      %1240 = vmatmul.mubr.bf16.gmra.mrb[0].mxu0 %v1088
      %v1241 = vpop.f32.mrb[0].mxu0
      %v1242 = vadd.f32 %v1046, %v1241
      %v1243 = vpop.f32.mrb[0].mxu0
      %v1244 = vpop.f32.mrb[0].mxu0
      %v1245 = vadd.f32 %v1049, %v1244
      %v1246 = vpop.f32.mrb[0].mxu0
      %1247 = vmatprep.mubr.bf16.mxu0 0
      %1248 = vmatmul.mubr.bf16.gmra.mrb[0].mxu0 %v1090
      %v1249 = vpop.f32.mrb[0].mxu0
      %v1250 = vadd.f32 %v1054, %v1249
      %v1251 = vpop.f32.mrb[0].mxu0
      %v1252 = vpop.f32.mrb[0].mxu0
      %v1253 = vadd.f32 %v1057, %v1252
      %v1254 = vpop.f32.mrb[0].mxu0
      %1255 = vdwg.mxu0
      %vm1288 = vcmask 1046528
      %v1289 = vrot.slane %v616, 1
      %v1290 = vrot.slane %v633, 1
      %v1291 = vsel %vm1288, %v1289, %v1290
      %v1292 = vrot.slane %v617, 1
      %v1293 = vrot.slane %v634, 1
      %v1294 = vsel %vm1288, %v1292, %v1293
      %v1295 = vrot.slane %v618, 1
      %v1296 = vrot.slane %v635, 1
      %v1297 = vsel %vm1288, %v1295, %v1296
      %v1298 = vrot.slane %v619, 1
      %v1299 = vrot.slane %v636, 1
      %v1300 = vsel %vm1288, %v1298, %v1299
      %v1301 = vrot.slane %v620, 1
      %v1302 = vrot.slane %v637, 1
      %v1303 = vsel %vm1288, %v1301, %v1302
      %v1304 = vrot.slane %v621, 1
      %v1305 = vrot.slane %v638, 1
      %v1306 = vsel %vm1288, %v1304, %v1305
      %v1307 = vrot.slane %v622, 1
      %v1308 = vrot.slane %v639, 1
      %v1309 = vsel %vm1288, %v1307, %v1308
      %v1310 = vrot.slane %v623, 1
      %v1311 = vrot.slane %v640, 1
      %v1312 = vsel %vm1288, %v1310, %v1311
      %v1313 = vrot.slane %v624, 1
      %v1314 = vrot.slane %v641, 1
      %v1315 = vsel %vm1288, %v1313, %v1314
      %v1316 = vrot.slane %v625, 1
      %v1317 = vrot.slane %v642, 1
      %v1318 = vsel %vm1288, %v1316, %v1317
      %v1319 = vrot.slane %v626, 1
      %v1320 = vrot.slane %v643, 1
      %v1321 = vsel %vm1288, %v1319, %v1320
      %v1322 = vrot.slane %v627, 1
      %v1323 = vrot.slane %v644, 1
      %v1324 = vsel %vm1288, %v1322, %v1323
      %v1325 = vrot.slane %v628, 1
      %v1326 = vrot.slane %v645, 1
      %v1327 = vsel %vm1288, %v1325, %v1326
      %v1328 = vrot.slane %v629, 1
      %v1329 = vrot.slane %v646, 1
      %v1330 = vsel %vm1288, %v1328, %v1329
      %v1331 = vrot.slane %v630, 1
      %v1332 = vrot.slane %v647, 1
      %v1333 = vsel %vm1288, %v1331, %v1332
      %v1334 = vrot.slane %v631, 1
      %v1335 = vrot.slane %v648, 1
      %v1336 = vsel %vm1288, %v1334, %v1335
      %s1337 = scalar_lea.vmem %s3, 4
      %v1338 = vld [vmem:[%s1337] sm:$0x3]
      %v1340 = vsel %vm846, %v1291, 0
      %v1343 = vsel %vm846, %v1294, 0
      %v1346 = vsel %vm846, %v1297, 0
      %v1349 = vsel %vm846, %v1300, 0
      %v1352 = vsel %vm846, %v1303, 0
      %v1355 = vsel %vm846, %v1306, 0
      %v1358 = vsel %vm846, %v1309, 0
      %v1361 = vsel %vm846, %v1312, 0
      %v1364 = vsel %vm846, %v1315, 0
      %v1367 = vsel %vm846, %v1318, 0
      %v1370 = vsel %vm846, %v1321, 0
      %v1373 = vsel %vm846, %v1324, 0
      %v1376 = vsel %vm846, %v1327, 0
      %v1379 = vsel %vm846, %v1330, 0
      %v1382 = vsel %vm846, %v1333, 0
      %v1385 = vsel %vm846, %v1336, 0
      %v1388 = vsel %vm895, %v1338, 0
      %1390 = vmatprep.subr.bf16.mxu0 0
      %1391 = vmatpush1.bf16.msra.mxu0 %v1388
      %1392 = vmatprep.subr.bf16.mxu0 0
      %1393 = vmatpush1.bf16.msra.mxu0 0
      %1394 = vmatprep.subr.bf16.mxu0 0
      %1395 = vmatpush1.bf16.msra.mxu0 0
      %1396 = vmatprep.subr.bf16.mxu0 0
      %1397 = vmatpush1.bf16.msra.mxu0 0
      %1398 = vmatprep.subr.bf16.mxu0 0
      %1399 = vmatpush1.bf16.msra.mxu0 0
      %1400 = vmatprep.subr.bf16.mxu0 0
      %1401 = vmatpush1.bf16.msra.mxu0 0
      %1402 = vmatprep.subr.bf16.mxu0 0
      %1403 = vmatpush1.bf16.msra.mxu0 0
      %1404 = vmatprep.subr.bf16.mxu0 0
      %1405 = vmatpush1.bf16.msra.mxu0 0
      %1406 = vmatprep.subr.bf16.mxu0 0
      %1407 = vmatpush1.bf16.msra.mxu0 0
      %1408 = vmatprep.subr.bf16.mxu0 0
      %1409 = vmatpush1.bf16.msra.mxu0 0
      %1410 = vmatprep.subr.bf16.mxu0 0
      %1411 = vmatpush1.bf16.msra.mxu0 0
      %1412 = vmatprep.subr.bf16.mxu0 0
      %1413 = vmatpush1.bf16.msra.mxu0 0
      %1414 = vmatprep.subr.bf16.mxu0 0
      %1415 = vmatpush1.bf16.msra.mxu0 0
      %1416 = vmatprep.subr.bf16.mxu0 0
      %1417 = vmatpush1.bf16.msra.mxu0 0
      %1418 = vmatprep.subr.bf16.mxu0 0
      %1419 = vmatpush1.bf16.msra.mxu0 0
      %1420 = vmatprep.subr.bf16.mxu0 0
      %1421 = vmatpush1.bf16.msra.mxu0 0
      %1422 = vmatprep.mubr.bf16.mxu0 0
      %1423 = vmatmul.mubr.bf16.gmra.mrb[0].mxu0 %v1340
      %v1424 = vpop.f32.mrb[0].mxu0
      %v1425 = vadd.f32 0.0, %v1424
      %v1426 = vpop.f32.mrb[0].mxu0
      %v1427 = vpop.f32.mrb[0].mxu0
      %v1428 = vadd.f32 0.0, %v1427
      %v1429 = vpop.f32.mrb[0].mxu0
      %1430 = vmatprep.mubr.bf16.mxu0 0
      %1431 = vmatmul.mubr.bf16.gmra.mrb[0].mxu0 %v1343
      %v1432 = vpop.f32.mrb[0].mxu0
      %v1433 = vadd.f32 0.0, %v1432
      %v1434 = vpop.f32.mrb[0].mxu0
      %v1435 = vpop.f32.mrb[0].mxu0
      %v1436 = vadd.f32 0.0, %v1435
      %v1437 = vpop.f32.mrb[0].mxu0
      %1438 = vmatprep.mubr.bf16.mxu0 0
      %1439 = vmatmul.mubr.bf16.gmra.mrb[0].mxu0 %v1346
      %v1440 = vpop.f32.mrb[0].mxu0
      %v1441 = vadd.f32 0.0, %v1440
      %v1442 = vpop.f32.mrb[0].mxu0
      %v1443 = vpop.f32.mrb[0].mxu0
      %v1444 = vadd.f32 0.0, %v1443
      %v1445 = vpop.f32.mrb[0].mxu0
      %1446 = vmatprep.mubr.bf16.mxu0 0
      %1447 = vmatmul.mubr.bf16.gmra.mrb[0].mxu0 %v1349
      %v1448 = vpop.f32.mrb[0].mxu0
      %v1449 = vadd.f32 0.0, %v1448
      %v1450 = vpop.f32.mrb[0].mxu0
      %v1451 = vpop.f32.mrb[0].mxu0
      %v1452 = vadd.f32 0.0, %v1451
      %v1453 = vpop.f32.mrb[0].mxu0
      %1454 = vmatprep.mubr.bf16.mxu0 0
      %1455 = vmatmul.mubr.bf16.gmra.mrb[0].mxu0 %v1352
      %v1456 = vpop.f32.mrb[0].mxu0
      %v1457 = vadd.f32 0.0, %v1456
      %v1458 = vpop.f32.mrb[0].mxu0
      %v1459 = vpop.f32.mrb[0].mxu0
      %v1460 = vadd.f32 0.0, %v1459
      %v1461 = vpop.f32.mrb[0].mxu0
      %1462 = vmatprep.mubr.bf16.mxu0 0
      %1463 = vmatmul.mubr.bf16.gmra.mrb[0].mxu0 %v1355
      %v1464 = vpop.f32.mrb[0].mxu0
      %v1465 = vadd.f32 0.0, %v1464
      %v1466 = vpop.f32.mrb[0].mxu0
      %v1467 = vpop.f32.mrb[0].mxu0
      %v1468 = vadd.f32 0.0, %v1467
      %v1469 = vpop.f32.mrb[0].mxu0
      %1470 = vmatprep.mubr.bf16.mxu0 0
      %1471 = vmatmul.mubr.bf16.gmra.mrb[0].mxu0 %v1358
      %v1472 = vpop.f32.mrb[0].mxu0
      %v1473 = vadd.f32 0.0, %v1472
      %v1474 = vpop.f32.mrb[0].mxu0
      %v1475 = vpop.f32.mrb[0].mxu0
      %v1476 = vadd.f32 0.0, %v1475
      %v1477 = vpop.f32.mrb[0].mxu0
      %1478 = vmatprep.mubr.bf16.mxu0 0
      %1479 = vmatmul.mubr.bf16.gmra.mrb[0].mxu0 %v1361
      %v1480 = vpop.f32.mrb[0].mxu0
      %v1481 = vadd.f32 0.0, %v1480
      %v1482 = vpop.f32.mrb[0].mxu0
      %v1483 = vpop.f32.mrb[0].mxu0
      %v1484 = vadd.f32 0.0, %v1483
      %v1485 = vpop.f32.mrb[0].mxu0
      %1486 = vmatprep.mubr.bf16.mxu0 0
      %1487 = vmatmul.mubr.bf16.gmra.mrb[0].mxu0 %v1364
      %v1488 = vpop.f32.mrb[0].mxu0
      %v1489 = vadd.f32 0.0, %v1488
      %v1490 = vpop.f32.mrb[0].mxu0
      %v1491 = vpop.f32.mrb[0].mxu0
      %v1492 = vadd.f32 0.0, %v1491
      %v1493 = vpop.f32.mrb[0].mxu0
      %1494 = vmatprep.mubr.bf16.mxu0 0
      %1495 = vmatmul.mubr.bf16.gmra.mrb[0].mxu0 %v1367
      %v1496 = vpop.f32.mrb[0].mxu0
      %v1497 = vadd.f32 0.0, %v1496
      %v1498 = vpop.f32.mrb[0].mxu0
      %v1499 = vpop.f32.mrb[0].mxu0
      %v1500 = vadd.f32 0.0, %v1499
      %v1501 = vpop.f32.mrb[0].mxu0
      %1502 = vmatprep.mubr.bf16.mxu0 0
      %1503 = vmatmul.mubr.bf16.gmra.mrb[0].mxu0 %v1370
      %v1504 = vpop.f32.mrb[0].mxu0
      %v1505 = vadd.f32 0.0, %v1504
      %v1506 = vpop.f32.mrb[0].mxu0
      %v1507 = vpop.f32.mrb[0].mxu0
      %v1508 = vadd.f32 0.0, %v1507
      %v1509 = vpop.f32.mrb[0].mxu0
      %1510 = vmatprep.mubr.bf16.mxu0 0
      %1511 = vmatmul.mubr.bf16.gmra.mrb[0].mxu0 %v1373
      %v1512 = vpop.f32.mrb[0].mxu0
      %v1513 = vadd.f32 0.0, %v1512
      %v1514 = vpop.f32.mrb[0].mxu0
      %v1515 = vpop.f32.mrb[0].mxu0
      %v1516 = vadd.f32 0.0, %v1515
      %v1517 = vpop.f32.mrb[0].mxu0
      %1518 = vmatprep.mubr.bf16.mxu0 0
      %1519 = vmatmul.mubr.bf16.gmra.mrb[0].mxu0 %v1376
      %v1520 = vpop.f32.mrb[0].mxu0
      %v1521 = vadd.f32 0.0, %v1520
      %v1522 = vpop.f32.mrb[0].mxu0
      %v1523 = vpop.f32.mrb[0].mxu0
      %v1524 = vadd.f32 0.0, %v1523
      %v1525 = vpop.f32.mrb[0].mxu0
      %1526 = vmatprep.mubr.bf16.mxu0 0
      %1527 = vmatmul.mubr.bf16.gmra.mrb[0].mxu0 %v1379
      %v1528 = vpop.f32.mrb[0].mxu0
      %v1529 = vadd.f32 0.0, %v1528
      %v1530 = vpop.f32.mrb[0].mxu0
      %v1531 = vpop.f32.mrb[0].mxu0
      %v1532 = vadd.f32 0.0, %v1531
      %v1533 = vpop.f32.mrb[0].mxu0
      %1534 = vmatprep.mubr.bf16.mxu0 0
      %1535 = vmatmul.mubr.bf16.gmra.mrb[0].mxu0 %v1382
      %v1536 = vpop.f32.mrb[0].mxu0
      %v1537 = vadd.f32 0.0, %v1536
      %v1538 = vpop.f32.mrb[0].mxu0
      %v1539 = vpop.f32.mrb[0].mxu0
      %v1540 = vadd.f32 0.0, %v1539
      %v1541 = vpop.f32.mrb[0].mxu0
      %1542 = vmatprep.mubr.bf16.mxu0 0
      %1543 = vmatmul.mubr.bf16.gmra.mrb[0].mxu0 %v1385
      %v1544 = vpop.f32.mrb[0].mxu0
      %v1545 = vadd.f32 0.0, %v1544
      %v1546 = vpop.f32.mrb[0].mxu0
      %v1547 = vpop.f32.mrb[0].mxu0
      %v1548 = vadd.f32 0.0, %v1547
      %v1549 = vpop.f32.mrb[0].mxu0
      %1550 = vdwg.mxu0
      %v1551 = vadd.f32 %v1130, %v1425
      %v1552 = vadd.f32 %v1133, %v1428
      %v1553 = vadd.f32 %v1138, %v1433
      %v1554 = vadd.f32 %v1141, %v1436
      %v1555 = vadd.f32 %v1146, %v1441
      %v1556 = vadd.f32 %v1149, %v1444
      %v1557 = vadd.f32 %v1154, %v1449
      %v1558 = vadd.f32 %v1157, %v1452
      %v1559 = vadd.f32 %v1162, %v1457
      %v1560 = vadd.f32 %v1165, %v1460
      %v1561 = vadd.f32 %v1170, %v1465
      %v1562 = vadd.f32 %v1173, %v1468
      %v1563 = vadd.f32 %v1178, %v1473
      %v1564 = vadd.f32 %v1181, %v1476
      %v1565 = vadd.f32 %v1186, %v1481
      %v1566 = vadd.f32 %v1189, %v1484
      %v1567 = vadd.f32 %v1194, %v1489
      %v1568 = vadd.f32 %v1197, %v1492
      %v1569 = vadd.f32 %v1202, %v1497
      %v1570 = vadd.f32 %v1205, %v1500
      %v1571 = vadd.f32 %v1210, %v1505
      %v1572 = vadd.f32 %v1213, %v1508
      %v1573 = vadd.f32 %v1218, %v1513
      %v1574 = vadd.f32 %v1221, %v1516
      %v1575 = vadd.f32 %v1226, %v1521
      %v1576 = vadd.f32 %v1229, %v1524
      %v1577 = vadd.f32 %v1234, %v1529
      %v1578 = vadd.f32 %v1237, %v1532
      %v1579 = vadd.f32 %v1242, %v1537
      %v1580 = vadd.f32 %v1245, %v1540
      %v1581 = vadd.f32 %v1250, %v1545
      %v1582 = vadd.f32 %v1253, %v1548
      %s1583 = scalar_lea.vmem %s3, 6
      %v1584 = vld [vmem:[%s1583] sm:$0x3]
      %v1586 = vsel %vm846, %v632, 0
      %v1589 = vsel %vm895, %v1584, 0
      %1591 = vmatprep.subr.bf16.mxu0 0
      %1592 = vmatpush1.bf16.msra.mxu0 %v1589
      %1593 = vmatprep.subr.bf16.mxu0 0
      %1594 = vmatpush1.bf16.msra.mxu0 0
      %1595 = vmatprep.subr.bf16.mxu0 0
      %1596 = vmatpush1.bf16.msra.mxu0 0
      %1597 = vmatprep.subr.bf16.mxu0 0
      %1598 = vmatpush1.bf16.msra.mxu0 0
      %1599 = vmatprep.subr.bf16.mxu0 0
      %1600 = vmatpush1.bf16.msra.mxu0 0
      %1601 = vmatprep.subr.bf16.mxu0 0
      %1602 = vmatpush1.bf16.msra.mxu0 0
      %1603 = vmatprep.subr.bf16.mxu0 0
      %1604 = vmatpush1.bf16.msra.mxu0 0
      %1605 = vmatprep.subr.bf16.mxu0 0
      %1606 = vmatpush1.bf16.msra.mxu0 0
      %1607 = vmatprep.subr.bf16.mxu0 0
      %1608 = vmatpush1.bf16.msra.mxu0 0
      %1609 = vmatprep.subr.bf16.mxu0 0
      %1610 = vmatpush1.bf16.msra.mxu0 0
      %1611 = vmatprep.subr.bf16.mxu0 0
      %1612 = vmatpush1.bf16.msra.mxu0 0
      %1613 = vmatprep.subr.bf16.mxu0 0
      %1614 = vmatpush1.bf16.msra.mxu0 0
      %1615 = vmatprep.subr.bf16.mxu0 0
      %1616 = vmatpush1.bf16.msra.mxu0 0
      %1617 = vmatprep.subr.bf16.mxu0 0
      %1618 = vmatpush1.bf16.msra.mxu0 0
      %1619 = vmatprep.subr.bf16.mxu0 0
      %1620 = vmatpush1.bf16.msra.mxu0 0
      %1621 = vmatprep.subr.bf16.mxu0 0
      %1622 = vmatpush1.bf16.msra.mxu0 0
      %1623 = vmatprep.mubr.bf16.mxu0 0
      %1624 = vmatmul.mubr.bf16.gmra.mrb[0].mxu0 %v1062
      %v1625 = vpop.f32.mrb[0].mxu0
      %v1626 = vadd.f32 0.0, %v1625
      %v1627 = vpop.f32.mrb[0].mxu0
      %v1628 = vpop.f32.mrb[0].mxu0
      %v1629 = vadd.f32 0.0, %v1628
      %v1630 = vpop.f32.mrb[0].mxu0
      %1631 = vmatprep.mubr.bf16.mxu0 0
      %1632 = vmatmul.mubr.bf16.gmra.mrb[0].mxu0 %v1064
      %v1633 = vpop.f32.mrb[0].mxu0
      %v1634 = vadd.f32 0.0, %v1633
      %v1635 = vpop.f32.mrb[0].mxu0
      %v1636 = vpop.f32.mrb[0].mxu0
      %v1637 = vadd.f32 0.0, %v1636
      %v1638 = vpop.f32.mrb[0].mxu0
      %1639 = vmatprep.mubr.bf16.mxu0 0
      %1640 = vmatmul.mubr.bf16.gmra.mrb[0].mxu0 %v1066
      %v1641 = vpop.f32.mrb[0].mxu0
      %v1642 = vadd.f32 0.0, %v1641
      %v1643 = vpop.f32.mrb[0].mxu0
      %v1644 = vpop.f32.mrb[0].mxu0
      %v1645 = vadd.f32 0.0, %v1644
      %v1646 = vpop.f32.mrb[0].mxu0
      %1647 = vmatprep.mubr.bf16.mxu0 0
      %1648 = vmatmul.mubr.bf16.gmra.mrb[0].mxu0 %v1068
      %v1649 = vpop.f32.mrb[0].mxu0
      %v1650 = vadd.f32 0.0, %v1649
      %v1651 = vpop.f32.mrb[0].mxu0
      %v1652 = vpop.f32.mrb[0].mxu0
      %v1653 = vadd.f32 0.0, %v1652
      %v1654 = vpop.f32.mrb[0].mxu0
      %1655 = vmatprep.mubr.bf16.mxu0 0
      %1656 = vmatmul.mubr.bf16.gmra.mrb[0].mxu0 %v1070
      %v1657 = vpop.f32.mrb[0].mxu0
      %v1658 = vadd.f32 0.0, %v1657
      %v1659 = vpop.f32.mrb[0].mxu0
      %v1660 = vpop.f32.mrb[0].mxu0
      %v1661 = vadd.f32 0.0, %v1660
      %v1662 = vpop.f32.mrb[0].mxu0
      %1663 = vmatprep.mubr.bf16.mxu0 0
      %1664 = vmatmul.mubr.bf16.gmra.mrb[0].mxu0 %v1072
      %v1665 = vpop.f32.mrb[0].mxu0
      %v1666 = vadd.f32 0.0, %v1665
      %v1667 = vpop.f32.mrb[0].mxu0
      %v1668 = vpop.f32.mrb[0].mxu0
      %v1669 = vadd.f32 0.0, %v1668
      %v1670 = vpop.f32.mrb[0].mxu0
      %1671 = vmatprep.mubr.bf16.mxu0 0
      %1672 = vmatmul.mubr.bf16.gmra.mrb[0].mxu0 %v1074
      %v1673 = vpop.f32.mrb[0].mxu0
      %v1674 = vadd.f32 0.0, %v1673
      %v1675 = vpop.f32.mrb[0].mxu0
      %v1676 = vpop.f32.mrb[0].mxu0
      %v1677 = vadd.f32 0.0, %v1676
      %v1678 = vpop.f32.mrb[0].mxu0
      %1679 = vmatprep.mubr.bf16.mxu0 0
      %1680 = vmatmul.mubr.bf16.gmra.mrb[0].mxu0 %v1076
      %v1681 = vpop.f32.mrb[0].mxu0
      %v1682 = vadd.f32 0.0, %v1681
      %v1683 = vpop.f32.mrb[0].mxu0
      %v1684 = vpop.f32.mrb[0].mxu0
      %v1685 = vadd.f32 0.0, %v1684
      %v1686 = vpop.f32.mrb[0].mxu0
      %1687 = vmatprep.mubr.bf16.mxu0 0
      %1688 = vmatmul.mubr.bf16.gmra.mrb[0].mxu0 %v1078
      %v1689 = vpop.f32.mrb[0].mxu0
      %v1690 = vadd.f32 0.0, %v1689
      %v1691 = vpop.f32.mrb[0].mxu0
      %v1692 = vpop.f32.mrb[0].mxu0
      %v1693 = vadd.f32 0.0, %v1692
      %v1694 = vpop.f32.mrb[0].mxu0
      %1695 = vmatprep.mubr.bf16.mxu0 0
      %1696 = vmatmul.mubr.bf16.gmra.mrb[0].mxu0 %v1080
      %v1697 = vpop.f32.mrb[0].mxu0
      %v1698 = vadd.f32 0.0, %v1697
      %v1699 = vpop.f32.mrb[0].mxu0
      %v1700 = vpop.f32.mrb[0].mxu0
      %v1701 = vadd.f32 0.0, %v1700
      %v1702 = vpop.f32.mrb[0].mxu0
      %1703 = vmatprep.mubr.bf16.mxu0 0
      %1704 = vmatmul.mubr.bf16.gmra.mrb[0].mxu0 %v1082
      %v1705 = vpop.f32.mrb[0].mxu0
      %v1706 = vadd.f32 0.0, %v1705
      %v1707 = vpop.f32.mrb[0].mxu0
      %v1708 = vpop.f32.mrb[0].mxu0
      %v1709 = vadd.f32 0.0, %v1708
      %v1710 = vpop.f32.mrb[0].mxu0
      %1711 = vmatprep.mubr.bf16.mxu0 0
      %1712 = vmatmul.mubr.bf16.gmra.mrb[0].mxu0 %v1084
      %v1713 = vpop.f32.mrb[0].mxu0
      %v1714 = vadd.f32 0.0, %v1713
      %v1715 = vpop.f32.mrb[0].mxu0
      %v1716 = vpop.f32.mrb[0].mxu0
      %v1717 = vadd.f32 0.0, %v1716
      %v1718 = vpop.f32.mrb[0].mxu0
      %1719 = vmatprep.mubr.bf16.mxu0 0
      %1720 = vmatmul.mubr.bf16.gmra.mrb[0].mxu0 %v1086
      %v1721 = vpop.f32.mrb[0].mxu0
      %v1722 = vadd.f32 0.0, %v1721
      %v1723 = vpop.f32.mrb[0].mxu0
      %v1724 = vpop.f32.mrb[0].mxu0
      %v1725 = vadd.f32 0.0, %v1724
      %v1726 = vpop.f32.mrb[0].mxu0
      %1727 = vmatprep.mubr.bf16.mxu0 0
      %1728 = vmatmul.mubr.bf16.gmra.mrb[0].mxu0 %v1088
      %v1729 = vpop.f32.mrb[0].mxu0
      %v1730 = vadd.f32 0.0, %v1729
      %v1731 = vpop.f32.mrb[0].mxu0
      %v1732 = vpop.f32.mrb[0].mxu0
      %v1733 = vadd.f32 0.0, %v1732
      %v1734 = vpop.f32.mrb[0].mxu0
      %1735 = vmatprep.mubr.bf16.mxu0 0
      %1736 = vmatmul.mubr.bf16.gmra.mrb[0].mxu0 %v1090
      %v1737 = vpop.f32.mrb[0].mxu0
      %v1738 = vadd.f32 0.0, %v1737
      %v1739 = vpop.f32.mrb[0].mxu0
      %v1740 = vpop.f32.mrb[0].mxu0
      %v1741 = vadd.f32 0.0, %v1740
      %v1742 = vpop.f32.mrb[0].mxu0
      %1743 = vmatprep.mubr.bf16.mxu0 0
      %1744 = vmatmul.mubr.bf16.gmra.mrb[0].mxu0 %v1586
      %v1745 = vpop.f32.mrb[0].mxu0
      %v1746 = vadd.f32 0.0, %v1745
      %v1747 = vpop.f32.mrb[0].mxu0
      %v1748 = vpop.f32.mrb[0].mxu0
      %v1749 = vadd.f32 0.0, %v1748
      %v1750 = vpop.f32.mrb[0].mxu0
      %1751 = vdwg.mxu0
      %v1752 = vadd.f32 %v1551, %v1626
      %v1753 = vadd.f32 %v1552, %v1629
      %v1754 = vadd.f32 %v1553, %v1634
      %v1755 = vadd.f32 %v1554, %v1637
      %v1756 = vadd.f32 %v1555, %v1642
      %v1757 = vadd.f32 %v1556, %v1645
      %v1758 = vadd.f32 %v1557, %v1650
      %v1759 = vadd.f32 %v1558, %v1653
      %v1760 = vadd.f32 %v1559, %v1658
      %v1761 = vadd.f32 %v1560, %v1661
      %v1762 = vadd.f32 %v1561, %v1666
      %v1763 = vadd.f32 %v1562, %v1669
      %v1764 = vadd.f32 %v1563, %v1674
      %v1765 = vadd.f32 %v1564, %v1677
      %v1766 = vadd.f32 %v1565, %v1682
      %v1767 = vadd.f32 %v1566, %v1685
      %v1768 = vadd.f32 %v1567, %v1690
      %v1769 = vadd.f32 %v1568, %v1693
      %v1770 = vadd.f32 %v1569, %v1698
      %v1771 = vadd.f32 %v1570, %v1701
      %v1772 = vadd.f32 %v1571, %v1706
      %v1773 = vadd.f32 %v1572, %v1709
      %v1774 = vadd.f32 %v1573, %v1714
      %v1775 = vadd.f32 %v1574, %v1717
      %v1776 = vadd.f32 %v1575, %v1722
      %v1777 = vadd.f32 %v1576, %v1725
      %v1778 = vadd.f32 %v1577, %v1730
      %v1779 = vadd.f32 %v1578, %v1733
      %v1780 = vadd.f32 %v1579, %v1738
      %v1781 = vadd.f32 %v1580, %v1741
      %v1782 = vadd.f32 %v1581, %v1746
      %v1783 = vadd.f32 %v1582, %v1749
      %v1784 = vshrl.u32 %v632, 16
      %v1786 = vshll.u32 %v632, 16
      %v1788 = vrot.slane %v1786, 1
      %v1789 = vor.u32 %v1784, %v1788
      %v1791 = vshll.u32 %v649, 16
      %v1793 = vrot.slane %v1791, 1
      %v1794 = vsel %vm651, %v1789, %v1793
      %s1795 = scalar_lea.vmem %s3, 8
      %v1796 = vld [vmem:[%s1795] sm:$0x3]
      %v1798 = vsel %vm846, %v1794, 0
      %v1801 = vsel %vm895, %v1796, 0
      %1803 = vmatprep.subr.bf16.mxu0 0
      %1804 = vmatpush1.bf16.msra.mxu0 %v1801
      %1805 = vmatprep.subr.bf16.mxu0 0
      %1806 = vmatpush1.bf16.msra.mxu0 0
      %1807 = vmatprep.subr.bf16.mxu0 0
      %1808 = vmatpush1.bf16.msra.mxu0 0
      %1809 = vmatprep.subr.bf16.mxu0 0
      %1810 = vmatpush1.bf16.msra.mxu0 0
      %1811 = vmatprep.subr.bf16.mxu0 0
      %1812 = vmatpush1.bf16.msra.mxu0 0
      %1813 = vmatprep.subr.bf16.mxu0 0
      %1814 = vmatpush1.bf16.msra.mxu0 0
      %1815 = vmatprep.subr.bf16.mxu0 0
      %1816 = vmatpush1.bf16.msra.mxu0 0
      %1817 = vmatprep.subr.bf16.mxu0 0
      %1818 = vmatpush1.bf16.msra.mxu0 0
      %1819 = vmatprep.subr.bf16.mxu0 0
      %1820 = vmatpush1.bf16.msra.mxu0 0
      %1821 = vmatprep.subr.bf16.mxu0 0
      %1822 = vmatpush1.bf16.msra.mxu0 0
      %1823 = vmatprep.subr.bf16.mxu0 0
      %1824 = vmatpush1.bf16.msra.mxu0 0
      %1825 = vmatprep.subr.bf16.mxu0 0
      %1826 = vmatpush1.bf16.msra.mxu0 0
      %1827 = vmatprep.subr.bf16.mxu0 0
      %1828 = vmatpush1.bf16.msra.mxu0 0
      %1829 = vmatprep.subr.bf16.mxu0 0
      %1830 = vmatpush1.bf16.msra.mxu0 0
      %1831 = vmatprep.subr.bf16.mxu0 0
      %1832 = vmatpush1.bf16.msra.mxu0 0
      %1833 = vmatprep.subr.bf16.mxu0 0
      %1834 = vmatpush1.bf16.msra.mxu0 0
      %1835 = vmatprep.mubr.bf16.mxu0 0
      %1836 = vmatmul.mubr.bf16.gmra.mrb[0].mxu0 %v851
      %v1837 = vpop.f32.mrb[0].mxu0
      %v1838 = vadd.f32 0.0, %v1837
      %v1839 = vpop.f32.mrb[0].mxu0
      %v1840 = vpop.f32.mrb[0].mxu0
      %v1841 = vadd.f32 0.0, %v1840
      %v1842 = vpop.f32.mrb[0].mxu0
      %1843 = vmatprep.mubr.bf16.mxu0 0
      %1844 = vmatmul.mubr.bf16.gmra.mrb[0].mxu0 %v854
      %v1845 = vpop.f32.mrb[0].mxu0
      %v1846 = vadd.f32 0.0, %v1845
      %v1847 = vpop.f32.mrb[0].mxu0
      %v1848 = vpop.f32.mrb[0].mxu0
      %v1849 = vadd.f32 0.0, %v1848
      %v1850 = vpop.f32.mrb[0].mxu0
      %1851 = vmatprep.mubr.bf16.mxu0 0
      %1852 = vmatmul.mubr.bf16.gmra.mrb[0].mxu0 %v857
      %v1853 = vpop.f32.mrb[0].mxu0
      %v1854 = vadd.f32 0.0, %v1853
      %v1855 = vpop.f32.mrb[0].mxu0
      %v1856 = vpop.f32.mrb[0].mxu0
      %v1857 = vadd.f32 0.0, %v1856
      %v1858 = vpop.f32.mrb[0].mxu0
      %1859 = vmatprep.mubr.bf16.mxu0 0
      %1860 = vmatmul.mubr.bf16.gmra.mrb[0].mxu0 %v860
      %v1861 = vpop.f32.mrb[0].mxu0
      %v1862 = vadd.f32 0.0, %v1861
      %v1863 = vpop.f32.mrb[0].mxu0
      %v1864 = vpop.f32.mrb[0].mxu0
      %v1865 = vadd.f32 0.0, %v1864
      %v1866 = vpop.f32.mrb[0].mxu0
      %1867 = vmatprep.mubr.bf16.mxu0 0
      %1868 = vmatmul.mubr.bf16.gmra.mrb[0].mxu0 %v863
      %v1869 = vpop.f32.mrb[0].mxu0
      %v1870 = vadd.f32 0.0, %v1869
      %v1871 = vpop.f32.mrb[0].mxu0
      %v1872 = vpop.f32.mrb[0].mxu0
      %v1873 = vadd.f32 0.0, %v1872
      %v1874 = vpop.f32.mrb[0].mxu0
      %1875 = vmatprep.mubr.bf16.mxu0 0
      %1876 = vmatmul.mubr.bf16.gmra.mrb[0].mxu0 %v866
      %v1877 = vpop.f32.mrb[0].mxu0
      %v1878 = vadd.f32 0.0, %v1877
      %v1879 = vpop.f32.mrb[0].mxu0
      %v1880 = vpop.f32.mrb[0].mxu0
      %v1881 = vadd.f32 0.0, %v1880
      %v1882 = vpop.f32.mrb[0].mxu0
      %1883 = vmatprep.mubr.bf16.mxu0 0
      %1884 = vmatmul.mubr.bf16.gmra.mrb[0].mxu0 %v869
      %v1885 = vpop.f32.mrb[0].mxu0
      %v1886 = vadd.f32 0.0, %v1885
      %v1887 = vpop.f32.mrb[0].mxu0
      %v1888 = vpop.f32.mrb[0].mxu0
      %v1889 = vadd.f32 0.0, %v1888
      %v1890 = vpop.f32.mrb[0].mxu0
      %1891 = vmatprep.mubr.bf16.mxu0 0
      %1892 = vmatmul.mubr.bf16.gmra.mrb[0].mxu0 %v872
      %v1893 = vpop.f32.mrb[0].mxu0
      %v1894 = vadd.f32 0.0, %v1893
      %v1895 = vpop.f32.mrb[0].mxu0
      %v1896 = vpop.f32.mrb[0].mxu0
      %v1897 = vadd.f32 0.0, %v1896
      %v1898 = vpop.f32.mrb[0].mxu0
      %1899 = vmatprep.mubr.bf16.mxu0 0
      %1900 = vmatmul.mubr.bf16.gmra.mrb[0].mxu0 %v875
      %v1901 = vpop.f32.mrb[0].mxu0
      %v1902 = vadd.f32 0.0, %v1901
      %v1903 = vpop.f32.mrb[0].mxu0
      %v1904 = vpop.f32.mrb[0].mxu0
      %v1905 = vadd.f32 0.0, %v1904
      %v1906 = vpop.f32.mrb[0].mxu0
      %1907 = vmatprep.mubr.bf16.mxu0 0
      %1908 = vmatmul.mubr.bf16.gmra.mrb[0].mxu0 %v878
      %v1909 = vpop.f32.mrb[0].mxu0
      %v1910 = vadd.f32 0.0, %v1909
      %v1911 = vpop.f32.mrb[0].mxu0
      %v1912 = vpop.f32.mrb[0].mxu0
      %v1913 = vadd.f32 0.0, %v1912
      %v1914 = vpop.f32.mrb[0].mxu0
      %1915 = vmatprep.mubr.bf16.mxu0 0
      %1916 = vmatmul.mubr.bf16.gmra.mrb[0].mxu0 %v881
      %v1917 = vpop.f32.mrb[0].mxu0
      %v1918 = vadd.f32 0.0, %v1917
      %v1919 = vpop.f32.mrb[0].mxu0
      %v1920 = vpop.f32.mrb[0].mxu0
      %v1921 = vadd.f32 0.0, %v1920
      %v1922 = vpop.f32.mrb[0].mxu0
      %1923 = vmatprep.mubr.bf16.mxu0 0
      %1924 = vmatmul.mubr.bf16.gmra.mrb[0].mxu0 %v884
      %v1925 = vpop.f32.mrb[0].mxu0
      %v1926 = vadd.f32 0.0, %v1925
      %v1927 = vpop.f32.mrb[0].mxu0
      %v1928 = vpop.f32.mrb[0].mxu0
      %v1929 = vadd.f32 0.0, %v1928
      %v1930 = vpop.f32.mrb[0].mxu0
      %1931 = vmatprep.mubr.bf16.mxu0 0
      %1932 = vmatmul.mubr.bf16.gmra.mrb[0].mxu0 %v887
      %v1933 = vpop.f32.mrb[0].mxu0
      %v1934 = vadd.f32 0.0, %v1933
      %v1935 = vpop.f32.mrb[0].mxu0
      %v1936 = vpop.f32.mrb[0].mxu0
      %v1937 = vadd.f32 0.0, %v1936
      %v1938 = vpop.f32.mrb[0].mxu0
      %1939 = vmatprep.mubr.bf16.mxu0 0
      %1940 = vmatmul.mubr.bf16.gmra.mrb[0].mxu0 %v890
      %v1941 = vpop.f32.mrb[0].mxu0
      %v1942 = vadd.f32 0.0, %v1941
      %v1943 = vpop.f32.mrb[0].mxu0
      %v1944 = vpop.f32.mrb[0].mxu0
      %v1945 = vadd.f32 0.0, %v1944
      %v1946 = vpop.f32.mrb[0].mxu0
      %1947 = vmatprep.mubr.bf16.mxu0 0
      %1948 = vmatmul.mubr.bf16.gmra.mrb[0].mxu0 %v893
      %v1949 = vpop.f32.mrb[0].mxu0
      %v1950 = vadd.f32 0.0, %v1949
      %v1951 = vpop.f32.mrb[0].mxu0
      %v1952 = vpop.f32.mrb[0].mxu0
      %v1953 = vadd.f32 0.0, %v1952
      %v1954 = vpop.f32.mrb[0].mxu0
      %1955 = vmatprep.mubr.bf16.mxu0 0
      %1956 = vmatmul.mubr.bf16.gmra.mrb[0].mxu0 %v1798
      %v1957 = vpop.f32.mrb[0].mxu0
      %v1958 = vadd.f32 0.0, %v1957
      %v1959 = vpop.f32.mrb[0].mxu0
      %v1960 = vpop.f32.mrb[0].mxu0
      %v1961 = vadd.f32 0.0, %v1960
      %v1962 = vpop.f32.mrb[0].mxu0
      %1963 = vdwg.mxu0
      %v1964 = vadd.f32 %v1752, %v1838
      %v1965 = vadd.f32 %v1753, %v1841
      %v1966 = vadd.f32 %v1754, %v1846
      %v1967 = vadd.f32 %v1755, %v1849
      %v1968 = vadd.f32 %v1756, %v1854
      %v1969 = vadd.f32 %v1757, %v1857
      %v1970 = vadd.f32 %v1758, %v1862
      %v1971 = vadd.f32 %v1759, %v1865
      %v1972 = vadd.f32 %v1760, %v1870
      %v1973 = vadd.f32 %v1761, %v1873
      %v1974 = vadd.f32 %v1762, %v1878
      %v1975 = vadd.f32 %v1763, %v1881
      %v1976 = vadd.f32 %v1764, %v1886
      %v1977 = vadd.f32 %v1765, %v1889
      %v1978 = vadd.f32 %v1766, %v1894
      %v1979 = vadd.f32 %v1767, %v1897
      %v1980 = vadd.f32 %v1768, %v1902
      %v1981 = vadd.f32 %v1769, %v1905
      %v1982 = vadd.f32 %v1770, %v1910
      %v1983 = vadd.f32 %v1771, %v1913
      %v1984 = vadd.f32 %v1772, %v1918
      %v1985 = vadd.f32 %v1773, %v1921
      %v1986 = vadd.f32 %v1774, %v1926
      %v1987 = vadd.f32 %v1775, %v1929
      %v1988 = vadd.f32 %v1776, %v1934
      %v1989 = vadd.f32 %v1777, %v1937
      %v1990 = vadd.f32 %v1778, %v1942
      %v1991 = vadd.f32 %v1779, %v1945
      %v1992 = vadd.f32 %v1780, %v1950
      %v1993 = vadd.f32 %v1781, %v1953
      %v1994 = vadd.f32 %v1782, %v1958
      %v1995 = vadd.f32 %v1783, %v1961
      %v1998 = vrot.slane %v632, 1
      %v1999 = vrot.slane %v649, 1
      %v2000 = vsel %vm1288, %v1998, %v1999
      %s2001 = scalar_lea.vmem %s3, 10
      %v2002 = vld [vmem:[%s2001] sm:$0x3]
      %v2004 = vsel %vm846, %v2000, 0
      %v2007 = vsel %vm895, %v2002, 0
      %2009 = vmatprep.subr.bf16.mxu0 0
      %2010 = vmatpush1.bf16.msra.mxu0 %v2007
      %2011 = vmatprep.subr.bf16.mxu0 0
      %2012 = vmatpush1.bf16.msra.mxu0 0
      %2013 = vmatprep.subr.bf16.mxu0 0
      %2014 = vmatpush1.bf16.msra.mxu0 0
      %2015 = vmatprep.subr.bf16.mxu0 0
      %2016 = vmatpush1.bf16.msra.mxu0 0
      %2017 = vmatprep.subr.bf16.mxu0 0
      %2018 = vmatpush1.bf16.msra.mxu0 0
      %2019 = vmatprep.subr.bf16.mxu0 0
      %2020 = vmatpush1.bf16.msra.mxu0 0
      %2021 = vmatprep.subr.bf16.mxu0 0
      %2022 = vmatpush1.bf16.msra.mxu0 0
      %2023 = vmatprep.subr.bf16.mxu0 0
      %2024 = vmatpush1.bf16.msra.mxu0 0
      %2025 = vmatprep.subr.bf16.mxu0 0
      %2026 = vmatpush1.bf16.msra.mxu0 0
      %2027 = vmatprep.subr.bf16.mxu0 0
      %2028 = vmatpush1.bf16.msra.mxu0 0
      %2029 = vmatprep.subr.bf16.mxu0 0
      %2030 = vmatpush1.bf16.msra.mxu0 0
      %2031 = vmatprep.subr.bf16.mxu0 0
      %2032 = vmatpush1.bf16.msra.mxu0 0
      %2033 = vmatprep.subr.bf16.mxu0 0
      %2034 = vmatpush1.bf16.msra.mxu0 0
      %2035 = vmatprep.subr.bf16.mxu0 0
      %2036 = vmatpush1.bf16.msra.mxu0 0
      %2037 = vmatprep.subr.bf16.mxu0 0
      %2038 = vmatpush1.bf16.msra.mxu0 0
      %2039 = vmatprep.subr.bf16.mxu0 0
      %2040 = vmatpush1.bf16.msra.mxu0 0
      %2041 = vmatprep.mubr.bf16.mxu0 0
      %2042 = vmatmul.mubr.bf16.gmra.mrb[0].mxu0 %v1343
      %v2043 = vpop.f32.mrb[0].mxu0
      %v2044 = vadd.f32 0.0, %v2043
      %v2045 = vpop.f32.mrb[0].mxu0
      %v2046 = vpop.f32.mrb[0].mxu0
      %v2047 = vadd.f32 0.0, %v2046
      %v2048 = vpop.f32.mrb[0].mxu0
      %2049 = vmatprep.mubr.bf16.mxu0 0
      %2050 = vmatmul.mubr.bf16.gmra.mrb[0].mxu0 %v1346
      %v2051 = vpop.f32.mrb[0].mxu0
      %v2052 = vadd.f32 0.0, %v2051
      %v2053 = vpop.f32.mrb[0].mxu0
      %v2054 = vpop.f32.mrb[0].mxu0
      %v2055 = vadd.f32 0.0, %v2054
      %v2056 = vpop.f32.mrb[0].mxu0
      %2057 = vmatprep.mubr.bf16.mxu0 0
      %2058 = vmatmul.mubr.bf16.gmra.mrb[0].mxu0 %v1349
      %v2059 = vpop.f32.mrb[0].mxu0
      %v2060 = vadd.f32 0.0, %v2059
      %v2061 = vpop.f32.mrb[0].mxu0
      %v2062 = vpop.f32.mrb[0].mxu0
      %v2063 = vadd.f32 0.0, %v2062
      %v2064 = vpop.f32.mrb[0].mxu0
      %2065 = vmatprep.mubr.bf16.mxu0 0
      %2066 = vmatmul.mubr.bf16.gmra.mrb[0].mxu0 %v1352
      %v2067 = vpop.f32.mrb[0].mxu0
      %v2068 = vadd.f32 0.0, %v2067
      %v2069 = vpop.f32.mrb[0].mxu0
      %v2070 = vpop.f32.mrb[0].mxu0
      %v2071 = vadd.f32 0.0, %v2070
      %v2072 = vpop.f32.mrb[0].mxu0
      %2073 = vmatprep.mubr.bf16.mxu0 0
      %2074 = vmatmul.mubr.bf16.gmra.mrb[0].mxu0 %v1355
      %v2075 = vpop.f32.mrb[0].mxu0
      %v2076 = vadd.f32 0.0, %v2075
      %v2077 = vpop.f32.mrb[0].mxu0
      %v2078 = vpop.f32.mrb[0].mxu0
      %v2079 = vadd.f32 0.0, %v2078
      %v2080 = vpop.f32.mrb[0].mxu0
      %2081 = vmatprep.mubr.bf16.mxu0 0
      %2082 = vmatmul.mubr.bf16.gmra.mrb[0].mxu0 %v1358
      %v2083 = vpop.f32.mrb[0].mxu0
      %v2084 = vadd.f32 0.0, %v2083
      %v2085 = vpop.f32.mrb[0].mxu0
      %v2086 = vpop.f32.mrb[0].mxu0
      %v2087 = vadd.f32 0.0, %v2086
      %v2088 = vpop.f32.mrb[0].mxu0
      %2089 = vmatprep.mubr.bf16.mxu0 0
      %2090 = vmatmul.mubr.bf16.gmra.mrb[0].mxu0 %v1361
      %v2091 = vpop.f32.mrb[0].mxu0
      %v2092 = vadd.f32 0.0, %v2091
      %v2093 = vpop.f32.mrb[0].mxu0
      %v2094 = vpop.f32.mrb[0].mxu0
      %v2095 = vadd.f32 0.0, %v2094
      %v2096 = vpop.f32.mrb[0].mxu0
      %2097 = vmatprep.mubr.bf16.mxu0 0
      %2098 = vmatmul.mubr.bf16.gmra.mrb[0].mxu0 %v1364
      %v2099 = vpop.f32.mrb[0].mxu0
      %v2100 = vadd.f32 0.0, %v2099
      %v2101 = vpop.f32.mrb[0].mxu0
      %v2102 = vpop.f32.mrb[0].mxu0
      %v2103 = vadd.f32 0.0, %v2102
      %v2104 = vpop.f32.mrb[0].mxu0
      %2105 = vmatprep.mubr.bf16.mxu0 0
      %2106 = vmatmul.mubr.bf16.gmra.mrb[0].mxu0 %v1367
      %v2107 = vpop.f32.mrb[0].mxu0
      %v2108 = vadd.f32 0.0, %v2107
      %v2109 = vpop.f32.mrb[0].mxu0
      %v2110 = vpop.f32.mrb[0].mxu0
      %v2111 = vadd.f32 0.0, %v2110
      %v2112 = vpop.f32.mrb[0].mxu0
      %2113 = vmatprep.mubr.bf16.mxu0 0
      %2114 = vmatmul.mubr.bf16.gmra.mrb[0].mxu0 %v1370
      %v2115 = vpop.f32.mrb[0].mxu0
      %v2116 = vadd.f32 0.0, %v2115
      %v2117 = vpop.f32.mrb[0].mxu0
      %v2118 = vpop.f32.mrb[0].mxu0
      %v2119 = vadd.f32 0.0, %v2118
      %v2120 = vpop.f32.mrb[0].mxu0
      %2121 = vmatprep.mubr.bf16.mxu0 0
      %2122 = vmatmul.mubr.bf16.gmra.mrb[0].mxu0 %v1373
      %v2123 = vpop.f32.mrb[0].mxu0
      %v2124 = vadd.f32 0.0, %v2123
      %v2125 = vpop.f32.mrb[0].mxu0
      %v2126 = vpop.f32.mrb[0].mxu0
      %v2127 = vadd.f32 0.0, %v2126
      %v2128 = vpop.f32.mrb[0].mxu0
      %2129 = vmatprep.mubr.bf16.mxu0 0
      %2130 = vmatmul.mubr.bf16.gmra.mrb[0].mxu0 %v1376
      %v2131 = vpop.f32.mrb[0].mxu0
      %v2132 = vadd.f32 0.0, %v2131
      %v2133 = vpop.f32.mrb[0].mxu0
      %v2134 = vpop.f32.mrb[0].mxu0
      %v2135 = vadd.f32 0.0, %v2134
      %v2136 = vpop.f32.mrb[0].mxu0
      %2137 = vmatprep.mubr.bf16.mxu0 0
      %2138 = vmatmul.mubr.bf16.gmra.mrb[0].mxu0 %v1379
      %v2139 = vpop.f32.mrb[0].mxu0
      %v2140 = vadd.f32 0.0, %v2139
      %v2141 = vpop.f32.mrb[0].mxu0
      %v2142 = vpop.f32.mrb[0].mxu0
      %v2143 = vadd.f32 0.0, %v2142
      %v2144 = vpop.f32.mrb[0].mxu0
      %2145 = vmatprep.mubr.bf16.mxu0 0
      %2146 = vmatmul.mubr.bf16.gmra.mrb[0].mxu0 %v1382
      %v2147 = vpop.f32.mrb[0].mxu0
      %v2148 = vadd.f32 0.0, %v2147
      %v2149 = vpop.f32.mrb[0].mxu0
      %v2150 = vpop.f32.mrb[0].mxu0
      %v2151 = vadd.f32 0.0, %v2150
      %v2152 = vpop.f32.mrb[0].mxu0
      %2153 = vmatprep.mubr.bf16.mxu0 0
      %2154 = vmatmul.mubr.bf16.gmra.mrb[0].mxu0 %v1385
      %v2155 = vpop.f32.mrb[0].mxu0
      %v2156 = vadd.f32 0.0, %v2155
      %v2157 = vpop.f32.mrb[0].mxu0
      %v2158 = vpop.f32.mrb[0].mxu0
      %v2159 = vadd.f32 0.0, %v2158
      %v2160 = vpop.f32.mrb[0].mxu0
      %2161 = vmatprep.mubr.bf16.mxu0 0
      %2162 = vmatmul.mubr.bf16.gmra.mrb[0].mxu0 %v2004
      %v2163 = vpop.f32.mrb[0].mxu0
      %v2164 = vadd.f32 0.0, %v2163
      %v2165 = vpop.f32.mrb[0].mxu0
      %v2166 = vpop.f32.mrb[0].mxu0
      %v2167 = vadd.f32 0.0, %v2166
      %v2168 = vpop.f32.mrb[0].mxu0
      %2169 = vdwg.mxu0
      %v2170 = vadd.f32 %v1964, %v2044
      %v2171 = vadd.f32 %v1965, %v2047
      %v2172 = vadd.f32 %v1966, %v2052
      %v2173 = vadd.f32 %v1967, %v2055
      %v2174 = vadd.f32 %v1968, %v2060
      %v2175 = vadd.f32 %v1969, %v2063
      %v2176 = vadd.f32 %v1970, %v2068
      %v2177 = vadd.f32 %v1971, %v2071
      %v2178 = vadd.f32 %v1972, %v2076
      %v2179 = vadd.f32 %v1973, %v2079
      %v2180 = vadd.f32 %v1974, %v2084
      %v2181 = vadd.f32 %v1975, %v2087
      %v2182 = vadd.f32 %v1976, %v2092
      %v2183 = vadd.f32 %v1977, %v2095
      %v2184 = vadd.f32 %v1978, %v2100
      %v2185 = vadd.f32 %v1979, %v2103
      %v2186 = vadd.f32 %v1980, %v2108
      %v2187 = vadd.f32 %v1981, %v2111
      %v2188 = vadd.f32 %v1982, %v2116
      %v2189 = vadd.f32 %v1983, %v2119
      %v2190 = vadd.f32 %v1984, %v2124
      %v2191 = vadd.f32 %v1985, %v2127
      %v2192 = vadd.f32 %v1986, %v2132
      %v2193 = vadd.f32 %v1987, %v2135
      %v2194 = vadd.f32 %v1988, %v2140
      %v2195 = vadd.f32 %v1989, %v2143
      %v2196 = vadd.f32 %v1990, %v2148
      %v2197 = vadd.f32 %v1991, %v2151
      %v2198 = vadd.f32 %v1992, %v2156
      %v2199 = vadd.f32 %v1993, %v2159
      %v2200 = vadd.f32 %v1994, %v2164
      %v2201 = vadd.f32 %v1995, %v2167
      %s2202 = scalar_lea.vmem %s3, 12
      %v2203 = vld [vmem:[%s2202] sm:$0x3]
      %v2205 = vsel %vm895, %v2203, 0
      %2207 = vmatprep.subr.bf16.mxu0 0
      %2208 = vmatpush1.bf16.msra.mxu0 %v2205
      %2209 = vmatprep.subr.bf16.mxu0 0
      %2210 = vmatpush1.bf16.msra.mxu0 0
      %2211 = vmatprep.subr.bf16.mxu0 0
      %2212 = vmatpush1.bf16.msra.mxu0 0
      %2213 = vmatprep.subr.bf16.mxu0 0
      %2214 = vmatpush1.bf16.msra.mxu0 0
      %2215 = vmatprep.subr.bf16.mxu0 0
      %2216 = vmatpush1.bf16.msra.mxu0 0
      %2217 = vmatprep.subr.bf16.mxu0 0
      %2218 = vmatpush1.bf16.msra.mxu0 0
      %2219 = vmatprep.subr.bf16.mxu0 0
      %2220 = vmatpush1.bf16.msra.mxu0 0
      %2221 = vmatprep.subr.bf16.mxu0 0
      %2222 = vmatpush1.bf16.msra.mxu0 0
      %2223 = vmatprep.subr.bf16.mxu0 0
      %2224 = vmatpush1.bf16.msra.mxu0 0
      %2225 = vmatprep.subr.bf16.mxu0 0
      %2226 = vmatpush1.bf16.msra.mxu0 0
      %2227 = vmatprep.subr.bf16.mxu0 0
      %2228 = vmatpush1.bf16.msra.mxu0 0
      %2229 = vmatprep.subr.bf16.mxu0 0
      %2230 = vmatpush1.bf16.msra.mxu0 0
      %2231 = vmatprep.subr.bf16.mxu0 0
      %2232 = vmatpush1.bf16.msra.mxu0 0
      %2233 = vmatprep.subr.bf16.mxu0 0
      %2234 = vmatpush1.bf16.msra.mxu0 0
      %2235 = vmatprep.subr.bf16.mxu0 0
      %2236 = vmatpush1.bf16.msra.mxu0 0
      %2237 = vmatprep.subr.bf16.mxu0 0
      %2238 = vmatpush1.bf16.msra.mxu0 0
      %2239 = vmatprep.mubr.bf16.mxu0 0
      %2240 = vmatmul.mubr.bf16.gmra.mrb[0].mxu0 %v1064
      %v2241 = vpop.f32.mrb[0].mxu0
      %v2242 = vadd.f32 0.0, %v2241
      %v2243 = vpop.f32.mrb[0].mxu0
      %v2244 = vpop.f32.mrb[0].mxu0
      %v2245 = vadd.f32 0.0, %v2244
      %v2246 = vpop.f32.mrb[0].mxu0
      %2247 = vmatprep.mubr.bf16.mxu0 0
      %2248 = vmatmul.mubr.bf16.gmra.mrb[0].mxu0 %v1066
      %v2249 = vpop.f32.mrb[0].mxu0
      %v2250 = vadd.f32 0.0, %v2249
      %v2251 = vpop.f32.mrb[0].mxu0
      %v2252 = vpop.f32.mrb[0].mxu0
      %v2253 = vadd.f32 0.0, %v2252
      %v2254 = vpop.f32.mrb[0].mxu0
      %2255 = vmatprep.mubr.bf16.mxu0 0
      %2256 = vmatmul.mubr.bf16.gmra.mrb[0].mxu0 %v1068
      %v2257 = vpop.f32.mrb[0].mxu0
      %v2258 = vadd.f32 0.0, %v2257
      %v2259 = vpop.f32.mrb[0].mxu0
      %v2260 = vpop.f32.mrb[0].mxu0
      %v2261 = vadd.f32 0.0, %v2260
      %v2262 = vpop.f32.mrb[0].mxu0
      %2263 = vmatprep.mubr.bf16.mxu0 0
      %2264 = vmatmul.mubr.bf16.gmra.mrb[0].mxu0 %v1070
      %v2265 = vpop.f32.mrb[0].mxu0
      %v2266 = vadd.f32 0.0, %v2265
      %v2267 = vpop.f32.mrb[0].mxu0
      %v2268 = vpop.f32.mrb[0].mxu0
      %v2269 = vadd.f32 0.0, %v2268
      %v2270 = vpop.f32.mrb[0].mxu0
      %2271 = vmatprep.mubr.bf16.mxu0 0
      %2272 = vmatmul.mubr.bf16.gmra.mrb[0].mxu0 %v1072
      %v2273 = vpop.f32.mrb[0].mxu0
      %v2274 = vadd.f32 0.0, %v2273
      %v2275 = vpop.f32.mrb[0].mxu0
      %v2276 = vpop.f32.mrb[0].mxu0
      %v2277 = vadd.f32 0.0, %v2276
      %v2278 = vpop.f32.mrb[0].mxu0
      %2279 = vmatprep.mubr.bf16.mxu0 0
      %2280 = vmatmul.mubr.bf16.gmra.mrb[0].mxu0 %v1074
      %v2281 = vpop.f32.mrb[0].mxu0
      %v2282 = vadd.f32 0.0, %v2281
      %v2283 = vpop.f32.mrb[0].mxu0
      %v2284 = vpop.f32.mrb[0].mxu0
      %v2285 = vadd.f32 0.0, %v2284
      %v2286 = vpop.f32.mrb[0].mxu0
      %2287 = vmatprep.mubr.bf16.mxu0 0
      %2288 = vmatmul.mubr.bf16.gmra.mrb[0].mxu0 %v1076
      %v2289 = vpop.f32.mrb[0].mxu0
      %v2290 = vadd.f32 0.0, %v2289
      %v2291 = vpop.f32.mrb[0].mxu0
      %v2292 = vpop.f32.mrb[0].mxu0
      %v2293 = vadd.f32 0.0, %v2292
      %v2294 = vpop.f32.mrb[0].mxu0
      %2295 = vmatprep.mubr.bf16.mxu0 0
      %2296 = vmatmul.mubr.bf16.gmra.mrb[0].mxu0 %v1078
      %v2297 = vpop.f32.mrb[0].mxu0
      %v2298 = vadd.f32 0.0, %v2297
      %v2299 = vpop.f32.mrb[0].mxu0
      %v2300 = vpop.f32.mrb[0].mxu0
      %v2301 = vadd.f32 0.0, %v2300
      %v2302 = vpop.f32.mrb[0].mxu0
      %2303 = vmatprep.mubr.bf16.mxu0 0
      %2304 = vmatmul.mubr.bf16.gmra.mrb[0].mxu0 %v1080
      %v2305 = vpop.f32.mrb[0].mxu0
      %v2306 = vadd.f32 0.0, %v2305
      %v2307 = vpop.f32.mrb[0].mxu0
      %v2308 = vpop.f32.mrb[0].mxu0
      %v2309 = vadd.f32 0.0, %v2308
      %v2310 = vpop.f32.mrb[0].mxu0
      %2311 = vmatprep.mubr.bf16.mxu0 0
      %2312 = vmatmul.mubr.bf16.gmra.mrb[0].mxu0 %v1082
      %v2313 = vpop.f32.mrb[0].mxu0
      %v2314 = vadd.f32 0.0, %v2313
      %v2315 = vpop.f32.mrb[0].mxu0
      %v2316 = vpop.f32.mrb[0].mxu0
      %v2317 = vadd.f32 0.0, %v2316
      %v2318 = vpop.f32.mrb[0].mxu0
      %2319 = vmatprep.mubr.bf16.mxu0 0
      %2320 = vmatmul.mubr.bf16.gmra.mrb[0].mxu0 %v1084
      %v2321 = vpop.f32.mrb[0].mxu0
      %v2322 = vadd.f32 0.0, %v2321
      %v2323 = vpop.f32.mrb[0].mxu0
      %v2324 = vpop.f32.mrb[0].mxu0
      %v2325 = vadd.f32 0.0, %v2324
      %v2326 = vpop.f32.mrb[0].mxu0
      %2327 = vmatprep.mubr.bf16.mxu0 0
      %2328 = vmatmul.mubr.bf16.gmra.mrb[0].mxu0 %v1086
      %v2329 = vpop.f32.mrb[0].mxu0
      %v2330 = vadd.f32 0.0, %v2329
      %v2331 = vpop.f32.mrb[0].mxu0
      %v2332 = vpop.f32.mrb[0].mxu0
      %v2333 = vadd.f32 0.0, %v2332
      %v2334 = vpop.f32.mrb[0].mxu0
      %2335 = vmatprep.mubr.bf16.mxu0 0
      %2336 = vmatmul.mubr.bf16.gmra.mrb[0].mxu0 %v1088
      %v2337 = vpop.f32.mrb[0].mxu0
      %v2338 = vadd.f32 0.0, %v2337
      %v2339 = vpop.f32.mrb[0].mxu0
      %v2340 = vpop.f32.mrb[0].mxu0
      %v2341 = vadd.f32 0.0, %v2340
      %v2342 = vpop.f32.mrb[0].mxu0
      %2343 = vmatprep.mubr.bf16.mxu0 0
      %2344 = vmatmul.mubr.bf16.gmra.mrb[0].mxu0 %v1090
      %v2345 = vpop.f32.mrb[0].mxu0
      %v2346 = vadd.f32 0.0, %v2345
      %v2347 = vpop.f32.mrb[0].mxu0
      %v2348 = vpop.f32.mrb[0].mxu0
      %v2349 = vadd.f32 0.0, %v2348
      %v2350 = vpop.f32.mrb[0].mxu0
      %2351 = vmatprep.mubr.bf16.mxu0 0
      %2352 = vmatmul.mubr.bf16.gmra.mrb[0].mxu0 %v1586
      %v2353 = vpop.f32.mrb[0].mxu0
      %v2354 = vadd.f32 0.0, %v2353
      %v2355 = vpop.f32.mrb[0].mxu0
      %v2356 = vpop.f32.mrb[0].mxu0
      %v2357 = vadd.f32 0.0, %v2356
      %v2358 = vpop.f32.mrb[0].mxu0
      %2359 = vmatprep.mubr.bf16.mxu0 0
      %2360 = vmatmul.mubr.bf16.gmra.mrb[0].mxu0 %v1060
      %v2361 = vpop.f32.mrb[0].mxu0
      %v2362 = vadd.f32 0.0, %v2361
      %v2363 = vpop.f32.mrb[0].mxu0
      %v2364 = vpop.f32.mrb[0].mxu0
      %v2365 = vadd.f32 0.0, %v2364
      %v2366 = vpop.f32.mrb[0].mxu0
      %2367 = vdwg.mxu0
      %v2368 = vadd.f32 %v2170, %v2242
      %v2369 = vadd.f32 %v2171, %v2245
      %v2370 = vadd.f32 %v2172, %v2250
      %v2371 = vadd.f32 %v2173, %v2253
      %v2372 = vadd.f32 %v2174, %v2258
      %v2373 = vadd.f32 %v2175, %v2261
      %v2374 = vadd.f32 %v2176, %v2266
      %v2375 = vadd.f32 %v2177, %v2269
      %v2376 = vadd.f32 %v2178, %v2274
      %v2377 = vadd.f32 %v2179, %v2277
      %v2378 = vadd.f32 %v2180, %v2282
      %v2379 = vadd.f32 %v2181, %v2285
      %v2380 = vadd.f32 %v2182, %v2290
      %v2381 = vadd.f32 %v2183, %v2293
      %v2382 = vadd.f32 %v2184, %v2298
      %v2383 = vadd.f32 %v2185, %v2301
      %v2384 = vadd.f32 %v2186, %v2306
      %v2385 = vadd.f32 %v2187, %v2309
      %v2386 = vadd.f32 %v2188, %v2314
      %v2387 = vadd.f32 %v2189, %v2317
      %v2388 = vadd.f32 %v2190, %v2322
      %v2389 = vadd.f32 %v2191, %v2325
      %v2390 = vadd.f32 %v2192, %v2330
      %v2391 = vadd.f32 %v2193, %v2333
      %v2392 = vadd.f32 %v2194, %v2338
      %v2393 = vadd.f32 %v2195, %v2341
      %v2394 = vadd.f32 %v2196, %v2346
      %v2395 = vadd.f32 %v2197, %v2349
      %v2396 = vadd.f32 %v2198, %v2354
      %v2397 = vadd.f32 %v2199, %v2357
      %v2398 = vadd.f32 %v2200, %v2362
      %v2399 = vadd.f32 %v2201, %v2365
      %s2400 = scalar_lea.vmem %s3, 14
      %v2401 = vld [vmem:[%s2400] sm:$0x3]
      %v2403 = vsel %vm895, %v2401, 0
      %2405 = vmatprep.subr.bf16.mxu0 0
      %2406 = vmatpush1.bf16.msra.mxu0 %v2403
      %2407 = vmatprep.subr.bf16.mxu0 0
      %2408 = vmatpush1.bf16.msra.mxu0 0
      %2409 = vmatprep.subr.bf16.mxu0 0
      %2410 = vmatpush1.bf16.msra.mxu0 0
      %2411 = vmatprep.subr.bf16.mxu0 0
      %2412 = vmatpush1.bf16.msra.mxu0 0
      %2413 = vmatprep.subr.bf16.mxu0 0
      %2414 = vmatpush1.bf16.msra.mxu0 0
      %2415 = vmatprep.subr.bf16.mxu0 0
      %2416 = vmatpush1.bf16.msra.mxu0 0
      %2417 = vmatprep.subr.bf16.mxu0 0
      %2418 = vmatpush1.bf16.msra.mxu0 0
      %2419 = vmatprep.subr.bf16.mxu0 0
      %2420 = vmatpush1.bf16.msra.mxu0 0
      %2421 = vmatprep.subr.bf16.mxu0 0
      %2422 = vmatpush1.bf16.msra.mxu0 0
      %2423 = vmatprep.subr.bf16.mxu0 0
      %2424 = vmatpush1.bf16.msra.mxu0 0
      %2425 = vmatprep.subr.bf16.mxu0 0
      %2426 = vmatpush1.bf16.msra.mxu0 0
      %2427 = vmatprep.subr.bf16.mxu0 0
      %2428 = vmatpush1.bf16.msra.mxu0 0
      %2429 = vmatprep.subr.bf16.mxu0 0
      %2430 = vmatpush1.bf16.msra.mxu0 0
      %2431 = vmatprep.subr.bf16.mxu0 0
      %2432 = vmatpush1.bf16.msra.mxu0 0
      %2433 = vmatprep.subr.bf16.mxu0 0
      %2434 = vmatpush1.bf16.msra.mxu0 0
      %2435 = vmatprep.subr.bf16.mxu0 0
      %2436 = vmatpush1.bf16.msra.mxu0 0
      %2437 = vmatprep.mubr.bf16.mxu0 0
      %2438 = vmatmul.mubr.bf16.gmra.mrb[0].mxu0 %v854
      %v2439 = vpop.f32.mrb[0].mxu0
      %v2440 = vadd.f32 0.0, %v2439
      %v2441 = vpop.f32.mrb[0].mxu0
      %v2442 = vpop.f32.mrb[0].mxu0
      %v2443 = vadd.f32 0.0, %v2442
      %v2444 = vpop.f32.mrb[0].mxu0
      %2445 = vmatprep.mubr.bf16.mxu0 0
      %2446 = vmatmul.mubr.bf16.gmra.mrb[0].mxu0 %v857
      %v2447 = vpop.f32.mrb[0].mxu0
      %v2448 = vadd.f32 0.0, %v2447
      %v2449 = vpop.f32.mrb[0].mxu0
      %v2450 = vpop.f32.mrb[0].mxu0
      %v2451 = vadd.f32 0.0, %v2450
      %v2452 = vpop.f32.mrb[0].mxu0
      %2453 = vmatprep.mubr.bf16.mxu0 0
      %2454 = vmatmul.mubr.bf16.gmra.mrb[0].mxu0 %v860
      %v2455 = vpop.f32.mrb[0].mxu0
      %v2456 = vadd.f32 0.0, %v2455
      %v2457 = vpop.f32.mrb[0].mxu0
      %v2458 = vpop.f32.mrb[0].mxu0
      %v2459 = vadd.f32 0.0, %v2458
      %v2460 = vpop.f32.mrb[0].mxu0
      %2461 = vmatprep.mubr.bf16.mxu0 0
      %2462 = vmatmul.mubr.bf16.gmra.mrb[0].mxu0 %v863
      %v2463 = vpop.f32.mrb[0].mxu0
      %v2464 = vadd.f32 0.0, %v2463
      %v2465 = vpop.f32.mrb[0].mxu0
      %v2466 = vpop.f32.mrb[0].mxu0
      %v2467 = vadd.f32 0.0, %v2466
      %v2468 = vpop.f32.mrb[0].mxu0
      %2469 = vmatprep.mubr.bf16.mxu0 0
      %2470 = vmatmul.mubr.bf16.gmra.mrb[0].mxu0 %v866
      %v2471 = vpop.f32.mrb[0].mxu0
      %v2472 = vadd.f32 0.0, %v2471
      %v2473 = vpop.f32.mrb[0].mxu0
      %v2474 = vpop.f32.mrb[0].mxu0
      %v2475 = vadd.f32 0.0, %v2474
      %v2476 = vpop.f32.mrb[0].mxu0
      %2477 = vmatprep.mubr.bf16.mxu0 0
      %2478 = vmatmul.mubr.bf16.gmra.mrb[0].mxu0 %v869
      %v2479 = vpop.f32.mrb[0].mxu0
      %v2480 = vadd.f32 0.0, %v2479
      %v2481 = vpop.f32.mrb[0].mxu0
      %v2482 = vpop.f32.mrb[0].mxu0
      %v2483 = vadd.f32 0.0, %v2482
      %v2484 = vpop.f32.mrb[0].mxu0
      %2485 = vmatprep.mubr.bf16.mxu0 0
      %2486 = vmatmul.mubr.bf16.gmra.mrb[0].mxu0 %v872
      %v2487 = vpop.f32.mrb[0].mxu0
      %v2488 = vadd.f32 0.0, %v2487
      %v2489 = vpop.f32.mrb[0].mxu0
      %v2490 = vpop.f32.mrb[0].mxu0
      %v2491 = vadd.f32 0.0, %v2490
      %v2492 = vpop.f32.mrb[0].mxu0
      %2493 = vmatprep.mubr.bf16.mxu0 0
      %2494 = vmatmul.mubr.bf16.gmra.mrb[0].mxu0 %v875
      %v2495 = vpop.f32.mrb[0].mxu0
      %v2496 = vadd.f32 0.0, %v2495
      %v2497 = vpop.f32.mrb[0].mxu0
      %v2498 = vpop.f32.mrb[0].mxu0
      %v2499 = vadd.f32 0.0, %v2498
      %v2500 = vpop.f32.mrb[0].mxu0
      %2501 = vmatprep.mubr.bf16.mxu0 0
      %2502 = vmatmul.mubr.bf16.gmra.mrb[0].mxu0 %v878
      %v2503 = vpop.f32.mrb[0].mxu0
      %v2504 = vadd.f32 0.0, %v2503
      %v2505 = vpop.f32.mrb[0].mxu0
      %v2506 = vpop.f32.mrb[0].mxu0
      %v2507 = vadd.f32 0.0, %v2506
      %v2508 = vpop.f32.mrb[0].mxu0
      %2509 = vmatprep.mubr.bf16.mxu0 0
      %2510 = vmatmul.mubr.bf16.gmra.mrb[0].mxu0 %v881
      %v2511 = vpop.f32.mrb[0].mxu0
      %v2512 = vadd.f32 0.0, %v2511
      %v2513 = vpop.f32.mrb[0].mxu0
      %v2514 = vpop.f32.mrb[0].mxu0
      %v2515 = vadd.f32 0.0, %v2514
      %v2516 = vpop.f32.mrb[0].mxu0
      %2517 = vmatprep.mubr.bf16.mxu0 0
      %2518 = vmatmul.mubr.bf16.gmra.mrb[0].mxu0 %v884
      %v2519 = vpop.f32.mrb[0].mxu0
      %v2520 = vadd.f32 0.0, %v2519
      %v2521 = vpop.f32.mrb[0].mxu0
      %v2522 = vpop.f32.mrb[0].mxu0
      %v2523 = vadd.f32 0.0, %v2522
      %v2524 = vpop.f32.mrb[0].mxu0
      %2525 = vmatprep.mubr.bf16.mxu0 0
      %2526 = vmatmul.mubr.bf16.gmra.mrb[0].mxu0 %v887
      %v2527 = vpop.f32.mrb[0].mxu0
      %v2528 = vadd.f32 0.0, %v2527
      %v2529 = vpop.f32.mrb[0].mxu0
      %v2530 = vpop.f32.mrb[0].mxu0
      %v2531 = vadd.f32 0.0, %v2530
      %v2532 = vpop.f32.mrb[0].mxu0
      %2533 = vmatprep.mubr.bf16.mxu0 0
      %2534 = vmatmul.mubr.bf16.gmra.mrb[0].mxu0 %v890
      %v2535 = vpop.f32.mrb[0].mxu0
      %v2536 = vadd.f32 0.0, %v2535
      %v2537 = vpop.f32.mrb[0].mxu0
      %v2538 = vpop.f32.mrb[0].mxu0
      %v2539 = vadd.f32 0.0, %v2538
      %v2540 = vpop.f32.mrb[0].mxu0
      %2541 = vmatprep.mubr.bf16.mxu0 0
      %2542 = vmatmul.mubr.bf16.gmra.mrb[0].mxu0 %v893
      %v2543 = vpop.f32.mrb[0].mxu0
      %v2544 = vadd.f32 0.0, %v2543
      %v2545 = vpop.f32.mrb[0].mxu0
      %v2546 = vpop.f32.mrb[0].mxu0
      %v2547 = vadd.f32 0.0, %v2546
      %v2548 = vpop.f32.mrb[0].mxu0
      %2549 = vmatprep.mubr.bf16.mxu0 0
      %2550 = vmatmul.mubr.bf16.gmra.mrb[0].mxu0 %v1798
      %v2551 = vpop.f32.mrb[0].mxu0
      %v2552 = vadd.f32 0.0, %v2551
      %v2553 = vpop.f32.mrb[0].mxu0
      %v2554 = vpop.f32.mrb[0].mxu0
      %v2555 = vadd.f32 0.0, %v2554
      %v2556 = vpop.f32.mrb[0].mxu0
      %2557 = vmatprep.mubr.bf16.mxu0 0
      %2558 = vmatmul.mubr.bf16.gmra.mrb[0].mxu0 %v848
      %v2559 = vpop.f32.mrb[0].mxu0
      %v2560 = vadd.f32 0.0, %v2559
      %v2561 = vpop.f32.mrb[0].mxu0
      %v2562 = vpop.f32.mrb[0].mxu0
      %v2563 = vadd.f32 0.0, %v2562
      %v2564 = vpop.f32.mrb[0].mxu0
      %2565 = vdwg.mxu0
      %v2566 = vadd.f32 %v2368, %v2440
      %v2567 = vadd.f32 %v2369, %v2443
      %v2568 = vadd.f32 %v2370, %v2448
      %v2569 = vadd.f32 %v2371, %v2451
      %v2570 = vadd.f32 %v2372, %v2456
      %v2571 = vadd.f32 %v2373, %v2459
      %v2572 = vadd.f32 %v2374, %v2464
      %v2573 = vadd.f32 %v2375, %v2467
      %v2574 = vadd.f32 %v2376, %v2472
      %v2575 = vadd.f32 %v2377, %v2475
      %v2576 = vadd.f32 %v2378, %v2480
      %v2577 = vadd.f32 %v2379, %v2483
      %v2578 = vadd.f32 %v2380, %v2488
      %v2579 = vadd.f32 %v2381, %v2491
      %v2580 = vadd.f32 %v2382, %v2496
      %v2581 = vadd.f32 %v2383, %v2499
      %v2582 = vadd.f32 %v2384, %v2504
      %v2583 = vadd.f32 %v2385, %v2507
      %v2584 = vadd.f32 %v2386, %v2512
      %v2585 = vadd.f32 %v2387, %v2515
      %v2586 = vadd.f32 %v2388, %v2520
      %v2587 = vadd.f32 %v2389, %v2523
      %v2588 = vadd.f32 %v2390, %v2528
      %v2589 = vadd.f32 %v2391, %v2531
      %v2590 = vadd.f32 %v2392, %v2536
      %v2591 = vadd.f32 %v2393, %v2539
      %v2592 = vadd.f32 %v2394, %v2544
      %v2593 = vadd.f32 %v2395, %v2547
      %v2594 = vadd.f32 %v2396, %v2552
      %v2595 = vadd.f32 %v2397, %v2555
      %v2596 = vadd.f32 %v2398, %v2560
      %v2597 = vadd.f32 %v2399, %v2563
      %s2598 = scalar_lea.vmem %s3, 16
      %v2599 = vld [vmem:[%s2598] sm:$0x3]
      %v2601 = vsel %vm895, %v2599, 0
      %2603 = vmatprep.subr.bf16.mxu0 0
      %2604 = vmatpush1.bf16.msra.mxu0 %v2601
      %2605 = vmatprep.subr.bf16.mxu0 0
      %2606 = vmatpush1.bf16.msra.mxu0 0
      %2607 = vmatprep.subr.bf16.mxu0 0
      %2608 = vmatpush1.bf16.msra.mxu0 0
      %2609 = vmatprep.subr.bf16.mxu0 0
      %2610 = vmatpush1.bf16.msra.mxu0 0
      %2611 = vmatprep.subr.bf16.mxu0 0
      %2612 = vmatpush1.bf16.msra.mxu0 0
      %2613 = vmatprep.subr.bf16.mxu0 0
      %2614 = vmatpush1.bf16.msra.mxu0 0
      %2615 = vmatprep.subr.bf16.mxu0 0
      %2616 = vmatpush1.bf16.msra.mxu0 0
      %2617 = vmatprep.subr.bf16.mxu0 0
      %2618 = vmatpush1.bf16.msra.mxu0 0
      %2619 = vmatprep.subr.bf16.mxu0 0
      %2620 = vmatpush1.bf16.msra.mxu0 0
      %2621 = vmatprep.subr.bf16.mxu0 0
      %2622 = vmatpush1.bf16.msra.mxu0 0
      %2623 = vmatprep.subr.bf16.mxu0 0
      %2624 = vmatpush1.bf16.msra.mxu0 0
      %2625 = vmatprep.subr.bf16.mxu0 0
      %2626 = vmatpush1.bf16.msra.mxu0 0
      %2627 = vmatprep.subr.bf16.mxu0 0
      %2628 = vmatpush1.bf16.msra.mxu0 0
      %2629 = vmatprep.subr.bf16.mxu0 0
      %2630 = vmatpush1.bf16.msra.mxu0 0
      %2631 = vmatprep.subr.bf16.mxu0 0
      %2632 = vmatpush1.bf16.msra.mxu0 0
      %2633 = vmatprep.subr.bf16.mxu0 0
      %2634 = vmatpush1.bf16.msra.mxu0 0
      %2635 = vmatprep.mubr.bf16.mxu0 0
      %2636 = vmatmul.mubr.bf16.gmra.mrb[0].mxu0 %v1346
      %v2637 = vpop.f32.mrb[0].mxu0
      %v2638 = vadd.f32 0.0, %v2637
      %v2639 = vpop.f32.mrb[0].mxu0
      %v2640 = vpop.f32.mrb[0].mxu0
      %v2641 = vadd.f32 0.0, %v2640
      %v2642 = vpop.f32.mrb[0].mxu0
      %2643 = vmatprep.mubr.bf16.mxu0 0
      %2644 = vmatmul.mubr.bf16.gmra.mrb[0].mxu0 %v1349
      %v2645 = vpop.f32.mrb[0].mxu0
      %v2646 = vadd.f32 0.0, %v2645
      %v2647 = vpop.f32.mrb[0].mxu0
      %v2648 = vpop.f32.mrb[0].mxu0
      %v2649 = vadd.f32 0.0, %v2648
      %v2650 = vpop.f32.mrb[0].mxu0
      %2651 = vmatprep.mubr.bf16.mxu0 0
      %2652 = vmatmul.mubr.bf16.gmra.mrb[0].mxu0 %v1352
      %v2653 = vpop.f32.mrb[0].mxu0
      %v2654 = vadd.f32 0.0, %v2653
      %v2655 = vpop.f32.mrb[0].mxu0
      %v2656 = vpop.f32.mrb[0].mxu0
      %v2657 = vadd.f32 0.0, %v2656
      %v2658 = vpop.f32.mrb[0].mxu0
      %2659 = vmatprep.mubr.bf16.mxu0 0
      %2660 = vmatmul.mubr.bf16.gmra.mrb[0].mxu0 %v1355
      %v2661 = vpop.f32.mrb[0].mxu0
      %v2662 = vadd.f32 0.0, %v2661
      %v2663 = vpop.f32.mrb[0].mxu0
      %v2664 = vpop.f32.mrb[0].mxu0
      %v2665 = vadd.f32 0.0, %v2664
      %v2666 = vpop.f32.mrb[0].mxu0
      %2667 = vmatprep.mubr.bf16.mxu0 0
      %2668 = vmatmul.mubr.bf16.gmra.mrb[0].mxu0 %v1358
      %v2669 = vpop.f32.mrb[0].mxu0
      %v2670 = vadd.f32 0.0, %v2669
      %v2671 = vpop.f32.mrb[0].mxu0
      %v2672 = vpop.f32.mrb[0].mxu0
      %v2673 = vadd.f32 0.0, %v2672
      %v2674 = vpop.f32.mrb[0].mxu0
      %2675 = vmatprep.mubr.bf16.mxu0 0
      %2676 = vmatmul.mubr.bf16.gmra.mrb[0].mxu0 %v1361
      %v2677 = vpop.f32.mrb[0].mxu0
      %v2678 = vadd.f32 0.0, %v2677
      %v2679 = vpop.f32.mrb[0].mxu0
      %v2680 = vpop.f32.mrb[0].mxu0
      %v2681 = vadd.f32 0.0, %v2680
      %v2682 = vpop.f32.mrb[0].mxu0
      %2683 = vmatprep.mubr.bf16.mxu0 0
      %2684 = vmatmul.mubr.bf16.gmra.mrb[0].mxu0 %v1364
      %v2685 = vpop.f32.mrb[0].mxu0
      %v2686 = vadd.f32 0.0, %v2685
      %v2687 = vpop.f32.mrb[0].mxu0
      %v2688 = vpop.f32.mrb[0].mxu0
      %v2689 = vadd.f32 0.0, %v2688
      %v2690 = vpop.f32.mrb[0].mxu0
      %2691 = vmatprep.mubr.bf16.mxu0 0
      %2692 = vmatmul.mubr.bf16.gmra.mrb[0].mxu0 %v1367
      %v2693 = vpop.f32.mrb[0].mxu0
      %v2694 = vadd.f32 0.0, %v2693
      %v2695 = vpop.f32.mrb[0].mxu0
      %v2696 = vpop.f32.mrb[0].mxu0
      %v2697 = vadd.f32 0.0, %v2696
      %v2698 = vpop.f32.mrb[0].mxu0
      %2699 = vmatprep.mubr.bf16.mxu0 0
      %2700 = vmatmul.mubr.bf16.gmra.mrb[0].mxu0 %v1370
      %v2701 = vpop.f32.mrb[0].mxu0
      %v2702 = vadd.f32 0.0, %v2701
      %v2703 = vpop.f32.mrb[0].mxu0
      %v2704 = vpop.f32.mrb[0].mxu0
      %v2705 = vadd.f32 0.0, %v2704
      %v2706 = vpop.f32.mrb[0].mxu0
      %2707 = vmatprep.mubr.bf16.mxu0 0
      %2708 = vmatmul.mubr.bf16.gmra.mrb[0].mxu0 %v1373
      %v2709 = vpop.f32.mrb[0].mxu0
      %v2710 = vadd.f32 0.0, %v2709
      %v2711 = vpop.f32.mrb[0].mxu0
      %v2712 = vpop.f32.mrb[0].mxu0
      %v2713 = vadd.f32 0.0, %v2712
      %v2714 = vpop.f32.mrb[0].mxu0
      %2715 = vmatprep.mubr.bf16.mxu0 0
      %2716 = vmatmul.mubr.bf16.gmra.mrb[0].mxu0 %v1376
      %v2717 = vpop.f32.mrb[0].mxu0
      %v2718 = vadd.f32 0.0, %v2717
      %v2719 = vpop.f32.mrb[0].mxu0
      %v2720 = vpop.f32.mrb[0].mxu0
      %v2721 = vadd.f32 0.0, %v2720
      %v2722 = vpop.f32.mrb[0].mxu0
      %2723 = vmatprep.mubr.bf16.mxu0 0
      %2724 = vmatmul.mubr.bf16.gmra.mrb[0].mxu0 %v1379
      %v2725 = vpop.f32.mrb[0].mxu0
      %v2726 = vadd.f32 0.0, %v2725
      %v2727 = vpop.f32.mrb[0].mxu0
      %v2728 = vpop.f32.mrb[0].mxu0
      %v2729 = vadd.f32 0.0, %v2728
      %v2730 = vpop.f32.mrb[0].mxu0
      %2731 = vmatprep.mubr.bf16.mxu0 0
      %2732 = vmatmul.mubr.bf16.gmra.mrb[0].mxu0 %v1382
      %v2733 = vpop.f32.mrb[0].mxu0
      %v2734 = vadd.f32 0.0, %v2733
      %v2735 = vpop.f32.mrb[0].mxu0
      %v2736 = vpop.f32.mrb[0].mxu0
      %v2737 = vadd.f32 0.0, %v2736
      %v2738 = vpop.f32.mrb[0].mxu0
      %2739 = vmatprep.mubr.bf16.mxu0 0
      %2740 = vmatmul.mubr.bf16.gmra.mrb[0].mxu0 %v1385
      %v2741 = vpop.f32.mrb[0].mxu0
      %v2742 = vadd.f32 0.0, %v2741
      %v2743 = vpop.f32.mrb[0].mxu0
      %v2744 = vpop.f32.mrb[0].mxu0
      %v2745 = vadd.f32 0.0, %v2744
      %v2746 = vpop.f32.mrb[0].mxu0
      %2747 = vmatprep.mubr.bf16.mxu0 0
      %2748 = vmatmul.mubr.bf16.gmra.mrb[0].mxu0 %v2004
      %v2749 = vpop.f32.mrb[0].mxu0
      %v2750 = vadd.f32 0.0, %v2749
      %v2751 = vpop.f32.mrb[0].mxu0
      %v2752 = vpop.f32.mrb[0].mxu0
      %v2753 = vadd.f32 0.0, %v2752
      %v2754 = vpop.f32.mrb[0].mxu0
      %2755 = vmatprep.mubr.bf16.mxu0 0
      %2756 = vmatmul.mubr.bf16.gmra.mrb[0].mxu0 %v1340
      %v2757 = vpop.f32.mrb[0].mxu0
      %v2758 = vadd.f32 0.0, %v2757
      %v2759 = vpop.f32.mrb[0].mxu0
      %v2760 = vpop.f32.mrb[0].mxu0
      %v2761 = vadd.f32 0.0, %v2760
      %v2762 = vpop.f32.mrb[0].mxu0
      %2763 = vdwg.mxu0
      %v2764 = vadd.f32 %v2566, %v2638
      %v2765 = vadd.f32 %v2567, %v2641
      %v2766 = vadd.f32 %v2568, %v2646
      %v2767 = vadd.f32 %v2569, %v2649
      %v2768 = vadd.f32 %v2570, %v2654
      %v2769 = vadd.f32 %v2571, %v2657
      %v2770 = vadd.f32 %v2572, %v2662
      %v2771 = vadd.f32 %v2573, %v2665
      %v2772 = vadd.f32 %v2574, %v2670
      %v2773 = vadd.f32 %v2575, %v2673
      %v2774 = vadd.f32 %v2576, %v2678
      %v2775 = vadd.f32 %v2577, %v2681
      %v2776 = vadd.f32 %v2578, %v2686
      %v2777 = vadd.f32 %v2579, %v2689
      %v2778 = vadd.f32 %v2580, %v2694
      %v2779 = vadd.f32 %v2581, %v2697
      %v2780 = vadd.f32 %v2582, %v2702
      %v2781 = vadd.f32 %v2583, %v2705
      %v2782 = vadd.f32 %v2584, %v2710
      %v2783 = vadd.f32 %v2585, %v2713
      %v2784 = vadd.f32 %v2586, %v2718
      %v2785 = vadd.f32 %v2587, %v2721
      %v2786 = vadd.f32 %v2588, %v2726
      %v2787 = vadd.f32 %v2589, %v2729
      %v2788 = vadd.f32 %v2590, %v2734
      %v2789 = vadd.f32 %v2591, %v2737
      %v2790 = vadd.f32 %v2592, %v2742
      %v2791 = vadd.f32 %v2593, %v2745
      %v2792 = vadd.f32 %v2594, %v2750
      %v2793 = vadd.f32 %v2595, %v2753
      %v2794 = vadd.f32 %v2596, %v2758
      %v2795 = vadd.f32 %v2597, %v2761
      %v2796 = vpack.c.bf16 %v2765, %v2764
      %v2797 = vpack.c.bf16 %v2767, %v2766
      %v2798 = vpack.c.bf16 %v2769, %v2768
      %v2799 = vpack.c.bf16 %v2771, %v2770
      %v2800 = vpack.c.bf16 %v2773, %v2772
      %v2801 = vpack.c.bf16 %v2775, %v2774
      %v2802 = vpack.c.bf16 %v2777, %v2776
      %v2803 = vpack.c.bf16 %v2779, %v2778
      %v2804 = vpack.c.bf16 %v2781, %v2780
      %v2805 = vpack.c.bf16 %v2783, %v2782
      %v2806 = vpack.c.bf16 %v2785, %v2784
      %v2807 = vpack.c.bf16 %v2787, %v2786
      %v2808 = vpack.c.bf16 %v2789, %v2788
      %v2809 = vpack.c.bf16 %v2791, %v2790
      %v2810 = vpack.c.bf16 %v2793, %v2792
      %v2811 = vpack.c.bf16 %v2795, %v2794
      %v2828 = vunpack.c.l.b16 %v2796
      %v2829 = vunpack.c.h.b16 %v2796
      %v2830 = vunpack.c.l.b16 %v2797
      %v2831 = vunpack.c.h.b16 %v2797
      %v2832 = vunpack.c.l.b16 %v2798
      %v2833 = vunpack.c.h.b16 %v2798
      %v2834 = vunpack.c.l.b16 %v2799
      %v2835 = vunpack.c.h.b16 %v2799
      %v2836 = vunpack.c.l.b16 %v2800
      %v2837 = vunpack.c.h.b16 %v2800
      %v2838 = vunpack.c.l.b16 %v2801
      %v2839 = vunpack.c.h.b16 %v2801
      %v2840 = vunpack.c.l.b16 %v2802
      %v2841 = vunpack.c.h.b16 %v2802
      %v2842 = vunpack.c.l.b16 %v2803
      %v2843 = vunpack.c.h.b16 %v2803
      %v2844 = vunpack.c.l.b16 %v2804
      %v2845 = vunpack.c.h.b16 %v2804
      %v2846 = vunpack.c.l.b16 %v2805
      %v2847 = vunpack.c.h.b16 %v2805
      %v2848 = vunpack.c.l.b16 %v2806
      %v2849 = vunpack.c.h.b16 %v2806
      %v2850 = vunpack.c.l.b16 %v2807
      %v2851 = vunpack.c.h.b16 %v2807
      %v2852 = vunpack.c.l.b16 %v2808
      %v2853 = vunpack.c.h.b16 %v2808
      %v2854 = vunpack.c.l.b16 %v2809
      %v2855 = vunpack.c.h.b16 %v2809
      %v2856 = vunpack.c.l.b16 %v2810
      %v2857 = vunpack.c.h.b16 %v2810
      %v2858 = vunpack.c.l.b16 %v2811
      %v2859 = vunpack.c.h.b16 %v2811
      %v2860 = vpack.c.b16 %v2828, %v2828
      %v2861 = vpack.c.b16 %v2829, %v2829
      %v2862 = vpack.c.b16 %v2830, %v2830
      %v2863 = vpack.c.b16 %v2831, %v2831
      %v2864 = vpack.c.b16 %v2832, %v2832
      %v2865 = vpack.c.b16 %v2833, %v2833
      %v2866 = vpack.c.b16 %v2834, %v2834
      %v2867 = vpack.c.b16 %v2835, %v2835
      %v2868 = vpack.c.b16 %v2836, %v2836
      %v2869 = vpack.c.b16 %v2837, %v2837
      %v2870 = vpack.c.b16 %v2838, %v2838
      %v2871 = vpack.c.b16 %v2839, %v2839
      %v2872 = vpack.c.b16 %v2840, %v2840
      %v2873 = vpack.c.b16 %v2841, %v2841
      %v2874 = vpack.c.b16 %v2842, %v2842
      %v2875 = vpack.c.b16 %v2843, %v2843
      %v2876 = vpack.c.b16 %v2844, %v2844
      %v2877 = vpack.c.b16 %v2845, %v2845
      %v2878 = vpack.c.b16 %v2846, %v2846
      %v2879 = vpack.c.b16 %v2847, %v2847
      %v2880 = vpack.c.b16 %v2848, %v2848
      %v2881 = vpack.c.b16 %v2849, %v2849
      %v2882 = vpack.c.b16 %v2850, %v2850
      %v2883 = vpack.c.b16 %v2851, %v2851
      %v2884 = vpack.c.b16 %v2852, %v2852
      %v2885 = vpack.c.b16 %v2853, %v2853
      %v2886 = vpack.c.b16 %v2854, %v2854
      %v2887 = vpack.c.b16 %v2855, %v2855
      %v2888 = vpack.c.b16 %v2856, %v2856
      %v2889 = vpack.c.b16 %v2857, %v2857
      %v2890 = vpack.c.b16 %v2858, %v2858
      %v2891 = vpack.c.b16 %v2859, %v2859
      %vm2924 = vcmask 27648
      %2925 = vst.msk [vmem:[%s262] sm:$0xf] %vm2924, %v2860
      %2926 = vst.msk [vmem:[%s262 + $0x4] sm:$0xf] %vm2924, %v2861
      %2927 = vst.msk [vmem:[%s262 + $0x8] sm:$0xf] %vm2924, %v2862
      %2928 = vst.msk [vmem:[%s262 + $0xc] sm:$0xf] %vm2924, %v2863
      %2929 = vst.msk [vmem:[%s262 + $0x10] sm:$0xf] %vm2924, %v2864
      %2930 = vst.msk [vmem:[%s262 + $0x14] sm:$0xf] %vm2924, %v2865
      %2931 = vst.msk [vmem:[%s262 + $0x18] sm:$0xf] %vm2924, %v2866
      %2932 = vst.msk [vmem:[%s262 + $0x1c] sm:$0xf] %vm2924, %v2867
      %2933 = vst.msk [vmem:[%s262 + $0x20] sm:$0xf] %vm2924, %v2868
      %2934 = vst.msk [vmem:[%s262 + $0x24] sm:$0xf] %vm2924, %v2869
      %2935 = vst.msk [vmem:[%s262 + $0x28] sm:$0xf] %vm2924, %v2870
      %2936 = vst.msk [vmem:[%s262 + $0x2c] sm:$0xf] %vm2924, %v2871
      %2937 = vst.msk [vmem:[%s262 + $0x30] sm:$0xf] %vm2924, %v2872
      %2938 = vst.msk [vmem:[%s262 + $0x34] sm:$0xf] %vm2924, %v2873
      %2939 = vst.msk [vmem:[%s262 + $0x38] sm:$0xf] %vm2924, %v2874
      %2940 = vst.msk [vmem:[%s262 + $0x3c] sm:$0xf] %vm2924, %v2875
      %2941 = vst.msk [vmem:[%s262 + $0x40] sm:$0xf] %vm2924, %v2876
      %2942 = vst.msk [vmem:[%s262 + $0x44] sm:$0xf] %vm2924, %v2877
      %2943 = vst.msk [vmem:[%s262 + $0x48] sm:$0xf] %vm2924, %v2878
      %2944 = vst.msk [vmem:[%s262 + $0x4c] sm:$0xf] %vm2924, %v2879
      %2945 = vst.msk [vmem:[%s262 + $0x50] sm:$0xf] %vm2924, %v2880
      %2946 = vst.msk [vmem:[%s262 + $0x54] sm:$0xf] %vm2924, %v2881
      %2947 = vst.msk [vmem:[%s262 + $0x58] sm:$0xf] %vm2924, %v2882
      %2948 = vst.msk [vmem:[%s262 + $0x5c] sm:$0xf] %vm2924, %v2883
      %2949 = vst.msk [vmem:[%s262 + $0x60] sm:$0xf] %vm2924, %v2884
      %2950 = vst.msk [vmem:[%s262 + $0x64] sm:$0xf] %vm2924, %v2885
      %2951 = vst.msk [vmem:[%s262 + $0x68] sm:$0xf] %vm2924, %v2886
      %2952 = vst.msk [vmem:[%s262 + $0x6c] sm:$0xf] %vm2924, %v2887
      %2953 = vst.msk [vmem:[%s262 + $0x70] sm:$0xf] %vm2924, %v2888
      %2954 = vst.msk [vmem:[%s262 + $0x74] sm:$0xf] %vm2924, %v2889
      %2955 = vst.msk [vmem:[%s262 + $0x78] sm:$0xf] %vm2924, %v2890
      %2956 = vst.msk [vmem:[%s262 + $0x7c] sm:$0xf] %vm2924, %v2891
      %v2957 = vsel %vm846, %v2764, 0.0
      %v2958 = vsel %vm846, %v2765, 0.0
      %v2959 = vadd.f32 %v2957, %v2958
      %v2960 = vsel %vm846, %v2766, 0.0
      %v2961 = vadd.f32 %v2959, %v2960
      %v2962 = vsel %vm846, %v2767, 0.0
      %v2963 = vadd.f32 %v2961, %v2962
      %v2964 = vsel %vm846, %v2768, 0.0
      %v2965 = vadd.f32 %v2963, %v2964
      %v2966 = vsel %vm846, %v2769, 0.0
      %v2967 = vadd.f32 %v2965, %v2966
      %v2968 = vsel %vm846, %v2770, 0.0
      %v2969 = vadd.f32 %v2967, %v2968
      %v2970 = vsel %vm846, %v2771, 0.0
      %v2971 = vadd.f32 %v2969, %v2970
      %v2972 = vsel %vm846, %v2772, 0.0
      %v2973 = vadd.f32 %v2971, %v2972
      %v2974 = vsel %vm846, %v2773, 0.0
      %v2975 = vadd.f32 %v2973, %v2974
      %v2976 = vsel %vm846, %v2774, 0.0
      %v2977 = vadd.f32 %v2975, %v2976
      %v2978 = vsel %vm846, %v2775, 0.0
      %v2979 = vadd.f32 %v2977, %v2978
      %v2980 = vsel %vm846, %v2776, 0.0
      %v2981 = vadd.f32 %v2979, %v2980
      %v2982 = vsel %vm846, %v2777, 0.0
      %v2983 = vadd.f32 %v2981, %v2982
      %v2984 = vsel %vm846, %v2778, 0.0
      %v2985 = vadd.f32 %v2983, %v2984
      %v2986 = vsel %vm846, %v2779, 0.0
      %v2987 = vadd.f32 %v2985, %v2986
      %v2988 = vsel %vm846, %v2780, 0.0
      %v2989 = vadd.f32 %v2987, %v2988
      %v2990 = vsel %vm846, %v2781, 0.0
      %v2991 = vadd.f32 %v2989, %v2990
      %v2992 = vsel %vm846, %v2782, 0.0
      %v2993 = vadd.f32 %v2991, %v2992
      %v2994 = vsel %vm846, %v2783, 0.0
      %v2995 = vadd.f32 %v2993, %v2994
      %v2996 = vsel %vm846, %v2784, 0.0
      %v2997 = vadd.f32 %v2995, %v2996
      %v2998 = vsel %vm846, %v2785, 0.0
      %v2999 = vadd.f32 %v2997, %v2998
      %v3000 = vsel %vm846, %v2786, 0.0
      %v3001 = vadd.f32 %v2999, %v3000
      %v3002 = vsel %vm846, %v2787, 0.0
      %v3003 = vadd.f32 %v3001, %v3002
      %v3004 = vsel %vm846, %v2788, 0.0
      %v3005 = vadd.f32 %v3003, %v3004
      %v3006 = vsel %vm846, %v2789, 0.0
      %v3007 = vadd.f32 %v3005, %v3006
      %v3008 = vsel %vm846, %v2790, 0.0
      %v3009 = vadd.f32 %v3007, %v3008
      %v3010 = vsel %vm846, %v2791, 0.0
      %v3011 = vadd.f32 %v3009, %v3010
      %v3012 = vsel %vm846, %v2792, 0.0
      %v3013 = vadd.f32 %v3011, %v3012
      %v3014 = vsel %vm846, %v2793, 0.0
      %v3015 = vadd.f32 %v3013, %v3014
      %v3016 = vsel %vm846, %v2794, 0.0
      %v3017 = vadd.f32 %v3015, %v3016
      %v3018 = vsel %vm846, %v2795, 0.0
      %v3019 = vadd.f32 %v3017, %v3018
      %v3020 = vrot.slane %v3019, 4
      %v3021 = vadd.f32 %v3019, %v3020
      %v3022 = vrot.slane %v3021, 2
      %v3023 = vadd.f32 %v3021, %v3022
      %v3024 = vrot.slane %v3023, 1
      %v3025 = vadd.f32 %v3023, %v3024
      %vm3026 = vcmask 24576
      %3027 = vst.msk [vmem:[%s265] sm:$0x1] %vm3026, %v3025
      %v3028 = vmul.f32 %v2764, %v2764
      %v3029 = vmul.f32 %v2765, %v2765
      %v3030 = vmul.f32 %v2766, %v2766
      %v3031 = vmul.f32 %v2767, %v2767
      %v3032 = vmul.f32 %v2768, %v2768
      %v3033 = vmul.f32 %v2769, %v2769
      %v3034 = vmul.f32 %v2770, %v2770
      %v3035 = vmul.f32 %v2771, %v2771
      %v3036 = vmul.f32 %v2772, %v2772
      %v3037 = vmul.f32 %v2773, %v2773
      %v3038 = vmul.f32 %v2774, %v2774
      %v3039 = vmul.f32 %v2775, %v2775
      %v3040 = vmul.f32 %v2776, %v2776
      %v3041 = vmul.f32 %v2777, %v2777
      %v3042 = vmul.f32 %v2778, %v2778
      %v3043 = vmul.f32 %v2779, %v2779
      %v3044 = vmul.f32 %v2780, %v2780
      %v3045 = vmul.f32 %v2781, %v2781
      %v3046 = vmul.f32 %v2782, %v2782
      %v3047 = vmul.f32 %v2783, %v2783
      %v3048 = vmul.f32 %v2784, %v2784
      %v3049 = vmul.f32 %v2785, %v2785
      %v3050 = vmul.f32 %v2786, %v2786
      %v3051 = vmul.f32 %v2787, %v2787
      %v3052 = vmul.f32 %v2788, %v2788
      %v3053 = vmul.f32 %v2789, %v2789
      %v3054 = vmul.f32 %v2790, %v2790
      %v3055 = vmul.f32 %v2791, %v2791
      %v3056 = vmul.f32 %v2792, %v2792
      %v3057 = vmul.f32 %v2793, %v2793
      %v3058 = vmul.f32 %v2794, %v2794
      %v3059 = vmul.f32 %v2795, %v2795
      %v3060 = vsel %vm846, %v3028, 0.0
      %v3061 = vsel %vm846, %v3029, 0.0
      %v3062 = vadd.f32 %v3060, %v3061
      %v3063 = vsel %vm846, %v3030, 0.0
      %v3064 = vadd.f32 %v3062, %v3063
      %v3065 = vsel %vm846, %v3031, 0.0
      %v3066 = vadd.f32 %v3064, %v3065
      %v3067 = vsel %vm846, %v3032, 0.0
      %v3068 = vadd.f32 %v3066, %v3067
      %v3069 = vsel %vm846, %v3033, 0.0
      %v3070 = vadd.f32 %v3068, %v3069
      %v3071 = vsel %vm846, %v3034, 0.0
      %v3072 = vadd.f32 %v3070, %v3071
      %v3073 = vsel %vm846, %v3035, 0.0
      %v3074 = vadd.f32 %v3072, %v3073
      %v3075 = vsel %vm846, %v3036, 0.0
      %v3076 = vadd.f32 %v3074, %v3075
      %v3077 = vsel %vm846, %v3037, 0.0
      %v3078 = vadd.f32 %v3076, %v3077
      %v3079 = vsel %vm846, %v3038, 0.0
      %v3080 = vadd.f32 %v3078, %v3079
      %v3081 = vsel %vm846, %v3039, 0.0
      %v3082 = vadd.f32 %v3080, %v3081
      %v3083 = vsel %vm846, %v3040, 0.0
      %v3084 = vadd.f32 %v3082, %v3083
      %v3085 = vsel %vm846, %v3041, 0.0
      %v3086 = vadd.f32 %v3084, %v3085
      %v3087 = vsel %vm846, %v3042, 0.0
      %v3088 = vadd.f32 %v3086, %v3087
      %v3089 = vsel %vm846, %v3043, 0.0
      %v3090 = vadd.f32 %v3088, %v3089
      %v3091 = vsel %vm846, %v3044, 0.0
      %v3092 = vadd.f32 %v3090, %v3091
      %v3093 = vsel %vm846, %v3045, 0.0
      %v3094 = vadd.f32 %v3092, %v3093
      %v3095 = vsel %vm846, %v3046, 0.0
      %v3096 = vadd.f32 %v3094, %v3095
      %v3097 = vsel %vm846, %v3047, 0.0
      %v3098 = vadd.f32 %v3096, %v3097
      %v3099 = vsel %vm846, %v3048, 0.0
      %v3100 = vadd.f32 %v3098, %v3099
      %v3101 = vsel %vm846, %v3049, 0.0
      %v3102 = vadd.f32 %v3100, %v3101
      %v3103 = vsel %vm846, %v3050, 0.0
      %v3104 = vadd.f32 %v3102, %v3103
      %v3105 = vsel %vm846, %v3051, 0.0
      %v3106 = vadd.f32 %v3104, %v3105
      %v3107 = vsel %vm846, %v3052, 0.0
      %v3108 = vadd.f32 %v3106, %v3107
      %v3109 = vsel %vm846, %v3053, 0.0
      %v3110 = vadd.f32 %v3108, %v3109
      %v3111 = vsel %vm846, %v3054, 0.0
      %v3112 = vadd.f32 %v3110, %v3111
      %v3113 = vsel %vm846, %v3055, 0.0
      %v3114 = vadd.f32 %v3112, %v3113
      %v3115 = vsel %vm846, %v3056, 0.0
      %v3116 = vadd.f32 %v3114, %v3115
      %v3117 = vsel %vm846, %v3057, 0.0
      %v3118 = vadd.f32 %v3116, %v3117
      %v3119 = vsel %vm846, %v3058, 0.0
      %v3120 = vadd.f32 %v3118, %v3119
      %v3121 = vsel %vm846, %v3059, 0.0
      %v3122 = vadd.f32 %v3120, %v3121
      %v3123 = vrot.slane %v3122, 4
      %v3124 = vadd.f32 %v3122, %v3123
      %v3125 = vrot.slane %v3124, 2
      %v3126 = vadd.f32 %v3124, %v3125
      %v3127 = vrot.slane %v3126, 1
      %v3128 = vadd.f32 %v3126, %v3127
      %3129 = vst.msk [vmem:[%s268] sm:$0x1] %vm3026, %v3128
      %p3130 = scmp.lt.s32.totalorder %s18, 1
      %s3131 = scalar_select %p3130, %s18, 1
      %s3132 = smul.addr %s3131, 32
      %s3133 = smul.addr %s3132, 4
      %s3134 = scalar_lea.vmem %s4, %s3133
      %p3135 = scmp.lt.s32.totalorder %s18, 1
      %s3136 = scalar_select %p3135, %s18, 1
      %s3137 = scalar_lea.vmem %s5, %s3136
      %p3138 = scmp.lt.s32.totalorder %s18, 1
      %s3139 = scalar_select %p3138, %s18, 1
      %s3140 = scalar_lea.vmem %s6, %s3139
      // Predicated region
      $region37: #{upblock_forward.6} parent=35 // pred_check
        %p3141 = pneg %p125
      $region38: #{upblock_forward.6} parent=35 // pred_check_branch
        %3143 = sbr.rel (%p3141) target = $region40
      $region39: #{upblock_forward.6} parent=35 // pred_region
        _
      $region40: #{upblock_forward.6} parent=35 // pred_fallthru
        _
      // Predicated region
      $region41: #{upblock_forward.6} parent=35 // pred_check
        %p3144 = pneg %p151
      $region42: #{upblock_forward.6} parent=35 // pred_check_branch
        %3146 = sbr.rel (%p3144) target = $region44
      $region43: #{upblock_forward.6} parent=35 // pred_region
        _
      $region44: #{upblock_forward.6} parent=35 // pred_fallthru
        _
      // Predicated region
      $region45: #{upblock_forward.6} parent=35 // pred_check
        %p3147 = pneg %p177
      $region46: #{upblock_forward.6} parent=35 // pred_check_branch
        %3149 = sbr.rel (%p3147) target = $region48
      $region47: #{upblock_forward.6} parent=35 // pred_region
        _
      $region48: #{upblock_forward.6} parent=35 // pred_fallthru
        _
    $region36: #{upblock_forward.6} parent=5 // pred_fallthru
      _
    %p3150 = scmp.le.s32.totalorder 2, %s13
    // Predicated region
    $region49: #{upblock_forward.6} parent=5 // pred_check
      %p3151 = pneg %p3150
    $region50: #{upblock_forward.6} parent=5 // pred_check_branch
      %3153 = sbr.rel (%p3151) target = $region52
    $region51: #{upblock_forward.6} parent=5 // pred_region
      %s3154 = ssub.s32 %s13, 2
      // Predicated region
      $region53: #{upblock_forward.6} parent=51 // pred_check
        %p3155 = pneg %p131
      $region54: #{upblock_forward.6} parent=51 // pred_check_branch
        %3157 = sbr.rel (%p3155) target = $region56
      $region55: #{upblock_forward.6} parent=51 // pred_region
        %p3158 = scmp.lt.s32.totalorder %s19, 1
        %s3159 = scalar_select %p3158, %s19, 1
        %s3160 = smul.addr %s3159, 32
        %s3161 = smul.addr %s3160, 4
        %s3162 = scalar_lea.vmem %s4, %s3161
      $region56: #{upblock_forward.6} parent=51 // pred_fallthru
        _
      // Predicated region
      $region57: #{upblock_forward.6} parent=51 // pred_check
        %p3163 = pneg %p157
      $region58: #{upblock_forward.6} parent=51 // pred_check_branch
        %3165 = sbr.rel (%p3163) target = $region60
      $region59: #{upblock_forward.6} parent=51 // pred_region
        %p3166 = scmp.lt.s32.totalorder %s19, 1
        %s3167 = scalar_select %p3166, %s19, 1
        %s3168 = scalar_lea.vmem %s5, %s3167
      $region60: #{upblock_forward.6} parent=51 // pred_fallthru
        _
      // Predicated region
      $region61: #{upblock_forward.6} parent=51 // pred_check
        %p3169 = pneg %p183
      $region62: #{upblock_forward.6} parent=51 // pred_check_branch
        %3171 = sbr.rel (%p3169) target = $region64
      $region63: #{upblock_forward.6} parent=51 // pred_region
        %p3172 = scmp.lt.s32.totalorder %s19, 1
        %s3173 = scalar_select %p3172, %s19, 1
        %s3174 = scalar_lea.vmem %s6, %s3173
      $region64: #{upblock_forward.6} parent=51 // pred_fallthru
        _
    $region52: #{upblock_forward.6} parent=5 // pred_fallthru
      _
  $region6: #{upblock_forward.6} parent=0 // loop_footer
    %s17 = sadd.s32 1, %s13
  $region7: #{upblock_forward.6} parent=0 // loop_footer_branch
    %12 = sbr.rel target = $region3
  $region8: #{upblock_forward.6} parent=0 // loop_exit
    _

// kernel: upblock_forward.5
$region0: #{upblock_forward.5}
  #allocation0 [shape = 'u32[]', space=smem, size = 0x4, offset = 0x4, fixed_abs, tag = 'smem constant byte address 0x4 - core index']
  #allocation1 [shape = 'u32[144,128]{1,0:T(1,128)}', space=vmem, size = 0x12000, scoped, tag = 'internal scratch']
  %s0 = inlined_call_operand.vmem [shape: bf16[2,18,18,4], index: 0, kind: input, shape index: {}]
  %s1 = inlined_call_operand.vmem [shape: bf16[2,18,18,4], index: 1, kind: input, shape index: {}]
  %s2 = inlined_call_operand.vmem [shape: bf16[3,3,4,4], index: 2, kind: input, shape index: {}]
  %s3 = inlined_call_operand.vmem [shape: bf16[3,3,4,4], index: 3, kind: input, shape index: {}]
  %s4 = inlined_call_operand.vmem [shape: bf16[2,16,16,4], index: 4, kind: output, shape index: {0}]
  %s5 = inlined_call_operand.vmem [shape: f32[2,1,4], index: 5, kind: output, shape index: {1}]
  %s6 = inlined_call_operand.vmem [shape: f32[2,1,4], index: 6, kind: output, shape index: {2}]
  %7 = xla_tuple %s4, %s5, %s6
  %s8 = sld [smem:[#allocation0]]
  $region65: #{upblock_forward.5} parent=0
    _
  %s10 = ssub.s32 1, %s8
  %s11 = scalar_select 0, %s10, %s8
  loop: start=0, step=1, limit=4
  $region2: #{upblock_forward.5} parent=0 // loop_pre_header
    _
  $region3: #{upblock_forward.5} parent=0 // loop_header
    %s13 = sphi 0, %s17
    %p14 = scmp.ge.s32.totalorder %s13, 4
    %s23 = sphi 0, %s25
    %s26 = sphi 0, %s23
    %s27 = sphi 0, %s26
    %s43 = sphi 0, %s27
    %s49 = sphi 0, %s51
    %s52 = sphi 0, %s49
    %s53 = sphi 0, %s52
    %s69 = sphi 0, %s53
    %s73 = sphi 0, %s73
    %s75 = sphi 0, %s73
    %s76 = sphi 0, %s75
    %s90 = sphi 0, %s76
    %s94 = sphi 0, %s94
    %s96 = sphi 0, %s94
    %s97 = sphi 0, %s96
    %s111 = sphi 0, %s97
    %s117 = sphi 0, %s119
    %s120 = sphi 0, %s117
    %s121 = sphi 0, %s120
    %s137 = sphi 0, %s121
    %s143 = sphi 0, %s145
    %s146 = sphi 0, %s143
    %s147 = sphi 0, %s146
    %s163 = sphi 0, %s147
    %s169 = sphi 0, %s171
    %s172 = sphi 0, %s169
    %s173 = sphi 0, %s172
    %s189 = sphi 0, %s173
  $region4: #{upblock_forward.5} parent=0 // loop_header_branch
    %16 = sbr.rel (%p14) target = $region8
  $region5: #{upblock_forward.5} parent=0 // loop_body
    %s18 = ssub.s32 %s13, 1
    %s19 = ssub.s32 %s13, 2
    %s20 = sadd.s32 %s13, 1
    %s21 = ssub.s32 %s13, %s20
    %p22 = scmp.eq.s32.totalorder %s21, 0
    %s24 = sadd.s32 %s23, 1
    %s25 = scalar_select %p22, %s23, %s24
    %p28 = pneg %p22
    %p29 = scmp.eq.s32.totalorder %s13, 1
    %p30 = por %p28, %p29
    %p31 = scmp.ne.s32.totalorder %s23, %s26
    %p32 = scmp.eq.s32.totalorder %s13, 0
    %p33 = por %p31, %p32
    %p34 = scmp.ne.s32.totalorder %s23, %s26
    %p35 = scmp.eq.s32.totalorder %s18, 1
    %p36 = por %p34, %p35
    %p37 = scmp.ne.s32.totalorder %s26, %s27
    %p38 = scmp.eq.s32.totalorder %s18, 0
    %p39 = por %p37, %p38
    %p40 = scmp.ne.s32.totalorder %s26, %s27
    %p41 = scmp.eq.s32.totalorder %s19, 1
    %p42 = por %p40, %p41
    %p44 = scmp.ne.s32.totalorder %s27, %s43
    %p45 = scmp.eq.s32.totalorder %s19, 0
    %p46 = por %p44, %p45
    %s47 = ssub.s32 %s13, %s20
    %p48 = scmp.eq.s32.totalorder %s47, 0
    %s50 = sadd.s32 %s49, 1
    %s51 = scalar_select %p48, %s49, %s50
    %p54 = pneg %p48
    %p55 = scmp.eq.s32.totalorder %s13, 1
    %p56 = por %p54, %p55
    %p57 = scmp.ne.s32.totalorder %s49, %s52
    %p58 = scmp.eq.s32.totalorder %s13, 0
    %p59 = por %p57, %p58
    %p60 = scmp.ne.s32.totalorder %s49, %s52
    %p61 = scmp.eq.s32.totalorder %s18, 1
    %p62 = por %p60, %p61
    %p63 = scmp.ne.s32.totalorder %s52, %s53
    %p64 = scmp.eq.s32.totalorder %s18, 0
    %p65 = por %p63, %p64
    %p66 = scmp.ne.s32.totalorder %s52, %s53
    %p67 = scmp.eq.s32.totalorder %s19, 1
    %p68 = por %p66, %p67
    %p70 = scmp.ne.s32.totalorder %s53, %s69
    %p71 = scmp.eq.s32.totalorder %s19, 0
    %p72 = por %p70, %p71
    %s74 = sadd.s32 %s73, 1
    %p77 = scmp.eq.s32.totalorder %s13, 1
    %p78 = scmp.ne.s32.totalorder %s73, %s75
    %p79 = scmp.eq.s32.totalorder %s13, 0
    %p80 = por %p78, %p79
    %p81 = scmp.ne.s32.totalorder %s73, %s75
    %p82 = scmp.eq.s32.totalorder %s18, 1
    %p83 = por %p81, %p82
    %p84 = scmp.ne.s32.totalorder %s75, %s76
    %p85 = scmp.eq.s32.totalorder %s18, 0
    %p86 = por %p84, %p85
    %p87 = scmp.ne.s32.totalorder %s75, %s76
    %p88 = scmp.eq.s32.totalorder %s19, 1
    %p89 = por %p87, %p88
    %p91 = scmp.ne.s32.totalorder %s76, %s90
    %p92 = scmp.eq.s32.totalorder %s19, 0
    %p93 = por %p91, %p92
    %s95 = sadd.s32 %s94, 1
    %p98 = scmp.eq.s32.totalorder %s13, 1
    %p99 = scmp.ne.s32.totalorder %s94, %s96
    %p100 = scmp.eq.s32.totalorder %s13, 0
    %p101 = por %p99, %p100
    %p102 = scmp.ne.s32.totalorder %s94, %s96
    %p103 = scmp.eq.s32.totalorder %s18, 1
    %p104 = por %p102, %p103
    %p105 = scmp.ne.s32.totalorder %s96, %s97
    %p106 = scmp.eq.s32.totalorder %s18, 0
    %p107 = por %p105, %p106
    %p108 = scmp.ne.s32.totalorder %s96, %s97
    %p109 = scmp.eq.s32.totalorder %s19, 1
    %p110 = por %p108, %p109
    %p112 = scmp.ne.s32.totalorder %s97, %s111
    %p113 = scmp.eq.s32.totalorder %s19, 0
    %p114 = por %p112, %p113
    %s115 = ssub.s32 %s13, %s20
    %p116 = scmp.eq.s32.totalorder %s115, 0
    %s118 = sadd.s32 %s117, 1
    %s119 = scalar_select %p116, %s117, %s118
    %p122 = pneg %p116
    %p123 = scmp.eq.s32.totalorder %s13, 1
    %p124 = por %p122, %p123
    %p125 = scmp.ne.s32.totalorder %s117, %s120
    %p126 = scmp.eq.s32.totalorder %s13, 0
    %p127 = por %p125, %p126
    %p128 = scmp.ne.s32.totalorder %s117, %s120
    %p129 = scmp.eq.s32.totalorder %s18, 1
    %p130 = por %p128, %p129
    %p131 = scmp.ne.s32.totalorder %s120, %s121
    %p132 = scmp.eq.s32.totalorder %s18, 0
    %p133 = por %p131, %p132
    %p134 = scmp.ne.s32.totalorder %s120, %s121
    %p135 = scmp.eq.s32.totalorder %s19, 1
    %p136 = por %p134, %p135
    %p138 = scmp.ne.s32.totalorder %s121, %s137
    %p139 = scmp.eq.s32.totalorder %s19, 0
    %p140 = por %p138, %p139
    %s141 = ssub.s32 %s13, %s20
    %p142 = scmp.eq.s32.totalorder %s141, 0
    %s144 = sadd.s32 %s143, 1
    %s145 = scalar_select %p142, %s143, %s144
    %p148 = pneg %p142
    %p149 = scmp.eq.s32.totalorder %s13, 1
    %p150 = por %p148, %p149
    %p151 = scmp.ne.s32.totalorder %s143, %s146
    %p152 = scmp.eq.s32.totalorder %s13, 0
    %p153 = por %p151, %p152
    %p154 = scmp.ne.s32.totalorder %s143, %s146
    %p155 = scmp.eq.s32.totalorder %s18, 1
    %p156 = por %p154, %p155
    %p157 = scmp.ne.s32.totalorder %s146, %s147
    %p158 = scmp.eq.s32.totalorder %s18, 0
    %p159 = por %p157, %p158
    %p160 = scmp.ne.s32.totalorder %s146, %s147
    %p161 = scmp.eq.s32.totalorder %s19, 1
    %p162 = por %p160, %p161
    %p164 = scmp.ne.s32.totalorder %s147, %s163
    %p165 = scmp.eq.s32.totalorder %s19, 0
    %p166 = por %p164, %p165
    %s167 = ssub.s32 %s13, %s20
    %p168 = scmp.eq.s32.totalorder %s167, 0
    %s170 = sadd.s32 %s169, 1
    %s171 = scalar_select %p168, %s169, %s170
    %p174 = pneg %p168
    %p175 = scmp.eq.s32.totalorder %s13, 1
    %p176 = por %p174, %p175
    %p177 = scmp.ne.s32.totalorder %s169, %s172
    %p178 = scmp.eq.s32.totalorder %s13, 0
    %p179 = por %p177, %p178
    %p180 = scmp.ne.s32.totalorder %s169, %s172
    %p181 = scmp.eq.s32.totalorder %s18, 1
    %p182 = por %p180, %p181
    %p183 = scmp.ne.s32.totalorder %s172, %s173
    %p184 = scmp.eq.s32.totalorder %s18, 0
    %p185 = por %p183, %p184
    %p186 = scmp.ne.s32.totalorder %s172, %s173
    %p187 = scmp.eq.s32.totalorder %s19, 1
    %p188 = por %p186, %p187
    %p190 = scmp.ne.s32.totalorder %s173, %s189
    %p191 = scmp.eq.s32.totalorder %s19, 0
    %p192 = por %p190, %p191
    %p193 = scmp.le.s32.totalorder 1, %s13
    %p194 = scmp.lt.s32.totalorder %s13, 3
    %p195 = pnand %p193, %p194
    %p196 = pneg %p195
    // Predicated region
    $region9: #{upblock_forward.5} parent=5 // pred_check
      _
    $region10: #{upblock_forward.5} parent=5 // pred_check_branch
      %198 = sbr.rel (%p195) target = $region12
    $region11: #{upblock_forward.5} parent=5 // pred_region
      %s199 = ssub.s32 %s13, 1
      // Predicated region
      $region13: #{upblock_forward.5} parent=11 // pred_check
        %p200 = pneg %p86
      $region14: #{upblock_forward.5} parent=11 // pred_check_branch
        %202 = sbr.rel (%p200) target = $region16
      $region15: #{upblock_forward.5} parent=11 // pred_region
        _
      $region16: #{upblock_forward.5} parent=11 // pred_fallthru
        _
      // Predicated region
      $region17: #{upblock_forward.5} parent=11 // pred_check
        %p203 = pneg %p107
      $region18: #{upblock_forward.5} parent=11 // pred_check_branch
        %205 = sbr.rel (%p203) target = $region20
      $region19: #{upblock_forward.5} parent=11 // pred_region
        _
      $region20: #{upblock_forward.5} parent=11 // pred_fallthru
        _
    $region12: #{upblock_forward.5} parent=5 // pred_fallthru
      _
    %p206 = scmp.lt.s32.totalorder %s13, 2
    // Predicated region
    $region21: #{upblock_forward.5} parent=5 // pred_check
      %p207 = pneg %p206
    $region22: #{upblock_forward.5} parent=5 // pred_check_branch
      %209 = sbr.rel (%p207) target = $region24
    $region23: #{upblock_forward.5} parent=5 // pred_region
      // Predicated region
      $region25: #{upblock_forward.5} parent=23 // pred_check
        %p210 = pneg %p33
      $region26: #{upblock_forward.5} parent=23 // pred_check_branch
        %212 = sbr.rel (%p210) target = $region28
      $region27: #{upblock_forward.5} parent=23 // pred_region
        %p213 = scmp.lt.s32.totalorder %s13, 1
        %s214 = scalar_select %p213, %s13, 1
        %s215 = smul.addr %s214, 54
        %s216 = smul.addr %s215, 4
        %s217 = scalar_lea.vmem %s0, %s216
      $region28: #{upblock_forward.5} parent=23 // pred_fallthru
        _
      // Predicated region
      $region29: #{upblock_forward.5} parent=23 // pred_check
        %p218 = pneg %p59
      $region30: #{upblock_forward.5} parent=23 // pred_check_branch
        %220 = sbr.rel (%p218) target = $region32
      $region31: #{upblock_forward.5} parent=23 // pred_region
        %p221 = scmp.lt.s32.totalorder %s13, 1
        %s222 = scalar_select %p221, %s13, 1
        %s223 = smul.addr %s222, 54
        %s224 = smul.addr %s223, 4
        %s225 = scalar_lea.vmem %s1, %s224
      $region32: #{upblock_forward.5} parent=23 // pred_fallthru
        _
    $region24: #{upblock_forward.5} parent=5 // pred_fallthru
      _
    %p226 = scmp.le.s32.totalorder 1, %s13
    %p227 = scmp.lt.s32.totalorder %s13, 3
    %p228 = pnand %p226, %p227
    %p229 = pneg %p228
    // Predicated region
    $region33: #{upblock_forward.5} parent=5 // pred_check
      _
    $region34: #{upblock_forward.5} parent=5 // pred_check_branch
      %231 = sbr.rel (%p228) target = $region36
    $region35: #{upblock_forward.5} parent=5 // pred_region
      %s232 = ssub.s32 %s13, 1
      %p233 = scmp.lt.s32.totalorder %s18, 1
      %s234 = scalar_select %p233, %s18, 1
      %s235 = smul.addr %s234, 54
      %s236 = smul.addr %s235, 4
      %s237 = scalar_lea.vmem %s0, %s236
      %p238 = pneg %p39
      %p239 = pneg %p36
      %p240 = scmp.lt.s32.totalorder %s18, 1
      %s241 = scalar_select %p240, %s18, 1
      %s242 = smul.addr %s241, 54
      %s243 = smul.addr %s242, 4
      %s244 = scalar_lea.vmem %s1, %s243
      %p245 = pneg %p65
      %p246 = pneg %p62
      %p247 = pneg %p86
      %p248 = pneg %p83
      %p249 = pneg %p107
      %p250 = pneg %p104
      %p251 = pneg %p133
      %p252 = pneg %p130
      %p253 = scmp.lt.s32.totalorder %s18, 1
      %s254 = scalar_select %p253, %s18, 1
      %s255 = smul.addr %s254, 32
      %s256 = smul.addr %s255, 4
      %s257 = scalar_lea.vmem %s4, %s256
      %p258 = pneg %p159
      %p259 = pneg %p156
      %p260 = scmp.lt.s32.totalorder %s18, 1
      %s261 = scalar_select %p260, %s18, 1
      %s262 = scalar_lea.vmem %s5, %s261
      %p263 = pneg %p185
      %p264 = pneg %p182
      %p265 = scmp.lt.s32.totalorder %s18, 1
      %s266 = scalar_select %p265, %s18, 1
      %s267 = scalar_lea.vmem %s6, %s266
      %p268 = scmp.lt.s32.totalorder %s18, 1
      %s269 = scalar_select %p268, %s18, 1
      %s270 = smul.addr %s269, 54
      %s271 = smul.addr %s270, 4
      %s272 = scalar_lea.vmem %s0, %s271
      %p273 = scmp.lt.s32.totalorder %s18, 1
      %s274 = scalar_select %p273, %s18, 1
      %s275 = smul.addr %s274, 54
      %s276 = smul.addr %s275, 4
      %s277 = scalar_lea.vmem %s1, %s276
      %p278 = scmp.lt.s32.totalorder %s18, 1
      %s279 = scalar_select %p278, %s18, 1
      %s280 = smul.addr %s279, 32
      %s281 = smul.addr %s280, 4
      %s282 = scalar_lea.vmem %s4, %s281
      %p283 = scmp.lt.s32.totalorder %s18, 1
      %s284 = scalar_select %p283, %s18, 1
      %s285 = scalar_lea.vmem %s5, %s284
      %p286 = scmp.lt.s32.totalorder %s18, 1
      %s287 = scalar_select %p286, %s18, 1
      %s288 = scalar_lea.vmem %s6, %s287
      %v290 = vld [vmem:[%s272] sm:$0xf]
      %v291 = vld [vmem:[%s272 + $0x4] sm:$0xf]
      %v292 = vld [vmem:[%s272 + $0x8] sm:$0x1]
      %v293 = vld [vmem:[%s272 + $0xc] sm:$0xf]
      %v294 = vld [vmem:[%s272 + $0x10] sm:$0xf]
      %v295 = vld [vmem:[%s272 + $0x14] sm:$0x1]
      %v296 = vld [vmem:[%s272 + $0x18] sm:$0xf]
      %v297 = vld [vmem:[%s272 + $0x1c] sm:$0xf]
      %v298 = vld [vmem:[%s272 + $0x20] sm:$0x1]
      %v299 = vld [vmem:[%s272 + $0x24] sm:$0xf]
      %v300 = vld [vmem:[%s272 + $0x28] sm:$0xf]
      %v301 = vld [vmem:[%s272 + $0x2c] sm:$0x1]
      %v302 = vld [vmem:[%s272 + $0x30] sm:$0xf]
      %v303 = vld [vmem:[%s272 + $0x34] sm:$0xf]
      %v304 = vld [vmem:[%s272 + $0x38] sm:$0x1]
      %v305 = vld [vmem:[%s272 + $0x3c] sm:$0xf]
      %v306 = vld [vmem:[%s272 + $0x40] sm:$0xf]
      %v307 = vld [vmem:[%s272 + $0x44] sm:$0x1]
      %v308 = vld [vmem:[%s272 + $0x48] sm:$0xf]
      %v309 = vld [vmem:[%s272 + $0x4c] sm:$0xf]
      %v310 = vld [vmem:[%s272 + $0x50] sm:$0x1]
      %v311 = vld [vmem:[%s272 + $0x54] sm:$0xf]
      %v312 = vld [vmem:[%s272 + $0x58] sm:$0xf]
      %v313 = vld [vmem:[%s272 + $0x5c] sm:$0x1]
      %v314 = vld [vmem:[%s272 + $0x60] sm:$0xf]
      %v315 = vld [vmem:[%s272 + $0x64] sm:$0xf]
      %v316 = vld [vmem:[%s272 + $0x68] sm:$0x1]
      %v317 = vld [vmem:[%s272 + $0x6c] sm:$0xf]
      %v318 = vld [vmem:[%s272 + $0x70] sm:$0xf]
      %v319 = vld [vmem:[%s272 + $0x74] sm:$0x1]
      %v320 = vld [vmem:[%s272 + $0x78] sm:$0xf]
      %v321 = vld [vmem:[%s272 + $0x7c] sm:$0xf]
      %v322 = vld [vmem:[%s272 + $0x80] sm:$0x1]
      %v323 = vld [vmem:[%s272 + $0x84] sm:$0xf]
      %v324 = vld [vmem:[%s272 + $0x88] sm:$0xf]
      %v325 = vld [vmem:[%s272 + $0x8c] sm:$0x1]
      %v326 = vld [vmem:[%s272 + $0x90] sm:$0xf]
      %v327 = vld [vmem:[%s272 + $0x94] sm:$0xf]
      %v328 = vld [vmem:[%s272 + $0x98] sm:$0x1]
      %v329 = vld [vmem:[%s272 + $0x9c] sm:$0xf]
      %v330 = vld [vmem:[%s272 + $0xa0] sm:$0xf]
      %v331 = vld [vmem:[%s272 + $0xa4] sm:$0x1]
      %v332 = vld [vmem:[%s272 + $0xa8] sm:$0xf]
      %v333 = vld [vmem:[%s272 + $0xac] sm:$0xf]
      %v334 = vld [vmem:[%s272 + $0xb0] sm:$0x1]
      %v335 = vld [vmem:[%s272 + $0xb4] sm:$0xf]
      %v336 = vld [vmem:[%s272 + $0xb8] sm:$0xf]
      %v337 = vld [vmem:[%s272 + $0xbc] sm:$0x1]
      %v338 = vld [vmem:[%s272 + $0xc0] sm:$0xf]
      %v339 = vld [vmem:[%s272 + $0xc4] sm:$0xf]
      %v340 = vld [vmem:[%s272 + $0xc8] sm:$0x1]
      %v341 = vld [vmem:[%s272 + $0xcc] sm:$0xf]
      %v342 = vld [vmem:[%s272 + $0xd0] sm:$0xf]
      %v343 = vld [vmem:[%s272 + $0xd4] sm:$0x1]
      %v344 = vld [vmem:[%s277] sm:$0xf]
      %v345 = vld [vmem:[%s277 + $0x4] sm:$0xf]
      %v346 = vld [vmem:[%s277 + $0x8] sm:$0x1]
      %v347 = vld [vmem:[%s277 + $0xc] sm:$0xf]
      %v348 = vld [vmem:[%s277 + $0x10] sm:$0xf]
      %v349 = vld [vmem:[%s277 + $0x14] sm:$0x1]
      %v350 = vld [vmem:[%s277 + $0x18] sm:$0xf]
      %v351 = vld [vmem:[%s277 + $0x1c] sm:$0xf]
      %v352 = vld [vmem:[%s277 + $0x20] sm:$0x1]
      %v353 = vld [vmem:[%s277 + $0x24] sm:$0xf]
      %v354 = vld [vmem:[%s277 + $0x28] sm:$0xf]
      %v355 = vld [vmem:[%s277 + $0x2c] sm:$0x1]
      %v356 = vld [vmem:[%s277 + $0x30] sm:$0xf]
      %v357 = vld [vmem:[%s277 + $0x34] sm:$0xf]
      %v358 = vld [vmem:[%s277 + $0x38] sm:$0x1]
      %v359 = vld [vmem:[%s277 + $0x3c] sm:$0xf]
      %v360 = vld [vmem:[%s277 + $0x40] sm:$0xf]
      %v361 = vld [vmem:[%s277 + $0x44] sm:$0x1]
      %v362 = vld [vmem:[%s277 + $0x48] sm:$0xf]
      %v363 = vld [vmem:[%s277 + $0x4c] sm:$0xf]
      %v364 = vld [vmem:[%s277 + $0x50] sm:$0x1]
      %v365 = vld [vmem:[%s277 + $0x54] sm:$0xf]
      %v366 = vld [vmem:[%s277 + $0x58] sm:$0xf]
      %v367 = vld [vmem:[%s277 + $0x5c] sm:$0x1]
      %v368 = vld [vmem:[%s277 + $0x60] sm:$0xf]
      %v369 = vld [vmem:[%s277 + $0x64] sm:$0xf]
      %v370 = vld [vmem:[%s277 + $0x68] sm:$0x1]
      %v371 = vld [vmem:[%s277 + $0x6c] sm:$0xf]
      %v372 = vld [vmem:[%s277 + $0x70] sm:$0xf]
      %v373 = vld [vmem:[%s277 + $0x74] sm:$0x1]
      %v374 = vld [vmem:[%s277 + $0x78] sm:$0xf]
      %v375 = vld [vmem:[%s277 + $0x7c] sm:$0xf]
      %v376 = vld [vmem:[%s277 + $0x80] sm:$0x1]
      %v377 = vld [vmem:[%s277 + $0x84] sm:$0xf]
      %v378 = vld [vmem:[%s277 + $0x88] sm:$0xf]
      %v379 = vld [vmem:[%s277 + $0x8c] sm:$0x1]
      %v380 = vld [vmem:[%s277 + $0x90] sm:$0xf]
      %v381 = vld [vmem:[%s277 + $0x94] sm:$0xf]
      %v382 = vld [vmem:[%s277 + $0x98] sm:$0x1]
      %v383 = vld [vmem:[%s277 + $0x9c] sm:$0xf]
      %v384 = vld [vmem:[%s277 + $0xa0] sm:$0xf]
      %v385 = vld [vmem:[%s277 + $0xa4] sm:$0x1]
      %v386 = vld [vmem:[%s277 + $0xa8] sm:$0xf]
      %v387 = vld [vmem:[%s277 + $0xac] sm:$0xf]
      %v388 = vld [vmem:[%s277 + $0xb0] sm:$0x1]
      %v389 = vld [vmem:[%s277 + $0xb4] sm:$0xf]
      %v390 = vld [vmem:[%s277 + $0xb8] sm:$0xf]
      %v391 = vld [vmem:[%s277 + $0xbc] sm:$0x1]
      %v392 = vld [vmem:[%s277 + $0xc0] sm:$0xf]
      %v393 = vld [vmem:[%s277 + $0xc4] sm:$0xf]
      %v394 = vld [vmem:[%s277 + $0xc8] sm:$0x1]
      %v395 = vld [vmem:[%s277 + $0xcc] sm:$0xf]
      %v396 = vld [vmem:[%s277 + $0xd0] sm:$0xf]
      %v397 = vld [vmem:[%s277 + $0xd4] sm:$0x1]
      %v398 = vld [vmem:[%s2] sm:$0x3]
      %v399 = vld [vmem:[%s3] sm:$0x3]
      %v432 = vunpack.c.l.b16 %v344
      %v433 = vunpack.c.l.b16 %v345
      %v434 = vunpack.c.l.b16 %v347
      %v435 = vunpack.c.l.b16 %v348
      %v436 = vunpack.c.l.b16 %v350
      %v437 = vunpack.c.l.b16 %v351
      %v438 = vunpack.c.l.b16 %v353
      %v439 = vunpack.c.l.b16 %v354
      %v440 = vunpack.c.l.b16 %v356
      %v441 = vunpack.c.l.b16 %v357
      %v442 = vunpack.c.l.b16 %v359
      %v443 = vunpack.c.l.b16 %v360
      %v444 = vunpack.c.l.b16 %v362
      %v445 = vunpack.c.l.b16 %v363
      %v446 = vunpack.c.l.b16 %v365
      %v447 = vunpack.c.l.b16 %v366
      %v448 = vunpack.c.l.b16 %v368
      %v449 = vunpack.c.l.b16 %v369
      %v450 = vunpack.c.l.b16 %v371
      %v451 = vunpack.c.l.b16 %v372
      %v452 = vunpack.c.l.b16 %v374
      %v453 = vunpack.c.l.b16 %v375
      %v454 = vunpack.c.l.b16 %v377
      %v455 = vunpack.c.l.b16 %v378
      %v456 = vunpack.c.l.b16 %v380
      %v457 = vunpack.c.l.b16 %v381
      %v458 = vunpack.c.l.b16 %v383
      %v459 = vunpack.c.l.b16 %v384
      %v460 = vunpack.c.l.b16 %v386
      %v461 = vunpack.c.l.b16 %v387
      %v462 = vunpack.c.l.b16 %v389
      %v463 = vunpack.c.l.b16 %v390
      %v464 = vpack.c.b16 %v433, %v432
      %v465 = vpack.c.b16 %v435, %v434
      %v466 = vpack.c.b16 %v437, %v436
      %v467 = vpack.c.b16 %v439, %v438
      %v468 = vpack.c.b16 %v441, %v440
      %v469 = vpack.c.b16 %v443, %v442
      %v470 = vpack.c.b16 %v445, %v444
      %v471 = vpack.c.b16 %v447, %v446
      %v472 = vpack.c.b16 %v449, %v448
      %v473 = vpack.c.b16 %v451, %v450
      %v474 = vpack.c.b16 %v453, %v452
      %v475 = vpack.c.b16 %v455, %v454
      %v476 = vpack.c.b16 %v457, %v456
      %v477 = vpack.c.b16 %v459, %v458
      %v478 = vpack.c.b16 %v461, %v460
      %v479 = vpack.c.b16 %v463, %v462
      %vm480 = vcmask 31744
      %v482 = vsel %vm480, %v464, 0
      %v485 = vsel %vm480, %v465, 0
      %v488 = vsel %vm480, %v466, 0
      %v491 = vsel %vm480, %v467, 0
      %v494 = vsel %vm480, %v468, 0
      %v497 = vsel %vm480, %v469, 0
      %v500 = vsel %vm480, %v470, 0
      %v503 = vsel %vm480, %v471, 0
      %v506 = vsel %vm480, %v472, 0
      %v509 = vsel %vm480, %v473, 0
      %v512 = vsel %vm480, %v474, 0
      %v515 = vsel %vm480, %v475, 0
      %v518 = vsel %vm480, %v476, 0
      %v521 = vsel %vm480, %v477, 0
      %v524 = vsel %vm480, %v478, 0
      %v527 = vsel %vm480, %v479, 0
      %vm529 = vcmask 1041408
      %v531 = vsel %vm529, %v399, 0
      %533 = vmatprep.subr.bf16.mxu0 0
      %534 = vmatpush1.bf16.msra.mxu0 %v531
      %535 = vmatprep.subr.bf16.mxu0 0
      %536 = vmatpush1.bf16.msra.mxu0 0
      %537 = vmatprep.subr.bf16.mxu0 0
      %538 = vmatpush1.bf16.msra.mxu0 0
      %539 = vmatprep.subr.bf16.mxu0 0
      %540 = vmatpush1.bf16.msra.mxu0 0
      %541 = vmatprep.subr.bf16.mxu0 0
      %542 = vmatpush1.bf16.msra.mxu0 0
      %543 = vmatprep.subr.bf16.mxu0 0
      %544 = vmatpush1.bf16.msra.mxu0 0
      %545 = vmatprep.subr.bf16.mxu0 0
      %546 = vmatpush1.bf16.msra.mxu0 0
      %547 = vmatprep.subr.bf16.mxu0 0
      %548 = vmatpush1.bf16.msra.mxu0 0
      %549 = vmatprep.subr.bf16.mxu0 0
      %550 = vmatpush1.bf16.msra.mxu0 0
      %551 = vmatprep.subr.bf16.mxu0 0
      %552 = vmatpush1.bf16.msra.mxu0 0
      %553 = vmatprep.subr.bf16.mxu0 0
      %554 = vmatpush1.bf16.msra.mxu0 0
      %555 = vmatprep.subr.bf16.mxu0 0
      %556 = vmatpush1.bf16.msra.mxu0 0
      %557 = vmatprep.subr.bf16.mxu0 0
      %558 = vmatpush1.bf16.msra.mxu0 0
      %559 = vmatprep.subr.bf16.mxu0 0
      %560 = vmatpush1.bf16.msra.mxu0 0
      %561 = vmatprep.subr.bf16.mxu0 0
      %562 = vmatpush1.bf16.msra.mxu0 0
      %563 = vmatprep.subr.bf16.mxu0 0
      %564 = vmatpush1.bf16.msra.mxu0 0
      %565 = vmatprep.mubr.bf16.mxu0 0
      %566 = vmatmul.mubr.bf16.gmra.mrb[0].mxu0 %v482
      %v567 = vpop.f32.mrb[0].mxu0
      %v568 = vadd.f32 0.0, %v567
      %v569 = vpop.f32.mrb[0].mxu0
      %v570 = vpop.f32.mrb[0].mxu0
      %v571 = vadd.f32 0.0, %v570
      %v572 = vpop.f32.mrb[0].mxu0
      %573 = vmatprep.mubr.bf16.mxu0 0
      %574 = vmatmul.mubr.bf16.gmra.mrb[0].mxu0 %v485
      %v575 = vpop.f32.mrb[0].mxu0
      %v576 = vadd.f32 0.0, %v575
      %v577 = vpop.f32.mrb[0].mxu0
      %v578 = vpop.f32.mrb[0].mxu0
      %v579 = vadd.f32 0.0, %v578
      %v580 = vpop.f32.mrb[0].mxu0
      %581 = vmatprep.mubr.bf16.mxu0 0
      %582 = vmatmul.mubr.bf16.gmra.mrb[0].mxu0 %v488
      %v583 = vpop.f32.mrb[0].mxu0
      %v584 = vadd.f32 0.0, %v583
      %v585 = vpop.f32.mrb[0].mxu0
      %v586 = vpop.f32.mrb[0].mxu0
      %v587 = vadd.f32 0.0, %v586
      %v588 = vpop.f32.mrb[0].mxu0
      %589 = vmatprep.mubr.bf16.mxu0 0
      %590 = vmatmul.mubr.bf16.gmra.mrb[0].mxu0 %v491
      %v591 = vpop.f32.mrb[0].mxu0
      %v592 = vadd.f32 0.0, %v591
      %v593 = vpop.f32.mrb[0].mxu0
      %v594 = vpop.f32.mrb[0].mxu0
      %v595 = vadd.f32 0.0, %v594
      %v596 = vpop.f32.mrb[0].mxu0
      %597 = vmatprep.mubr.bf16.mxu0 0
      %598 = vmatmul.mubr.bf16.gmra.mrb[0].mxu0 %v494
      %v599 = vpop.f32.mrb[0].mxu0
      %v600 = vadd.f32 0.0, %v599
      %v601 = vpop.f32.mrb[0].mxu0
      %v602 = vpop.f32.mrb[0].mxu0
      %v603 = vadd.f32 0.0, %v602
      %v604 = vpop.f32.mrb[0].mxu0
      %605 = vmatprep.mubr.bf16.mxu0 0
      %606 = vmatmul.mubr.bf16.gmra.mrb[0].mxu0 %v497
      %v607 = vpop.f32.mrb[0].mxu0
      %v608 = vadd.f32 0.0, %v607
      %v609 = vpop.f32.mrb[0].mxu0
      %v610 = vpop.f32.mrb[0].mxu0
      %v611 = vadd.f32 0.0, %v610
      %v612 = vpop.f32.mrb[0].mxu0
      %613 = vmatprep.mubr.bf16.mxu0 0
      %614 = vmatmul.mubr.bf16.gmra.mrb[0].mxu0 %v500
      %v615 = vpop.f32.mrb[0].mxu0
      %v616 = vadd.f32 0.0, %v615
      %v617 = vpop.f32.mrb[0].mxu0
      %v618 = vpop.f32.mrb[0].mxu0
      %v619 = vadd.f32 0.0, %v618
      %v620 = vpop.f32.mrb[0].mxu0
      %621 = vmatprep.mubr.bf16.mxu0 0
      %622 = vmatmul.mubr.bf16.gmra.mrb[0].mxu0 %v503
      %v623 = vpop.f32.mrb[0].mxu0
      %v624 = vadd.f32 0.0, %v623
      %v625 = vpop.f32.mrb[0].mxu0
      %v626 = vpop.f32.mrb[0].mxu0
      %v627 = vadd.f32 0.0, %v626
      %v628 = vpop.f32.mrb[0].mxu0
      %629 = vmatprep.mubr.bf16.mxu0 0
      %630 = vmatmul.mubr.bf16.gmra.mrb[0].mxu0 %v506
      %v631 = vpop.f32.mrb[0].mxu0
      %v632 = vadd.f32 0.0, %v631
      %v633 = vpop.f32.mrb[0].mxu0
      %v634 = vpop.f32.mrb[0].mxu0
      %v635 = vadd.f32 0.0, %v634
      %v636 = vpop.f32.mrb[0].mxu0
      %637 = vmatprep.mubr.bf16.mxu0 0
      %638 = vmatmul.mubr.bf16.gmra.mrb[0].mxu0 %v509
      %v639 = vpop.f32.mrb[0].mxu0
      %v640 = vadd.f32 0.0, %v639
      %v641 = vpop.f32.mrb[0].mxu0
      %v642 = vpop.f32.mrb[0].mxu0
      %v643 = vadd.f32 0.0, %v642
      %v644 = vpop.f32.mrb[0].mxu0
      %645 = vmatprep.mubr.bf16.mxu0 0
      %646 = vmatmul.mubr.bf16.gmra.mrb[0].mxu0 %v512
      %v647 = vpop.f32.mrb[0].mxu0
      %v648 = vadd.f32 0.0, %v647
      %v649 = vpop.f32.mrb[0].mxu0
      %v650 = vpop.f32.mrb[0].mxu0
      %v651 = vadd.f32 0.0, %v650
      %v652 = vpop.f32.mrb[0].mxu0
      %653 = vmatprep.mubr.bf16.mxu0 0
      %654 = vmatmul.mubr.bf16.gmra.mrb[0].mxu0 %v515
      %v655 = vpop.f32.mrb[0].mxu0
      %v656 = vadd.f32 0.0, %v655
      %v657 = vpop.f32.mrb[0].mxu0
      %v658 = vpop.f32.mrb[0].mxu0
      %v659 = vadd.f32 0.0, %v658
      %v660 = vpop.f32.mrb[0].mxu0
      %661 = vmatprep.mubr.bf16.mxu0 0
      %662 = vmatmul.mubr.bf16.gmra.mrb[0].mxu0 %v518
      %v663 = vpop.f32.mrb[0].mxu0
      %v664 = vadd.f32 0.0, %v663
      %v665 = vpop.f32.mrb[0].mxu0
      %v666 = vpop.f32.mrb[0].mxu0
      %v667 = vadd.f32 0.0, %v666
      %v668 = vpop.f32.mrb[0].mxu0
      %669 = vmatprep.mubr.bf16.mxu0 0
      %670 = vmatmul.mubr.bf16.gmra.mrb[0].mxu0 %v521
      %v671 = vpop.f32.mrb[0].mxu0
      %v672 = vadd.f32 0.0, %v671
      %v673 = vpop.f32.mrb[0].mxu0
      %v674 = vpop.f32.mrb[0].mxu0
      %v675 = vadd.f32 0.0, %v674
      %v676 = vpop.f32.mrb[0].mxu0
      %677 = vmatprep.mubr.bf16.mxu0 0
      %678 = vmatmul.mubr.bf16.gmra.mrb[0].mxu0 %v524
      %v679 = vpop.f32.mrb[0].mxu0
      %v680 = vadd.f32 0.0, %v679
      %v681 = vpop.f32.mrb[0].mxu0
      %v682 = vpop.f32.mrb[0].mxu0
      %v683 = vadd.f32 0.0, %v682
      %v684 = vpop.f32.mrb[0].mxu0
      %685 = vmatprep.mubr.bf16.mxu0 0
      %686 = vmatmul.mubr.bf16.gmra.mrb[0].mxu0 %v527
      %v687 = vpop.f32.mrb[0].mxu0
      %v688 = vadd.f32 0.0, %v687
      %v689 = vpop.f32.mrb[0].mxu0
      %v690 = vpop.f32.mrb[0].mxu0
      %v691 = vadd.f32 0.0, %v690
      %v692 = vpop.f32.mrb[0].mxu0
      %693 = vdwg.mxu0
      %v726 = vunpack.c.l.b16 %v290
      %v727 = vunpack.c.l.b16 %v291
      %v728 = vunpack.c.l.b16 %v293
      %v729 = vunpack.c.l.b16 %v294
      %v730 = vunpack.c.l.b16 %v296
      %v731 = vunpack.c.l.b16 %v297
      %v732 = vunpack.c.l.b16 %v299
      %v733 = vunpack.c.l.b16 %v300
      %v734 = vunpack.c.l.b16 %v302
      %v735 = vunpack.c.l.b16 %v303
      %v736 = vunpack.c.l.b16 %v305
      %v737 = vunpack.c.l.b16 %v306
      %v738 = vunpack.c.l.b16 %v308
      %v739 = vunpack.c.l.b16 %v309
      %v740 = vunpack.c.l.b16 %v311
      %v741 = vunpack.c.l.b16 %v312
      %v742 = vunpack.c.l.b16 %v314
      %v743 = vunpack.c.l.b16 %v315
      %v744 = vunpack.c.l.b16 %v317
      %v745 = vunpack.c.l.b16 %v318
      %v746 = vunpack.c.l.b16 %v320
      %v747 = vunpack.c.l.b16 %v321
      %v748 = vunpack.c.l.b16 %v323
      %v749 = vunpack.c.l.b16 %v324
      %v750 = vunpack.c.l.b16 %v326
      %v751 = vunpack.c.l.b16 %v327
      %v752 = vunpack.c.l.b16 %v329
      %v753 = vunpack.c.l.b16 %v330
      %v754 = vunpack.c.l.b16 %v332
      %v755 = vunpack.c.l.b16 %v333
      %v756 = vunpack.c.l.b16 %v335
      %v757 = vunpack.c.l.b16 %v336
      %v758 = vpack.c.b16 %v727, %v726
      %v759 = vpack.c.b16 %v729, %v728
      %v760 = vpack.c.b16 %v731, %v730
      %v761 = vpack.c.b16 %v733, %v732
      %v762 = vpack.c.b16 %v735, %v734
      %v763 = vpack.c.b16 %v737, %v736
      %v764 = vpack.c.b16 %v739, %v738
      %v765 = vpack.c.b16 %v741, %v740
      %v766 = vpack.c.b16 %v743, %v742
      %v767 = vpack.c.b16 %v745, %v744
      %v768 = vpack.c.b16 %v747, %v746
      %v769 = vpack.c.b16 %v749, %v748
      %v770 = vpack.c.b16 %v751, %v750
      %v771 = vpack.c.b16 %v753, %v752
      %v772 = vpack.c.b16 %v755, %v754
      %v773 = vpack.c.b16 %v757, %v756
      %v775 = vsel %vm480, %v758, 0
      %v778 = vsel %vm480, %v759, 0
      %v781 = vsel %vm480, %v760, 0
      %v784 = vsel %vm480, %v761, 0
      %v787 = vsel %vm480, %v762, 0
      %v790 = vsel %vm480, %v763, 0
      %v793 = vsel %vm480, %v764, 0
      %v796 = vsel %vm480, %v765, 0
      %v799 = vsel %vm480, %v766, 0
      %v802 = vsel %vm480, %v767, 0
      %v805 = vsel %vm480, %v768, 0
      %v808 = vsel %vm480, %v769, 0
      %v811 = vsel %vm480, %v770, 0
      %v814 = vsel %vm480, %v771, 0
      %v817 = vsel %vm480, %v772, 0
      %v820 = vsel %vm480, %v773, 0
      %v823 = vsel %vm529, %v398, 0
      %825 = vmatprep.subr.bf16.mxu0 0
      %826 = vmatpush1.bf16.msra.mxu0 %v823
      %827 = vmatprep.subr.bf16.mxu0 0
      %828 = vmatpush1.bf16.msra.mxu0 0
      %829 = vmatprep.subr.bf16.mxu0 0
      %830 = vmatpush1.bf16.msra.mxu0 0
      %831 = vmatprep.subr.bf16.mxu0 0
      %832 = vmatpush1.bf16.msra.mxu0 0
      %833 = vmatprep.subr.bf16.mxu0 0
      %834 = vmatpush1.bf16.msra.mxu0 0
      %835 = vmatprep.subr.bf16.mxu0 0
      %836 = vmatpush1.bf16.msra.mxu0 0
      %837 = vmatprep.subr.bf16.mxu0 0
      %838 = vmatpush1.bf16.msra.mxu0 0
      %839 = vmatprep.subr.bf16.mxu0 0
      %840 = vmatpush1.bf16.msra.mxu0 0
      %841 = vmatprep.subr.bf16.mxu0 0
      %842 = vmatpush1.bf16.msra.mxu0 0
      %843 = vmatprep.subr.bf16.mxu0 0
      %844 = vmatpush1.bf16.msra.mxu0 0
      %845 = vmatprep.subr.bf16.mxu0 0
      %846 = vmatpush1.bf16.msra.mxu0 0
      %847 = vmatprep.subr.bf16.mxu0 0
      %848 = vmatpush1.bf16.msra.mxu0 0
      %849 = vmatprep.subr.bf16.mxu0 0
      %850 = vmatpush1.bf16.msra.mxu0 0
      %851 = vmatprep.subr.bf16.mxu0 0
      %852 = vmatpush1.bf16.msra.mxu0 0
      %853 = vmatprep.subr.bf16.mxu0 0
      %854 = vmatpush1.bf16.msra.mxu0 0
      %855 = vmatprep.subr.bf16.mxu0 0
      %856 = vmatpush1.bf16.msra.mxu0 0
      %857 = vmatprep.mubr.bf16.mxu0 0
      %858 = vmatmul.mubr.bf16.gmra.mrb[0].mxu0 %v775
      %v859 = vpop.f32.mrb[0].mxu0
      %v860 = vadd.f32 %v568, %v859
      %v861 = vpop.f32.mrb[0].mxu0
      %v862 = vpop.f32.mrb[0].mxu0
      %v863 = vadd.f32 %v571, %v862
      %v864 = vpop.f32.mrb[0].mxu0
      %865 = vmatprep.mubr.bf16.mxu0 0
      %866 = vmatmul.mubr.bf16.gmra.mrb[0].mxu0 %v778
      %v867 = vpop.f32.mrb[0].mxu0
      %v868 = vadd.f32 %v576, %v867
      %v869 = vpop.f32.mrb[0].mxu0
      %v870 = vpop.f32.mrb[0].mxu0
      %v871 = vadd.f32 %v579, %v870
      %v872 = vpop.f32.mrb[0].mxu0
      %873 = vmatprep.mubr.bf16.mxu0 0
      %874 = vmatmul.mubr.bf16.gmra.mrb[0].mxu0 %v781
      %v875 = vpop.f32.mrb[0].mxu0
      %v876 = vadd.f32 %v584, %v875
      %v877 = vpop.f32.mrb[0].mxu0
      %v878 = vpop.f32.mrb[0].mxu0
      %v879 = vadd.f32 %v587, %v878
      %v880 = vpop.f32.mrb[0].mxu0
      %881 = vmatprep.mubr.bf16.mxu0 0
      %882 = vmatmul.mubr.bf16.gmra.mrb[0].mxu0 %v784
      %v883 = vpop.f32.mrb[0].mxu0
      %v884 = vadd.f32 %v592, %v883
      %v885 = vpop.f32.mrb[0].mxu0
      %v886 = vpop.f32.mrb[0].mxu0
      %v887 = vadd.f32 %v595, %v886
      %v888 = vpop.f32.mrb[0].mxu0
      %889 = vmatprep.mubr.bf16.mxu0 0
      %890 = vmatmul.mubr.bf16.gmra.mrb[0].mxu0 %v787
      %v891 = vpop.f32.mrb[0].mxu0
      %v892 = vadd.f32 %v600, %v891
      %v893 = vpop.f32.mrb[0].mxu0
      %v894 = vpop.f32.mrb[0].mxu0
      %v895 = vadd.f32 %v603, %v894
      %v896 = vpop.f32.mrb[0].mxu0
      %897 = vmatprep.mubr.bf16.mxu0 0
      %898 = vmatmul.mubr.bf16.gmra.mrb[0].mxu0 %v790
      %v899 = vpop.f32.mrb[0].mxu0
      %v900 = vadd.f32 %v608, %v899
      %v901 = vpop.f32.mrb[0].mxu0
      %v902 = vpop.f32.mrb[0].mxu0
      %v903 = vadd.f32 %v611, %v902
      %v904 = vpop.f32.mrb[0].mxu0
      %905 = vmatprep.mubr.bf16.mxu0 0
      %906 = vmatmul.mubr.bf16.gmra.mrb[0].mxu0 %v793
      %v907 = vpop.f32.mrb[0].mxu0
      %v908 = vadd.f32 %v616, %v907
      %v909 = vpop.f32.mrb[0].mxu0
      %v910 = vpop.f32.mrb[0].mxu0
      %v911 = vadd.f32 %v619, %v910
      %v912 = vpop.f32.mrb[0].mxu0
      %913 = vmatprep.mubr.bf16.mxu0 0
      %914 = vmatmul.mubr.bf16.gmra.mrb[0].mxu0 %v796
      %v915 = vpop.f32.mrb[0].mxu0
      %v916 = vadd.f32 %v624, %v915
      %v917 = vpop.f32.mrb[0].mxu0
      %v918 = vpop.f32.mrb[0].mxu0
      %v919 = vadd.f32 %v627, %v918
      %v920 = vpop.f32.mrb[0].mxu0
      %921 = vmatprep.mubr.bf16.mxu0 0
      %922 = vmatmul.mubr.bf16.gmra.mrb[0].mxu0 %v799
      %v923 = vpop.f32.mrb[0].mxu0
      %v924 = vadd.f32 %v632, %v923
      %v925 = vpop.f32.mrb[0].mxu0
      %v926 = vpop.f32.mrb[0].mxu0
      %v927 = vadd.f32 %v635, %v926
      %v928 = vpop.f32.mrb[0].mxu0
      %929 = vmatprep.mubr.bf16.mxu0 0
      %930 = vmatmul.mubr.bf16.gmra.mrb[0].mxu0 %v802
      %v931 = vpop.f32.mrb[0].mxu0
      %v932 = vadd.f32 %v640, %v931
      %v933 = vpop.f32.mrb[0].mxu0
      %v934 = vpop.f32.mrb[0].mxu0
      %v935 = vadd.f32 %v643, %v934
      %v936 = vpop.f32.mrb[0].mxu0
      %937 = vmatprep.mubr.bf16.mxu0 0
      %938 = vmatmul.mubr.bf16.gmra.mrb[0].mxu0 %v805
      %v939 = vpop.f32.mrb[0].mxu0
      %v940 = vadd.f32 %v648, %v939
      %v941 = vpop.f32.mrb[0].mxu0
      %v942 = vpop.f32.mrb[0].mxu0
      %v943 = vadd.f32 %v651, %v942
      %v944 = vpop.f32.mrb[0].mxu0
      %945 = vmatprep.mubr.bf16.mxu0 0
      %946 = vmatmul.mubr.bf16.gmra.mrb[0].mxu0 %v808
      %v947 = vpop.f32.mrb[0].mxu0
      %v948 = vadd.f32 %v656, %v947
      %v949 = vpop.f32.mrb[0].mxu0
      %v950 = vpop.f32.mrb[0].mxu0
      %v951 = vadd.f32 %v659, %v950
      %v952 = vpop.f32.mrb[0].mxu0
      %953 = vmatprep.mubr.bf16.mxu0 0
      %954 = vmatmul.mubr.bf16.gmra.mrb[0].mxu0 %v811
      %v955 = vpop.f32.mrb[0].mxu0
      %v956 = vadd.f32 %v664, %v955
      %v957 = vpop.f32.mrb[0].mxu0
      %v958 = vpop.f32.mrb[0].mxu0
      %v959 = vadd.f32 %v667, %v958
      %v960 = vpop.f32.mrb[0].mxu0
      %961 = vmatprep.mubr.bf16.mxu0 0
      %962 = vmatmul.mubr.bf16.gmra.mrb[0].mxu0 %v814
      %v963 = vpop.f32.mrb[0].mxu0
      %v964 = vadd.f32 %v672, %v963
      %v965 = vpop.f32.mrb[0].mxu0
      %v966 = vpop.f32.mrb[0].mxu0
      %v967 = vadd.f32 %v675, %v966
      %v968 = vpop.f32.mrb[0].mxu0
      %969 = vmatprep.mubr.bf16.mxu0 0
      %970 = vmatmul.mubr.bf16.gmra.mrb[0].mxu0 %v817
      %v971 = vpop.f32.mrb[0].mxu0
      %v972 = vadd.f32 %v680, %v971
      %v973 = vpop.f32.mrb[0].mxu0
      %v974 = vpop.f32.mrb[0].mxu0
      %v975 = vadd.f32 %v683, %v974
      %v976 = vpop.f32.mrb[0].mxu0
      %977 = vmatprep.mubr.bf16.mxu0 0
      %978 = vmatmul.mubr.bf16.gmra.mrb[0].mxu0 %v820
      %v979 = vpop.f32.mrb[0].mxu0
      %v980 = vadd.f32 %v688, %v979
      %v981 = vpop.f32.mrb[0].mxu0
      %v982 = vpop.f32.mrb[0].mxu0
      %v983 = vadd.f32 %v691, %v982
      %v984 = vpop.f32.mrb[0].mxu0
      %985 = vdwg.mxu0
      %vm986 = vsmask.f32 3328
      %vm987 = vsmask.f32 7440
      %vm988 = vmor %vm986, %vm987
      %v990 = vshrl.u32 %v290, 16
      %v992 = vrot.slane %v990, 4
      %v993 = vshll.u32 %v290, 16
      %v995 = vrot.slane %v993, 5
      %v996 = vor.u32 %v992, %v995
      %v997 = vrot.slane %v996, 4
      %v999 = vshll.u32 %v291, 16
      %v1001 = vrot.slane %v999, 5
      %v1002 = vsel %vm988, %v997, %v1001
      %v1003 = vshrl.u32 %v291, 16
      %v1005 = vrot.slane %v1003, 4
      %v1006 = vor.u32 %v1005, %v1001
      %v1007 = vrot.slane %v1006, 4
      %v1009 = vshll.u32 %v292, 16
      %v1011 = vrot.slane %v1009, 5
      %v1012 = vsel %vm988, %v1007, %v1011
      %v1014 = vshrl.u32 %v293, 16
      %v1016 = vrot.slane %v1014, 4
      %v1017 = vshll.u32 %v293, 16
      %v1019 = vrot.slane %v1017, 5
      %v1020 = vor.u32 %v1016, %v1019
      %v1021 = vrot.slane %v1020, 4
      %v1023 = vshll.u32 %v294, 16
      %v1025 = vrot.slane %v1023, 5
      %v1026 = vsel %vm988, %v1021, %v1025
      %v1027 = vshrl.u32 %v294, 16
      %v1029 = vrot.slane %v1027, 4
      %v1030 = vor.u32 %v1029, %v1025
      %v1031 = vrot.slane %v1030, 4
      %v1033 = vshll.u32 %v295, 16
      %v1035 = vrot.slane %v1033, 5
      %v1036 = vsel %vm988, %v1031, %v1035
      %v1038 = vshrl.u32 %v296, 16
      %v1040 = vrot.slane %v1038, 4
      %v1041 = vshll.u32 %v296, 16
      %v1043 = vrot.slane %v1041, 5
      %v1044 = vor.u32 %v1040, %v1043
      %v1045 = vrot.slane %v1044, 4
      %v1047 = vshll.u32 %v297, 16
      %v1049 = vrot.slane %v1047, 5
      %v1050 = vsel %vm988, %v1045, %v1049
      %v1051 = vshrl.u32 %v297, 16
      %v1053 = vrot.slane %v1051, 4
      %v1054 = vor.u32 %v1053, %v1049
      %v1055 = vrot.slane %v1054, 4
      %v1057 = vshll.u32 %v298, 16
      %v1059 = vrot.slane %v1057, 5
      %v1060 = vsel %vm988, %v1055, %v1059
      %v1062 = vshrl.u32 %v299, 16
      %v1064 = vrot.slane %v1062, 4
      %v1065 = vshll.u32 %v299, 16
      %v1067 = vrot.slane %v1065, 5
      %v1068 = vor.u32 %v1064, %v1067
      %v1069 = vrot.slane %v1068, 4
      %v1071 = vshll.u32 %v300, 16
      %v1073 = vrot.slane %v1071, 5
      %v1074 = vsel %vm988, %v1069, %v1073
      %v1075 = vshrl.u32 %v300, 16
      %v1077 = vrot.slane %v1075, 4
      %v1078 = vor.u32 %v1077, %v1073
      %v1079 = vrot.slane %v1078, 4
      %v1081 = vshll.u32 %v301, 16
      %v1083 = vrot.slane %v1081, 5
      %v1084 = vsel %vm988, %v1079, %v1083
      %v1086 = vshrl.u32 %v302, 16
      %v1088 = vrot.slane %v1086, 4
      %v1089 = vshll.u32 %v302, 16
      %v1091 = vrot.slane %v1089, 5
      %v1092 = vor.u32 %v1088, %v1091
      %v1093 = vrot.slane %v1092, 4
      %v1095 = vshll.u32 %v303, 16
      %v1097 = vrot.slane %v1095, 5
      %v1098 = vsel %vm988, %v1093, %v1097
      %v1099 = vshrl.u32 %v303, 16
      %v1101 = vrot.slane %v1099, 4
      %v1102 = vor.u32 %v1101, %v1097
      %v1103 = vrot.slane %v1102, 4
      %v1105 = vshll.u32 %v304, 16
      %v1107 = vrot.slane %v1105, 5
      %v1108 = vsel %vm988, %v1103, %v1107
      %v1110 = vshrl.u32 %v305, 16
      %v1112 = vrot.slane %v1110, 4
      %v1113 = vshll.u32 %v305, 16
      %v1115 = vrot.slane %v1113, 5
      %v1116 = vor.u32 %v1112, %v1115
      %v1117 = vrot.slane %v1116, 4
      %v1119 = vshll.u32 %v306, 16
      %v1121 = vrot.slane %v1119, 5
      %v1122 = vsel %vm988, %v1117, %v1121
      %v1123 = vshrl.u32 %v306, 16
      %v1125 = vrot.slane %v1123, 4
      %v1126 = vor.u32 %v1125, %v1121
      %v1127 = vrot.slane %v1126, 4
      %v1129 = vshll.u32 %v307, 16
      %v1131 = vrot.slane %v1129, 5
      %v1132 = vsel %vm988, %v1127, %v1131
      %v1134 = vshrl.u32 %v308, 16
      %v1136 = vrot.slane %v1134, 4
      %v1137 = vshll.u32 %v308, 16
      %v1139 = vrot.slane %v1137, 5
      %v1140 = vor.u32 %v1136, %v1139
      %v1141 = vrot.slane %v1140, 4
      %v1143 = vshll.u32 %v309, 16
      %v1145 = vrot.slane %v1143, 5
      %v1146 = vsel %vm988, %v1141, %v1145
      %v1147 = vshrl.u32 %v309, 16
      %v1149 = vrot.slane %v1147, 4
      %v1150 = vor.u32 %v1149, %v1145
      %v1151 = vrot.slane %v1150, 4
      %v1153 = vshll.u32 %v310, 16
      %v1155 = vrot.slane %v1153, 5
      %v1156 = vsel %vm988, %v1151, %v1155
      %v1158 = vshrl.u32 %v311, 16
      %v1160 = vrot.slane %v1158, 4
      %v1161 = vshll.u32 %v311, 16
      %v1163 = vrot.slane %v1161, 5
      %v1164 = vor.u32 %v1160, %v1163
      %v1165 = vrot.slane %v1164, 4
      %v1167 = vshll.u32 %v312, 16
      %v1169 = vrot.slane %v1167, 5
      %v1170 = vsel %vm988, %v1165, %v1169
      %v1171 = vshrl.u32 %v312, 16
      %v1173 = vrot.slane %v1171, 4
      %v1174 = vor.u32 %v1173, %v1169
      %v1175 = vrot.slane %v1174, 4
      %v1177 = vshll.u32 %v313, 16
      %v1179 = vrot.slane %v1177, 5
      %v1180 = vsel %vm988, %v1175, %v1179
      %v1182 = vshrl.u32 %v314, 16
      %v1184 = vrot.slane %v1182, 4
      %v1185 = vshll.u32 %v314, 16
      %v1187 = vrot.slane %v1185, 5
      %v1188 = vor.u32 %v1184, %v1187
      %v1189 = vrot.slane %v1188, 4
      %v1191 = vshll.u32 %v315, 16
      %v1193 = vrot.slane %v1191, 5
      %v1194 = vsel %vm988, %v1189, %v1193
      %v1195 = vshrl.u32 %v315, 16
      %v1197 = vrot.slane %v1195, 4
      %v1198 = vor.u32 %v1197, %v1193
      %v1199 = vrot.slane %v1198, 4
      %v1201 = vshll.u32 %v316, 16
      %v1203 = vrot.slane %v1201, 5
      %v1204 = vsel %vm988, %v1199, %v1203
      %v1206 = vshrl.u32 %v317, 16
      %v1208 = vrot.slane %v1206, 4
      %v1209 = vshll.u32 %v317, 16
      %v1211 = vrot.slane %v1209, 5
      %v1212 = vor.u32 %v1208, %v1211
      %v1213 = vrot.slane %v1212, 4
      %v1215 = vshll.u32 %v318, 16
      %v1217 = vrot.slane %v1215, 5
      %v1218 = vsel %vm988, %v1213, %v1217
      %v1219 = vshrl.u32 %v318, 16
      %v1221 = vrot.slane %v1219, 4
      %v1222 = vor.u32 %v1221, %v1217
      %v1223 = vrot.slane %v1222, 4
      %v1225 = vshll.u32 %v319, 16
      %v1227 = vrot.slane %v1225, 5
      %v1228 = vsel %vm988, %v1223, %v1227
      %v1230 = vshrl.u32 %v320, 16
      %v1232 = vrot.slane %v1230, 4
      %v1233 = vshll.u32 %v320, 16
      %v1235 = vrot.slane %v1233, 5
      %v1236 = vor.u32 %v1232, %v1235
      %v1237 = vrot.slane %v1236, 4
      %v1239 = vshll.u32 %v321, 16
      %v1241 = vrot.slane %v1239, 5
      %v1242 = vsel %vm988, %v1237, %v1241
      %v1243 = vshrl.u32 %v321, 16
      %v1245 = vrot.slane %v1243, 4
      %v1246 = vor.u32 %v1245, %v1241
      %v1247 = vrot.slane %v1246, 4
      %v1249 = vshll.u32 %v322, 16
      %v1251 = vrot.slane %v1249, 5
      %v1252 = vsel %vm988, %v1247, %v1251
      %v1254 = vshrl.u32 %v323, 16
      %v1256 = vrot.slane %v1254, 4
      %v1257 = vshll.u32 %v323, 16
      %v1259 = vrot.slane %v1257, 5
      %v1260 = vor.u32 %v1256, %v1259
      %v1261 = vrot.slane %v1260, 4
      %v1263 = vshll.u32 %v324, 16
      %v1265 = vrot.slane %v1263, 5
      %v1266 = vsel %vm988, %v1261, %v1265
      %v1267 = vshrl.u32 %v324, 16
      %v1269 = vrot.slane %v1267, 4
      %v1270 = vor.u32 %v1269, %v1265
      %v1271 = vrot.slane %v1270, 4
      %v1273 = vshll.u32 %v325, 16
      %v1275 = vrot.slane %v1273, 5
      %v1276 = vsel %vm988, %v1271, %v1275
      %v1278 = vshrl.u32 %v326, 16
      %v1280 = vrot.slane %v1278, 4
      %v1281 = vshll.u32 %v326, 16
      %v1283 = vrot.slane %v1281, 5
      %v1284 = vor.u32 %v1280, %v1283
      %v1285 = vrot.slane %v1284, 4
      %v1287 = vshll.u32 %v327, 16
      %v1289 = vrot.slane %v1287, 5
      %v1290 = vsel %vm988, %v1285, %v1289
      %v1291 = vshrl.u32 %v327, 16
      %v1293 = vrot.slane %v1291, 4
      %v1294 = vor.u32 %v1293, %v1289
      %v1295 = vrot.slane %v1294, 4
      %v1297 = vshll.u32 %v328, 16
      %v1299 = vrot.slane %v1297, 5
      %v1300 = vsel %vm988, %v1295, %v1299
      %v1302 = vshrl.u32 %v329, 16
      %v1304 = vrot.slane %v1302, 4
      %v1305 = vshll.u32 %v329, 16
      %v1307 = vrot.slane %v1305, 5
      %v1308 = vor.u32 %v1304, %v1307
      %v1309 = vrot.slane %v1308, 4
      %v1311 = vshll.u32 %v330, 16
      %v1313 = vrot.slane %v1311, 5
      %v1314 = vsel %vm988, %v1309, %v1313
      %v1315 = vshrl.u32 %v330, 16
      %v1317 = vrot.slane %v1315, 4
      %v1318 = vor.u32 %v1317, %v1313
      %v1319 = vrot.slane %v1318, 4
      %v1321 = vshll.u32 %v331, 16
      %v1323 = vrot.slane %v1321, 5
      %v1324 = vsel %vm988, %v1319, %v1323
      %v1326 = vshrl.u32 %v332, 16
      %v1328 = vrot.slane %v1326, 4
      %v1329 = vshll.u32 %v332, 16
      %v1331 = vrot.slane %v1329, 5
      %v1332 = vor.u32 %v1328, %v1331
      %v1333 = vrot.slane %v1332, 4
      %v1335 = vshll.u32 %v333, 16
      %v1337 = vrot.slane %v1335, 5
      %v1338 = vsel %vm988, %v1333, %v1337
      %v1339 = vshrl.u32 %v333, 16
      %v1341 = vrot.slane %v1339, 4
      %v1342 = vor.u32 %v1341, %v1337
      %v1343 = vrot.slane %v1342, 4
      %v1345 = vshll.u32 %v334, 16
      %v1347 = vrot.slane %v1345, 5
      %v1348 = vsel %vm988, %v1343, %v1347
      %v1350 = vshrl.u32 %v335, 16
      %v1352 = vrot.slane %v1350, 4
      %v1353 = vshll.u32 %v335, 16
      %v1355 = vrot.slane %v1353, 5
      %v1356 = vor.u32 %v1352, %v1355
      %v1357 = vrot.slane %v1356, 4
      %v1359 = vshll.u32 %v336, 16
      %v1361 = vrot.slane %v1359, 5
      %v1362 = vsel %vm988, %v1357, %v1361
      %v1363 = vshrl.u32 %v336, 16
      %v1365 = vrot.slane %v1363, 4
      %v1366 = vor.u32 %v1365, %v1361
      %v1367 = vrot.slane %v1366, 4
      %v1369 = vshll.u32 %v337, 16
      %v1371 = vrot.slane %v1369, 5
      %v1372 = vsel %vm988, %v1367, %v1371
      %v1374 = vshrl.u32 %v344, 16
      %v1376 = vrot.slane %v1374, 4
      %v1377 = vshll.u32 %v344, 16
      %v1379 = vrot.slane %v1377, 5
      %v1380 = vor.u32 %v1376, %v1379
      %v1381 = vrot.slane %v1380, 4
      %v1383 = vshll.u32 %v345, 16
      %v1385 = vrot.slane %v1383, 5
      %v1386 = vsel %vm988, %v1381, %v1385
      %v1387 = vshrl.u32 %v345, 16
      %v1389 = vrot.slane %v1387, 4
      %v1390 = vor.u32 %v1389, %v1385
      %v1391 = vrot.slane %v1390, 4
      %v1393 = vshll.u32 %v346, 16
      %v1395 = vrot.slane %v1393, 5
      %v1396 = vsel %vm988, %v1391, %v1395
      %v1398 = vshrl.u32 %v347, 16
      %v1400 = vrot.slane %v1398, 4
      %v1401 = vshll.u32 %v347, 16
      %v1403 = vrot.slane %v1401, 5
      %v1404 = vor.u32 %v1400, %v1403
      %v1405 = vrot.slane %v1404, 4
      %v1407 = vshll.u32 %v348, 16
      %v1409 = vrot.slane %v1407, 5
      %v1410 = vsel %vm988, %v1405, %v1409
      %v1411 = vshrl.u32 %v348, 16
      %v1413 = vrot.slane %v1411, 4
      %v1414 = vor.u32 %v1413, %v1409
      %v1415 = vrot.slane %v1414, 4
      %v1417 = vshll.u32 %v349, 16
      %v1419 = vrot.slane %v1417, 5
      %v1420 = vsel %vm988, %v1415, %v1419
      %v1422 = vshrl.u32 %v350, 16
      %v1424 = vrot.slane %v1422, 4
      %v1425 = vshll.u32 %v350, 16
      %v1427 = vrot.slane %v1425, 5
      %v1428 = vor.u32 %v1424, %v1427
      %v1429 = vrot.slane %v1428, 4
      %v1431 = vshll.u32 %v351, 16
      %v1433 = vrot.slane %v1431, 5
      %v1434 = vsel %vm988, %v1429, %v1433
      %v1435 = vshrl.u32 %v351, 16
      %v1437 = vrot.slane %v1435, 4
      %v1438 = vor.u32 %v1437, %v1433
      %v1439 = vrot.slane %v1438, 4
      %v1441 = vshll.u32 %v352, 16
      %v1443 = vrot.slane %v1441, 5
      %v1444 = vsel %vm988, %v1439, %v1443
      %v1446 = vshrl.u32 %v353, 16
      %v1448 = vrot.slane %v1446, 4
      %v1449 = vshll.u32 %v353, 16
      %v1451 = vrot.slane %v1449, 5
      %v1452 = vor.u32 %v1448, %v1451
      %v1453 = vrot.slane %v1452, 4
      %v1455 = vshll.u32 %v354, 16
      %v1457 = vrot.slane %v1455, 5
      %v1458 = vsel %vm988, %v1453, %v1457
      %v1459 = vshrl.u32 %v354, 16
      %v1461 = vrot.slane %v1459, 4
      %v1462 = vor.u32 %v1461, %v1457
      %v1463 = vrot.slane %v1462, 4
      %v1465 = vshll.u32 %v355, 16
      %v1467 = vrot.slane %v1465, 5
      %v1468 = vsel %vm988, %v1463, %v1467
      %v1470 = vshrl.u32 %v356, 16
      %v1472 = vrot.slane %v1470, 4
      %v1473 = vshll.u32 %v356, 16
      %v1475 = vrot.slane %v1473, 5
      %v1476 = vor.u32 %v1472, %v1475
      %v1477 = vrot.slane %v1476, 4
      %v1479 = vshll.u32 %v357, 16
      %v1481 = vrot.slane %v1479, 5
      %v1482 = vsel %vm988, %v1477, %v1481
      %v1483 = vshrl.u32 %v357, 16
      %v1485 = vrot.slane %v1483, 4
      %v1486 = vor.u32 %v1485, %v1481
      %v1487 = vrot.slane %v1486, 4
      %v1489 = vshll.u32 %v358, 16
      %v1491 = vrot.slane %v1489, 5
      %v1492 = vsel %vm988, %v1487, %v1491
      %v1494 = vshrl.u32 %v359, 16
      %v1496 = vrot.slane %v1494, 4
      %v1497 = vshll.u32 %v359, 16
      %v1499 = vrot.slane %v1497, 5
      %v1500 = vor.u32 %v1496, %v1499
      %v1501 = vrot.slane %v1500, 4
      %v1503 = vshll.u32 %v360, 16
      %v1505 = vrot.slane %v1503, 5
      %v1506 = vsel %vm988, %v1501, %v1505
      %v1507 = vshrl.u32 %v360, 16
      %v1509 = vrot.slane %v1507, 4
      %v1510 = vor.u32 %v1509, %v1505
      %v1511 = vrot.slane %v1510, 4
      %v1513 = vshll.u32 %v361, 16
      %v1515 = vrot.slane %v1513, 5
      %v1516 = vsel %vm988, %v1511, %v1515
      %v1518 = vshrl.u32 %v362, 16
      %v1520 = vrot.slane %v1518, 4
      %v1521 = vshll.u32 %v362, 16
      %v1523 = vrot.slane %v1521, 5
      %v1524 = vor.u32 %v1520, %v1523
      %v1525 = vrot.slane %v1524, 4
      %v1527 = vshll.u32 %v363, 16
      %v1529 = vrot.slane %v1527, 5
      %v1530 = vsel %vm988, %v1525, %v1529
      %v1531 = vshrl.u32 %v363, 16
      %v1533 = vrot.slane %v1531, 4
      %v1534 = vor.u32 %v1533, %v1529
      %v1535 = vrot.slane %v1534, 4
      %v1537 = vshll.u32 %v364, 16
      %v1539 = vrot.slane %v1537, 5
      %v1540 = vsel %vm988, %v1535, %v1539
      %v1542 = vshrl.u32 %v365, 16
      %v1544 = vrot.slane %v1542, 4
      %v1545 = vshll.u32 %v365, 16
      %v1547 = vrot.slane %v1545, 5
      %v1548 = vor.u32 %v1544, %v1547
      %v1549 = vrot.slane %v1548, 4
      %v1551 = vshll.u32 %v366, 16
      %v1553 = vrot.slane %v1551, 5
      %v1554 = vsel %vm988, %v1549, %v1553
      %v1555 = vshrl.u32 %v366, 16
      %v1557 = vrot.slane %v1555, 4
      %v1558 = vor.u32 %v1557, %v1553
      %v1559 = vrot.slane %v1558, 4
      %v1561 = vshll.u32 %v367, 16
      %v1563 = vrot.slane %v1561, 5
      %v1564 = vsel %vm988, %v1559, %v1563
      %v1566 = vshrl.u32 %v368, 16
      %v1568 = vrot.slane %v1566, 4
      %v1569 = vshll.u32 %v368, 16
      %v1571 = vrot.slane %v1569, 5
      %v1572 = vor.u32 %v1568, %v1571
      %v1573 = vrot.slane %v1572, 4
      %v1575 = vshll.u32 %v369, 16
      %v1577 = vrot.slane %v1575, 5
      %v1578 = vsel %vm988, %v1573, %v1577
      %v1579 = vshrl.u32 %v369, 16
      %v1581 = vrot.slane %v1579, 4
      %v1582 = vor.u32 %v1581, %v1577
      %v1583 = vrot.slane %v1582, 4
      %v1585 = vshll.u32 %v370, 16
      %v1587 = vrot.slane %v1585, 5
      %v1588 = vsel %vm988, %v1583, %v1587
      %v1590 = vshrl.u32 %v371, 16
      %v1592 = vrot.slane %v1590, 4
      %v1593 = vshll.u32 %v371, 16
      %v1595 = vrot.slane %v1593, 5
      %v1596 = vor.u32 %v1592, %v1595
      %v1597 = vrot.slane %v1596, 4
      %v1599 = vshll.u32 %v372, 16
      %v1601 = vrot.slane %v1599, 5
      %v1602 = vsel %vm988, %v1597, %v1601
      %v1603 = vshrl.u32 %v372, 16
      %v1605 = vrot.slane %v1603, 4
      %v1606 = vor.u32 %v1605, %v1601
      %v1607 = vrot.slane %v1606, 4
      %v1609 = vshll.u32 %v373, 16
      %v1611 = vrot.slane %v1609, 5
      %v1612 = vsel %vm988, %v1607, %v1611
      %v1614 = vshrl.u32 %v374, 16
      %v1616 = vrot.slane %v1614, 4
      %v1617 = vshll.u32 %v374, 16
      %v1619 = vrot.slane %v1617, 5
      %v1620 = vor.u32 %v1616, %v1619
      %v1621 = vrot.slane %v1620, 4
      %v1623 = vshll.u32 %v375, 16
      %v1625 = vrot.slane %v1623, 5
      %v1626 = vsel %vm988, %v1621, %v1625
      %v1627 = vshrl.u32 %v375, 16
      %v1629 = vrot.slane %v1627, 4
      %v1630 = vor.u32 %v1629, %v1625
      %v1631 = vrot.slane %v1630, 4
      %v1633 = vshll.u32 %v376, 16
      %v1635 = vrot.slane %v1633, 5
      %v1636 = vsel %vm988, %v1631, %v1635
      %v1638 = vshrl.u32 %v377, 16
      %v1640 = vrot.slane %v1638, 4
      %v1641 = vshll.u32 %v377, 16
      %v1643 = vrot.slane %v1641, 5
      %v1644 = vor.u32 %v1640, %v1643
      %v1645 = vrot.slane %v1644, 4
      %v1647 = vshll.u32 %v378, 16
      %v1649 = vrot.slane %v1647, 5
      %v1650 = vsel %vm988, %v1645, %v1649
      %v1651 = vshrl.u32 %v378, 16
      %v1653 = vrot.slane %v1651, 4
      %v1654 = vor.u32 %v1653, %v1649
      %v1655 = vrot.slane %v1654, 4
      %v1657 = vshll.u32 %v379, 16
      %v1659 = vrot.slane %v1657, 5
      %v1660 = vsel %vm988, %v1655, %v1659
      %v1662 = vshrl.u32 %v380, 16
      %v1664 = vrot.slane %v1662, 4
      %v1665 = vshll.u32 %v380, 16
      %v1667 = vrot.slane %v1665, 5
      %v1668 = vor.u32 %v1664, %v1667
      %v1669 = vrot.slane %v1668, 4
      %v1671 = vshll.u32 %v381, 16
      %v1673 = vrot.slane %v1671, 5
      %v1674 = vsel %vm988, %v1669, %v1673
      %v1675 = vshrl.u32 %v381, 16
      %v1677 = vrot.slane %v1675, 4
      %v1678 = vor.u32 %v1677, %v1673
      %v1679 = vrot.slane %v1678, 4
      %v1681 = vshll.u32 %v382, 16
      %v1683 = vrot.slane %v1681, 5
      %v1684 = vsel %vm988, %v1679, %v1683
      %v1686 = vshrl.u32 %v383, 16
      %v1688 = vrot.slane %v1686, 4
      %v1689 = vshll.u32 %v383, 16
      %v1691 = vrot.slane %v1689, 5
      %v1692 = vor.u32 %v1688, %v1691
      %v1693 = vrot.slane %v1692, 4
      %v1695 = vshll.u32 %v384, 16
      %v1697 = vrot.slane %v1695, 5
      %v1698 = vsel %vm988, %v1693, %v1697
      %v1699 = vshrl.u32 %v384, 16
      %v1701 = vrot.slane %v1699, 4
      %v1702 = vor.u32 %v1701, %v1697
      %v1703 = vrot.slane %v1702, 4
      %v1705 = vshll.u32 %v385, 16
      %v1707 = vrot.slane %v1705, 5
      %v1708 = vsel %vm988, %v1703, %v1707
      %v1710 = vshrl.u32 %v386, 16
      %v1712 = vrot.slane %v1710, 4
      %v1713 = vshll.u32 %v386, 16
      %v1715 = vrot.slane %v1713, 5
      %v1716 = vor.u32 %v1712, %v1715
      %v1717 = vrot.slane %v1716, 4
      %v1719 = vshll.u32 %v387, 16
      %v1721 = vrot.slane %v1719, 5
      %v1722 = vsel %vm988, %v1717, %v1721
      %v1723 = vshrl.u32 %v387, 16
      %v1725 = vrot.slane %v1723, 4
      %v1726 = vor.u32 %v1725, %v1721
      %v1727 = vrot.slane %v1726, 4
      %v1729 = vshll.u32 %v388, 16
      %v1731 = vrot.slane %v1729, 5
      %v1732 = vsel %vm988, %v1727, %v1731
      %v1734 = vshrl.u32 %v389, 16
      %v1736 = vrot.slane %v1734, 4
      %v1737 = vshll.u32 %v389, 16
      %v1739 = vrot.slane %v1737, 5
      %v1740 = vor.u32 %v1736, %v1739
      %v1741 = vrot.slane %v1740, 4
      %v1743 = vshll.u32 %v390, 16
      %v1745 = vrot.slane %v1743, 5
      %v1746 = vsel %vm988, %v1741, %v1745
      %v1747 = vshrl.u32 %v390, 16
      %v1749 = vrot.slane %v1747, 4
      %v1750 = vor.u32 %v1749, %v1745
      %v1751 = vrot.slane %v1750, 4
      %v1753 = vshll.u32 %v391, 16
      %v1755 = vrot.slane %v1753, 5
      %v1756 = vsel %vm988, %v1751, %v1755
      %s1757 = scalar_lea.vmem %s2, 2
      %v1758 = vld [vmem:[%s1757] sm:$0x3]
      %s1759 = scalar_lea.vmem %s3, 2
      %v1760 = vld [vmem:[%s1759] sm:$0x3]
      %v1761 = vunpack.c.l.b16 %v1386
      %v1762 = vunpack.c.l.b16 %v1396
      %v1763 = vunpack.c.l.b16 %v1410
      %v1764 = vunpack.c.l.b16 %v1420
      %v1765 = vunpack.c.l.b16 %v1434
      %v1766 = vunpack.c.l.b16 %v1444
      %v1767 = vunpack.c.l.b16 %v1458
      %v1768 = vunpack.c.l.b16 %v1468
      %v1769 = vunpack.c.l.b16 %v1482
      %v1770 = vunpack.c.l.b16 %v1492
      %v1771 = vunpack.c.l.b16 %v1506
      %v1772 = vunpack.c.l.b16 %v1516
      %v1773 = vunpack.c.l.b16 %v1530
      %v1774 = vunpack.c.l.b16 %v1540
      %v1775 = vunpack.c.l.b16 %v1554
      %v1776 = vunpack.c.l.b16 %v1564
      %v1777 = vunpack.c.l.b16 %v1578
      %v1778 = vunpack.c.l.b16 %v1588
      %v1779 = vunpack.c.l.b16 %v1602
      %v1780 = vunpack.c.l.b16 %v1612
      %v1781 = vunpack.c.l.b16 %v1626
      %v1782 = vunpack.c.l.b16 %v1636
      %v1783 = vunpack.c.l.b16 %v1650
      %v1784 = vunpack.c.l.b16 %v1660
      %v1785 = vunpack.c.l.b16 %v1674
      %v1786 = vunpack.c.l.b16 %v1684
      %v1787 = vunpack.c.l.b16 %v1698
      %v1788 = vunpack.c.l.b16 %v1708
      %v1789 = vunpack.c.l.b16 %v1722
      %v1790 = vunpack.c.l.b16 %v1732
      %v1791 = vunpack.c.l.b16 %v1746
      %v1792 = vunpack.c.l.b16 %v1756
      %v1793 = vpack.c.b16 %v1762, %v1761
      %v1794 = vpack.c.b16 %v1764, %v1763
      %v1795 = vpack.c.b16 %v1766, %v1765
      %v1796 = vpack.c.b16 %v1768, %v1767
      %v1797 = vpack.c.b16 %v1770, %v1769
      %v1798 = vpack.c.b16 %v1772, %v1771
      %v1799 = vpack.c.b16 %v1774, %v1773
      %v1800 = vpack.c.b16 %v1776, %v1775
      %v1801 = vpack.c.b16 %v1778, %v1777
      %v1802 = vpack.c.b16 %v1780, %v1779
      %v1803 = vpack.c.b16 %v1782, %v1781
      %v1804 = vpack.c.b16 %v1784, %v1783
      %v1805 = vpack.c.b16 %v1786, %v1785
      %v1806 = vpack.c.b16 %v1788, %v1787
      %v1807 = vpack.c.b16 %v1790, %v1789
      %v1808 = vpack.c.b16 %v1792, %v1791
      %v1810 = vsel %vm480, %v1793, 0
      %v1813 = vsel %vm480, %v1794, 0
      %v1816 = vsel %vm480, %v1795, 0
      %v1819 = vsel %vm480, %v1796, 0
      %v1822 = vsel %vm480, %v1797, 0
      %v1825 = vsel %vm480, %v1798, 0
      %v1828 = vsel %vm480, %v1799, 0
      %v1831 = vsel %vm480, %v1800, 0
      %v1834 = vsel %vm480, %v1801, 0
      %v1837 = vsel %vm480, %v1802, 0
      %v1840 = vsel %vm480, %v1803, 0
      %v1843 = vsel %vm480, %v1804, 0
      %v1846 = vsel %vm480, %v1805, 0
      %v1849 = vsel %vm480, %v1806, 0
      %v1852 = vsel %vm480, %v1807, 0
      %v1855 = vsel %vm480, %v1808, 0
      %v1858 = vsel %vm529, %v1760, 0
      %1860 = vmatprep.subr.bf16.mxu0 0
      %1861 = vmatpush1.bf16.msra.mxu0 %v1858
      %1862 = vmatprep.subr.bf16.mxu0 0
      %1863 = vmatpush1.bf16.msra.mxu0 0
      %1864 = vmatprep.subr.bf16.mxu0 0
      %1865 = vmatpush1.bf16.msra.mxu0 0
      %1866 = vmatprep.subr.bf16.mxu0 0
      %1867 = vmatpush1.bf16.msra.mxu0 0
      %1868 = vmatprep.subr.bf16.mxu0 0
      %1869 = vmatpush1.bf16.msra.mxu0 0
      %1870 = vmatprep.subr.bf16.mxu0 0
      %1871 = vmatpush1.bf16.msra.mxu0 0
      %1872 = vmatprep.subr.bf16.mxu0 0
      %1873 = vmatpush1.bf16.msra.mxu0 0
      %1874 = vmatprep.subr.bf16.mxu0 0
      %1875 = vmatpush1.bf16.msra.mxu0 0
      %1876 = vmatprep.subr.bf16.mxu0 0
      %1877 = vmatpush1.bf16.msra.mxu0 0
      %1878 = vmatprep.subr.bf16.mxu0 0
      %1879 = vmatpush1.bf16.msra.mxu0 0
      %1880 = vmatprep.subr.bf16.mxu0 0
      %1881 = vmatpush1.bf16.msra.mxu0 0
      %1882 = vmatprep.subr.bf16.mxu0 0
      %1883 = vmatpush1.bf16.msra.mxu0 0
      %1884 = vmatprep.subr.bf16.mxu0 0
      %1885 = vmatpush1.bf16.msra.mxu0 0
      %1886 = vmatprep.subr.bf16.mxu0 0
      %1887 = vmatpush1.bf16.msra.mxu0 0
      %1888 = vmatprep.subr.bf16.mxu0 0
      %1889 = vmatpush1.bf16.msra.mxu0 0
      %1890 = vmatprep.subr.bf16.mxu0 0
      %1891 = vmatpush1.bf16.msra.mxu0 0
      %1892 = vmatprep.mubr.bf16.mxu0 0
      %1893 = vmatmul.mubr.bf16.gmra.mrb[0].mxu0 %v1810
      %v1894 = vpop.f32.mrb[0].mxu0
      %v1895 = vadd.f32 0.0, %v1894
      %v1896 = vpop.f32.mrb[0].mxu0
      %v1897 = vpop.f32.mrb[0].mxu0
      %v1898 = vadd.f32 0.0, %v1897
      %v1899 = vpop.f32.mrb[0].mxu0
      %1900 = vmatprep.mubr.bf16.mxu0 0
      %1901 = vmatmul.mubr.bf16.gmra.mrb[0].mxu0 %v1813
      %v1902 = vpop.f32.mrb[0].mxu0
      %v1903 = vadd.f32 0.0, %v1902
      %v1904 = vpop.f32.mrb[0].mxu0
      %v1905 = vpop.f32.mrb[0].mxu0
      %v1906 = vadd.f32 0.0, %v1905
      %v1907 = vpop.f32.mrb[0].mxu0
      %1908 = vmatprep.mubr.bf16.mxu0 0
      %1909 = vmatmul.mubr.bf16.gmra.mrb[0].mxu0 %v1816
      %v1910 = vpop.f32.mrb[0].mxu0
      %v1911 = vadd.f32 0.0, %v1910
      %v1912 = vpop.f32.mrb[0].mxu0
      %v1913 = vpop.f32.mrb[0].mxu0
      %v1914 = vadd.f32 0.0, %v1913
      %v1915 = vpop.f32.mrb[0].mxu0
      %1916 = vmatprep.mubr.bf16.mxu0 0
      %1917 = vmatmul.mubr.bf16.gmra.mrb[0].mxu0 %v1819
      %v1918 = vpop.f32.mrb[0].mxu0
      %v1919 = vadd.f32 0.0, %v1918
      %v1920 = vpop.f32.mrb[0].mxu0
      %v1921 = vpop.f32.mrb[0].mxu0
      %v1922 = vadd.f32 0.0, %v1921
      %v1923 = vpop.f32.mrb[0].mxu0
      %1924 = vmatprep.mubr.bf16.mxu0 0
      %1925 = vmatmul.mubr.bf16.gmra.mrb[0].mxu0 %v1822
      %v1926 = vpop.f32.mrb[0].mxu0
      %v1927 = vadd.f32 0.0, %v1926
      %v1928 = vpop.f32.mrb[0].mxu0
      %v1929 = vpop.f32.mrb[0].mxu0
      %v1930 = vadd.f32 0.0, %v1929
      %v1931 = vpop.f32.mrb[0].mxu0
      %1932 = vmatprep.mubr.bf16.mxu0 0
      %1933 = vmatmul.mubr.bf16.gmra.mrb[0].mxu0 %v1825
      %v1934 = vpop.f32.mrb[0].mxu0
      %v1935 = vadd.f32 0.0, %v1934
      %v1936 = vpop.f32.mrb[0].mxu0
      %v1937 = vpop.f32.mrb[0].mxu0
      %v1938 = vadd.f32 0.0, %v1937
      %v1939 = vpop.f32.mrb[0].mxu0
      %1940 = vmatprep.mubr.bf16.mxu0 0
      %1941 = vmatmul.mubr.bf16.gmra.mrb[0].mxu0 %v1828
      %v1942 = vpop.f32.mrb[0].mxu0
      %v1943 = vadd.f32 0.0, %v1942
      %v1944 = vpop.f32.mrb[0].mxu0
      %v1945 = vpop.f32.mrb[0].mxu0
      %v1946 = vadd.f32 0.0, %v1945
      %v1947 = vpop.f32.mrb[0].mxu0
      %1948 = vmatprep.mubr.bf16.mxu0 0
      %1949 = vmatmul.mubr.bf16.gmra.mrb[0].mxu0 %v1831
      %v1950 = vpop.f32.mrb[0].mxu0
      %v1951 = vadd.f32 0.0, %v1950
      %v1952 = vpop.f32.mrb[0].mxu0
      %v1953 = vpop.f32.mrb[0].mxu0
      %v1954 = vadd.f32 0.0, %v1953
      %v1955 = vpop.f32.mrb[0].mxu0
      %1956 = vmatprep.mubr.bf16.mxu0 0
      %1957 = vmatmul.mubr.bf16.gmra.mrb[0].mxu0 %v1834
      %v1958 = vpop.f32.mrb[0].mxu0
      %v1959 = vadd.f32 0.0, %v1958
      %v1960 = vpop.f32.mrb[0].mxu0
      %v1961 = vpop.f32.mrb[0].mxu0
      %v1962 = vadd.f32 0.0, %v1961
      %v1963 = vpop.f32.mrb[0].mxu0
      %1964 = vmatprep.mubr.bf16.mxu0 0
      %1965 = vmatmul.mubr.bf16.gmra.mrb[0].mxu0 %v1837
      %v1966 = vpop.f32.mrb[0].mxu0
      %v1967 = vadd.f32 0.0, %v1966
      %v1968 = vpop.f32.mrb[0].mxu0
      %v1969 = vpop.f32.mrb[0].mxu0
      %v1970 = vadd.f32 0.0, %v1969
      %v1971 = vpop.f32.mrb[0].mxu0
      %1972 = vmatprep.mubr.bf16.mxu0 0
      %1973 = vmatmul.mubr.bf16.gmra.mrb[0].mxu0 %v1840
      %v1974 = vpop.f32.mrb[0].mxu0
      %v1975 = vadd.f32 0.0, %v1974
      %v1976 = vpop.f32.mrb[0].mxu0
      %v1977 = vpop.f32.mrb[0].mxu0
      %v1978 = vadd.f32 0.0, %v1977
      %v1979 = vpop.f32.mrb[0].mxu0
      %1980 = vmatprep.mubr.bf16.mxu0 0
      %1981 = vmatmul.mubr.bf16.gmra.mrb[0].mxu0 %v1843
      %v1982 = vpop.f32.mrb[0].mxu0
      %v1983 = vadd.f32 0.0, %v1982
      %v1984 = vpop.f32.mrb[0].mxu0
      %v1985 = vpop.f32.mrb[0].mxu0
      %v1986 = vadd.f32 0.0, %v1985
      %v1987 = vpop.f32.mrb[0].mxu0
      %1988 = vmatprep.mubr.bf16.mxu0 0
      %1989 = vmatmul.mubr.bf16.gmra.mrb[0].mxu0 %v1846
      %v1990 = vpop.f32.mrb[0].mxu0
      %v1991 = vadd.f32 0.0, %v1990
      %v1992 = vpop.f32.mrb[0].mxu0
      %v1993 = vpop.f32.mrb[0].mxu0
      %v1994 = vadd.f32 0.0, %v1993
      %v1995 = vpop.f32.mrb[0].mxu0
      %1996 = vmatprep.mubr.bf16.mxu0 0
      %1997 = vmatmul.mubr.bf16.gmra.mrb[0].mxu0 %v1849
      %v1998 = vpop.f32.mrb[0].mxu0
      %v1999 = vadd.f32 0.0, %v1998
      %v2000 = vpop.f32.mrb[0].mxu0
      %v2001 = vpop.f32.mrb[0].mxu0
      %v2002 = vadd.f32 0.0, %v2001
      %v2003 = vpop.f32.mrb[0].mxu0
      %2004 = vmatprep.mubr.bf16.mxu0 0
      %2005 = vmatmul.mubr.bf16.gmra.mrb[0].mxu0 %v1852
      %v2006 = vpop.f32.mrb[0].mxu0
      %v2007 = vadd.f32 0.0, %v2006
      %v2008 = vpop.f32.mrb[0].mxu0
      %v2009 = vpop.f32.mrb[0].mxu0
      %v2010 = vadd.f32 0.0, %v2009
      %v2011 = vpop.f32.mrb[0].mxu0
      %2012 = vmatprep.mubr.bf16.mxu0 0
      %2013 = vmatmul.mubr.bf16.gmra.mrb[0].mxu0 %v1855
      %v2014 = vpop.f32.mrb[0].mxu0
      %v2015 = vadd.f32 0.0, %v2014
      %v2016 = vpop.f32.mrb[0].mxu0
      %v2017 = vpop.f32.mrb[0].mxu0
      %v2018 = vadd.f32 0.0, %v2017
      %v2019 = vpop.f32.mrb[0].mxu0
      %2020 = vdwg.mxu0
      %v2021 = vunpack.c.l.b16 %v1002
      %v2022 = vunpack.c.l.b16 %v1012
      %v2023 = vunpack.c.l.b16 %v1026
      %v2024 = vunpack.c.l.b16 %v1036
      %v2025 = vunpack.c.l.b16 %v1050
      %v2026 = vunpack.c.l.b16 %v1060
      %v2027 = vunpack.c.l.b16 %v1074
      %v2028 = vunpack.c.l.b16 %v1084
      %v2029 = vunpack.c.l.b16 %v1098
      %v2030 = vunpack.c.l.b16 %v1108
      %v2031 = vunpack.c.l.b16 %v1122
      %v2032 = vunpack.c.l.b16 %v1132
      %v2033 = vunpack.c.l.b16 %v1146
      %v2034 = vunpack.c.l.b16 %v1156
      %v2035 = vunpack.c.l.b16 %v1170
      %v2036 = vunpack.c.l.b16 %v1180
      %v2037 = vunpack.c.l.b16 %v1194
      %v2038 = vunpack.c.l.b16 %v1204
      %v2039 = vunpack.c.l.b16 %v1218
      %v2040 = vunpack.c.l.b16 %v1228
      %v2041 = vunpack.c.l.b16 %v1242
      %v2042 = vunpack.c.l.b16 %v1252
      %v2043 = vunpack.c.l.b16 %v1266
      %v2044 = vunpack.c.l.b16 %v1276
      %v2045 = vunpack.c.l.b16 %v1290
      %v2046 = vunpack.c.l.b16 %v1300
      %v2047 = vunpack.c.l.b16 %v1314
      %v2048 = vunpack.c.l.b16 %v1324
      %v2049 = vunpack.c.l.b16 %v1338
      %v2050 = vunpack.c.l.b16 %v1348
      %v2051 = vunpack.c.l.b16 %v1362
      %v2052 = vunpack.c.l.b16 %v1372
      %v2053 = vpack.c.b16 %v2022, %v2021
      %v2054 = vpack.c.b16 %v2024, %v2023
      %v2055 = vpack.c.b16 %v2026, %v2025
      %v2056 = vpack.c.b16 %v2028, %v2027
      %v2057 = vpack.c.b16 %v2030, %v2029
      %v2058 = vpack.c.b16 %v2032, %v2031
      %v2059 = vpack.c.b16 %v2034, %v2033
      %v2060 = vpack.c.b16 %v2036, %v2035
      %v2061 = vpack.c.b16 %v2038, %v2037
      %v2062 = vpack.c.b16 %v2040, %v2039
      %v2063 = vpack.c.b16 %v2042, %v2041
      %v2064 = vpack.c.b16 %v2044, %v2043
      %v2065 = vpack.c.b16 %v2046, %v2045
      %v2066 = vpack.c.b16 %v2048, %v2047
      %v2067 = vpack.c.b16 %v2050, %v2049
      %v2068 = vpack.c.b16 %v2052, %v2051
      %v2070 = vsel %vm480, %v2053, 0
      %v2073 = vsel %vm480, %v2054, 0
      %v2076 = vsel %vm480, %v2055, 0
      %v2079 = vsel %vm480, %v2056, 0
      %v2082 = vsel %vm480, %v2057, 0
      %v2085 = vsel %vm480, %v2058, 0
      %v2088 = vsel %vm480, %v2059, 0
      %v2091 = vsel %vm480, %v2060, 0
      %v2094 = vsel %vm480, %v2061, 0
      %v2097 = vsel %vm480, %v2062, 0
      %v2100 = vsel %vm480, %v2063, 0
      %v2103 = vsel %vm480, %v2064, 0
      %v2106 = vsel %vm480, %v2065, 0
      %v2109 = vsel %vm480, %v2066, 0
      %v2112 = vsel %vm480, %v2067, 0
      %v2115 = vsel %vm480, %v2068, 0
      %v2118 = vsel %vm529, %v1758, 0
      %2120 = vmatprep.subr.bf16.mxu0 0
      %2121 = vmatpush1.bf16.msra.mxu0 %v2118
      %2122 = vmatprep.subr.bf16.mxu0 0
      %2123 = vmatpush1.bf16.msra.mxu0 0
      %2124 = vmatprep.subr.bf16.mxu0 0
      %2125 = vmatpush1.bf16.msra.mxu0 0
      %2126 = vmatprep.subr.bf16.mxu0 0
      %2127 = vmatpush1.bf16.msra.mxu0 0
      %2128 = vmatprep.subr.bf16.mxu0 0
      %2129 = vmatpush1.bf16.msra.mxu0 0
      %2130 = vmatprep.subr.bf16.mxu0 0
      %2131 = vmatpush1.bf16.msra.mxu0 0
      %2132 = vmatprep.subr.bf16.mxu0 0
      %2133 = vmatpush1.bf16.msra.mxu0 0
      %2134 = vmatprep.subr.bf16.mxu0 0
      %2135 = vmatpush1.bf16.msra.mxu0 0
      %2136 = vmatprep.subr.bf16.mxu0 0
      %2137 = vmatpush1.bf16.msra.mxu0 0
      %2138 = vmatprep.subr.bf16.mxu0 0
      %2139 = vmatpush1.bf16.msra.mxu0 0
      %2140 = vmatprep.subr.bf16.mxu0 0
      %2141 = vmatpush1.bf16.msra.mxu0 0
      %2142 = vmatprep.subr.bf16.mxu0 0
      %2143 = vmatpush1.bf16.msra.mxu0 0
      %2144 = vmatprep.subr.bf16.mxu0 0
      %2145 = vmatpush1.bf16.msra.mxu0 0
      %2146 = vmatprep.subr.bf16.mxu0 0
      %2147 = vmatpush1.bf16.msra.mxu0 0
      %2148 = vmatprep.subr.bf16.mxu0 0
      %2149 = vmatpush1.bf16.msra.mxu0 0
      %2150 = vmatprep.subr.bf16.mxu0 0
      %2151 = vmatpush1.bf16.msra.mxu0 0
      %2152 = vmatprep.mubr.bf16.mxu0 0
      %2153 = vmatmul.mubr.bf16.gmra.mrb[0].mxu0 %v2070
      %v2154 = vpop.f32.mrb[0].mxu0
      %v2155 = vadd.f32 %v1895, %v2154
      %v2156 = vpop.f32.mrb[0].mxu0
      %v2157 = vpop.f32.mrb[0].mxu0
      %v2158 = vadd.f32 %v1898, %v2157
      %v2159 = vpop.f32.mrb[0].mxu0
      %2160 = vmatprep.mubr.bf16.mxu0 0
      %2161 = vmatmul.mubr.bf16.gmra.mrb[0].mxu0 %v2073
      %v2162 = vpop.f32.mrb[0].mxu0
      %v2163 = vadd.f32 %v1903, %v2162
      %v2164 = vpop.f32.mrb[0].mxu0
      %v2165 = vpop.f32.mrb[0].mxu0
      %v2166 = vadd.f32 %v1906, %v2165
      %v2167 = vpop.f32.mrb[0].mxu0
      %2168 = vmatprep.mubr.bf16.mxu0 0
      %2169 = vmatmul.mubr.bf16.gmra.mrb[0].mxu0 %v2076
      %v2170 = vpop.f32.mrb[0].mxu0
      %v2171 = vadd.f32 %v1911, %v2170
      %v2172 = vpop.f32.mrb[0].mxu0
      %v2173 = vpop.f32.mrb[0].mxu0
      %v2174 = vadd.f32 %v1914, %v2173
      %v2175 = vpop.f32.mrb[0].mxu0
      %2176 = vmatprep.mubr.bf16.mxu0 0
      %2177 = vmatmul.mubr.bf16.gmra.mrb[0].mxu0 %v2079
      %v2178 = vpop.f32.mrb[0].mxu0
      %v2179 = vadd.f32 %v1919, %v2178
      %v2180 = vpop.f32.mrb[0].mxu0
      %v2181 = vpop.f32.mrb[0].mxu0
      %v2182 = vadd.f32 %v1922, %v2181
      %v2183 = vpop.f32.mrb[0].mxu0
      %2184 = vmatprep.mubr.bf16.mxu0 0
      %2185 = vmatmul.mubr.bf16.gmra.mrb[0].mxu0 %v2082
      %v2186 = vpop.f32.mrb[0].mxu0
      %v2187 = vadd.f32 %v1927, %v2186
      %v2188 = vpop.f32.mrb[0].mxu0
      %v2189 = vpop.f32.mrb[0].mxu0
      %v2190 = vadd.f32 %v1930, %v2189
      %v2191 = vpop.f32.mrb[0].mxu0
      %2192 = vmatprep.mubr.bf16.mxu0 0
      %2193 = vmatmul.mubr.bf16.gmra.mrb[0].mxu0 %v2085
      %v2194 = vpop.f32.mrb[0].mxu0
      %v2195 = vadd.f32 %v1935, %v2194
      %v2196 = vpop.f32.mrb[0].mxu0
      %v2197 = vpop.f32.mrb[0].mxu0
      %v2198 = vadd.f32 %v1938, %v2197
      %v2199 = vpop.f32.mrb[0].mxu0
      %2200 = vmatprep.mubr.bf16.mxu0 0
      %2201 = vmatmul.mubr.bf16.gmra.mrb[0].mxu0 %v2088
      %v2202 = vpop.f32.mrb[0].mxu0
      %v2203 = vadd.f32 %v1943, %v2202
      %v2204 = vpop.f32.mrb[0].mxu0
      %v2205 = vpop.f32.mrb[0].mxu0
      %v2206 = vadd.f32 %v1946, %v2205
      %v2207 = vpop.f32.mrb[0].mxu0
      %2208 = vmatprep.mubr.bf16.mxu0 0
      %2209 = vmatmul.mubr.bf16.gmra.mrb[0].mxu0 %v2091
      %v2210 = vpop.f32.mrb[0].mxu0
      %v2211 = vadd.f32 %v1951, %v2210
      %v2212 = vpop.f32.mrb[0].mxu0
      %v2213 = vpop.f32.mrb[0].mxu0
      %v2214 = vadd.f32 %v1954, %v2213
      %v2215 = vpop.f32.mrb[0].mxu0
      %2216 = vmatprep.mubr.bf16.mxu0 0
      %2217 = vmatmul.mubr.bf16.gmra.mrb[0].mxu0 %v2094
      %v2218 = vpop.f32.mrb[0].mxu0
      %v2219 = vadd.f32 %v1959, %v2218
      %v2220 = vpop.f32.mrb[0].mxu0
      %v2221 = vpop.f32.mrb[0].mxu0
      %v2222 = vadd.f32 %v1962, %v2221
      %v2223 = vpop.f32.mrb[0].mxu0
      %2224 = vmatprep.mubr.bf16.mxu0 0
      %2225 = vmatmul.mubr.bf16.gmra.mrb[0].mxu0 %v2097
      %v2226 = vpop.f32.mrb[0].mxu0
      %v2227 = vadd.f32 %v1967, %v2226
      %v2228 = vpop.f32.mrb[0].mxu0
      %v2229 = vpop.f32.mrb[0].mxu0
      %v2230 = vadd.f32 %v1970, %v2229
      %v2231 = vpop.f32.mrb[0].mxu0
      %2232 = vmatprep.mubr.bf16.mxu0 0
      %2233 = vmatmul.mubr.bf16.gmra.mrb[0].mxu0 %v2100
      %v2234 = vpop.f32.mrb[0].mxu0
      %v2235 = vadd.f32 %v1975, %v2234
      %v2236 = vpop.f32.mrb[0].mxu0
      %v2237 = vpop.f32.mrb[0].mxu0
      %v2238 = vadd.f32 %v1978, %v2237
      %v2239 = vpop.f32.mrb[0].mxu0
      %2240 = vmatprep.mubr.bf16.mxu0 0
      %2241 = vmatmul.mubr.bf16.gmra.mrb[0].mxu0 %v2103
      %v2242 = vpop.f32.mrb[0].mxu0
      %v2243 = vadd.f32 %v1983, %v2242
      %v2244 = vpop.f32.mrb[0].mxu0
      %v2245 = vpop.f32.mrb[0].mxu0
      %v2246 = vadd.f32 %v1986, %v2245
      %v2247 = vpop.f32.mrb[0].mxu0
      %2248 = vmatprep.mubr.bf16.mxu0 0
      %2249 = vmatmul.mubr.bf16.gmra.mrb[0].mxu0 %v2106
      %v2250 = vpop.f32.mrb[0].mxu0
      %v2251 = vadd.f32 %v1991, %v2250
      %v2252 = vpop.f32.mrb[0].mxu0
      %v2253 = vpop.f32.mrb[0].mxu0
      %v2254 = vadd.f32 %v1994, %v2253
      %v2255 = vpop.f32.mrb[0].mxu0
      %2256 = vmatprep.mubr.bf16.mxu0 0
      %2257 = vmatmul.mubr.bf16.gmra.mrb[0].mxu0 %v2109
      %v2258 = vpop.f32.mrb[0].mxu0
      %v2259 = vadd.f32 %v1999, %v2258
      %v2260 = vpop.f32.mrb[0].mxu0
      %v2261 = vpop.f32.mrb[0].mxu0
      %v2262 = vadd.f32 %v2002, %v2261
      %v2263 = vpop.f32.mrb[0].mxu0
      %2264 = vmatprep.mubr.bf16.mxu0 0
      %2265 = vmatmul.mubr.bf16.gmra.mrb[0].mxu0 %v2112
      %v2266 = vpop.f32.mrb[0].mxu0
      %v2267 = vadd.f32 %v2007, %v2266
      %v2268 = vpop.f32.mrb[0].mxu0
      %v2269 = vpop.f32.mrb[0].mxu0
      %v2270 = vadd.f32 %v2010, %v2269
      %v2271 = vpop.f32.mrb[0].mxu0
      %2272 = vmatprep.mubr.bf16.mxu0 0
      %2273 = vmatmul.mubr.bf16.gmra.mrb[0].mxu0 %v2115
      %v2274 = vpop.f32.mrb[0].mxu0
      %v2275 = vadd.f32 %v2015, %v2274
      %v2276 = vpop.f32.mrb[0].mxu0
      %v2277 = vpop.f32.mrb[0].mxu0
      %v2278 = vadd.f32 %v2018, %v2277
      %v2279 = vpop.f32.mrb[0].mxu0
      %2280 = vdwg.mxu0
      %v2281 = vadd.f32 %v860, %v2155
      %v2282 = vadd.f32 %v863, %v2158
      %v2283 = vadd.f32 %v868, %v2163
      %v2284 = vadd.f32 %v871, %v2166
      %v2285 = vadd.f32 %v876, %v2171
      %v2286 = vadd.f32 %v879, %v2174
      %v2287 = vadd.f32 %v884, %v2179
      %v2288 = vadd.f32 %v887, %v2182
      %v2289 = vadd.f32 %v892, %v2187
      %v2290 = vadd.f32 %v895, %v2190
      %v2291 = vadd.f32 %v900, %v2195
      %v2292 = vadd.f32 %v903, %v2198
      %v2293 = vadd.f32 %v908, %v2203
      %v2294 = vadd.f32 %v911, %v2206
      %v2295 = vadd.f32 %v916, %v2211
      %v2296 = vadd.f32 %v919, %v2214
      %v2297 = vadd.f32 %v924, %v2219
      %v2298 = vadd.f32 %v927, %v2222
      %v2299 = vadd.f32 %v932, %v2227
      %v2300 = vadd.f32 %v935, %v2230
      %v2301 = vadd.f32 %v940, %v2235
      %v2302 = vadd.f32 %v943, %v2238
      %v2303 = vadd.f32 %v948, %v2243
      %v2304 = vadd.f32 %v951, %v2246
      %v2305 = vadd.f32 %v956, %v2251
      %v2306 = vadd.f32 %v959, %v2254
      %v2307 = vadd.f32 %v964, %v2259
      %v2308 = vadd.f32 %v967, %v2262
      %v2309 = vadd.f32 %v972, %v2267
      %v2310 = vadd.f32 %v975, %v2270
      %v2311 = vadd.f32 %v980, %v2275
      %v2312 = vadd.f32 %v983, %v2278
      %vm2329 = vcmask 1042432
      %vm2330 = vcmask 1046532
      %vm2331 = vmor %vm2329, %vm2330
      %v2332 = vrot.slane %v290, 5
      %v2333 = vrot.slane %v2332, 4
      %v2334 = vrot.slane %v291, 5
      %v2335 = vsel %vm2331, %v2333, %v2334
      %v2336 = vrot.slane %v2334, 4
      %v2337 = vrot.slane %v292, 5
      %v2338 = vsel %vm2331, %v2336, %v2337
      %v2339 = vrot.slane %v293, 5
      %v2340 = vrot.slane %v2339, 4
      %v2341 = vrot.slane %v294, 5
      %v2342 = vsel %vm2331, %v2340, %v2341
      %v2343 = vrot.slane %v2341, 4
      %v2344 = vrot.slane %v295, 5
      %v2345 = vsel %vm2331, %v2343, %v2344
      %v2346 = vrot.slane %v296, 5
      %v2347 = vrot.slane %v2346, 4
      %v2348 = vrot.slane %v297, 5
      %v2349 = vsel %vm2331, %v2347, %v2348
      %v2350 = vrot.slane %v2348, 4
      %v2351 = vrot.slane %v298, 5
      %v2352 = vsel %vm2331, %v2350, %v2351
      %v2353 = vrot.slane %v299, 5
      %v2354 = vrot.slane %v2353, 4
      %v2355 = vrot.slane %v300, 5
      %v2356 = vsel %vm2331, %v2354, %v2355
      %v2357 = vrot.slane %v2355, 4
      %v2358 = vrot.slane %v301, 5
      %v2359 = vsel %vm2331, %v2357, %v2358
      %v2360 = vrot.slane %v302, 5
      %v2361 = vrot.slane %v2360, 4
      %v2362 = vrot.slane %v303, 5
      %v2363 = vsel %vm2331, %v2361, %v2362
      %v2364 = vrot.slane %v2362, 4
      %v2365 = vrot.slane %v304, 5
      %v2366 = vsel %vm2331, %v2364, %v2365
      %v2367 = vrot.slane %v305, 5
      %v2368 = vrot.slane %v2367, 4
      %v2369 = vrot.slane %v306, 5
      %v2370 = vsel %vm2331, %v2368, %v2369
      %v2371 = vrot.slane %v2369, 4
      %v2372 = vrot.slane %v307, 5
      %v2373 = vsel %vm2331, %v2371, %v2372
      %v2374 = vrot.slane %v308, 5
      %v2375 = vrot.slane %v2374, 4
      %v2376 = vrot.slane %v309, 5
      %v2377 = vsel %vm2331, %v2375, %v2376
      %v2378 = vrot.slane %v2376, 4
      %v2379 = vrot.slane %v310, 5
      %v2380 = vsel %vm2331, %v2378, %v2379
      %v2381 = vrot.slane %v311, 5
      %v2382 = vrot.slane %v2381, 4
      %v2383 = vrot.slane %v312, 5
      %v2384 = vsel %vm2331, %v2382, %v2383
      %v2385 = vrot.slane %v2383, 4
      %v2386 = vrot.slane %v313, 5
      %v2387 = vsel %vm2331, %v2385, %v2386
      %v2388 = vrot.slane %v314, 5
      %v2389 = vrot.slane %v2388, 4
      %v2390 = vrot.slane %v315, 5
      %v2391 = vsel %vm2331, %v2389, %v2390
      %v2392 = vrot.slane %v2390, 4
      %v2393 = vrot.slane %v316, 5
      %v2394 = vsel %vm2331, %v2392, %v2393
      %v2395 = vrot.slane %v317, 5
      %v2396 = vrot.slane %v2395, 4
      %v2397 = vrot.slane %v318, 5
      %v2398 = vsel %vm2331, %v2396, %v2397
      %v2399 = vrot.slane %v2397, 4
      %v2400 = vrot.slane %v319, 5
      %v2401 = vsel %vm2331, %v2399, %v2400
      %v2402 = vrot.slane %v320, 5
      %v2403 = vrot.slane %v2402, 4
      %v2404 = vrot.slane %v321, 5
      %v2405 = vsel %vm2331, %v2403, %v2404
      %v2406 = vrot.slane %v2404, 4
      %v2407 = vrot.slane %v322, 5
      %v2408 = vsel %vm2331, %v2406, %v2407
      %v2409 = vrot.slane %v323, 5
      %v2410 = vrot.slane %v2409, 4
      %v2411 = vrot.slane %v324, 5
      %v2412 = vsel %vm2331, %v2410, %v2411
      %v2413 = vrot.slane %v2411, 4
      %v2414 = vrot.slane %v325, 5
      %v2415 = vsel %vm2331, %v2413, %v2414
      %v2416 = vrot.slane %v326, 5
      %v2417 = vrot.slane %v2416, 4
      %v2418 = vrot.slane %v327, 5
      %v2419 = vsel %vm2331, %v2417, %v2418
      %v2420 = vrot.slane %v2418, 4
      %v2421 = vrot.slane %v328, 5
      %v2422 = vsel %vm2331, %v2420, %v2421
      %v2423 = vrot.slane %v329, 5
      %v2424 = vrot.slane %v2423, 4
      %v2425 = vrot.slane %v330, 5
      %v2426 = vsel %vm2331, %v2424, %v2425
      %v2427 = vrot.slane %v2425, 4
      %v2428 = vrot.slane %v331, 5
      %v2429 = vsel %vm2331, %v2427, %v2428
      %v2430 = vrot.slane %v332, 5
      %v2431 = vrot.slane %v2430, 4
      %v2432 = vrot.slane %v333, 5
      %v2433 = vsel %vm2331, %v2431, %v2432
      %v2434 = vrot.slane %v2432, 4
      %v2435 = vrot.slane %v334, 5
      %v2436 = vsel %vm2331, %v2434, %v2435
      %v2437 = vrot.slane %v335, 5
      %v2438 = vrot.slane %v2437, 4
      %v2439 = vrot.slane %v336, 5
      %v2440 = vsel %vm2331, %v2438, %v2439
      %v2441 = vrot.slane %v2439, 4
      %v2442 = vrot.slane %v337, 5
      %v2443 = vsel %vm2331, %v2441, %v2442
      %v2460 = vrot.slane %v344, 5
      %v2461 = vrot.slane %v2460, 4
      %v2462 = vrot.slane %v345, 5
      %v2463 = vsel %vm2331, %v2461, %v2462
      %v2464 = vrot.slane %v2462, 4
      %v2465 = vrot.slane %v346, 5
      %v2466 = vsel %vm2331, %v2464, %v2465
      %v2467 = vrot.slane %v347, 5
      %v2468 = vrot.slane %v2467, 4
      %v2469 = vrot.slane %v348, 5
      %v2470 = vsel %vm2331, %v2468, %v2469
      %v2471 = vrot.slane %v2469, 4
      %v2472 = vrot.slane %v349, 5
      %v2473 = vsel %vm2331, %v2471, %v2472
      %v2474 = vrot.slane %v350, 5
      %v2475 = vrot.slane %v2474, 4
      %v2476 = vrot.slane %v351, 5
      %v2477 = vsel %vm2331, %v2475, %v2476
      %v2478 = vrot.slane %v2476, 4
      %v2479 = vrot.slane %v352, 5
      %v2480 = vsel %vm2331, %v2478, %v2479
      %v2481 = vrot.slane %v353, 5
      %v2482 = vrot.slane %v2481, 4
      %v2483 = vrot.slane %v354, 5
      %v2484 = vsel %vm2331, %v2482, %v2483
      %v2485 = vrot.slane %v2483, 4
      %v2486 = vrot.slane %v355, 5
      %v2487 = vsel %vm2331, %v2485, %v2486
      %v2488 = vrot.slane %v356, 5
      %v2489 = vrot.slane %v2488, 4
      %v2490 = vrot.slane %v357, 5
      %v2491 = vsel %vm2331, %v2489, %v2490
      %v2492 = vrot.slane %v2490, 4
      %v2493 = vrot.slane %v358, 5
      %v2494 = vsel %vm2331, %v2492, %v2493
      %v2495 = vrot.slane %v359, 5
      %v2496 = vrot.slane %v2495, 4
      %v2497 = vrot.slane %v360, 5
      %v2498 = vsel %vm2331, %v2496, %v2497
      %v2499 = vrot.slane %v2497, 4
      %v2500 = vrot.slane %v361, 5
      %v2501 = vsel %vm2331, %v2499, %v2500
      %v2502 = vrot.slane %v362, 5
      %v2503 = vrot.slane %v2502, 4
      %v2504 = vrot.slane %v363, 5
      %v2505 = vsel %vm2331, %v2503, %v2504
      %v2506 = vrot.slane %v2504, 4
      %v2507 = vrot.slane %v364, 5
      %v2508 = vsel %vm2331, %v2506, %v2507
      %v2509 = vrot.slane %v365, 5
      %v2510 = vrot.slane %v2509, 4
      %v2511 = vrot.slane %v366, 5
      %v2512 = vsel %vm2331, %v2510, %v2511
      %v2513 = vrot.slane %v2511, 4
      %v2514 = vrot.slane %v367, 5
      %v2515 = vsel %vm2331, %v2513, %v2514
      %v2516 = vrot.slane %v368, 5
      %v2517 = vrot.slane %v2516, 4
      %v2518 = vrot.slane %v369, 5
      %v2519 = vsel %vm2331, %v2517, %v2518
      %v2520 = vrot.slane %v2518, 4
      %v2521 = vrot.slane %v370, 5
      %v2522 = vsel %vm2331, %v2520, %v2521
      %v2523 = vrot.slane %v371, 5
      %v2524 = vrot.slane %v2523, 4
      %v2525 = vrot.slane %v372, 5
      %v2526 = vsel %vm2331, %v2524, %v2525
      %v2527 = vrot.slane %v2525, 4
      %v2528 = vrot.slane %v373, 5
      %v2529 = vsel %vm2331, %v2527, %v2528
      %v2530 = vrot.slane %v374, 5
      %v2531 = vrot.slane %v2530, 4
      %v2532 = vrot.slane %v375, 5
      %v2533 = vsel %vm2331, %v2531, %v2532
      %v2534 = vrot.slane %v2532, 4
      %v2535 = vrot.slane %v376, 5
      %v2536 = vsel %vm2331, %v2534, %v2535
      %v2537 = vrot.slane %v377, 5
      %v2538 = vrot.slane %v2537, 4
      %v2539 = vrot.slane %v378, 5
      %v2540 = vsel %vm2331, %v2538, %v2539
      %v2541 = vrot.slane %v2539, 4
      %v2542 = vrot.slane %v379, 5
      %v2543 = vsel %vm2331, %v2541, %v2542
      %v2544 = vrot.slane %v380, 5
      %v2545 = vrot.slane %v2544, 4
      %v2546 = vrot.slane %v381, 5
      %v2547 = vsel %vm2331, %v2545, %v2546
      %v2548 = vrot.slane %v2546, 4
      %v2549 = vrot.slane %v382, 5
      %v2550 = vsel %vm2331, %v2548, %v2549
      %v2551 = vrot.slane %v383, 5
      %v2552 = vrot.slane %v2551, 4
      %v2553 = vrot.slane %v384, 5
      %v2554 = vsel %vm2331, %v2552, %v2553
      %v2555 = vrot.slane %v2553, 4
      %v2556 = vrot.slane %v385, 5
      %v2557 = vsel %vm2331, %v2555, %v2556
      %v2558 = vrot.slane %v386, 5
      %v2559 = vrot.slane %v2558, 4
      %v2560 = vrot.slane %v387, 5
      %v2561 = vsel %vm2331, %v2559, %v2560
      %v2562 = vrot.slane %v2560, 4
      %v2563 = vrot.slane %v388, 5
      %v2564 = vsel %vm2331, %v2562, %v2563
      %v2565 = vrot.slane %v389, 5
      %v2566 = vrot.slane %v2565, 4
      %v2567 = vrot.slane %v390, 5
      %v2568 = vsel %vm2331, %v2566, %v2567
      %v2569 = vrot.slane %v2567, 4
      %v2570 = vrot.slane %v391, 5
      %v2571 = vsel %vm2331, %v2569, %v2570
      %s2572 = scalar_lea.vmem %s2, 4
      %v2573 = vld [vmem:[%s2572] sm:$0x3]
      %s2574 = scalar_lea.vmem %s3, 4
      %v2575 = vld [vmem:[%s2574] sm:$0x3]
      %v2576 = vunpack.c.l.b16 %v2463
      %v2577 = vunpack.c.l.b16 %v2466
      %v2578 = vunpack.c.l.b16 %v2470
      %v2579 = vunpack.c.l.b16 %v2473
      %v2580 = vunpack.c.l.b16 %v2477
      %v2581 = vunpack.c.l.b16 %v2480
      %v2582 = vunpack.c.l.b16 %v2484
      %v2583 = vunpack.c.l.b16 %v2487
      %v2584 = vunpack.c.l.b16 %v2491
      %v2585 = vunpack.c.l.b16 %v2494
      %v2586 = vunpack.c.l.b16 %v2498
      %v2587 = vunpack.c.l.b16 %v2501
      %v2588 = vunpack.c.l.b16 %v2505
      %v2589 = vunpack.c.l.b16 %v2508
      %v2590 = vunpack.c.l.b16 %v2512
      %v2591 = vunpack.c.l.b16 %v2515
      %v2592 = vunpack.c.l.b16 %v2519
      %v2593 = vunpack.c.l.b16 %v2522
      %v2594 = vunpack.c.l.b16 %v2526
      %v2595 = vunpack.c.l.b16 %v2529
      %v2596 = vunpack.c.l.b16 %v2533
      %v2597 = vunpack.c.l.b16 %v2536
      %v2598 = vunpack.c.l.b16 %v2540
      %v2599 = vunpack.c.l.b16 %v2543
      %v2600 = vunpack.c.l.b16 %v2547
      %v2601 = vunpack.c.l.b16 %v2550
      %v2602 = vunpack.c.l.b16 %v2554
      %v2603 = vunpack.c.l.b16 %v2557
      %v2604 = vunpack.c.l.b16 %v2561
      %v2605 = vunpack.c.l.b16 %v2564
      %v2606 = vunpack.c.l.b16 %v2568
      %v2607 = vunpack.c.l.b16 %v2571
      %v2608 = vpack.c.b16 %v2577, %v2576
      %v2609 = vpack.c.b16 %v2579, %v2578
      %v2610 = vpack.c.b16 %v2581, %v2580
      %v2611 = vpack.c.b16 %v2583, %v2582
      %v2612 = vpack.c.b16 %v2585, %v2584
      %v2613 = vpack.c.b16 %v2587, %v2586
      %v2614 = vpack.c.b16 %v2589, %v2588
      %v2615 = vpack.c.b16 %v2591, %v2590
      %v2616 = vpack.c.b16 %v2593, %v2592
      %v2617 = vpack.c.b16 %v2595, %v2594
      %v2618 = vpack.c.b16 %v2597, %v2596
      %v2619 = vpack.c.b16 %v2599, %v2598
      %v2620 = vpack.c.b16 %v2601, %v2600
      %v2621 = vpack.c.b16 %v2603, %v2602
      %v2622 = vpack.c.b16 %v2605, %v2604
      %v2623 = vpack.c.b16 %v2607, %v2606
      %v2625 = vsel %vm480, %v2608, 0
      %v2628 = vsel %vm480, %v2609, 0
      %v2631 = vsel %vm480, %v2610, 0
      %v2634 = vsel %vm480, %v2611, 0
      %v2637 = vsel %vm480, %v2612, 0
      %v2640 = vsel %vm480, %v2613, 0
      %v2643 = vsel %vm480, %v2614, 0
      %v2646 = vsel %vm480, %v2615, 0
      %v2649 = vsel %vm480, %v2616, 0
      %v2652 = vsel %vm480, %v2617, 0
      %v2655 = vsel %vm480, %v2618, 0
      %v2658 = vsel %vm480, %v2619, 0
      %v2661 = vsel %vm480, %v2620, 0
      %v2664 = vsel %vm480, %v2621, 0
      %v2667 = vsel %vm480, %v2622, 0
      %v2670 = vsel %vm480, %v2623, 0
      %v2673 = vsel %vm529, %v2575, 0
      %2675 = vmatprep.subr.bf16.mxu0 0
      %2676 = vmatpush1.bf16.msra.mxu0 %v2673
      %2677 = vmatprep.subr.bf16.mxu0 0
      %2678 = vmatpush1.bf16.msra.mxu0 0
      %2679 = vmatprep.subr.bf16.mxu0 0
      %2680 = vmatpush1.bf16.msra.mxu0 0
      %2681 = vmatprep.subr.bf16.mxu0 0
      %2682 = vmatpush1.bf16.msra.mxu0 0
      %2683 = vmatprep.subr.bf16.mxu0 0
      %2684 = vmatpush1.bf16.msra.mxu0 0
      %2685 = vmatprep.subr.bf16.mxu0 0
      %2686 = vmatpush1.bf16.msra.mxu0 0
      %2687 = vmatprep.subr.bf16.mxu0 0
      %2688 = vmatpush1.bf16.msra.mxu0 0
      %2689 = vmatprep.subr.bf16.mxu0 0
      %2690 = vmatpush1.bf16.msra.mxu0 0
      %2691 = vmatprep.subr.bf16.mxu0 0
      %2692 = vmatpush1.bf16.msra.mxu0 0
      %2693 = vmatprep.subr.bf16.mxu0 0
      %2694 = vmatpush1.bf16.msra.mxu0 0
      %2695 = vmatprep.subr.bf16.mxu0 0
      %2696 = vmatpush1.bf16.msra.mxu0 0
      %2697 = vmatprep.subr.bf16.mxu0 0
      %2698 = vmatpush1.bf16.msra.mxu0 0
      %2699 = vmatprep.subr.bf16.mxu0 0
      %2700 = vmatpush1.bf16.msra.mxu0 0
      %2701 = vmatprep.subr.bf16.mxu0 0
      %2702 = vmatpush1.bf16.msra.mxu0 0
      %2703 = vmatprep.subr.bf16.mxu0 0
      %2704 = vmatpush1.bf16.msra.mxu0 0
      %2705 = vmatprep.subr.bf16.mxu0 0
      %2706 = vmatpush1.bf16.msra.mxu0 0
      %2707 = vmatprep.mubr.bf16.mxu0 0
      %2708 = vmatmul.mubr.bf16.gmra.mrb[0].mxu0 %v2625
      %v2709 = vpop.f32.mrb[0].mxu0
      %v2710 = vadd.f32 0.0, %v2709
      %v2711 = vpop.f32.mrb[0].mxu0
      %v2712 = vpop.f32.mrb[0].mxu0
      %v2713 = vadd.f32 0.0, %v2712
      %v2714 = vpop.f32.mrb[0].mxu0
      %2715 = vmatprep.mubr.bf16.mxu0 0
      %2716 = vmatmul.mubr.bf16.gmra.mrb[0].mxu0 %v2628
      %v2717 = vpop.f32.mrb[0].mxu0
      %v2718 = vadd.f32 0.0, %v2717
      %v2719 = vpop.f32.mrb[0].mxu0
      %v2720 = vpop.f32.mrb[0].mxu0
      %v2721 = vadd.f32 0.0, %v2720
      %v2722 = vpop.f32.mrb[0].mxu0
      %2723 = vmatprep.mubr.bf16.mxu0 0
      %2724 = vmatmul.mubr.bf16.gmra.mrb[0].mxu0 %v2631
      %v2725 = vpop.f32.mrb[0].mxu0
      %v2726 = vadd.f32 0.0, %v2725
      %v2727 = vpop.f32.mrb[0].mxu0
      %v2728 = vpop.f32.mrb[0].mxu0
      %v2729 = vadd.f32 0.0, %v2728
      %v2730 = vpop.f32.mrb[0].mxu0
      %2731 = vmatprep.mubr.bf16.mxu0 0
      %2732 = vmatmul.mubr.bf16.gmra.mrb[0].mxu0 %v2634
      %v2733 = vpop.f32.mrb[0].mxu0
      %v2734 = vadd.f32 0.0, %v2733
      %v2735 = vpop.f32.mrb[0].mxu0
      %v2736 = vpop.f32.mrb[0].mxu0
      %v2737 = vadd.f32 0.0, %v2736
      %v2738 = vpop.f32.mrb[0].mxu0
      %2739 = vmatprep.mubr.bf16.mxu0 0
      %2740 = vmatmul.mubr.bf16.gmra.mrb[0].mxu0 %v2637
      %v2741 = vpop.f32.mrb[0].mxu0
      %v2742 = vadd.f32 0.0, %v2741
      %v2743 = vpop.f32.mrb[0].mxu0
      %v2744 = vpop.f32.mrb[0].mxu0
      %v2745 = vadd.f32 0.0, %v2744
      %v2746 = vpop.f32.mrb[0].mxu0
      %2747 = vmatprep.mubr.bf16.mxu0 0
      %2748 = vmatmul.mubr.bf16.gmra.mrb[0].mxu0 %v2640
      %v2749 = vpop.f32.mrb[0].mxu0
      %v2750 = vadd.f32 0.0, %v2749
      %v2751 = vpop.f32.mrb[0].mxu0
      %v2752 = vpop.f32.mrb[0].mxu0
      %v2753 = vadd.f32 0.0, %v2752
      %v2754 = vpop.f32.mrb[0].mxu0
      %2755 = vmatprep.mubr.bf16.mxu0 0
      %2756 = vmatmul.mubr.bf16.gmra.mrb[0].mxu0 %v2643
      %v2757 = vpop.f32.mrb[0].mxu0
      %v2758 = vadd.f32 0.0, %v2757
      %v2759 = vpop.f32.mrb[0].mxu0
      %v2760 = vpop.f32.mrb[0].mxu0
      %v2761 = vadd.f32 0.0, %v2760
      %v2762 = vpop.f32.mrb[0].mxu0
      %2763 = vmatprep.mubr.bf16.mxu0 0
      %2764 = vmatmul.mubr.bf16.gmra.mrb[0].mxu0 %v2646
      %v2765 = vpop.f32.mrb[0].mxu0
      %v2766 = vadd.f32 0.0, %v2765
      %v2767 = vpop.f32.mrb[0].mxu0
      %v2768 = vpop.f32.mrb[0].mxu0
      %v2769 = vadd.f32 0.0, %v2768
      %v2770 = vpop.f32.mrb[0].mxu0
      %2771 = vmatprep.mubr.bf16.mxu0 0
      %2772 = vmatmul.mubr.bf16.gmra.mrb[0].mxu0 %v2649
      %v2773 = vpop.f32.mrb[0].mxu0
      %v2774 = vadd.f32 0.0, %v2773
      %v2775 = vpop.f32.mrb[0].mxu0
      %v2776 = vpop.f32.mrb[0].mxu0
      %v2777 = vadd.f32 0.0, %v2776
      %v2778 = vpop.f32.mrb[0].mxu0
      %2779 = vmatprep.mubr.bf16.mxu0 0
      %2780 = vmatmul.mubr.bf16.gmra.mrb[0].mxu0 %v2652
      %v2781 = vpop.f32.mrb[0].mxu0
      %v2782 = vadd.f32 0.0, %v2781
      %v2783 = vpop.f32.mrb[0].mxu0
      %v2784 = vpop.f32.mrb[0].mxu0
      %v2785 = vadd.f32 0.0, %v2784
      %v2786 = vpop.f32.mrb[0].mxu0
      %2787 = vmatprep.mubr.bf16.mxu0 0
      %2788 = vmatmul.mubr.bf16.gmra.mrb[0].mxu0 %v2655
      %v2789 = vpop.f32.mrb[0].mxu0
      %v2790 = vadd.f32 0.0, %v2789
      %v2791 = vpop.f32.mrb[0].mxu0
      %v2792 = vpop.f32.mrb[0].mxu0
      %v2793 = vadd.f32 0.0, %v2792
      %v2794 = vpop.f32.mrb[0].mxu0
      %2795 = vmatprep.mubr.bf16.mxu0 0
      %2796 = vmatmul.mubr.bf16.gmra.mrb[0].mxu0 %v2658
      %v2797 = vpop.f32.mrb[0].mxu0
      %v2798 = vadd.f32 0.0, %v2797
      %v2799 = vpop.f32.mrb[0].mxu0
      %v2800 = vpop.f32.mrb[0].mxu0
      %v2801 = vadd.f32 0.0, %v2800
      %v2802 = vpop.f32.mrb[0].mxu0
      %2803 = vmatprep.mubr.bf16.mxu0 0
      %2804 = vmatmul.mubr.bf16.gmra.mrb[0].mxu0 %v2661
      %v2805 = vpop.f32.mrb[0].mxu0
      %v2806 = vadd.f32 0.0, %v2805
      %v2807 = vpop.f32.mrb[0].mxu0
      %v2808 = vpop.f32.mrb[0].mxu0
      %v2809 = vadd.f32 0.0, %v2808
      %v2810 = vpop.f32.mrb[0].mxu0
      %2811 = vmatprep.mubr.bf16.mxu0 0
      %2812 = vmatmul.mubr.bf16.gmra.mrb[0].mxu0 %v2664
      %v2813 = vpop.f32.mrb[0].mxu0
      %v2814 = vadd.f32 0.0, %v2813
      %v2815 = vpop.f32.mrb[0].mxu0
      %v2816 = vpop.f32.mrb[0].mxu0
      %v2817 = vadd.f32 0.0, %v2816
      %v2818 = vpop.f32.mrb[0].mxu0
      %2819 = vmatprep.mubr.bf16.mxu0 0
      %2820 = vmatmul.mubr.bf16.gmra.mrb[0].mxu0 %v2667
      %v2821 = vpop.f32.mrb[0].mxu0
      %v2822 = vadd.f32 0.0, %v2821
      %v2823 = vpop.f32.mrb[0].mxu0
      %v2824 = vpop.f32.mrb[0].mxu0
      %v2825 = vadd.f32 0.0, %v2824
      %v2826 = vpop.f32.mrb[0].mxu0
      %2827 = vmatprep.mubr.bf16.mxu0 0
      %2828 = vmatmul.mubr.bf16.gmra.mrb[0].mxu0 %v2670
      %v2829 = vpop.f32.mrb[0].mxu0
      %v2830 = vadd.f32 0.0, %v2829
      %v2831 = vpop.f32.mrb[0].mxu0
      %v2832 = vpop.f32.mrb[0].mxu0
      %v2833 = vadd.f32 0.0, %v2832
      %v2834 = vpop.f32.mrb[0].mxu0
      %2835 = vdwg.mxu0
      %v2836 = vunpack.c.l.b16 %v2335
      %v2837 = vunpack.c.l.b16 %v2338
      %v2838 = vunpack.c.l.b16 %v2342
      %v2839 = vunpack.c.l.b16 %v2345
      %v2840 = vunpack.c.l.b16 %v2349
      %v2841 = vunpack.c.l.b16 %v2352
      %v2842 = vunpack.c.l.b16 %v2356
      %v2843 = vunpack.c.l.b16 %v2359
      %v2844 = vunpack.c.l.b16 %v2363
      %v2845 = vunpack.c.l.b16 %v2366
      %v2846 = vunpack.c.l.b16 %v2370
      %v2847 = vunpack.c.l.b16 %v2373
      %v2848 = vunpack.c.l.b16 %v2377
      %v2849 = vunpack.c.l.b16 %v2380
      %v2850 = vunpack.c.l.b16 %v2384
      %v2851 = vunpack.c.l.b16 %v2387
      %v2852 = vunpack.c.l.b16 %v2391
      %v2853 = vunpack.c.l.b16 %v2394
      %v2854 = vunpack.c.l.b16 %v2398
      %v2855 = vunpack.c.l.b16 %v2401
      %v2856 = vunpack.c.l.b16 %v2405
      %v2857 = vunpack.c.l.b16 %v2408
      %v2858 = vunpack.c.l.b16 %v2412
      %v2859 = vunpack.c.l.b16 %v2415
      %v2860 = vunpack.c.l.b16 %v2419
      %v2861 = vunpack.c.l.b16 %v2422
      %v2862 = vunpack.c.l.b16 %v2426
      %v2863 = vunpack.c.l.b16 %v2429
      %v2864 = vunpack.c.l.b16 %v2433
      %v2865 = vunpack.c.l.b16 %v2436
      %v2866 = vunpack.c.l.b16 %v2440
      %v2867 = vunpack.c.l.b16 %v2443
      %v2868 = vpack.c.b16 %v2837, %v2836
      %v2869 = vpack.c.b16 %v2839, %v2838
      %v2870 = vpack.c.b16 %v2841, %v2840
      %v2871 = vpack.c.b16 %v2843, %v2842
      %v2872 = vpack.c.b16 %v2845, %v2844
      %v2873 = vpack.c.b16 %v2847, %v2846
      %v2874 = vpack.c.b16 %v2849, %v2848
      %v2875 = vpack.c.b16 %v2851, %v2850
      %v2876 = vpack.c.b16 %v2853, %v2852
      %v2877 = vpack.c.b16 %v2855, %v2854
      %v2878 = vpack.c.b16 %v2857, %v2856
      %v2879 = vpack.c.b16 %v2859, %v2858
      %v2880 = vpack.c.b16 %v2861, %v2860
      %v2881 = vpack.c.b16 %v2863, %v2862
      %v2882 = vpack.c.b16 %v2865, %v2864
      %v2883 = vpack.c.b16 %v2867, %v2866
      %v2885 = vsel %vm480, %v2868, 0
      %v2888 = vsel %vm480, %v2869, 0
      %v2891 = vsel %vm480, %v2870, 0
      %v2894 = vsel %vm480, %v2871, 0
      %v2897 = vsel %vm480, %v2872, 0
      %v2900 = vsel %vm480, %v2873, 0
      %v2903 = vsel %vm480, %v2874, 0
      %v2906 = vsel %vm480, %v2875, 0
      %v2909 = vsel %vm480, %v2876, 0
      %v2912 = vsel %vm480, %v2877, 0
      %v2915 = vsel %vm480, %v2878, 0
      %v2918 = vsel %vm480, %v2879, 0
      %v2921 = vsel %vm480, %v2880, 0
      %v2924 = vsel %vm480, %v2881, 0
      %v2927 = vsel %vm480, %v2882, 0
      %v2930 = vsel %vm480, %v2883, 0
      %v2933 = vsel %vm529, %v2573, 0
      %2935 = vmatprep.subr.bf16.mxu0 0
      %2936 = vmatpush1.bf16.msra.mxu0 %v2933
      %2937 = vmatprep.subr.bf16.mxu0 0
      %2938 = vmatpush1.bf16.msra.mxu0 0
      %2939 = vmatprep.subr.bf16.mxu0 0
      %2940 = vmatpush1.bf16.msra.mxu0 0
      %2941 = vmatprep.subr.bf16.mxu0 0
      %2942 = vmatpush1.bf16.msra.mxu0 0
      %2943 = vmatprep.subr.bf16.mxu0 0
      %2944 = vmatpush1.bf16.msra.mxu0 0
      %2945 = vmatprep.subr.bf16.mxu0 0
      %2946 = vmatpush1.bf16.msra.mxu0 0
      %2947 = vmatprep.subr.bf16.mxu0 0
      %2948 = vmatpush1.bf16.msra.mxu0 0
      %2949 = vmatprep.subr.bf16.mxu0 0
      %2950 = vmatpush1.bf16.msra.mxu0 0
      %2951 = vmatprep.subr.bf16.mxu0 0
      %2952 = vmatpush1.bf16.msra.mxu0 0
      %2953 = vmatprep.subr.bf16.mxu0 0
      %2954 = vmatpush1.bf16.msra.mxu0 0
      %2955 = vmatprep.subr.bf16.mxu0 0
      %2956 = vmatpush1.bf16.msra.mxu0 0
      %2957 = vmatprep.subr.bf16.mxu0 0
      %2958 = vmatpush1.bf16.msra.mxu0 0
      %2959 = vmatprep.subr.bf16.mxu0 0
      %2960 = vmatpush1.bf16.msra.mxu0 0
      %2961 = vmatprep.subr.bf16.mxu0 0
      %2962 = vmatpush1.bf16.msra.mxu0 0
      %2963 = vmatprep.subr.bf16.mxu0 0
      %2964 = vmatpush1.bf16.msra.mxu0 0
      %2965 = vmatprep.subr.bf16.mxu0 0
      %2966 = vmatpush1.bf16.msra.mxu0 0
      %2967 = vmatprep.mubr.bf16.mxu0 0
      %2968 = vmatmul.mubr.bf16.gmra.mrb[0].mxu0 %v2885
      %v2969 = vpop.f32.mrb[0].mxu0
      %v2970 = vadd.f32 %v2710, %v2969
      %v2971 = vpop.f32.mrb[0].mxu0
      %v2972 = vpop.f32.mrb[0].mxu0
      %v2973 = vadd.f32 %v2713, %v2972
      %v2974 = vpop.f32.mrb[0].mxu0
      %2975 = vmatprep.mubr.bf16.mxu0 0
      %2976 = vmatmul.mubr.bf16.gmra.mrb[0].mxu0 %v2888
      %v2977 = vpop.f32.mrb[0].mxu0
      %v2978 = vadd.f32 %v2718, %v2977
      %v2979 = vpop.f32.mrb[0].mxu0
      %v2980 = vpop.f32.mrb[0].mxu0
      %v2981 = vadd.f32 %v2721, %v2980
      %v2982 = vpop.f32.mrb[0].mxu0
      %2983 = vmatprep.mubr.bf16.mxu0 0
      %2984 = vmatmul.mubr.bf16.gmra.mrb[0].mxu0 %v2891
      %v2985 = vpop.f32.mrb[0].mxu0
      %v2986 = vadd.f32 %v2726, %v2985
      %v2987 = vpop.f32.mrb[0].mxu0
      %v2988 = vpop.f32.mrb[0].mxu0
      %v2989 = vadd.f32 %v2729, %v2988
      %v2990 = vpop.f32.mrb[0].mxu0
      %2991 = vmatprep.mubr.bf16.mxu0 0
      %2992 = vmatmul.mubr.bf16.gmra.mrb[0].mxu0 %v2894
      %v2993 = vpop.f32.mrb[0].mxu0
      %v2994 = vadd.f32 %v2734, %v2993
      %v2995 = vpop.f32.mrb[0].mxu0
      %v2996 = vpop.f32.mrb[0].mxu0
      %v2997 = vadd.f32 %v2737, %v2996
      %v2998 = vpop.f32.mrb[0].mxu0
      %2999 = vmatprep.mubr.bf16.mxu0 0
      %3000 = vmatmul.mubr.bf16.gmra.mrb[0].mxu0 %v2897
      %v3001 = vpop.f32.mrb[0].mxu0
      %v3002 = vadd.f32 %v2742, %v3001
      %v3003 = vpop.f32.mrb[0].mxu0
      %v3004 = vpop.f32.mrb[0].mxu0
      %v3005 = vadd.f32 %v2745, %v3004
      %v3006 = vpop.f32.mrb[0].mxu0
      %3007 = vmatprep.mubr.bf16.mxu0 0
      %3008 = vmatmul.mubr.bf16.gmra.mrb[0].mxu0 %v2900
      %v3009 = vpop.f32.mrb[0].mxu0
      %v3010 = vadd.f32 %v2750, %v3009
      %v3011 = vpop.f32.mrb[0].mxu0
      %v3012 = vpop.f32.mrb[0].mxu0
      %v3013 = vadd.f32 %v2753, %v3012
      %v3014 = vpop.f32.mrb[0].mxu0
      %3015 = vmatprep.mubr.bf16.mxu0 0
      %3016 = vmatmul.mubr.bf16.gmra.mrb[0].mxu0 %v2903
      %v3017 = vpop.f32.mrb[0].mxu0
      %v3018 = vadd.f32 %v2758, %v3017
      %v3019 = vpop.f32.mrb[0].mxu0
      %v3020 = vpop.f32.mrb[0].mxu0
      %v3021 = vadd.f32 %v2761, %v3020
      %v3022 = vpop.f32.mrb[0].mxu0
      %3023 = vmatprep.mubr.bf16.mxu0 0
      %3024 = vmatmul.mubr.bf16.gmra.mrb[0].mxu0 %v2906
      %v3025 = vpop.f32.mrb[0].mxu0
      %v3026 = vadd.f32 %v2766, %v3025
      %v3027 = vpop.f32.mrb[0].mxu0
      %v3028 = vpop.f32.mrb[0].mxu0
      %v3029 = vadd.f32 %v2769, %v3028
      %v3030 = vpop.f32.mrb[0].mxu0
      %3031 = vmatprep.mubr.bf16.mxu0 0
      %3032 = vmatmul.mubr.bf16.gmra.mrb[0].mxu0 %v2909
      %v3033 = vpop.f32.mrb[0].mxu0
      %v3034 = vadd.f32 %v2774, %v3033
      %v3035 = vpop.f32.mrb[0].mxu0
      %v3036 = vpop.f32.mrb[0].mxu0
      %v3037 = vadd.f32 %v2777, %v3036
      %v3038 = vpop.f32.mrb[0].mxu0
      %3039 = vmatprep.mubr.bf16.mxu0 0
      %3040 = vmatmul.mubr.bf16.gmra.mrb[0].mxu0 %v2912
      %v3041 = vpop.f32.mrb[0].mxu0
      %v3042 = vadd.f32 %v2782, %v3041
      %v3043 = vpop.f32.mrb[0].mxu0
      %v3044 = vpop.f32.mrb[0].mxu0
      %v3045 = vadd.f32 %v2785, %v3044
      %v3046 = vpop.f32.mrb[0].mxu0
      %3047 = vmatprep.mubr.bf16.mxu0 0
      %3048 = vmatmul.mubr.bf16.gmra.mrb[0].mxu0 %v2915
      %v3049 = vpop.f32.mrb[0].mxu0
      %v3050 = vadd.f32 %v2790, %v3049
      %v3051 = vpop.f32.mrb[0].mxu0
      %v3052 = vpop.f32.mrb[0].mxu0
      %v3053 = vadd.f32 %v2793, %v3052
      %v3054 = vpop.f32.mrb[0].mxu0
      %3055 = vmatprep.mubr.bf16.mxu0 0
      %3056 = vmatmul.mubr.bf16.gmra.mrb[0].mxu0 %v2918
      %v3057 = vpop.f32.mrb[0].mxu0
      %v3058 = vadd.f32 %v2798, %v3057
      %v3059 = vpop.f32.mrb[0].mxu0
      %v3060 = vpop.f32.mrb[0].mxu0
      %v3061 = vadd.f32 %v2801, %v3060
      %v3062 = vpop.f32.mrb[0].mxu0
      %3063 = vmatprep.mubr.bf16.mxu0 0
      %3064 = vmatmul.mubr.bf16.gmra.mrb[0].mxu0 %v2921
      %v3065 = vpop.f32.mrb[0].mxu0
      %v3066 = vadd.f32 %v2806, %v3065
      %v3067 = vpop.f32.mrb[0].mxu0
      %v3068 = vpop.f32.mrb[0].mxu0
      %v3069 = vadd.f32 %v2809, %v3068
      %v3070 = vpop.f32.mrb[0].mxu0
      %3071 = vmatprep.mubr.bf16.mxu0 0
      %3072 = vmatmul.mubr.bf16.gmra.mrb[0].mxu0 %v2924
      %v3073 = vpop.f32.mrb[0].mxu0
      %v3074 = vadd.f32 %v2814, %v3073
      %v3075 = vpop.f32.mrb[0].mxu0
      %v3076 = vpop.f32.mrb[0].mxu0
      %v3077 = vadd.f32 %v2817, %v3076
      %v3078 = vpop.f32.mrb[0].mxu0
      %3079 = vmatprep.mubr.bf16.mxu0 0
      %3080 = vmatmul.mubr.bf16.gmra.mrb[0].mxu0 %v2927
      %v3081 = vpop.f32.mrb[0].mxu0
      %v3082 = vadd.f32 %v2822, %v3081
      %v3083 = vpop.f32.mrb[0].mxu0
      %v3084 = vpop.f32.mrb[0].mxu0
      %v3085 = vadd.f32 %v2825, %v3084
      %v3086 = vpop.f32.mrb[0].mxu0
      %3087 = vmatprep.mubr.bf16.mxu0 0
      %3088 = vmatmul.mubr.bf16.gmra.mrb[0].mxu0 %v2930
      %v3089 = vpop.f32.mrb[0].mxu0
      %v3090 = vadd.f32 %v2830, %v3089
      %v3091 = vpop.f32.mrb[0].mxu0
      %v3092 = vpop.f32.mrb[0].mxu0
      %v3093 = vadd.f32 %v2833, %v3092
      %v3094 = vpop.f32.mrb[0].mxu0
      %3095 = vdwg.mxu0
      %v3096 = vadd.f32 %v2281, %v2970
      %v3097 = vadd.f32 %v2282, %v2973
      %v3098 = vadd.f32 %v2283, %v2978
      %v3099 = vadd.f32 %v2284, %v2981
      %v3100 = vadd.f32 %v2285, %v2986
      %v3101 = vadd.f32 %v2286, %v2989
      %v3102 = vadd.f32 %v2287, %v2994
      %v3103 = vadd.f32 %v2288, %v2997
      %v3104 = vadd.f32 %v2289, %v3002
      %v3105 = vadd.f32 %v2290, %v3005
      %v3106 = vadd.f32 %v2291, %v3010
      %v3107 = vadd.f32 %v2292, %v3013
      %v3108 = vadd.f32 %v2293, %v3018
      %v3109 = vadd.f32 %v2294, %v3021
      %v3110 = vadd.f32 %v2295, %v3026
      %v3111 = vadd.f32 %v2296, %v3029
      %v3112 = vadd.f32 %v2297, %v3034
      %v3113 = vadd.f32 %v2298, %v3037
      %v3114 = vadd.f32 %v2299, %v3042
      %v3115 = vadd.f32 %v2300, %v3045
      %v3116 = vadd.f32 %v2301, %v3050
      %v3117 = vadd.f32 %v2302, %v3053
      %v3118 = vadd.f32 %v2303, %v3058
      %v3119 = vadd.f32 %v2304, %v3061
      %v3120 = vadd.f32 %v2305, %v3066
      %v3121 = vadd.f32 %v2306, %v3069
      %v3122 = vadd.f32 %v2307, %v3074
      %v3123 = vadd.f32 %v2308, %v3077
      %v3124 = vadd.f32 %v2309, %v3082
      %v3125 = vadd.f32 %v2310, %v3085
      %v3126 = vadd.f32 %v2311, %v3090
      %v3127 = vadd.f32 %v2312, %v3093
      %s3128 = scalar_lea.vmem %s2, 6
      %v3129 = vld [vmem:[%s3128] sm:$0x3]
      %s3130 = scalar_lea.vmem %s3, 6
      %v3131 = vld [vmem:[%s3130] sm:$0x3]
      %v3134 = vunpack.c.l.b16 %v392
      %v3135 = vunpack.c.l.b16 %v393
      %v3136 = vpack.c.b16 %v3135, %v3134
      %v3138 = vsel %vm480, %v3136, 0
      %v3141 = vsel %vm529, %v3131, 0
      %3143 = vmatprep.subr.bf16.mxu0 0
      %3144 = vmatpush1.bf16.msra.mxu0 %v3141
      %3145 = vmatprep.subr.bf16.mxu0 0
      %3146 = vmatpush1.bf16.msra.mxu0 0
      %3147 = vmatprep.subr.bf16.mxu0 0
      %3148 = vmatpush1.bf16.msra.mxu0 0
      %3149 = vmatprep.subr.bf16.mxu0 0
      %3150 = vmatpush1.bf16.msra.mxu0 0
      %3151 = vmatprep.subr.bf16.mxu0 0
      %3152 = vmatpush1.bf16.msra.mxu0 0
      %3153 = vmatprep.subr.bf16.mxu0 0
      %3154 = vmatpush1.bf16.msra.mxu0 0
      %3155 = vmatprep.subr.bf16.mxu0 0
      %3156 = vmatpush1.bf16.msra.mxu0 0
      %3157 = vmatprep.subr.bf16.mxu0 0
      %3158 = vmatpush1.bf16.msra.mxu0 0
      %3159 = vmatprep.subr.bf16.mxu0 0
      %3160 = vmatpush1.bf16.msra.mxu0 0
      %3161 = vmatprep.subr.bf16.mxu0 0
      %3162 = vmatpush1.bf16.msra.mxu0 0
      %3163 = vmatprep.subr.bf16.mxu0 0
      %3164 = vmatpush1.bf16.msra.mxu0 0
      %3165 = vmatprep.subr.bf16.mxu0 0
      %3166 = vmatpush1.bf16.msra.mxu0 0
      %3167 = vmatprep.subr.bf16.mxu0 0
      %3168 = vmatpush1.bf16.msra.mxu0 0
      %3169 = vmatprep.subr.bf16.mxu0 0
      %3170 = vmatpush1.bf16.msra.mxu0 0
      %3171 = vmatprep.subr.bf16.mxu0 0
      %3172 = vmatpush1.bf16.msra.mxu0 0
      %3173 = vmatprep.subr.bf16.mxu0 0
      %3174 = vmatpush1.bf16.msra.mxu0 0
      %3175 = vmatprep.mubr.bf16.mxu0 0
      %3176 = vmatmul.mubr.bf16.gmra.mrb[0].mxu0 %v485
      %v3177 = vpop.f32.mrb[0].mxu0
      %v3178 = vadd.f32 0.0, %v3177
      %v3179 = vpop.f32.mrb[0].mxu0
      %v3180 = vpop.f32.mrb[0].mxu0
      %v3181 = vadd.f32 0.0, %v3180
      %v3182 = vpop.f32.mrb[0].mxu0
      %3183 = vmatprep.mubr.bf16.mxu0 0
      %3184 = vmatmul.mubr.bf16.gmra.mrb[0].mxu0 %v488
      %v3185 = vpop.f32.mrb[0].mxu0
      %v3186 = vadd.f32 0.0, %v3185
      %v3187 = vpop.f32.mrb[0].mxu0
      %v3188 = vpop.f32.mrb[0].mxu0
      %v3189 = vadd.f32 0.0, %v3188
      %v3190 = vpop.f32.mrb[0].mxu0
      %3191 = vmatprep.mubr.bf16.mxu0 0
      %3192 = vmatmul.mubr.bf16.gmra.mrb[0].mxu0 %v491
      %v3193 = vpop.f32.mrb[0].mxu0
      %v3194 = vadd.f32 0.0, %v3193
      %v3195 = vpop.f32.mrb[0].mxu0
      %v3196 = vpop.f32.mrb[0].mxu0
      %v3197 = vadd.f32 0.0, %v3196
      %v3198 = vpop.f32.mrb[0].mxu0
      %3199 = vmatprep.mubr.bf16.mxu0 0
      %3200 = vmatmul.mubr.bf16.gmra.mrb[0].mxu0 %v494
      %v3201 = vpop.f32.mrb[0].mxu0
      %v3202 = vadd.f32 0.0, %v3201
      %v3203 = vpop.f32.mrb[0].mxu0
      %v3204 = vpop.f32.mrb[0].mxu0
      %v3205 = vadd.f32 0.0, %v3204
      %v3206 = vpop.f32.mrb[0].mxu0
      %3207 = vmatprep.mubr.bf16.mxu0 0
      %3208 = vmatmul.mubr.bf16.gmra.mrb[0].mxu0 %v497
      %v3209 = vpop.f32.mrb[0].mxu0
      %v3210 = vadd.f32 0.0, %v3209
      %v3211 = vpop.f32.mrb[0].mxu0
      %v3212 = vpop.f32.mrb[0].mxu0
      %v3213 = vadd.f32 0.0, %v3212
      %v3214 = vpop.f32.mrb[0].mxu0
      %3215 = vmatprep.mubr.bf16.mxu0 0
      %3216 = vmatmul.mubr.bf16.gmra.mrb[0].mxu0 %v500
      %v3217 = vpop.f32.mrb[0].mxu0
      %v3218 = vadd.f32 0.0, %v3217
      %v3219 = vpop.f32.mrb[0].mxu0
      %v3220 = vpop.f32.mrb[0].mxu0
      %v3221 = vadd.f32 0.0, %v3220
      %v3222 = vpop.f32.mrb[0].mxu0
      %3223 = vmatprep.mubr.bf16.mxu0 0
      %3224 = vmatmul.mubr.bf16.gmra.mrb[0].mxu0 %v503
      %v3225 = vpop.f32.mrb[0].mxu0
      %v3226 = vadd.f32 0.0, %v3225
      %v3227 = vpop.f32.mrb[0].mxu0
      %v3228 = vpop.f32.mrb[0].mxu0
      %v3229 = vadd.f32 0.0, %v3228
      %v3230 = vpop.f32.mrb[0].mxu0
      %3231 = vmatprep.mubr.bf16.mxu0 0
      %3232 = vmatmul.mubr.bf16.gmra.mrb[0].mxu0 %v506
      %v3233 = vpop.f32.mrb[0].mxu0
      %v3234 = vadd.f32 0.0, %v3233
      %v3235 = vpop.f32.mrb[0].mxu0
      %v3236 = vpop.f32.mrb[0].mxu0
      %v3237 = vadd.f32 0.0, %v3236
      %v3238 = vpop.f32.mrb[0].mxu0
      %3239 = vmatprep.mubr.bf16.mxu0 0
      %3240 = vmatmul.mubr.bf16.gmra.mrb[0].mxu0 %v509
      %v3241 = vpop.f32.mrb[0].mxu0
      %v3242 = vadd.f32 0.0, %v3241
      %v3243 = vpop.f32.mrb[0].mxu0
      %v3244 = vpop.f32.mrb[0].mxu0
      %v3245 = vadd.f32 0.0, %v3244
      %v3246 = vpop.f32.mrb[0].mxu0
      %3247 = vmatprep.mubr.bf16.mxu0 0
      %3248 = vmatmul.mubr.bf16.gmra.mrb[0].mxu0 %v512
      %v3249 = vpop.f32.mrb[0].mxu0
      %v3250 = vadd.f32 0.0, %v3249
      %v3251 = vpop.f32.mrb[0].mxu0
      %v3252 = vpop.f32.mrb[0].mxu0
      %v3253 = vadd.f32 0.0, %v3252
      %v3254 = vpop.f32.mrb[0].mxu0
      %3255 = vmatprep.mubr.bf16.mxu0 0
      %3256 = vmatmul.mubr.bf16.gmra.mrb[0].mxu0 %v515
      %v3257 = vpop.f32.mrb[0].mxu0
      %v3258 = vadd.f32 0.0, %v3257
      %v3259 = vpop.f32.mrb[0].mxu0
      %v3260 = vpop.f32.mrb[0].mxu0
      %v3261 = vadd.f32 0.0, %v3260
      %v3262 = vpop.f32.mrb[0].mxu0
      %3263 = vmatprep.mubr.bf16.mxu0 0
      %3264 = vmatmul.mubr.bf16.gmra.mrb[0].mxu0 %v518
      %v3265 = vpop.f32.mrb[0].mxu0
      %v3266 = vadd.f32 0.0, %v3265
      %v3267 = vpop.f32.mrb[0].mxu0
      %v3268 = vpop.f32.mrb[0].mxu0
      %v3269 = vadd.f32 0.0, %v3268
      %v3270 = vpop.f32.mrb[0].mxu0
      %3271 = vmatprep.mubr.bf16.mxu0 0
      %3272 = vmatmul.mubr.bf16.gmra.mrb[0].mxu0 %v521
      %v3273 = vpop.f32.mrb[0].mxu0
      %v3274 = vadd.f32 0.0, %v3273
      %v3275 = vpop.f32.mrb[0].mxu0
      %v3276 = vpop.f32.mrb[0].mxu0
      %v3277 = vadd.f32 0.0, %v3276
      %v3278 = vpop.f32.mrb[0].mxu0
      %3279 = vmatprep.mubr.bf16.mxu0 0
      %3280 = vmatmul.mubr.bf16.gmra.mrb[0].mxu0 %v524
      %v3281 = vpop.f32.mrb[0].mxu0
      %v3282 = vadd.f32 0.0, %v3281
      %v3283 = vpop.f32.mrb[0].mxu0
      %v3284 = vpop.f32.mrb[0].mxu0
      %v3285 = vadd.f32 0.0, %v3284
      %v3286 = vpop.f32.mrb[0].mxu0
      %3287 = vmatprep.mubr.bf16.mxu0 0
      %3288 = vmatmul.mubr.bf16.gmra.mrb[0].mxu0 %v527
      %v3289 = vpop.f32.mrb[0].mxu0
      %v3290 = vadd.f32 0.0, %v3289
      %v3291 = vpop.f32.mrb[0].mxu0
      %v3292 = vpop.f32.mrb[0].mxu0
      %v3293 = vadd.f32 0.0, %v3292
      %v3294 = vpop.f32.mrb[0].mxu0
      %3295 = vmatprep.mubr.bf16.mxu0 0
      %3296 = vmatmul.mubr.bf16.gmra.mrb[0].mxu0 %v3138
      %v3297 = vpop.f32.mrb[0].mxu0
      %v3298 = vadd.f32 0.0, %v3297
      %v3299 = vpop.f32.mrb[0].mxu0
      %v3300 = vpop.f32.mrb[0].mxu0
      %v3301 = vadd.f32 0.0, %v3300
      %v3302 = vpop.f32.mrb[0].mxu0
      %3303 = vdwg.mxu0
      %v3306 = vunpack.c.l.b16 %v338
      %v3307 = vunpack.c.l.b16 %v339
      %v3308 = vpack.c.b16 %v3307, %v3306
      %v3310 = vsel %vm480, %v3308, 0
      %v3313 = vsel %vm529, %v3129, 0
      %3315 = vmatprep.subr.bf16.mxu0 0
      %3316 = vmatpush1.bf16.msra.mxu0 %v3313
      %3317 = vmatprep.subr.bf16.mxu0 0
      %3318 = vmatpush1.bf16.msra.mxu0 0
      %3319 = vmatprep.subr.bf16.mxu0 0
      %3320 = vmatpush1.bf16.msra.mxu0 0
      %3321 = vmatprep.subr.bf16.mxu0 0
      %3322 = vmatpush1.bf16.msra.mxu0 0
      %3323 = vmatprep.subr.bf16.mxu0 0
      %3324 = vmatpush1.bf16.msra.mxu0 0
      %3325 = vmatprep.subr.bf16.mxu0 0
      %3326 = vmatpush1.bf16.msra.mxu0 0
      %3327 = vmatprep.subr.bf16.mxu0 0
      %3328 = vmatpush1.bf16.msra.mxu0 0
      %3329 = vmatprep.subr.bf16.mxu0 0
      %3330 = vmatpush1.bf16.msra.mxu0 0
      %3331 = vmatprep.subr.bf16.mxu0 0
      %3332 = vmatpush1.bf16.msra.mxu0 0
      %3333 = vmatprep.subr.bf16.mxu0 0
      %3334 = vmatpush1.bf16.msra.mxu0 0
      %3335 = vmatprep.subr.bf16.mxu0 0
      %3336 = vmatpush1.bf16.msra.mxu0 0
      %3337 = vmatprep.subr.bf16.mxu0 0
      %3338 = vmatpush1.bf16.msra.mxu0 0
      %3339 = vmatprep.subr.bf16.mxu0 0
      %3340 = vmatpush1.bf16.msra.mxu0 0
      %3341 = vmatprep.subr.bf16.mxu0 0
      %3342 = vmatpush1.bf16.msra.mxu0 0
      %3343 = vmatprep.subr.bf16.mxu0 0
      %3344 = vmatpush1.bf16.msra.mxu0 0
      %3345 = vmatprep.subr.bf16.mxu0 0
      %3346 = vmatpush1.bf16.msra.mxu0 0
      %3347 = vmatprep.mubr.bf16.mxu0 0
      %3348 = vmatmul.mubr.bf16.gmra.mrb[0].mxu0 %v778
      %v3349 = vpop.f32.mrb[0].mxu0
      %v3350 = vadd.f32 %v3178, %v3349
      %v3351 = vpop.f32.mrb[0].mxu0
      %v3352 = vpop.f32.mrb[0].mxu0
      %v3353 = vadd.f32 %v3181, %v3352
      %v3354 = vpop.f32.mrb[0].mxu0
      %3355 = vmatprep.mubr.bf16.mxu0 0
      %3356 = vmatmul.mubr.bf16.gmra.mrb[0].mxu0 %v781
      %v3357 = vpop.f32.mrb[0].mxu0
      %v3358 = vadd.f32 %v3186, %v3357
      %v3359 = vpop.f32.mrb[0].mxu0
      %v3360 = vpop.f32.mrb[0].mxu0
      %v3361 = vadd.f32 %v3189, %v3360
      %v3362 = vpop.f32.mrb[0].mxu0
      %3363 = vmatprep.mubr.bf16.mxu0 0
      %3364 = vmatmul.mubr.bf16.gmra.mrb[0].mxu0 %v784
      %v3365 = vpop.f32.mrb[0].mxu0
      %v3366 = vadd.f32 %v3194, %v3365
      %v3367 = vpop.f32.mrb[0].mxu0
      %v3368 = vpop.f32.mrb[0].mxu0
      %v3369 = vadd.f32 %v3197, %v3368
      %v3370 = vpop.f32.mrb[0].mxu0
      %3371 = vmatprep.mubr.bf16.mxu0 0
      %3372 = vmatmul.mubr.bf16.gmra.mrb[0].mxu0 %v787
      %v3373 = vpop.f32.mrb[0].mxu0
      %v3374 = vadd.f32 %v3202, %v3373
      %v3375 = vpop.f32.mrb[0].mxu0
      %v3376 = vpop.f32.mrb[0].mxu0
      %v3377 = vadd.f32 %v3205, %v3376
      %v3378 = vpop.f32.mrb[0].mxu0
      %3379 = vmatprep.mubr.bf16.mxu0 0
      %3380 = vmatmul.mubr.bf16.gmra.mrb[0].mxu0 %v790
      %v3381 = vpop.f32.mrb[0].mxu0
      %v3382 = vadd.f32 %v3210, %v3381
      %v3383 = vpop.f32.mrb[0].mxu0
      %v3384 = vpop.f32.mrb[0].mxu0
      %v3385 = vadd.f32 %v3213, %v3384
      %v3386 = vpop.f32.mrb[0].mxu0
      %3387 = vmatprep.mubr.bf16.mxu0 0
      %3388 = vmatmul.mubr.bf16.gmra.mrb[0].mxu0 %v793
      %v3389 = vpop.f32.mrb[0].mxu0
      %v3390 = vadd.f32 %v3218, %v3389
      %v3391 = vpop.f32.mrb[0].mxu0
      %v3392 = vpop.f32.mrb[0].mxu0
      %v3393 = vadd.f32 %v3221, %v3392
      %v3394 = vpop.f32.mrb[0].mxu0
      %3395 = vmatprep.mubr.bf16.mxu0 0
      %3396 = vmatmul.mubr.bf16.gmra.mrb[0].mxu0 %v796
      %v3397 = vpop.f32.mrb[0].mxu0
      %v3398 = vadd.f32 %v3226, %v3397
      %v3399 = vpop.f32.mrb[0].mxu0
      %v3400 = vpop.f32.mrb[0].mxu0
      %v3401 = vadd.f32 %v3229, %v3400
      %v3402 = vpop.f32.mrb[0].mxu0
      %3403 = vmatprep.mubr.bf16.mxu0 0
      %3404 = vmatmul.mubr.bf16.gmra.mrb[0].mxu0 %v799
      %v3405 = vpop.f32.mrb[0].mxu0
      %v3406 = vadd.f32 %v3234, %v3405
      %v3407 = vpop.f32.mrb[0].mxu0
      %v3408 = vpop.f32.mrb[0].mxu0
      %v3409 = vadd.f32 %v3237, %v3408
      %v3410 = vpop.f32.mrb[0].mxu0
      %3411 = vmatprep.mubr.bf16.mxu0 0
      %3412 = vmatmul.mubr.bf16.gmra.mrb[0].mxu0 %v802
      %v3413 = vpop.f32.mrb[0].mxu0
      %v3414 = vadd.f32 %v3242, %v3413
      %v3415 = vpop.f32.mrb[0].mxu0
      %v3416 = vpop.f32.mrb[0].mxu0
      %v3417 = vadd.f32 %v3245, %v3416
      %v3418 = vpop.f32.mrb[0].mxu0
      %3419 = vmatprep.mubr.bf16.mxu0 0
      %3420 = vmatmul.mubr.bf16.gmra.mrb[0].mxu0 %v805
      %v3421 = vpop.f32.mrb[0].mxu0
      %v3422 = vadd.f32 %v3250, %v3421
      %v3423 = vpop.f32.mrb[0].mxu0
      %v3424 = vpop.f32.mrb[0].mxu0
      %v3425 = vadd.f32 %v3253, %v3424
      %v3426 = vpop.f32.mrb[0].mxu0
      %3427 = vmatprep.mubr.bf16.mxu0 0
      %3428 = vmatmul.mubr.bf16.gmra.mrb[0].mxu0 %v808
      %v3429 = vpop.f32.mrb[0].mxu0
      %v3430 = vadd.f32 %v3258, %v3429
      %v3431 = vpop.f32.mrb[0].mxu0
      %v3432 = vpop.f32.mrb[0].mxu0
      %v3433 = vadd.f32 %v3261, %v3432
      %v3434 = vpop.f32.mrb[0].mxu0
      %3435 = vmatprep.mubr.bf16.mxu0 0
      %3436 = vmatmul.mubr.bf16.gmra.mrb[0].mxu0 %v811
      %v3437 = vpop.f32.mrb[0].mxu0
      %v3438 = vadd.f32 %v3266, %v3437
      %v3439 = vpop.f32.mrb[0].mxu0
      %v3440 = vpop.f32.mrb[0].mxu0
      %v3441 = vadd.f32 %v3269, %v3440
      %v3442 = vpop.f32.mrb[0].mxu0
      %3443 = vmatprep.mubr.bf16.mxu0 0
      %3444 = vmatmul.mubr.bf16.gmra.mrb[0].mxu0 %v814
      %v3445 = vpop.f32.mrb[0].mxu0
      %v3446 = vadd.f32 %v3274, %v3445
      %v3447 = vpop.f32.mrb[0].mxu0
      %v3448 = vpop.f32.mrb[0].mxu0
      %v3449 = vadd.f32 %v3277, %v3448
      %v3450 = vpop.f32.mrb[0].mxu0
      %3451 = vmatprep.mubr.bf16.mxu0 0
      %3452 = vmatmul.mubr.bf16.gmra.mrb[0].mxu0 %v817
      %v3453 = vpop.f32.mrb[0].mxu0
      %v3454 = vadd.f32 %v3282, %v3453
      %v3455 = vpop.f32.mrb[0].mxu0
      %v3456 = vpop.f32.mrb[0].mxu0
      %v3457 = vadd.f32 %v3285, %v3456
      %v3458 = vpop.f32.mrb[0].mxu0
      %3459 = vmatprep.mubr.bf16.mxu0 0
      %3460 = vmatmul.mubr.bf16.gmra.mrb[0].mxu0 %v820
      %v3461 = vpop.f32.mrb[0].mxu0
      %v3462 = vadd.f32 %v3290, %v3461
      %v3463 = vpop.f32.mrb[0].mxu0
      %v3464 = vpop.f32.mrb[0].mxu0
      %v3465 = vadd.f32 %v3293, %v3464
      %v3466 = vpop.f32.mrb[0].mxu0
      %3467 = vmatprep.mubr.bf16.mxu0 0
      %3468 = vmatmul.mubr.bf16.gmra.mrb[0].mxu0 %v3310
      %v3469 = vpop.f32.mrb[0].mxu0
      %v3470 = vadd.f32 %v3298, %v3469
      %v3471 = vpop.f32.mrb[0].mxu0
      %v3472 = vpop.f32.mrb[0].mxu0
      %v3473 = vadd.f32 %v3301, %v3472
      %v3474 = vpop.f32.mrb[0].mxu0
      %3475 = vdwg.mxu0
      %v3476 = vadd.f32 %v3096, %v3350
      %v3477 = vadd.f32 %v3097, %v3353
      %v3478 = vadd.f32 %v3098, %v3358
      %v3479 = vadd.f32 %v3099, %v3361
      %v3480 = vadd.f32 %v3100, %v3366
      %v3481 = vadd.f32 %v3101, %v3369
      %v3482 = vadd.f32 %v3102, %v3374
      %v3483 = vadd.f32 %v3103, %v3377
      %v3484 = vadd.f32 %v3104, %v3382
      %v3485 = vadd.f32 %v3105, %v3385
      %v3486 = vadd.f32 %v3106, %v3390
      %v3487 = vadd.f32 %v3107, %v3393
      %v3488 = vadd.f32 %v3108, %v3398
      %v3489 = vadd.f32 %v3109, %v3401
      %v3490 = vadd.f32 %v3110, %v3406
      %v3491 = vadd.f32 %v3111, %v3409
      %v3492 = vadd.f32 %v3112, %v3414
      %v3493 = vadd.f32 %v3113, %v3417
      %v3494 = vadd.f32 %v3114, %v3422
      %v3495 = vadd.f32 %v3115, %v3425
      %v3496 = vadd.f32 %v3116, %v3430
      %v3497 = vadd.f32 %v3117, %v3433
      %v3498 = vadd.f32 %v3118, %v3438
      %v3499 = vadd.f32 %v3119, %v3441
      %v3500 = vadd.f32 %v3120, %v3446
      %v3501 = vadd.f32 %v3121, %v3449
      %v3502 = vadd.f32 %v3122, %v3454
      %v3503 = vadd.f32 %v3123, %v3457
      %v3504 = vadd.f32 %v3124, %v3462
      %v3505 = vadd.f32 %v3125, %v3465
      %v3506 = vadd.f32 %v3126, %v3470
      %v3507 = vadd.f32 %v3127, %v3473
      %v3509 = vshrl.u32 %v338, 16
      %v3511 = vrot.slane %v3509, 4
      %v3512 = vshll.u32 %v338, 16
      %v3514 = vrot.slane %v3512, 5
      %v3515 = vor.u32 %v3511, %v3514
      %v3516 = vrot.slane %v3515, 4
      %v3518 = vshll.u32 %v339, 16
      %v3520 = vrot.slane %v3518, 5
      %v3521 = vsel %vm988, %v3516, %v3520
      %v3522 = vshrl.u32 %v339, 16
      %v3524 = vrot.slane %v3522, 4
      %v3525 = vor.u32 %v3524, %v3520
      %v3526 = vrot.slane %v3525, 4
      %v3528 = vshll.u32 %v340, 16
      %v3530 = vrot.slane %v3528, 5
      %v3531 = vsel %vm988, %v3526, %v3530
      %v3533 = vshrl.u32 %v392, 16
      %v3535 = vrot.slane %v3533, 4
      %v3536 = vshll.u32 %v392, 16
      %v3538 = vrot.slane %v3536, 5
      %v3539 = vor.u32 %v3535, %v3538
      %v3540 = vrot.slane %v3539, 4
      %v3542 = vshll.u32 %v393, 16
      %v3544 = vrot.slane %v3542, 5
      %v3545 = vsel %vm988, %v3540, %v3544
      %v3546 = vshrl.u32 %v393, 16
      %v3548 = vrot.slane %v3546, 4
      %v3549 = vor.u32 %v3548, %v3544
      %v3550 = vrot.slane %v3549, 4
      %v3552 = vshll.u32 %v394, 16
      %v3554 = vrot.slane %v3552, 5
      %v3555 = vsel %vm988, %v3550, %v3554
      %s3556 = scalar_lea.vmem %s2, 8
      %v3557 = vld [vmem:[%s3556] sm:$0x3]
      %s3558 = scalar_lea.vmem %s3, 8
      %v3559 = vld [vmem:[%s3558] sm:$0x3]
      %v3560 = vunpack.c.l.b16 %v3545
      %v3561 = vunpack.c.l.b16 %v3555
      %v3562 = vpack.c.b16 %v3561, %v3560
      %v3564 = vsel %vm480, %v3562, 0
      %v3567 = vsel %vm529, %v3559, 0
      %3569 = vmatprep.subr.bf16.mxu0 0
      %3570 = vmatpush1.bf16.msra.mxu0 %v3567
      %3571 = vmatprep.subr.bf16.mxu0 0
      %3572 = vmatpush1.bf16.msra.mxu0 0
      %3573 = vmatprep.subr.bf16.mxu0 0
      %3574 = vmatpush1.bf16.msra.mxu0 0
      %3575 = vmatprep.subr.bf16.mxu0 0
      %3576 = vmatpush1.bf16.msra.mxu0 0
      %3577 = vmatprep.subr.bf16.mxu0 0
      %3578 = vmatpush1.bf16.msra.mxu0 0
      %3579 = vmatprep.subr.bf16.mxu0 0
      %3580 = vmatpush1.bf16.msra.mxu0 0
      %3581 = vmatprep.subr.bf16.mxu0 0
      %3582 = vmatpush1.bf16.msra.mxu0 0
      %3583 = vmatprep.subr.bf16.mxu0 0
      %3584 = vmatpush1.bf16.msra.mxu0 0
      %3585 = vmatprep.subr.bf16.mxu0 0
      %3586 = vmatpush1.bf16.msra.mxu0 0
      %3587 = vmatprep.subr.bf16.mxu0 0
      %3588 = vmatpush1.bf16.msra.mxu0 0
      %3589 = vmatprep.subr.bf16.mxu0 0
      %3590 = vmatpush1.bf16.msra.mxu0 0
      %3591 = vmatprep.subr.bf16.mxu0 0
      %3592 = vmatpush1.bf16.msra.mxu0 0
      %3593 = vmatprep.subr.bf16.mxu0 0
      %3594 = vmatpush1.bf16.msra.mxu0 0
      %3595 = vmatprep.subr.bf16.mxu0 0
      %3596 = vmatpush1.bf16.msra.mxu0 0
      %3597 = vmatprep.subr.bf16.mxu0 0
      %3598 = vmatpush1.bf16.msra.mxu0 0
      %3599 = vmatprep.subr.bf16.mxu0 0
      %3600 = vmatpush1.bf16.msra.mxu0 0
      %3601 = vmatprep.mubr.bf16.mxu0 0
      %3602 = vmatmul.mubr.bf16.gmra.mrb[0].mxu0 %v1813
      %v3603 = vpop.f32.mrb[0].mxu0
      %v3604 = vadd.f32 0.0, %v3603
      %v3605 = vpop.f32.mrb[0].mxu0
      %v3606 = vpop.f32.mrb[0].mxu0
      %v3607 = vadd.f32 0.0, %v3606
      %v3608 = vpop.f32.mrb[0].mxu0
      %3609 = vmatprep.mubr.bf16.mxu0 0
      %3610 = vmatmul.mubr.bf16.gmra.mrb[0].mxu0 %v1816
      %v3611 = vpop.f32.mrb[0].mxu0
      %v3612 = vadd.f32 0.0, %v3611
      %v3613 = vpop.f32.mrb[0].mxu0
      %v3614 = vpop.f32.mrb[0].mxu0
      %v3615 = vadd.f32 0.0, %v3614
      %v3616 = vpop.f32.mrb[0].mxu0
      %3617 = vmatprep.mubr.bf16.mxu0 0
      %3618 = vmatmul.mubr.bf16.gmra.mrb[0].mxu0 %v1819
      %v3619 = vpop.f32.mrb[0].mxu0
      %v3620 = vadd.f32 0.0, %v3619
      %v3621 = vpop.f32.mrb[0].mxu0
      %v3622 = vpop.f32.mrb[0].mxu0
      %v3623 = vadd.f32 0.0, %v3622
      %v3624 = vpop.f32.mrb[0].mxu0
      %3625 = vmatprep.mubr.bf16.mxu0 0
      %3626 = vmatmul.mubr.bf16.gmra.mrb[0].mxu0 %v1822
      %v3627 = vpop.f32.mrb[0].mxu0
      %v3628 = vadd.f32 0.0, %v3627
      %v3629 = vpop.f32.mrb[0].mxu0
      %v3630 = vpop.f32.mrb[0].mxu0
      %v3631 = vadd.f32 0.0, %v3630
      %v3632 = vpop.f32.mrb[0].mxu0
      %3633 = vmatprep.mubr.bf16.mxu0 0
      %3634 = vmatmul.mubr.bf16.gmra.mrb[0].mxu0 %v1825
      %v3635 = vpop.f32.mrb[0].mxu0
      %v3636 = vadd.f32 0.0, %v3635
      %v3637 = vpop.f32.mrb[0].mxu0
      %v3638 = vpop.f32.mrb[0].mxu0
      %v3639 = vadd.f32 0.0, %v3638
      %v3640 = vpop.f32.mrb[0].mxu0
      %3641 = vmatprep.mubr.bf16.mxu0 0
      %3642 = vmatmul.mubr.bf16.gmra.mrb[0].mxu0 %v1828
      %v3643 = vpop.f32.mrb[0].mxu0
      %v3644 = vadd.f32 0.0, %v3643
      %v3645 = vpop.f32.mrb[0].mxu0
      %v3646 = vpop.f32.mrb[0].mxu0
      %v3647 = vadd.f32 0.0, %v3646
      %v3648 = vpop.f32.mrb[0].mxu0
      %3649 = vmatprep.mubr.bf16.mxu0 0
      %3650 = vmatmul.mubr.bf16.gmra.mrb[0].mxu0 %v1831
      %v3651 = vpop.f32.mrb[0].mxu0
      %v3652 = vadd.f32 0.0, %v3651
      %v3653 = vpop.f32.mrb[0].mxu0
      %v3654 = vpop.f32.mrb[0].mxu0
      %v3655 = vadd.f32 0.0, %v3654
      %v3656 = vpop.f32.mrb[0].mxu0
      %3657 = vmatprep.mubr.bf16.mxu0 0
      %3658 = vmatmul.mubr.bf16.gmra.mrb[0].mxu0 %v1834
      %v3659 = vpop.f32.mrb[0].mxu0
      %v3660 = vadd.f32 0.0, %v3659
      %v3661 = vpop.f32.mrb[0].mxu0
      %v3662 = vpop.f32.mrb[0].mxu0
      %v3663 = vadd.f32 0.0, %v3662
      %v3664 = vpop.f32.mrb[0].mxu0
      %3665 = vmatprep.mubr.bf16.mxu0 0
      %3666 = vmatmul.mubr.bf16.gmra.mrb[0].mxu0 %v1837
      %v3667 = vpop.f32.mrb[0].mxu0
      %v3668 = vadd.f32 0.0, %v3667
      %v3669 = vpop.f32.mrb[0].mxu0
      %v3670 = vpop.f32.mrb[0].mxu0
      %v3671 = vadd.f32 0.0, %v3670
      %v3672 = vpop.f32.mrb[0].mxu0
      %3673 = vmatprep.mubr.bf16.mxu0 0
      %3674 = vmatmul.mubr.bf16.gmra.mrb[0].mxu0 %v1840
      %v3675 = vpop.f32.mrb[0].mxu0
      %v3676 = vadd.f32 0.0, %v3675
      %v3677 = vpop.f32.mrb[0].mxu0
      %v3678 = vpop.f32.mrb[0].mxu0
      %v3679 = vadd.f32 0.0, %v3678
      %v3680 = vpop.f32.mrb[0].mxu0
      %3681 = vmatprep.mubr.bf16.mxu0 0
      %3682 = vmatmul.mubr.bf16.gmra.mrb[0].mxu0 %v1843
      %v3683 = vpop.f32.mrb[0].mxu0
      %v3684 = vadd.f32 0.0, %v3683
      %v3685 = vpop.f32.mrb[0].mxu0
      %v3686 = vpop.f32.mrb[0].mxu0
      %v3687 = vadd.f32 0.0, %v3686
      %v3688 = vpop.f32.mrb[0].mxu0
      %3689 = vmatprep.mubr.bf16.mxu0 0
      %3690 = vmatmul.mubr.bf16.gmra.mrb[0].mxu0 %v1846
      %v3691 = vpop.f32.mrb[0].mxu0
      %v3692 = vadd.f32 0.0, %v3691
      %v3693 = vpop.f32.mrb[0].mxu0
      %v3694 = vpop.f32.mrb[0].mxu0
      %v3695 = vadd.f32 0.0, %v3694
      %v3696 = vpop.f32.mrb[0].mxu0
      %3697 = vmatprep.mubr.bf16.mxu0 0
      %3698 = vmatmul.mubr.bf16.gmra.mrb[0].mxu0 %v1849
      %v3699 = vpop.f32.mrb[0].mxu0
      %v3700 = vadd.f32 0.0, %v3699
      %v3701 = vpop.f32.mrb[0].mxu0
      %v3702 = vpop.f32.mrb[0].mxu0
      %v3703 = vadd.f32 0.0, %v3702
      %v3704 = vpop.f32.mrb[0].mxu0
      %3705 = vmatprep.mubr.bf16.mxu0 0
      %3706 = vmatmul.mubr.bf16.gmra.mrb[0].mxu0 %v1852
      %v3707 = vpop.f32.mrb[0].mxu0
      %v3708 = vadd.f32 0.0, %v3707
      %v3709 = vpop.f32.mrb[0].mxu0
      %v3710 = vpop.f32.mrb[0].mxu0
      %v3711 = vadd.f32 0.0, %v3710
      %v3712 = vpop.f32.mrb[0].mxu0
      %3713 = vmatprep.mubr.bf16.mxu0 0
      %3714 = vmatmul.mubr.bf16.gmra.mrb[0].mxu0 %v1855
      %v3715 = vpop.f32.mrb[0].mxu0
      %v3716 = vadd.f32 0.0, %v3715
      %v3717 = vpop.f32.mrb[0].mxu0
      %v3718 = vpop.f32.mrb[0].mxu0
      %v3719 = vadd.f32 0.0, %v3718
      %v3720 = vpop.f32.mrb[0].mxu0
      %3721 = vmatprep.mubr.bf16.mxu0 0
      %3722 = vmatmul.mubr.bf16.gmra.mrb[0].mxu0 %v3564
      %v3723 = vpop.f32.mrb[0].mxu0
      %v3724 = vadd.f32 0.0, %v3723
      %v3725 = vpop.f32.mrb[0].mxu0
      %v3726 = vpop.f32.mrb[0].mxu0
      %v3727 = vadd.f32 0.0, %v3726
      %v3728 = vpop.f32.mrb[0].mxu0
      %3729 = vdwg.mxu0
      %v3730 = vunpack.c.l.b16 %v3521
      %v3731 = vunpack.c.l.b16 %v3531
      %v3732 = vpack.c.b16 %v3731, %v3730
      %v3734 = vsel %vm480, %v3732, 0
      %v3737 = vsel %vm529, %v3557, 0
      %3739 = vmatprep.subr.bf16.mxu0 0
      %3740 = vmatpush1.bf16.msra.mxu0 %v3737
      %3741 = vmatprep.subr.bf16.mxu0 0
      %3742 = vmatpush1.bf16.msra.mxu0 0
      %3743 = vmatprep.subr.bf16.mxu0 0
      %3744 = vmatpush1.bf16.msra.mxu0 0
      %3745 = vmatprep.subr.bf16.mxu0 0
      %3746 = vmatpush1.bf16.msra.mxu0 0
      %3747 = vmatprep.subr.bf16.mxu0 0
      %3748 = vmatpush1.bf16.msra.mxu0 0
      %3749 = vmatprep.subr.bf16.mxu0 0
      %3750 = vmatpush1.bf16.msra.mxu0 0
      %3751 = vmatprep.subr.bf16.mxu0 0
      %3752 = vmatpush1.bf16.msra.mxu0 0
      %3753 = vmatprep.subr.bf16.mxu0 0
      %3754 = vmatpush1.bf16.msra.mxu0 0
      %3755 = vmatprep.subr.bf16.mxu0 0
      %3756 = vmatpush1.bf16.msra.mxu0 0
      %3757 = vmatprep.subr.bf16.mxu0 0
      %3758 = vmatpush1.bf16.msra.mxu0 0
      %3759 = vmatprep.subr.bf16.mxu0 0
      %3760 = vmatpush1.bf16.msra.mxu0 0
      %3761 = vmatprep.subr.bf16.mxu0 0
      %3762 = vmatpush1.bf16.msra.mxu0 0
      %3763 = vmatprep.subr.bf16.mxu0 0
      %3764 = vmatpush1.bf16.msra.mxu0 0
      %3765 = vmatprep.subr.bf16.mxu0 0
      %3766 = vmatpush1.bf16.msra.mxu0 0
      %3767 = vmatprep.subr.bf16.mxu0 0
      %3768 = vmatpush1.bf16.msra.mxu0 0
      %3769 = vmatprep.subr.bf16.mxu0 0
      %3770 = vmatpush1.bf16.msra.mxu0 0
      %3771 = vmatprep.mubr.bf16.mxu0 0
      %3772 = vmatmul.mubr.bf16.gmra.mrb[0].mxu0 %v2073
      %v3773 = vpop.f32.mrb[0].mxu0
      %v3774 = vadd.f32 %v3604, %v3773
      %v3775 = vpop.f32.mrb[0].mxu0
      %v3776 = vpop.f32.mrb[0].mxu0
      %v3777 = vadd.f32 %v3607, %v3776
      %v3778 = vpop.f32.mrb[0].mxu0
      %3779 = vmatprep.mubr.bf16.mxu0 0
      %3780 = vmatmul.mubr.bf16.gmra.mrb[0].mxu0 %v2076
      %v3781 = vpop.f32.mrb[0].mxu0
      %v3782 = vadd.f32 %v3612, %v3781
      %v3783 = vpop.f32.mrb[0].mxu0
      %v3784 = vpop.f32.mrb[0].mxu0
      %v3785 = vadd.f32 %v3615, %v3784
      %v3786 = vpop.f32.mrb[0].mxu0
      %3787 = vmatprep.mubr.bf16.mxu0 0
      %3788 = vmatmul.mubr.bf16.gmra.mrb[0].mxu0 %v2079
      %v3789 = vpop.f32.mrb[0].mxu0
      %v3790 = vadd.f32 %v3620, %v3789
      %v3791 = vpop.f32.mrb[0].mxu0
      %v3792 = vpop.f32.mrb[0].mxu0
      %v3793 = vadd.f32 %v3623, %v3792
      %v3794 = vpop.f32.mrb[0].mxu0
      %3795 = vmatprep.mubr.bf16.mxu0 0
      %3796 = vmatmul.mubr.bf16.gmra.mrb[0].mxu0 %v2082
      %v3797 = vpop.f32.mrb[0].mxu0
      %v3798 = vadd.f32 %v3628, %v3797
      %v3799 = vpop.f32.mrb[0].mxu0
      %v3800 = vpop.f32.mrb[0].mxu0
      %v3801 = vadd.f32 %v3631, %v3800
      %v3802 = vpop.f32.mrb[0].mxu0
      %3803 = vmatprep.mubr.bf16.mxu0 0
      %3804 = vmatmul.mubr.bf16.gmra.mrb[0].mxu0 %v2085
      %v3805 = vpop.f32.mrb[0].mxu0
      %v3806 = vadd.f32 %v3636, %v3805
      %v3807 = vpop.f32.mrb[0].mxu0
      %v3808 = vpop.f32.mrb[0].mxu0
      %v3809 = vadd.f32 %v3639, %v3808
      %v3810 = vpop.f32.mrb[0].mxu0
      %3811 = vmatprep.mubr.bf16.mxu0 0
      %3812 = vmatmul.mubr.bf16.gmra.mrb[0].mxu0 %v2088
      %v3813 = vpop.f32.mrb[0].mxu0
      %v3814 = vadd.f32 %v3644, %v3813
      %v3815 = vpop.f32.mrb[0].mxu0
      %v3816 = vpop.f32.mrb[0].mxu0
      %v3817 = vadd.f32 %v3647, %v3816
      %v3818 = vpop.f32.mrb[0].mxu0
      %3819 = vmatprep.mubr.bf16.mxu0 0
      %3820 = vmatmul.mubr.bf16.gmra.mrb[0].mxu0 %v2091
      %v3821 = vpop.f32.mrb[0].mxu0
      %v3822 = vadd.f32 %v3652, %v3821
      %v3823 = vpop.f32.mrb[0].mxu0
      %v3824 = vpop.f32.mrb[0].mxu0
      %v3825 = vadd.f32 %v3655, %v3824
      %v3826 = vpop.f32.mrb[0].mxu0
      %3827 = vmatprep.mubr.bf16.mxu0 0
      %3828 = vmatmul.mubr.bf16.gmra.mrb[0].mxu0 %v2094
      %v3829 = vpop.f32.mrb[0].mxu0
      %v3830 = vadd.f32 %v3660, %v3829
      %v3831 = vpop.f32.mrb[0].mxu0
      %v3832 = vpop.f32.mrb[0].mxu0
      %v3833 = vadd.f32 %v3663, %v3832
      %v3834 = vpop.f32.mrb[0].mxu0
      %3835 = vmatprep.mubr.bf16.mxu0 0
      %3836 = vmatmul.mubr.bf16.gmra.mrb[0].mxu0 %v2097
      %v3837 = vpop.f32.mrb[0].mxu0
      %v3838 = vadd.f32 %v3668, %v3837
      %v3839 = vpop.f32.mrb[0].mxu0
      %v3840 = vpop.f32.mrb[0].mxu0
      %v3841 = vadd.f32 %v3671, %v3840
      %v3842 = vpop.f32.mrb[0].mxu0
      %3843 = vmatprep.mubr.bf16.mxu0 0
      %3844 = vmatmul.mubr.bf16.gmra.mrb[0].mxu0 %v2100
      %v3845 = vpop.f32.mrb[0].mxu0
      %v3846 = vadd.f32 %v3676, %v3845
      %v3847 = vpop.f32.mrb[0].mxu0
      %v3848 = vpop.f32.mrb[0].mxu0
      %v3849 = vadd.f32 %v3679, %v3848
      %v3850 = vpop.f32.mrb[0].mxu0
      %3851 = vmatprep.mubr.bf16.mxu0 0
      %3852 = vmatmul.mubr.bf16.gmra.mrb[0].mxu0 %v2103
      %v3853 = vpop.f32.mrb[0].mxu0
      %v3854 = vadd.f32 %v3684, %v3853
      %v3855 = vpop.f32.mrb[0].mxu0
      %v3856 = vpop.f32.mrb[0].mxu0
      %v3857 = vadd.f32 %v3687, %v3856
      %v3858 = vpop.f32.mrb[0].mxu0
      %3859 = vmatprep.mubr.bf16.mxu0 0
      %3860 = vmatmul.mubr.bf16.gmra.mrb[0].mxu0 %v2106
      %v3861 = vpop.f32.mrb[0].mxu0
      %v3862 = vadd.f32 %v3692, %v3861
      %v3863 = vpop.f32.mrb[0].mxu0
      %v3864 = vpop.f32.mrb[0].mxu0
      %v3865 = vadd.f32 %v3695, %v3864
      %v3866 = vpop.f32.mrb[0].mxu0
      %3867 = vmatprep.mubr.bf16.mxu0 0
      %3868 = vmatmul.mubr.bf16.gmra.mrb[0].mxu0 %v2109
      %v3869 = vpop.f32.mrb[0].mxu0
      %v3870 = vadd.f32 %v3700, %v3869
      %v3871 = vpop.f32.mrb[0].mxu0
      %v3872 = vpop.f32.mrb[0].mxu0
      %v3873 = vadd.f32 %v3703, %v3872
      %v3874 = vpop.f32.mrb[0].mxu0
      %3875 = vmatprep.mubr.bf16.mxu0 0
      %3876 = vmatmul.mubr.bf16.gmra.mrb[0].mxu0 %v2112
      %v3877 = vpop.f32.mrb[0].mxu0
      %v3878 = vadd.f32 %v3708, %v3877
      %v3879 = vpop.f32.mrb[0].mxu0
      %v3880 = vpop.f32.mrb[0].mxu0
      %v3881 = vadd.f32 %v3711, %v3880
      %v3882 = vpop.f32.mrb[0].mxu0
      %3883 = vmatprep.mubr.bf16.mxu0 0
      %3884 = vmatmul.mubr.bf16.gmra.mrb[0].mxu0 %v2115
      %v3885 = vpop.f32.mrb[0].mxu0
      %v3886 = vadd.f32 %v3716, %v3885
      %v3887 = vpop.f32.mrb[0].mxu0
      %v3888 = vpop.f32.mrb[0].mxu0
      %v3889 = vadd.f32 %v3719, %v3888
      %v3890 = vpop.f32.mrb[0].mxu0
      %3891 = vmatprep.mubr.bf16.mxu0 0
      %3892 = vmatmul.mubr.bf16.gmra.mrb[0].mxu0 %v3734
      %v3893 = vpop.f32.mrb[0].mxu0
      %v3894 = vadd.f32 %v3724, %v3893
      %v3895 = vpop.f32.mrb[0].mxu0
      %v3896 = vpop.f32.mrb[0].mxu0
      %v3897 = vadd.f32 %v3727, %v3896
      %v3898 = vpop.f32.mrb[0].mxu0
      %3899 = vdwg.mxu0
      %v3900 = vadd.f32 %v3476, %v3774
      %v3901 = vadd.f32 %v3477, %v3777
      %v3902 = vadd.f32 %v3478, %v3782
      %v3903 = vadd.f32 %v3479, %v3785
      %v3904 = vadd.f32 %v3480, %v3790
      %v3905 = vadd.f32 %v3481, %v3793
      %v3906 = vadd.f32 %v3482, %v3798
      %v3907 = vadd.f32 %v3483, %v3801
      %v3908 = vadd.f32 %v3484, %v3806
      %v3909 = vadd.f32 %v3485, %v3809
      %v3910 = vadd.f32 %v3486, %v3814
      %v3911 = vadd.f32 %v3487, %v3817
      %v3912 = vadd.f32 %v3488, %v3822
      %v3913 = vadd.f32 %v3489, %v3825
      %v3914 = vadd.f32 %v3490, %v3830
      %v3915 = vadd.f32 %v3491, %v3833
      %v3916 = vadd.f32 %v3492, %v3838
      %v3917 = vadd.f32 %v3493, %v3841
      %v3918 = vadd.f32 %v3494, %v3846
      %v3919 = vadd.f32 %v3495, %v3849
      %v3920 = vadd.f32 %v3496, %v3854
      %v3921 = vadd.f32 %v3497, %v3857
      %v3922 = vadd.f32 %v3498, %v3862
      %v3923 = vadd.f32 %v3499, %v3865
      %v3924 = vadd.f32 %v3500, %v3870
      %v3925 = vadd.f32 %v3501, %v3873
      %v3926 = vadd.f32 %v3502, %v3878
      %v3927 = vadd.f32 %v3503, %v3881
      %v3928 = vadd.f32 %v3504, %v3886
      %v3929 = vadd.f32 %v3505, %v3889
      %v3930 = vadd.f32 %v3506, %v3894
      %v3931 = vadd.f32 %v3507, %v3897
      %v3933 = vrot.slane %v338, 5
      %v3934 = vrot.slane %v3933, 4
      %v3935 = vrot.slane %v339, 5
      %v3936 = vsel %vm2331, %v3934, %v3935
      %v3937 = vrot.slane %v3935, 4
      %v3938 = vrot.slane %v340, 5
      %v3939 = vsel %vm2331, %v3937, %v3938
      %v3941 = vrot.slane %v392, 5
      %v3942 = vrot.slane %v3941, 4
      %v3943 = vrot.slane %v393, 5
      %v3944 = vsel %vm2331, %v3942, %v3943
      %v3945 = vrot.slane %v3943, 4
      %v3946 = vrot.slane %v394, 5
      %v3947 = vsel %vm2331, %v3945, %v3946
      %s3948 = scalar_lea.vmem %s2, 10
      %v3949 = vld [vmem:[%s3948] sm:$0x3]
      %s3950 = scalar_lea.vmem %s3, 10
      %v3951 = vld [vmem:[%s3950] sm:$0x3]
      %v3952 = vunpack.c.l.b16 %v3944
      %v3953 = vunpack.c.l.b16 %v3947
      %v3954 = vpack.c.b16 %v3953, %v3952
      %v3956 = vsel %vm480, %v3954, 0
      %v3959 = vsel %vm529, %v3951, 0
      %3961 = vmatprep.subr.bf16.mxu0 0
      %3962 = vmatpush1.bf16.msra.mxu0 %v3959
      %3963 = vmatprep.subr.bf16.mxu0 0
      %3964 = vmatpush1.bf16.msra.mxu0 0
      %3965 = vmatprep.subr.bf16.mxu0 0
      %3966 = vmatpush1.bf16.msra.mxu0 0
      %3967 = vmatprep.subr.bf16.mxu0 0
      %3968 = vmatpush1.bf16.msra.mxu0 0
      %3969 = vmatprep.subr.bf16.mxu0 0
      %3970 = vmatpush1.bf16.msra.mxu0 0
      %3971 = vmatprep.subr.bf16.mxu0 0
      %3972 = vmatpush1.bf16.msra.mxu0 0
      %3973 = vmatprep.subr.bf16.mxu0 0
      %3974 = vmatpush1.bf16.msra.mxu0 0
      %3975 = vmatprep.subr.bf16.mxu0 0
      %3976 = vmatpush1.bf16.msra.mxu0 0
      %3977 = vmatprep.subr.bf16.mxu0 0
      %3978 = vmatpush1.bf16.msra.mxu0 0
      %3979 = vmatprep.subr.bf16.mxu0 0
      %3980 = vmatpush1.bf16.msra.mxu0 0
      %3981 = vmatprep.subr.bf16.mxu0 0
      %3982 = vmatpush1.bf16.msra.mxu0 0
      %3983 = vmatprep.subr.bf16.mxu0 0
      %3984 = vmatpush1.bf16.msra.mxu0 0
      %3985 = vmatprep.subr.bf16.mxu0 0
      %3986 = vmatpush1.bf16.msra.mxu0 0
      %3987 = vmatprep.subr.bf16.mxu0 0
      %3988 = vmatpush1.bf16.msra.mxu0 0
      %3989 = vmatprep.subr.bf16.mxu0 0
      %3990 = vmatpush1.bf16.msra.mxu0 0
      %3991 = vmatprep.subr.bf16.mxu0 0
      %3992 = vmatpush1.bf16.msra.mxu0 0
      %3993 = vmatprep.mubr.bf16.mxu0 0
      %3994 = vmatmul.mubr.bf16.gmra.mrb[0].mxu0 %v2628
      %v3995 = vpop.f32.mrb[0].mxu0
      %v3996 = vadd.f32 0.0, %v3995
      %v3997 = vpop.f32.mrb[0].mxu0
      %v3998 = vpop.f32.mrb[0].mxu0
      %v3999 = vadd.f32 0.0, %v3998
      %v4000 = vpop.f32.mrb[0].mxu0
      %4001 = vmatprep.mubr.bf16.mxu0 0
      %4002 = vmatmul.mubr.bf16.gmra.mrb[0].mxu0 %v2631
      %v4003 = vpop.f32.mrb[0].mxu0
      %v4004 = vadd.f32 0.0, %v4003
      %v4005 = vpop.f32.mrb[0].mxu0
      %v4006 = vpop.f32.mrb[0].mxu0
      %v4007 = vadd.f32 0.0, %v4006
      %v4008 = vpop.f32.mrb[0].mxu0
      %4009 = vmatprep.mubr.bf16.mxu0 0
      %4010 = vmatmul.mubr.bf16.gmra.mrb[0].mxu0 %v2634
      %v4011 = vpop.f32.mrb[0].mxu0
      %v4012 = vadd.f32 0.0, %v4011
      %v4013 = vpop.f32.mrb[0].mxu0
      %v4014 = vpop.f32.mrb[0].mxu0
      %v4015 = vadd.f32 0.0, %v4014
      %v4016 = vpop.f32.mrb[0].mxu0
      %4017 = vmatprep.mubr.bf16.mxu0 0
      %4018 = vmatmul.mubr.bf16.gmra.mrb[0].mxu0 %v2637
      %v4019 = vpop.f32.mrb[0].mxu0
      %v4020 = vadd.f32 0.0, %v4019
      %v4021 = vpop.f32.mrb[0].mxu0
      %v4022 = vpop.f32.mrb[0].mxu0
      %v4023 = vadd.f32 0.0, %v4022
      %v4024 = vpop.f32.mrb[0].mxu0
      %4025 = vmatprep.mubr.bf16.mxu0 0
      %4026 = vmatmul.mubr.bf16.gmra.mrb[0].mxu0 %v2640
      %v4027 = vpop.f32.mrb[0].mxu0
      %v4028 = vadd.f32 0.0, %v4027
      %v4029 = vpop.f32.mrb[0].mxu0
      %v4030 = vpop.f32.mrb[0].mxu0
      %v4031 = vadd.f32 0.0, %v4030
      %v4032 = vpop.f32.mrb[0].mxu0
      %4033 = vmatprep.mubr.bf16.mxu0 0
      %4034 = vmatmul.mubr.bf16.gmra.mrb[0].mxu0 %v2643
      %v4035 = vpop.f32.mrb[0].mxu0
      %v4036 = vadd.f32 0.0, %v4035
      %v4037 = vpop.f32.mrb[0].mxu0
      %v4038 = vpop.f32.mrb[0].mxu0
      %v4039 = vadd.f32 0.0, %v4038
      %v4040 = vpop.f32.mrb[0].mxu0
      %4041 = vmatprep.mubr.bf16.mxu0 0
      %4042 = vmatmul.mubr.bf16.gmra.mrb[0].mxu0 %v2646
      %v4043 = vpop.f32.mrb[0].mxu0
      %v4044 = vadd.f32 0.0, %v4043
      %v4045 = vpop.f32.mrb[0].mxu0
      %v4046 = vpop.f32.mrb[0].mxu0
      %v4047 = vadd.f32 0.0, %v4046
      %v4048 = vpop.f32.mrb[0].mxu0
      %4049 = vmatprep.mubr.bf16.mxu0 0
      %4050 = vmatmul.mubr.bf16.gmra.mrb[0].mxu0 %v2649
      %v4051 = vpop.f32.mrb[0].mxu0
      %v4052 = vadd.f32 0.0, %v4051
      %v4053 = vpop.f32.mrb[0].mxu0
      %v4054 = vpop.f32.mrb[0].mxu0
      %v4055 = vadd.f32 0.0, %v4054
      %v4056 = vpop.f32.mrb[0].mxu0
      %4057 = vmatprep.mubr.bf16.mxu0 0
      %4058 = vmatmul.mubr.bf16.gmra.mrb[0].mxu0 %v2652
      %v4059 = vpop.f32.mrb[0].mxu0
      %v4060 = vadd.f32 0.0, %v4059
      %v4061 = vpop.f32.mrb[0].mxu0
      %v4062 = vpop.f32.mrb[0].mxu0
      %v4063 = vadd.f32 0.0, %v4062
      %v4064 = vpop.f32.mrb[0].mxu0
      %4065 = vmatprep.mubr.bf16.mxu0 0
      %4066 = vmatmul.mubr.bf16.gmra.mrb[0].mxu0 %v2655
      %v4067 = vpop.f32.mrb[0].mxu0
      %v4068 = vadd.f32 0.0, %v4067
      %v4069 = vpop.f32.mrb[0].mxu0
      %v4070 = vpop.f32.mrb[0].mxu0
      %v4071 = vadd.f32 0.0, %v4070
      %v4072 = vpop.f32.mrb[0].mxu0
      %4073 = vmatprep.mubr.bf16.mxu0 0
      %4074 = vmatmul.mubr.bf16.gmra.mrb[0].mxu0 %v2658
      %v4075 = vpop.f32.mrb[0].mxu0
      %v4076 = vadd.f32 0.0, %v4075
      %v4077 = vpop.f32.mrb[0].mxu0
      %v4078 = vpop.f32.mrb[0].mxu0
      %v4079 = vadd.f32 0.0, %v4078
      %v4080 = vpop.f32.mrb[0].mxu0
      %4081 = vmatprep.mubr.bf16.mxu0 0
      %4082 = vmatmul.mubr.bf16.gmra.mrb[0].mxu0 %v2661
      %v4083 = vpop.f32.mrb[0].mxu0
      %v4084 = vadd.f32 0.0, %v4083
      %v4085 = vpop.f32.mrb[0].mxu0
      %v4086 = vpop.f32.mrb[0].mxu0
      %v4087 = vadd.f32 0.0, %v4086
      %v4088 = vpop.f32.mrb[0].mxu0
      %4089 = vmatprep.mubr.bf16.mxu0 0
      %4090 = vmatmul.mubr.bf16.gmra.mrb[0].mxu0 %v2664
      %v4091 = vpop.f32.mrb[0].mxu0
      %v4092 = vadd.f32 0.0, %v4091
      %v4093 = vpop.f32.mrb[0].mxu0
      %v4094 = vpop.f32.mrb[0].mxu0
      %v4095 = vadd.f32 0.0, %v4094
      %v4096 = vpop.f32.mrb[0].mxu0
      %4097 = vmatprep.mubr.bf16.mxu0 0
      %4098 = vmatmul.mubr.bf16.gmra.mrb[0].mxu0 %v2667
      %v4099 = vpop.f32.mrb[0].mxu0
      %v4100 = vadd.f32 0.0, %v4099
      %v4101 = vpop.f32.mrb[0].mxu0
      %v4102 = vpop.f32.mrb[0].mxu0
      %v4103 = vadd.f32 0.0, %v4102
      %v4104 = vpop.f32.mrb[0].mxu0
      %4105 = vmatprep.mubr.bf16.mxu0 0
      %4106 = vmatmul.mubr.bf16.gmra.mrb[0].mxu0 %v2670
      %v4107 = vpop.f32.mrb[0].mxu0
      %v4108 = vadd.f32 0.0, %v4107
      %v4109 = vpop.f32.mrb[0].mxu0
      %v4110 = vpop.f32.mrb[0].mxu0
      %v4111 = vadd.f32 0.0, %v4110
      %v4112 = vpop.f32.mrb[0].mxu0
      %4113 = vmatprep.mubr.bf16.mxu0 0
      %4114 = vmatmul.mubr.bf16.gmra.mrb[0].mxu0 %v3956
      %v4115 = vpop.f32.mrb[0].mxu0
      %v4116 = vadd.f32 0.0, %v4115
      %v4117 = vpop.f32.mrb[0].mxu0
      %v4118 = vpop.f32.mrb[0].mxu0
      %v4119 = vadd.f32 0.0, %v4118
      %v4120 = vpop.f32.mrb[0].mxu0
      %4121 = vdwg.mxu0
      %v4122 = vunpack.c.l.b16 %v3936
      %v4123 = vunpack.c.l.b16 %v3939
      %v4124 = vpack.c.b16 %v4123, %v4122
      %v4126 = vsel %vm480, %v4124, 0
      %v4129 = vsel %vm529, %v3949, 0
      %4131 = vmatprep.subr.bf16.mxu0 0
      %4132 = vmatpush1.bf16.msra.mxu0 %v4129
      %4133 = vmatprep.subr.bf16.mxu0 0
      %4134 = vmatpush1.bf16.msra.mxu0 0
      %4135 = vmatprep.subr.bf16.mxu0 0
      %4136 = vmatpush1.bf16.msra.mxu0 0
      %4137 = vmatprep.subr.bf16.mxu0 0
      %4138 = vmatpush1.bf16.msra.mxu0 0
      %4139 = vmatprep.subr.bf16.mxu0 0
      %4140 = vmatpush1.bf16.msra.mxu0 0
      %4141 = vmatprep.subr.bf16.mxu0 0
      %4142 = vmatpush1.bf16.msra.mxu0 0
      %4143 = vmatprep.subr.bf16.mxu0 0
      %4144 = vmatpush1.bf16.msra.mxu0 0
      %4145 = vmatprep.subr.bf16.mxu0 0
      %4146 = vmatpush1.bf16.msra.mxu0 0
      %4147 = vmatprep.subr.bf16.mxu0 0
      %4148 = vmatpush1.bf16.msra.mxu0 0
      %4149 = vmatprep.subr.bf16.mxu0 0
      %4150 = vmatpush1.bf16.msra.mxu0 0
      %4151 = vmatprep.subr.bf16.mxu0 0
      %4152 = vmatpush1.bf16.msra.mxu0 0
      %4153 = vmatprep.subr.bf16.mxu0 0
      %4154 = vmatpush1.bf16.msra.mxu0 0
      %4155 = vmatprep.subr.bf16.mxu0 0
      %4156 = vmatpush1.bf16.msra.mxu0 0
      %4157 = vmatprep.subr.bf16.mxu0 0
      %4158 = vmatpush1.bf16.msra.mxu0 0
      %4159 = vmatprep.subr.bf16.mxu0 0
      %4160 = vmatpush1.bf16.msra.mxu0 0
      %4161 = vmatprep.subr.bf16.mxu0 0
      %4162 = vmatpush1.bf16.msra.mxu0 0
      %4163 = vmatprep.mubr.bf16.mxu0 0
      %4164 = vmatmul.mubr.bf16.gmra.mrb[0].mxu0 %v2888
      %v4165 = vpop.f32.mrb[0].mxu0
      %v4166 = vadd.f32 %v3996, %v4165
      %v4167 = vpop.f32.mrb[0].mxu0
      %v4168 = vpop.f32.mrb[0].mxu0
      %v4169 = vadd.f32 %v3999, %v4168
      %v4170 = vpop.f32.mrb[0].mxu0
      %4171 = vmatprep.mubr.bf16.mxu0 0
      %4172 = vmatmul.mubr.bf16.gmra.mrb[0].mxu0 %v2891
      %v4173 = vpop.f32.mrb[0].mxu0
      %v4174 = vadd.f32 %v4004, %v4173
      %v4175 = vpop.f32.mrb[0].mxu0
      %v4176 = vpop.f32.mrb[0].mxu0
      %v4177 = vadd.f32 %v4007, %v4176
      %v4178 = vpop.f32.mrb[0].mxu0
      %4179 = vmatprep.mubr.bf16.mxu0 0
      %4180 = vmatmul.mubr.bf16.gmra.mrb[0].mxu0 %v2894
      %v4181 = vpop.f32.mrb[0].mxu0
      %v4182 = vadd.f32 %v4012, %v4181
      %v4183 = vpop.f32.mrb[0].mxu0
      %v4184 = vpop.f32.mrb[0].mxu0
      %v4185 = vadd.f32 %v4015, %v4184
      %v4186 = vpop.f32.mrb[0].mxu0
      %4187 = vmatprep.mubr.bf16.mxu0 0
      %4188 = vmatmul.mubr.bf16.gmra.mrb[0].mxu0 %v2897
      %v4189 = vpop.f32.mrb[0].mxu0
      %v4190 = vadd.f32 %v4020, %v4189
      %v4191 = vpop.f32.mrb[0].mxu0
      %v4192 = vpop.f32.mrb[0].mxu0
      %v4193 = vadd.f32 %v4023, %v4192
      %v4194 = vpop.f32.mrb[0].mxu0
      %4195 = vmatprep.mubr.bf16.mxu0 0
      %4196 = vmatmul.mubr.bf16.gmra.mrb[0].mxu0 %v2900
      %v4197 = vpop.f32.mrb[0].mxu0
      %v4198 = vadd.f32 %v4028, %v4197
      %v4199 = vpop.f32.mrb[0].mxu0
      %v4200 = vpop.f32.mrb[0].mxu0
      %v4201 = vadd.f32 %v4031, %v4200
      %v4202 = vpop.f32.mrb[0].mxu0
      %4203 = vmatprep.mubr.bf16.mxu0 0
      %4204 = vmatmul.mubr.bf16.gmra.mrb[0].mxu0 %v2903
      %v4205 = vpop.f32.mrb[0].mxu0
      %v4206 = vadd.f32 %v4036, %v4205
      %v4207 = vpop.f32.mrb[0].mxu0
      %v4208 = vpop.f32.mrb[0].mxu0
      %v4209 = vadd.f32 %v4039, %v4208
      %v4210 = vpop.f32.mrb[0].mxu0
      %4211 = vmatprep.mubr.bf16.mxu0 0
      %4212 = vmatmul.mubr.bf16.gmra.mrb[0].mxu0 %v2906
      %v4213 = vpop.f32.mrb[0].mxu0
      %v4214 = vadd.f32 %v4044, %v4213
      %v4215 = vpop.f32.mrb[0].mxu0
      %v4216 = vpop.f32.mrb[0].mxu0
      %v4217 = vadd.f32 %v4047, %v4216
      %v4218 = vpop.f32.mrb[0].mxu0
      %4219 = vmatprep.mubr.bf16.mxu0 0
      %4220 = vmatmul.mubr.bf16.gmra.mrb[0].mxu0 %v2909
      %v4221 = vpop.f32.mrb[0].mxu0
      %v4222 = vadd.f32 %v4052, %v4221
      %v4223 = vpop.f32.mrb[0].mxu0
      %v4224 = vpop.f32.mrb[0].mxu0
      %v4225 = vadd.f32 %v4055, %v4224
      %v4226 = vpop.f32.mrb[0].mxu0
      %4227 = vmatprep.mubr.bf16.mxu0 0
      %4228 = vmatmul.mubr.bf16.gmra.mrb[0].mxu0 %v2912
      %v4229 = vpop.f32.mrb[0].mxu0
      %v4230 = vadd.f32 %v4060, %v4229
      %v4231 = vpop.f32.mrb[0].mxu0
      %v4232 = vpop.f32.mrb[0].mxu0
      %v4233 = vadd.f32 %v4063, %v4232
      %v4234 = vpop.f32.mrb[0].mxu0
      %4235 = vmatprep.mubr.bf16.mxu0 0
      %4236 = vmatmul.mubr.bf16.gmra.mrb[0].mxu0 %v2915
      %v4237 = vpop.f32.mrb[0].mxu0
      %v4238 = vadd.f32 %v4068, %v4237
      %v4239 = vpop.f32.mrb[0].mxu0
      %v4240 = vpop.f32.mrb[0].mxu0
      %v4241 = vadd.f32 %v4071, %v4240
      %v4242 = vpop.f32.mrb[0].mxu0
      %4243 = vmatprep.mubr.bf16.mxu0 0
      %4244 = vmatmul.mubr.bf16.gmra.mrb[0].mxu0 %v2918
      %v4245 = vpop.f32.mrb[0].mxu0
      %v4246 = vadd.f32 %v4076, %v4245
      %v4247 = vpop.f32.mrb[0].mxu0
      %v4248 = vpop.f32.mrb[0].mxu0
      %v4249 = vadd.f32 %v4079, %v4248
      %v4250 = vpop.f32.mrb[0].mxu0
      %4251 = vmatprep.mubr.bf16.mxu0 0
      %4252 = vmatmul.mubr.bf16.gmra.mrb[0].mxu0 %v2921
      %v4253 = vpop.f32.mrb[0].mxu0
      %v4254 = vadd.f32 %v4084, %v4253
      %v4255 = vpop.f32.mrb[0].mxu0
      %v4256 = vpop.f32.mrb[0].mxu0
      %v4257 = vadd.f32 %v4087, %v4256
      %v4258 = vpop.f32.mrb[0].mxu0
      %4259 = vmatprep.mubr.bf16.mxu0 0
      %4260 = vmatmul.mubr.bf16.gmra.mrb[0].mxu0 %v2924
      %v4261 = vpop.f32.mrb[0].mxu0
      %v4262 = vadd.f32 %v4092, %v4261
      %v4263 = vpop.f32.mrb[0].mxu0
      %v4264 = vpop.f32.mrb[0].mxu0
      %v4265 = vadd.f32 %v4095, %v4264
      %v4266 = vpop.f32.mrb[0].mxu0
      %4267 = vmatprep.mubr.bf16.mxu0 0
      %4268 = vmatmul.mubr.bf16.gmra.mrb[0].mxu0 %v2927
      %v4269 = vpop.f32.mrb[0].mxu0
      %v4270 = vadd.f32 %v4100, %v4269
      %v4271 = vpop.f32.mrb[0].mxu0
      %v4272 = vpop.f32.mrb[0].mxu0
      %v4273 = vadd.f32 %v4103, %v4272
      %v4274 = vpop.f32.mrb[0].mxu0
      %4275 = vmatprep.mubr.bf16.mxu0 0
      %4276 = vmatmul.mubr.bf16.gmra.mrb[0].mxu0 %v2930
      %v4277 = vpop.f32.mrb[0].mxu0
      %v4278 = vadd.f32 %v4108, %v4277
      %v4279 = vpop.f32.mrb[0].mxu0
      %v4280 = vpop.f32.mrb[0].mxu0
      %v4281 = vadd.f32 %v4111, %v4280
      %v4282 = vpop.f32.mrb[0].mxu0
      %4283 = vmatprep.mubr.bf16.mxu0 0
      %4284 = vmatmul.mubr.bf16.gmra.mrb[0].mxu0 %v4126
      %v4285 = vpop.f32.mrb[0].mxu0
      %v4286 = vadd.f32 %v4116, %v4285
      %v4287 = vpop.f32.mrb[0].mxu0
      %v4288 = vpop.f32.mrb[0].mxu0
      %v4289 = vadd.f32 %v4119, %v4288
      %v4290 = vpop.f32.mrb[0].mxu0
      %4291 = vdwg.mxu0
      %v4292 = vadd.f32 %v3900, %v4166
      %v4293 = vadd.f32 %v3901, %v4169
      %v4294 = vadd.f32 %v3902, %v4174
      %v4295 = vadd.f32 %v3903, %v4177
      %v4296 = vadd.f32 %v3904, %v4182
      %v4297 = vadd.f32 %v3905, %v4185
      %v4298 = vadd.f32 %v3906, %v4190
      %v4299 = vadd.f32 %v3907, %v4193
      %v4300 = vadd.f32 %v3908, %v4198
      %v4301 = vadd.f32 %v3909, %v4201
      %v4302 = vadd.f32 %v3910, %v4206
      %v4303 = vadd.f32 %v3911, %v4209
      %v4304 = vadd.f32 %v3912, %v4214
      %v4305 = vadd.f32 %v3913, %v4217
      %v4306 = vadd.f32 %v3914, %v4222
      %v4307 = vadd.f32 %v3915, %v4225
      %v4308 = vadd.f32 %v3916, %v4230
      %v4309 = vadd.f32 %v3917, %v4233
      %v4310 = vadd.f32 %v3918, %v4238
      %v4311 = vadd.f32 %v3919, %v4241
      %v4312 = vadd.f32 %v3920, %v4246
      %v4313 = vadd.f32 %v3921, %v4249
      %v4314 = vadd.f32 %v3922, %v4254
      %v4315 = vadd.f32 %v3923, %v4257
      %v4316 = vadd.f32 %v3924, %v4262
      %v4317 = vadd.f32 %v3925, %v4265
      %v4318 = vadd.f32 %v3926, %v4270
      %v4319 = vadd.f32 %v3927, %v4273
      %v4320 = vadd.f32 %v3928, %v4278
      %v4321 = vadd.f32 %v3929, %v4281
      %v4322 = vadd.f32 %v3930, %v4286
      %v4323 = vadd.f32 %v3931, %v4289
      %s4324 = scalar_lea.vmem %s2, 12
      %v4325 = vld [vmem:[%s4324] sm:$0x3]
      %s4326 = scalar_lea.vmem %s3, 12
      %v4327 = vld [vmem:[%s4326] sm:$0x3]
      %v4330 = vunpack.c.l.b16 %v395
      %v4331 = vunpack.c.l.b16 %v396
      %v4332 = vpack.c.b16 %v4331, %v4330
      %v4334 = vsel %vm480, %v4332, 0
      %v4337 = vsel %vm529, %v4327, 0
      %4339 = vmatprep.subr.bf16.mxu0 0
      %4340 = vmatpush1.bf16.msra.mxu0 %v4337
      %4341 = vmatprep.subr.bf16.mxu0 0
      %4342 = vmatpush1.bf16.msra.mxu0 0
      %4343 = vmatprep.subr.bf16.mxu0 0
      %4344 = vmatpush1.bf16.msra.mxu0 0
      %4345 = vmatprep.subr.bf16.mxu0 0
      %4346 = vmatpush1.bf16.msra.mxu0 0
      %4347 = vmatprep.subr.bf16.mxu0 0
      %4348 = vmatpush1.bf16.msra.mxu0 0
      %4349 = vmatprep.subr.bf16.mxu0 0
      %4350 = vmatpush1.bf16.msra.mxu0 0
      %4351 = vmatprep.subr.bf16.mxu0 0
      %4352 = vmatpush1.bf16.msra.mxu0 0
      %4353 = vmatprep.subr.bf16.mxu0 0
      %4354 = vmatpush1.bf16.msra.mxu0 0
      %4355 = vmatprep.subr.bf16.mxu0 0
      %4356 = vmatpush1.bf16.msra.mxu0 0
      %4357 = vmatprep.subr.bf16.mxu0 0
      %4358 = vmatpush1.bf16.msra.mxu0 0
      %4359 = vmatprep.subr.bf16.mxu0 0
      %4360 = vmatpush1.bf16.msra.mxu0 0
      %4361 = vmatprep.subr.bf16.mxu0 0
      %4362 = vmatpush1.bf16.msra.mxu0 0
      %4363 = vmatprep.subr.bf16.mxu0 0
      %4364 = vmatpush1.bf16.msra.mxu0 0
      %4365 = vmatprep.subr.bf16.mxu0 0
      %4366 = vmatpush1.bf16.msra.mxu0 0
      %4367 = vmatprep.subr.bf16.mxu0 0
      %4368 = vmatpush1.bf16.msra.mxu0 0
      %4369 = vmatprep.subr.bf16.mxu0 0
      %4370 = vmatpush1.bf16.msra.mxu0 0
      %4371 = vmatprep.mubr.bf16.mxu0 0
      %4372 = vmatmul.mubr.bf16.gmra.mrb[0].mxu0 %v488
      %v4373 = vpop.f32.mrb[0].mxu0
      %v4374 = vadd.f32 0.0, %v4373
      %v4375 = vpop.f32.mrb[0].mxu0
      %v4376 = vpop.f32.mrb[0].mxu0
      %v4377 = vadd.f32 0.0, %v4376
      %v4378 = vpop.f32.mrb[0].mxu0
      %4379 = vmatprep.mubr.bf16.mxu0 0
      %4380 = vmatmul.mubr.bf16.gmra.mrb[0].mxu0 %v491
      %v4381 = vpop.f32.mrb[0].mxu0
      %v4382 = vadd.f32 0.0, %v4381
      %v4383 = vpop.f32.mrb[0].mxu0
      %v4384 = vpop.f32.mrb[0].mxu0
      %v4385 = vadd.f32 0.0, %v4384
      %v4386 = vpop.f32.mrb[0].mxu0
      %4387 = vmatprep.mubr.bf16.mxu0 0
      %4388 = vmatmul.mubr.bf16.gmra.mrb[0].mxu0 %v494
      %v4389 = vpop.f32.mrb[0].mxu0
      %v4390 = vadd.f32 0.0, %v4389
      %v4391 = vpop.f32.mrb[0].mxu0
      %v4392 = vpop.f32.mrb[0].mxu0
      %v4393 = vadd.f32 0.0, %v4392
      %v4394 = vpop.f32.mrb[0].mxu0
      %4395 = vmatprep.mubr.bf16.mxu0 0
      %4396 = vmatmul.mubr.bf16.gmra.mrb[0].mxu0 %v497
      %v4397 = vpop.f32.mrb[0].mxu0
      %v4398 = vadd.f32 0.0, %v4397
      %v4399 = vpop.f32.mrb[0].mxu0
      %v4400 = vpop.f32.mrb[0].mxu0
      %v4401 = vadd.f32 0.0, %v4400
      %v4402 = vpop.f32.mrb[0].mxu0
      %4403 = vmatprep.mubr.bf16.mxu0 0
      %4404 = vmatmul.mubr.bf16.gmra.mrb[0].mxu0 %v500
      %v4405 = vpop.f32.mrb[0].mxu0
      %v4406 = vadd.f32 0.0, %v4405
      %v4407 = vpop.f32.mrb[0].mxu0
      %v4408 = vpop.f32.mrb[0].mxu0
      %v4409 = vadd.f32 0.0, %v4408
      %v4410 = vpop.f32.mrb[0].mxu0
      %4411 = vmatprep.mubr.bf16.mxu0 0
      %4412 = vmatmul.mubr.bf16.gmra.mrb[0].mxu0 %v503
      %v4413 = vpop.f32.mrb[0].mxu0
      %v4414 = vadd.f32 0.0, %v4413
      %v4415 = vpop.f32.mrb[0].mxu0
      %v4416 = vpop.f32.mrb[0].mxu0
      %v4417 = vadd.f32 0.0, %v4416
      %v4418 = vpop.f32.mrb[0].mxu0
      %4419 = vmatprep.mubr.bf16.mxu0 0
      %4420 = vmatmul.mubr.bf16.gmra.mrb[0].mxu0 %v506
      %v4421 = vpop.f32.mrb[0].mxu0
      %v4422 = vadd.f32 0.0, %v4421
      %v4423 = vpop.f32.mrb[0].mxu0
      %v4424 = vpop.f32.mrb[0].mxu0
      %v4425 = vadd.f32 0.0, %v4424
      %v4426 = vpop.f32.mrb[0].mxu0
      %4427 = vmatprep.mubr.bf16.mxu0 0
      %4428 = vmatmul.mubr.bf16.gmra.mrb[0].mxu0 %v509
      %v4429 = vpop.f32.mrb[0].mxu0
      %v4430 = vadd.f32 0.0, %v4429
      %v4431 = vpop.f32.mrb[0].mxu0
      %v4432 = vpop.f32.mrb[0].mxu0
      %v4433 = vadd.f32 0.0, %v4432
      %v4434 = vpop.f32.mrb[0].mxu0
      %4435 = vmatprep.mubr.bf16.mxu0 0
      %4436 = vmatmul.mubr.bf16.gmra.mrb[0].mxu0 %v512
      %v4437 = vpop.f32.mrb[0].mxu0
      %v4438 = vadd.f32 0.0, %v4437
      %v4439 = vpop.f32.mrb[0].mxu0
      %v4440 = vpop.f32.mrb[0].mxu0
      %v4441 = vadd.f32 0.0, %v4440
      %v4442 = vpop.f32.mrb[0].mxu0
      %4443 = vmatprep.mubr.bf16.mxu0 0
      %4444 = vmatmul.mubr.bf16.gmra.mrb[0].mxu0 %v515
      %v4445 = vpop.f32.mrb[0].mxu0
      %v4446 = vadd.f32 0.0, %v4445
      %v4447 = vpop.f32.mrb[0].mxu0
      %v4448 = vpop.f32.mrb[0].mxu0
      %v4449 = vadd.f32 0.0, %v4448
      %v4450 = vpop.f32.mrb[0].mxu0
      %4451 = vmatprep.mubr.bf16.mxu0 0
      %4452 = vmatmul.mubr.bf16.gmra.mrb[0].mxu0 %v518
      %v4453 = vpop.f32.mrb[0].mxu0
      %v4454 = vadd.f32 0.0, %v4453
      %v4455 = vpop.f32.mrb[0].mxu0
      %v4456 = vpop.f32.mrb[0].mxu0
      %v4457 = vadd.f32 0.0, %v4456
      %v4458 = vpop.f32.mrb[0].mxu0
      %4459 = vmatprep.mubr.bf16.mxu0 0
      %4460 = vmatmul.mubr.bf16.gmra.mrb[0].mxu0 %v521
      %v4461 = vpop.f32.mrb[0].mxu0
      %v4462 = vadd.f32 0.0, %v4461
      %v4463 = vpop.f32.mrb[0].mxu0
      %v4464 = vpop.f32.mrb[0].mxu0
      %v4465 = vadd.f32 0.0, %v4464
      %v4466 = vpop.f32.mrb[0].mxu0
      %4467 = vmatprep.mubr.bf16.mxu0 0
      %4468 = vmatmul.mubr.bf16.gmra.mrb[0].mxu0 %v524
      %v4469 = vpop.f32.mrb[0].mxu0
      %v4470 = vadd.f32 0.0, %v4469
      %v4471 = vpop.f32.mrb[0].mxu0
      %v4472 = vpop.f32.mrb[0].mxu0
      %v4473 = vadd.f32 0.0, %v4472
      %v4474 = vpop.f32.mrb[0].mxu0
      %4475 = vmatprep.mubr.bf16.mxu0 0
      %4476 = vmatmul.mubr.bf16.gmra.mrb[0].mxu0 %v527
      %v4477 = vpop.f32.mrb[0].mxu0
      %v4478 = vadd.f32 0.0, %v4477
      %v4479 = vpop.f32.mrb[0].mxu0
      %v4480 = vpop.f32.mrb[0].mxu0
      %v4481 = vadd.f32 0.0, %v4480
      %v4482 = vpop.f32.mrb[0].mxu0
      %4483 = vmatprep.mubr.bf16.mxu0 0
      %4484 = vmatmul.mubr.bf16.gmra.mrb[0].mxu0 %v3138
      %v4485 = vpop.f32.mrb[0].mxu0
      %v4486 = vadd.f32 0.0, %v4485
      %v4487 = vpop.f32.mrb[0].mxu0
      %v4488 = vpop.f32.mrb[0].mxu0
      %v4489 = vadd.f32 0.0, %v4488
      %v4490 = vpop.f32.mrb[0].mxu0
      %4491 = vmatprep.mubr.bf16.mxu0 0
      %4492 = vmatmul.mubr.bf16.gmra.mrb[0].mxu0 %v4334
      %v4493 = vpop.f32.mrb[0].mxu0
      %v4494 = vadd.f32 0.0, %v4493
      %v4495 = vpop.f32.mrb[0].mxu0
      %v4496 = vpop.f32.mrb[0].mxu0
      %v4497 = vadd.f32 0.0, %v4496
      %v4498 = vpop.f32.mrb[0].mxu0
      %4499 = vdwg.mxu0
      %v4502 = vunpack.c.l.b16 %v341
      %v4503 = vunpack.c.l.b16 %v342
      %v4504 = vpack.c.b16 %v4503, %v4502
      %v4506 = vsel %vm480, %v4504, 0
      %v4509 = vsel %vm529, %v4325, 0
      %4511 = vmatprep.subr.bf16.mxu0 0
      %4512 = vmatpush1.bf16.msra.mxu0 %v4509
      %4513 = vmatprep.subr.bf16.mxu0 0
      %4514 = vmatpush1.bf16.msra.mxu0 0
      %4515 = vmatprep.subr.bf16.mxu0 0
      %4516 = vmatpush1.bf16.msra.mxu0 0
      %4517 = vmatprep.subr.bf16.mxu0 0
      %4518 = vmatpush1.bf16.msra.mxu0 0
      %4519 = vmatprep.subr.bf16.mxu0 0
      %4520 = vmatpush1.bf16.msra.mxu0 0
      %4521 = vmatprep.subr.bf16.mxu0 0
      %4522 = vmatpush1.bf16.msra.mxu0 0
      %4523 = vmatprep.subr.bf16.mxu0 0
      %4524 = vmatpush1.bf16.msra.mxu0 0
      %4525 = vmatprep.subr.bf16.mxu0 0
      %4526 = vmatpush1.bf16.msra.mxu0 0
      %4527 = vmatprep.subr.bf16.mxu0 0
      %4528 = vmatpush1.bf16.msra.mxu0 0
      %4529 = vmatprep.subr.bf16.mxu0 0
      %4530 = vmatpush1.bf16.msra.mxu0 0
      %4531 = vmatprep.subr.bf16.mxu0 0
      %4532 = vmatpush1.bf16.msra.mxu0 0
      %4533 = vmatprep.subr.bf16.mxu0 0
      %4534 = vmatpush1.bf16.msra.mxu0 0
      %4535 = vmatprep.subr.bf16.mxu0 0
      %4536 = vmatpush1.bf16.msra.mxu0 0
      %4537 = vmatprep.subr.bf16.mxu0 0
      %4538 = vmatpush1.bf16.msra.mxu0 0
      %4539 = vmatprep.subr.bf16.mxu0 0
      %4540 = vmatpush1.bf16.msra.mxu0 0
      %4541 = vmatprep.subr.bf16.mxu0 0
      %4542 = vmatpush1.bf16.msra.mxu0 0
      %4543 = vmatprep.mubr.bf16.mxu0 0
      %4544 = vmatmul.mubr.bf16.gmra.mrb[0].mxu0 %v781
      %v4545 = vpop.f32.mrb[0].mxu0
      %v4546 = vadd.f32 %v4374, %v4545
      %v4547 = vpop.f32.mrb[0].mxu0
      %v4548 = vpop.f32.mrb[0].mxu0
      %v4549 = vadd.f32 %v4377, %v4548
      %v4550 = vpop.f32.mrb[0].mxu0
      %4551 = vmatprep.mubr.bf16.mxu0 0
      %4552 = vmatmul.mubr.bf16.gmra.mrb[0].mxu0 %v784
      %v4553 = vpop.f32.mrb[0].mxu0
      %v4554 = vadd.f32 %v4382, %v4553
      %v4555 = vpop.f32.mrb[0].mxu0
      %v4556 = vpop.f32.mrb[0].mxu0
      %v4557 = vadd.f32 %v4385, %v4556
      %v4558 = vpop.f32.mrb[0].mxu0
      %4559 = vmatprep.mubr.bf16.mxu0 0
      %4560 = vmatmul.mubr.bf16.gmra.mrb[0].mxu0 %v787
      %v4561 = vpop.f32.mrb[0].mxu0
      %v4562 = vadd.f32 %v4390, %v4561
      %v4563 = vpop.f32.mrb[0].mxu0
      %v4564 = vpop.f32.mrb[0].mxu0
      %v4565 = vadd.f32 %v4393, %v4564
      %v4566 = vpop.f32.mrb[0].mxu0
      %4567 = vmatprep.mubr.bf16.mxu0 0
      %4568 = vmatmul.mubr.bf16.gmra.mrb[0].mxu0 %v790
      %v4569 = vpop.f32.mrb[0].mxu0
      %v4570 = vadd.f32 %v4398, %v4569
      %v4571 = vpop.f32.mrb[0].mxu0
      %v4572 = vpop.f32.mrb[0].mxu0
      %v4573 = vadd.f32 %v4401, %v4572
      %v4574 = vpop.f32.mrb[0].mxu0
      %4575 = vmatprep.mubr.bf16.mxu0 0
      %4576 = vmatmul.mubr.bf16.gmra.mrb[0].mxu0 %v793
      %v4577 = vpop.f32.mrb[0].mxu0
      %v4578 = vadd.f32 %v4406, %v4577
      %v4579 = vpop.f32.mrb[0].mxu0
      %v4580 = vpop.f32.mrb[0].mxu0
      %v4581 = vadd.f32 %v4409, %v4580
      %v4582 = vpop.f32.mrb[0].mxu0
      %4583 = vmatprep.mubr.bf16.mxu0 0
      %4584 = vmatmul.mubr.bf16.gmra.mrb[0].mxu0 %v796
      %v4585 = vpop.f32.mrb[0].mxu0
      %v4586 = vadd.f32 %v4414, %v4585
      %v4587 = vpop.f32.mrb[0].mxu0
      %v4588 = vpop.f32.mrb[0].mxu0
      %v4589 = vadd.f32 %v4417, %v4588
      %v4590 = vpop.f32.mrb[0].mxu0
      %4591 = vmatprep.mubr.bf16.mxu0 0
      %4592 = vmatmul.mubr.bf16.gmra.mrb[0].mxu0 %v799
      %v4593 = vpop.f32.mrb[0].mxu0
      %v4594 = vadd.f32 %v4422, %v4593
      %v4595 = vpop.f32.mrb[0].mxu0
      %v4596 = vpop.f32.mrb[0].mxu0
      %v4597 = vadd.f32 %v4425, %v4596
      %v4598 = vpop.f32.mrb[0].mxu0
      %4599 = vmatprep.mubr.bf16.mxu0 0
      %4600 = vmatmul.mubr.bf16.gmra.mrb[0].mxu0 %v802
      %v4601 = vpop.f32.mrb[0].mxu0
      %v4602 = vadd.f32 %v4430, %v4601
      %v4603 = vpop.f32.mrb[0].mxu0
      %v4604 = vpop.f32.mrb[0].mxu0
      %v4605 = vadd.f32 %v4433, %v4604
      %v4606 = vpop.f32.mrb[0].mxu0
      %4607 = vmatprep.mubr.bf16.mxu0 0
      %4608 = vmatmul.mubr.bf16.gmra.mrb[0].mxu0 %v805
      %v4609 = vpop.f32.mrb[0].mxu0
      %v4610 = vadd.f32 %v4438, %v4609
      %v4611 = vpop.f32.mrb[0].mxu0
      %v4612 = vpop.f32.mrb[0].mxu0
      %v4613 = vadd.f32 %v4441, %v4612
      %v4614 = vpop.f32.mrb[0].mxu0
      %4615 = vmatprep.mubr.bf16.mxu0 0
      %4616 = vmatmul.mubr.bf16.gmra.mrb[0].mxu0 %v808
      %v4617 = vpop.f32.mrb[0].mxu0
      %v4618 = vadd.f32 %v4446, %v4617
      %v4619 = vpop.f32.mrb[0].mxu0
      %v4620 = vpop.f32.mrb[0].mxu0
      %v4621 = vadd.f32 %v4449, %v4620
      %v4622 = vpop.f32.mrb[0].mxu0
      %4623 = vmatprep.mubr.bf16.mxu0 0
      %4624 = vmatmul.mubr.bf16.gmra.mrb[0].mxu0 %v811
      %v4625 = vpop.f32.mrb[0].mxu0
      %v4626 = vadd.f32 %v4454, %v4625
      %v4627 = vpop.f32.mrb[0].mxu0
      %v4628 = vpop.f32.mrb[0].mxu0
      %v4629 = vadd.f32 %v4457, %v4628
      %v4630 = vpop.f32.mrb[0].mxu0
      %4631 = vmatprep.mubr.bf16.mxu0 0
      %4632 = vmatmul.mubr.bf16.gmra.mrb[0].mxu0 %v814
      %v4633 = vpop.f32.mrb[0].mxu0
      %v4634 = vadd.f32 %v4462, %v4633
      %v4635 = vpop.f32.mrb[0].mxu0
      %v4636 = vpop.f32.mrb[0].mxu0
      %v4637 = vadd.f32 %v4465, %v4636
      %v4638 = vpop.f32.mrb[0].mxu0
      %4639 = vmatprep.mubr.bf16.mxu0 0
      %4640 = vmatmul.mubr.bf16.gmra.mrb[0].mxu0 %v817
      %v4641 = vpop.f32.mrb[0].mxu0
      %v4642 = vadd.f32 %v4470, %v4641
      %v4643 = vpop.f32.mrb[0].mxu0
      %v4644 = vpop.f32.mrb[0].mxu0
      %v4645 = vadd.f32 %v4473, %v4644
      %v4646 = vpop.f32.mrb[0].mxu0
      %4647 = vmatprep.mubr.bf16.mxu0 0
      %4648 = vmatmul.mubr.bf16.gmra.mrb[0].mxu0 %v820
      %v4649 = vpop.f32.mrb[0].mxu0
      %v4650 = vadd.f32 %v4478, %v4649
      %v4651 = vpop.f32.mrb[0].mxu0
      %v4652 = vpop.f32.mrb[0].mxu0
      %v4653 = vadd.f32 %v4481, %v4652
      %v4654 = vpop.f32.mrb[0].mxu0
      %4655 = vmatprep.mubr.bf16.mxu0 0
      %4656 = vmatmul.mubr.bf16.gmra.mrb[0].mxu0 %v3310
      %v4657 = vpop.f32.mrb[0].mxu0
      %v4658 = vadd.f32 %v4486, %v4657
      %v4659 = vpop.f32.mrb[0].mxu0
      %v4660 = vpop.f32.mrb[0].mxu0
      %v4661 = vadd.f32 %v4489, %v4660
      %v4662 = vpop.f32.mrb[0].mxu0
      %4663 = vmatprep.mubr.bf16.mxu0 0
      %4664 = vmatmul.mubr.bf16.gmra.mrb[0].mxu0 %v4506
      %v4665 = vpop.f32.mrb[0].mxu0
      %v4666 = vadd.f32 %v4494, %v4665
      %v4667 = vpop.f32.mrb[0].mxu0
      %v4668 = vpop.f32.mrb[0].mxu0
      %v4669 = vadd.f32 %v4497, %v4668
      %v4670 = vpop.f32.mrb[0].mxu0
      %4671 = vdwg.mxu0
      %v4672 = vadd.f32 %v4292, %v4546
      %v4673 = vadd.f32 %v4293, %v4549
      %v4674 = vadd.f32 %v4294, %v4554
      %v4675 = vadd.f32 %v4295, %v4557
      %v4676 = vadd.f32 %v4296, %v4562
      %v4677 = vadd.f32 %v4297, %v4565
      %v4678 = vadd.f32 %v4298, %v4570
      %v4679 = vadd.f32 %v4299, %v4573
      %v4680 = vadd.f32 %v4300, %v4578
      %v4681 = vadd.f32 %v4301, %v4581
      %v4682 = vadd.f32 %v4302, %v4586
      %v4683 = vadd.f32 %v4303, %v4589
      %v4684 = vadd.f32 %v4304, %v4594
      %v4685 = vadd.f32 %v4305, %v4597
      %v4686 = vadd.f32 %v4306, %v4602
      %v4687 = vadd.f32 %v4307, %v4605
      %v4688 = vadd.f32 %v4308, %v4610
      %v4689 = vadd.f32 %v4309, %v4613
      %v4690 = vadd.f32 %v4310, %v4618
      %v4691 = vadd.f32 %v4311, %v4621
      %v4692 = vadd.f32 %v4312, %v4626
      %v4693 = vadd.f32 %v4313, %v4629
      %v4694 = vadd.f32 %v4314, %v4634
      %v4695 = vadd.f32 %v4315, %v4637
      %v4696 = vadd.f32 %v4316, %v4642
      %v4697 = vadd.f32 %v4317, %v4645
      %v4698 = vadd.f32 %v4318, %v4650
      %v4699 = vadd.f32 %v4319, %v4653
      %v4700 = vadd.f32 %v4320, %v4658
      %v4701 = vadd.f32 %v4321, %v4661
      %v4702 = vadd.f32 %v4322, %v4666
      %v4703 = vadd.f32 %v4323, %v4669
      %v4705 = vshrl.u32 %v341, 16
      %v4707 = vrot.slane %v4705, 4
      %v4708 = vshll.u32 %v341, 16
      %v4710 = vrot.slane %v4708, 5
      %v4711 = vor.u32 %v4707, %v4710
      %v4712 = vrot.slane %v4711, 4
      %v4714 = vshll.u32 %v342, 16
      %v4716 = vrot.slane %v4714, 5
      %v4717 = vsel %vm988, %v4712, %v4716
      %v4718 = vshrl.u32 %v342, 16
      %v4720 = vrot.slane %v4718, 4
      %v4721 = vor.u32 %v4720, %v4716
      %v4722 = vrot.slane %v4721, 4
      %v4724 = vshll.u32 %v343, 16
      %v4726 = vrot.slane %v4724, 5
      %v4727 = vsel %vm988, %v4722, %v4726
      %v4729 = vshrl.u32 %v395, 16
      %v4731 = vrot.slane %v4729, 4
      %v4732 = vshll.u32 %v395, 16
      %v4734 = vrot.slane %v4732, 5
      %v4735 = vor.u32 %v4731, %v4734
      %v4736 = vrot.slane %v4735, 4
      %v4738 = vshll.u32 %v396, 16
      %v4740 = vrot.slane %v4738, 5
      %v4741 = vsel %vm988, %v4736, %v4740
      %v4742 = vshrl.u32 %v396, 16
      %v4744 = vrot.slane %v4742, 4
      %v4745 = vor.u32 %v4744, %v4740
      %v4746 = vrot.slane %v4745, 4
      %v4748 = vshll.u32 %v397, 16
      %v4750 = vrot.slane %v4748, 5
      %v4751 = vsel %vm988, %v4746, %v4750
      %s4752 = scalar_lea.vmem %s2, 14
      %v4753 = vld [vmem:[%s4752] sm:$0x3]
      %s4754 = scalar_lea.vmem %s3, 14
      %v4755 = vld [vmem:[%s4754] sm:$0x3]
      %v4756 = vunpack.c.l.b16 %v4741
      %v4757 = vunpack.c.l.b16 %v4751
      %v4758 = vpack.c.b16 %v4757, %v4756
      %v4760 = vsel %vm480, %v4758, 0
      %v4763 = vsel %vm529, %v4755, 0
      %4765 = vmatprep.subr.bf16.mxu0 0
      %4766 = vmatpush1.bf16.msra.mxu0 %v4763
      %4767 = vmatprep.subr.bf16.mxu0 0
      %4768 = vmatpush1.bf16.msra.mxu0 0
      %4769 = vmatprep.subr.bf16.mxu0 0
      %4770 = vmatpush1.bf16.msra.mxu0 0
      %4771 = vmatprep.subr.bf16.mxu0 0
      %4772 = vmatpush1.bf16.msra.mxu0 0
      %4773 = vmatprep.subr.bf16.mxu0 0
      %4774 = vmatpush1.bf16.msra.mxu0 0
      %4775 = vmatprep.subr.bf16.mxu0 0
      %4776 = vmatpush1.bf16.msra.mxu0 0
      %4777 = vmatprep.subr.bf16.mxu0 0
      %4778 = vmatpush1.bf16.msra.mxu0 0
      %4779 = vmatprep.subr.bf16.mxu0 0
      %4780 = vmatpush1.bf16.msra.mxu0 0
      %4781 = vmatprep.subr.bf16.mxu0 0
      %4782 = vmatpush1.bf16.msra.mxu0 0
      %4783 = vmatprep.subr.bf16.mxu0 0
      %4784 = vmatpush1.bf16.msra.mxu0 0
      %4785 = vmatprep.subr.bf16.mxu0 0
      %4786 = vmatpush1.bf16.msra.mxu0 0
      %4787 = vmatprep.subr.bf16.mxu0 0
      %4788 = vmatpush1.bf16.msra.mxu0 0
      %4789 = vmatprep.subr.bf16.mxu0 0
      %4790 = vmatpush1.bf16.msra.mxu0 0
      %4791 = vmatprep.subr.bf16.mxu0 0
      %4792 = vmatpush1.bf16.msra.mxu0 0
      %4793 = vmatprep.subr.bf16.mxu0 0
      %4794 = vmatpush1.bf16.msra.mxu0 0
      %4795 = vmatprep.subr.bf16.mxu0 0
      %4796 = vmatpush1.bf16.msra.mxu0 0
      %4797 = vmatprep.mubr.bf16.mxu0 0
      %4798 = vmatmul.mubr.bf16.gmra.mrb[0].mxu0 %v1816
      %v4799 = vpop.f32.mrb[0].mxu0
      %v4800 = vadd.f32 0.0, %v4799
      %v4801 = vpop.f32.mrb[0].mxu0
      %v4802 = vpop.f32.mrb[0].mxu0
      %v4803 = vadd.f32 0.0, %v4802
      %v4804 = vpop.f32.mrb[0].mxu0
      %4805 = vmatprep.mubr.bf16.mxu0 0
      %4806 = vmatmul.mubr.bf16.gmra.mrb[0].mxu0 %v1819
      %v4807 = vpop.f32.mrb[0].mxu0
      %v4808 = vadd.f32 0.0, %v4807
      %v4809 = vpop.f32.mrb[0].mxu0
      %v4810 = vpop.f32.mrb[0].mxu0
      %v4811 = vadd.f32 0.0, %v4810
      %v4812 = vpop.f32.mrb[0].mxu0
      %4813 = vmatprep.mubr.bf16.mxu0 0
      %4814 = vmatmul.mubr.bf16.gmra.mrb[0].mxu0 %v1822
      %v4815 = vpop.f32.mrb[0].mxu0
      %v4816 = vadd.f32 0.0, %v4815
      %v4817 = vpop.f32.mrb[0].mxu0
      %v4818 = vpop.f32.mrb[0].mxu0
      %v4819 = vadd.f32 0.0, %v4818
      %v4820 = vpop.f32.mrb[0].mxu0
      %4821 = vmatprep.mubr.bf16.mxu0 0
      %4822 = vmatmul.mubr.bf16.gmra.mrb[0].mxu0 %v1825
      %v4823 = vpop.f32.mrb[0].mxu0
      %v4824 = vadd.f32 0.0, %v4823
      %v4825 = vpop.f32.mrb[0].mxu0
      %v4826 = vpop.f32.mrb[0].mxu0
      %v4827 = vadd.f32 0.0, %v4826
      %v4828 = vpop.f32.mrb[0].mxu0
      %4829 = vmatprep.mubr.bf16.mxu0 0
      %4830 = vmatmul.mubr.bf16.gmra.mrb[0].mxu0 %v1828
      %v4831 = vpop.f32.mrb[0].mxu0
      %v4832 = vadd.f32 0.0, %v4831
      %v4833 = vpop.f32.mrb[0].mxu0
      %v4834 = vpop.f32.mrb[0].mxu0
      %v4835 = vadd.f32 0.0, %v4834
      %v4836 = vpop.f32.mrb[0].mxu0
      %4837 = vmatprep.mubr.bf16.mxu0 0
      %4838 = vmatmul.mubr.bf16.gmra.mrb[0].mxu0 %v1831
      %v4839 = vpop.f32.mrb[0].mxu0
      %v4840 = vadd.f32 0.0, %v4839
      %v4841 = vpop.f32.mrb[0].mxu0
      %v4842 = vpop.f32.mrb[0].mxu0
      %v4843 = vadd.f32 0.0, %v4842
      %v4844 = vpop.f32.mrb[0].mxu0
      %4845 = vmatprep.mubr.bf16.mxu0 0
      %4846 = vmatmul.mubr.bf16.gmra.mrb[0].mxu0 %v1834
      %v4847 = vpop.f32.mrb[0].mxu0
      %v4848 = vadd.f32 0.0, %v4847
      %v4849 = vpop.f32.mrb[0].mxu0
      %v4850 = vpop.f32.mrb[0].mxu0
      %v4851 = vadd.f32 0.0, %v4850
      %v4852 = vpop.f32.mrb[0].mxu0
      %4853 = vmatprep.mubr.bf16.mxu0 0
      %4854 = vmatmul.mubr.bf16.gmra.mrb[0].mxu0 %v1837
      %v4855 = vpop.f32.mrb[0].mxu0
      %v4856 = vadd.f32 0.0, %v4855
      %v4857 = vpop.f32.mrb[0].mxu0
      %v4858 = vpop.f32.mrb[0].mxu0
      %v4859 = vadd.f32 0.0, %v4858
      %v4860 = vpop.f32.mrb[0].mxu0
      %4861 = vmatprep.mubr.bf16.mxu0 0
      %4862 = vmatmul.mubr.bf16.gmra.mrb[0].mxu0 %v1840
      %v4863 = vpop.f32.mrb[0].mxu0
      %v4864 = vadd.f32 0.0, %v4863
      %v4865 = vpop.f32.mrb[0].mxu0
      %v4866 = vpop.f32.mrb[0].mxu0
      %v4867 = vadd.f32 0.0, %v4866
      %v4868 = vpop.f32.mrb[0].mxu0
      %4869 = vmatprep.mubr.bf16.mxu0 0
      %4870 = vmatmul.mubr.bf16.gmra.mrb[0].mxu0 %v1843
      %v4871 = vpop.f32.mrb[0].mxu0
      %v4872 = vadd.f32 0.0, %v4871
      %v4873 = vpop.f32.mrb[0].mxu0
      %v4874 = vpop.f32.mrb[0].mxu0
      %v4875 = vadd.f32 0.0, %v4874
      %v4876 = vpop.f32.mrb[0].mxu0
      %4877 = vmatprep.mubr.bf16.mxu0 0
      %4878 = vmatmul.mubr.bf16.gmra.mrb[0].mxu0 %v1846
      %v4879 = vpop.f32.mrb[0].mxu0
      %v4880 = vadd.f32 0.0, %v4879
      %v4881 = vpop.f32.mrb[0].mxu0
      %v4882 = vpop.f32.mrb[0].mxu0
      %v4883 = vadd.f32 0.0, %v4882
      %v4884 = vpop.f32.mrb[0].mxu0
      %4885 = vmatprep.mubr.bf16.mxu0 0
      %4886 = vmatmul.mubr.bf16.gmra.mrb[0].mxu0 %v1849
      %v4887 = vpop.f32.mrb[0].mxu0
      %v4888 = vadd.f32 0.0, %v4887
      %v4889 = vpop.f32.mrb[0].mxu0
      %v4890 = vpop.f32.mrb[0].mxu0
      %v4891 = vadd.f32 0.0, %v4890
      %v4892 = vpop.f32.mrb[0].mxu0
      %4893 = vmatprep.mubr.bf16.mxu0 0
      %4894 = vmatmul.mubr.bf16.gmra.mrb[0].mxu0 %v1852
      %v4895 = vpop.f32.mrb[0].mxu0
      %v4896 = vadd.f32 0.0, %v4895
      %v4897 = vpop.f32.mrb[0].mxu0
      %v4898 = vpop.f32.mrb[0].mxu0
      %v4899 = vadd.f32 0.0, %v4898
      %v4900 = vpop.f32.mrb[0].mxu0
      %4901 = vmatprep.mubr.bf16.mxu0 0
      %4902 = vmatmul.mubr.bf16.gmra.mrb[0].mxu0 %v1855
      %v4903 = vpop.f32.mrb[0].mxu0
      %v4904 = vadd.f32 0.0, %v4903
      %v4905 = vpop.f32.mrb[0].mxu0
      %v4906 = vpop.f32.mrb[0].mxu0
      %v4907 = vadd.f32 0.0, %v4906
      %v4908 = vpop.f32.mrb[0].mxu0
      %4909 = vmatprep.mubr.bf16.mxu0 0
      %4910 = vmatmul.mubr.bf16.gmra.mrb[0].mxu0 %v3564
      %v4911 = vpop.f32.mrb[0].mxu0
      %v4912 = vadd.f32 0.0, %v4911
      %v4913 = vpop.f32.mrb[0].mxu0
      %v4914 = vpop.f32.mrb[0].mxu0
      %v4915 = vadd.f32 0.0, %v4914
      %v4916 = vpop.f32.mrb[0].mxu0
      %4917 = vmatprep.mubr.bf16.mxu0 0
      %4918 = vmatmul.mubr.bf16.gmra.mrb[0].mxu0 %v4760
      %v4919 = vpop.f32.mrb[0].mxu0
      %v4920 = vadd.f32 0.0, %v4919
      %v4921 = vpop.f32.mrb[0].mxu0
      %v4922 = vpop.f32.mrb[0].mxu0
      %v4923 = vadd.f32 0.0, %v4922
      %v4924 = vpop.f32.mrb[0].mxu0
      %4925 = vdwg.mxu0
      %v4926 = vunpack.c.l.b16 %v4717
      %v4927 = vunpack.c.l.b16 %v4727
      %v4928 = vpack.c.b16 %v4927, %v4926
      %v4930 = vsel %vm480, %v4928, 0
      %v4933 = vsel %vm529, %v4753, 0
      %4935 = vmatprep.subr.bf16.mxu0 0
      %4936 = vmatpush1.bf16.msra.mxu0 %v4933
      %4937 = vmatprep.subr.bf16.mxu0 0
      %4938 = vmatpush1.bf16.msra.mxu0 0
      %4939 = vmatprep.subr.bf16.mxu0 0
      %4940 = vmatpush1.bf16.msra.mxu0 0
      %4941 = vmatprep.subr.bf16.mxu0 0
      %4942 = vmatpush1.bf16.msra.mxu0 0
      %4943 = vmatprep.subr.bf16.mxu0 0
      %4944 = vmatpush1.bf16.msra.mxu0 0
      %4945 = vmatprep.subr.bf16.mxu0 0
      %4946 = vmatpush1.bf16.msra.mxu0 0
      %4947 = vmatprep.subr.bf16.mxu0 0
      %4948 = vmatpush1.bf16.msra.mxu0 0
      %4949 = vmatprep.subr.bf16.mxu0 0
      %4950 = vmatpush1.bf16.msra.mxu0 0
      %4951 = vmatprep.subr.bf16.mxu0 0
      %4952 = vmatpush1.bf16.msra.mxu0 0
      %4953 = vmatprep.subr.bf16.mxu0 0
      %4954 = vmatpush1.bf16.msra.mxu0 0
      %4955 = vmatprep.subr.bf16.mxu0 0
      %4956 = vmatpush1.bf16.msra.mxu0 0
      %4957 = vmatprep.subr.bf16.mxu0 0
      %4958 = vmatpush1.bf16.msra.mxu0 0
      %4959 = vmatprep.subr.bf16.mxu0 0
      %4960 = vmatpush1.bf16.msra.mxu0 0
      %4961 = vmatprep.subr.bf16.mxu0 0
      %4962 = vmatpush1.bf16.msra.mxu0 0
      %4963 = vmatprep.subr.bf16.mxu0 0
      %4964 = vmatpush1.bf16.msra.mxu0 0
      %4965 = vmatprep.subr.bf16.mxu0 0
      %4966 = vmatpush1.bf16.msra.mxu0 0
      %4967 = vmatprep.mubr.bf16.mxu0 0
      %4968 = vmatmul.mubr.bf16.gmra.mrb[0].mxu0 %v2076
      %v4969 = vpop.f32.mrb[0].mxu0
      %v4970 = vadd.f32 %v4800, %v4969
      %v4971 = vpop.f32.mrb[0].mxu0
      %v4972 = vpop.f32.mrb[0].mxu0
      %v4973 = vadd.f32 %v4803, %v4972
      %v4974 = vpop.f32.mrb[0].mxu0
      %4975 = vmatprep.mubr.bf16.mxu0 0
      %4976 = vmatmul.mubr.bf16.gmra.mrb[0].mxu0 %v2079
      %v4977 = vpop.f32.mrb[0].mxu0
      %v4978 = vadd.f32 %v4808, %v4977
      %v4979 = vpop.f32.mrb[0].mxu0
      %v4980 = vpop.f32.mrb[0].mxu0
      %v4981 = vadd.f32 %v4811, %v4980
      %v4982 = vpop.f32.mrb[0].mxu0
      %4983 = vmatprep.mubr.bf16.mxu0 0
      %4984 = vmatmul.mubr.bf16.gmra.mrb[0].mxu0 %v2082
      %v4985 = vpop.f32.mrb[0].mxu0
      %v4986 = vadd.f32 %v4816, %v4985
      %v4987 = vpop.f32.mrb[0].mxu0
      %v4988 = vpop.f32.mrb[0].mxu0
      %v4989 = vadd.f32 %v4819, %v4988
      %v4990 = vpop.f32.mrb[0].mxu0
      %4991 = vmatprep.mubr.bf16.mxu0 0
      %4992 = vmatmul.mubr.bf16.gmra.mrb[0].mxu0 %v2085
      %v4993 = vpop.f32.mrb[0].mxu0
      %v4994 = vadd.f32 %v4824, %v4993
      %v4995 = vpop.f32.mrb[0].mxu0
      %v4996 = vpop.f32.mrb[0].mxu0
      %v4997 = vadd.f32 %v4827, %v4996
      %v4998 = vpop.f32.mrb[0].mxu0
      %4999 = vmatprep.mubr.bf16.mxu0 0
      %5000 = vmatmul.mubr.bf16.gmra.mrb[0].mxu0 %v2088
      %v5001 = vpop.f32.mrb[0].mxu0
      %v5002 = vadd.f32 %v4832, %v5001
      %v5003 = vpop.f32.mrb[0].mxu0
      %v5004 = vpop.f32.mrb[0].mxu0
      %v5005 = vadd.f32 %v4835, %v5004
      %v5006 = vpop.f32.mrb[0].mxu0
      %5007 = vmatprep.mubr.bf16.mxu0 0
      %5008 = vmatmul.mubr.bf16.gmra.mrb[0].mxu0 %v2091
      %v5009 = vpop.f32.mrb[0].mxu0
      %v5010 = vadd.f32 %v4840, %v5009
      %v5011 = vpop.f32.mrb[0].mxu0
      %v5012 = vpop.f32.mrb[0].mxu0
      %v5013 = vadd.f32 %v4843, %v5012
      %v5014 = vpop.f32.mrb[0].mxu0
      %5015 = vmatprep.mubr.bf16.mxu0 0
      %5016 = vmatmul.mubr.bf16.gmra.mrb[0].mxu0 %v2094
      %v5017 = vpop.f32.mrb[0].mxu0
      %v5018 = vadd.f32 %v4848, %v5017
      %v5019 = vpop.f32.mrb[0].mxu0
      %v5020 = vpop.f32.mrb[0].mxu0
      %v5021 = vadd.f32 %v4851, %v5020
      %v5022 = vpop.f32.mrb[0].mxu0
      %5023 = vmatprep.mubr.bf16.mxu0 0
      %5024 = vmatmul.mubr.bf16.gmra.mrb[0].mxu0 %v2097
      %v5025 = vpop.f32.mrb[0].mxu0
      %v5026 = vadd.f32 %v4856, %v5025
      %v5027 = vpop.f32.mrb[0].mxu0
      %v5028 = vpop.f32.mrb[0].mxu0
      %v5029 = vadd.f32 %v4859, %v5028
      %v5030 = vpop.f32.mrb[0].mxu0
      %5031 = vmatprep.mubr.bf16.mxu0 0
      %5032 = vmatmul.mubr.bf16.gmra.mrb[0].mxu0 %v2100
      %v5033 = vpop.f32.mrb[0].mxu0
      %v5034 = vadd.f32 %v4864, %v5033
      %v5035 = vpop.f32.mrb[0].mxu0
      %v5036 = vpop.f32.mrb[0].mxu0
      %v5037 = vadd.f32 %v4867, %v5036
      %v5038 = vpop.f32.mrb[0].mxu0
      %5039 = vmatprep.mubr.bf16.mxu0 0
      %5040 = vmatmul.mubr.bf16.gmra.mrb[0].mxu0 %v2103
      %v5041 = vpop.f32.mrb[0].mxu0
      %v5042 = vadd.f32 %v4872, %v5041
      %v5043 = vpop.f32.mrb[0].mxu0
      %v5044 = vpop.f32.mrb[0].mxu0
      %v5045 = vadd.f32 %v4875, %v5044
      %v5046 = vpop.f32.mrb[0].mxu0
      %5047 = vmatprep.mubr.bf16.mxu0 0
      %5048 = vmatmul.mubr.bf16.gmra.mrb[0].mxu0 %v2106
      %v5049 = vpop.f32.mrb[0].mxu0
      %v5050 = vadd.f32 %v4880, %v5049
      %v5051 = vpop.f32.mrb[0].mxu0
      %v5052 = vpop.f32.mrb[0].mxu0
      %v5053 = vadd.f32 %v4883, %v5052
      %v5054 = vpop.f32.mrb[0].mxu0
      %5055 = vmatprep.mubr.bf16.mxu0 0
      %5056 = vmatmul.mubr.bf16.gmra.mrb[0].mxu0 %v2109
      %v5057 = vpop.f32.mrb[0].mxu0
      %v5058 = vadd.f32 %v4888, %v5057
      %v5059 = vpop.f32.mrb[0].mxu0
      %v5060 = vpop.f32.mrb[0].mxu0
      %v5061 = vadd.f32 %v4891, %v5060
      %v5062 = vpop.f32.mrb[0].mxu0
      %5063 = vmatprep.mubr.bf16.mxu0 0
      %5064 = vmatmul.mubr.bf16.gmra.mrb[0].mxu0 %v2112
      %v5065 = vpop.f32.mrb[0].mxu0
      %v5066 = vadd.f32 %v4896, %v5065
      %v5067 = vpop.f32.mrb[0].mxu0
      %v5068 = vpop.f32.mrb[0].mxu0
      %v5069 = vadd.f32 %v4899, %v5068
      %v5070 = vpop.f32.mrb[0].mxu0
      %5071 = vmatprep.mubr.bf16.mxu0 0
      %5072 = vmatmul.mubr.bf16.gmra.mrb[0].mxu0 %v2115
      %v5073 = vpop.f32.mrb[0].mxu0
      %v5074 = vadd.f32 %v4904, %v5073
      %v5075 = vpop.f32.mrb[0].mxu0
      %v5076 = vpop.f32.mrb[0].mxu0
      %v5077 = vadd.f32 %v4907, %v5076
      %v5078 = vpop.f32.mrb[0].mxu0
      %5079 = vmatprep.mubr.bf16.mxu0 0
      %5080 = vmatmul.mubr.bf16.gmra.mrb[0].mxu0 %v3734
      %v5081 = vpop.f32.mrb[0].mxu0
      %v5082 = vadd.f32 %v4912, %v5081
      %v5083 = vpop.f32.mrb[0].mxu0
      %v5084 = vpop.f32.mrb[0].mxu0
      %v5085 = vadd.f32 %v4915, %v5084
      %v5086 = vpop.f32.mrb[0].mxu0
      %5087 = vmatprep.mubr.bf16.mxu0 0
      %5088 = vmatmul.mubr.bf16.gmra.mrb[0].mxu0 %v4930
      %v5089 = vpop.f32.mrb[0].mxu0
      %v5090 = vadd.f32 %v4920, %v5089
      %v5091 = vpop.f32.mrb[0].mxu0
      %v5092 = vpop.f32.mrb[0].mxu0
      %v5093 = vadd.f32 %v4923, %v5092
      %v5094 = vpop.f32.mrb[0].mxu0
      %5095 = vdwg.mxu0
      %v5096 = vadd.f32 %v4672, %v4970
      %v5097 = vadd.f32 %v4673, %v4973
      %v5098 = vadd.f32 %v4674, %v4978
      %v5099 = vadd.f32 %v4675, %v4981
      %v5100 = vadd.f32 %v4676, %v4986
      %v5101 = vadd.f32 %v4677, %v4989
      %v5102 = vadd.f32 %v4678, %v4994
      %v5103 = vadd.f32 %v4679, %v4997
      %v5104 = vadd.f32 %v4680, %v5002
      %v5105 = vadd.f32 %v4681, %v5005
      %v5106 = vadd.f32 %v4682, %v5010
      %v5107 = vadd.f32 %v4683, %v5013
      %v5108 = vadd.f32 %v4684, %v5018
      %v5109 = vadd.f32 %v4685, %v5021
      %v5110 = vadd.f32 %v4686, %v5026
      %v5111 = vadd.f32 %v4687, %v5029
      %v5112 = vadd.f32 %v4688, %v5034
      %v5113 = vadd.f32 %v4689, %v5037
      %v5114 = vadd.f32 %v4690, %v5042
      %v5115 = vadd.f32 %v4691, %v5045
      %v5116 = vadd.f32 %v4692, %v5050
      %v5117 = vadd.f32 %v4693, %v5053
      %v5118 = vadd.f32 %v4694, %v5058
      %v5119 = vadd.f32 %v4695, %v5061
      %v5120 = vadd.f32 %v4696, %v5066
      %v5121 = vadd.f32 %v4697, %v5069
      %v5122 = vadd.f32 %v4698, %v5074
      %v5123 = vadd.f32 %v4699, %v5077
      %v5124 = vadd.f32 %v4700, %v5082
      %v5125 = vadd.f32 %v4701, %v5085
      %v5126 = vadd.f32 %v4702, %v5090
      %v5127 = vadd.f32 %v4703, %v5093
      %v5129 = vrot.slane %v341, 5
      %v5130 = vrot.slane %v5129, 4
      %v5131 = vrot.slane %v342, 5
      %v5132 = vsel %vm2331, %v5130, %v5131
      %v5133 = vrot.slane %v5131, 4
      %v5134 = vrot.slane %v343, 5
      %v5135 = vsel %vm2331, %v5133, %v5134
      %v5137 = vrot.slane %v395, 5
      %v5138 = vrot.slane %v5137, 4
      %v5139 = vrot.slane %v396, 5
      %v5140 = vsel %vm2331, %v5138, %v5139
      %v5141 = vrot.slane %v5139, 4
      %v5142 = vrot.slane %v397, 5
      %v5143 = vsel %vm2331, %v5141, %v5142
      %s5144 = scalar_lea.vmem %s2, 16
      %v5145 = vld [vmem:[%s5144] sm:$0x3]
      %s5146 = scalar_lea.vmem %s3, 16
      %v5147 = vld [vmem:[%s5146] sm:$0x3]
      %v5148 = vunpack.c.l.b16 %v5140
      %v5149 = vunpack.c.l.b16 %v5143
      %v5150 = vpack.c.b16 %v5149, %v5148
      %v5152 = vsel %vm480, %v5150, 0
      %v5155 = vsel %vm529, %v5147, 0
      %5157 = vmatprep.subr.bf16.mxu0 0
      %5158 = vmatpush1.bf16.msra.mxu0 %v5155
      %5159 = vmatprep.subr.bf16.mxu0 0
      %5160 = vmatpush1.bf16.msra.mxu0 0
      %5161 = vmatprep.subr.bf16.mxu0 0
      %5162 = vmatpush1.bf16.msra.mxu0 0
      %5163 = vmatprep.subr.bf16.mxu0 0
      %5164 = vmatpush1.bf16.msra.mxu0 0
      %5165 = vmatprep.subr.bf16.mxu0 0
      %5166 = vmatpush1.bf16.msra.mxu0 0
      %5167 = vmatprep.subr.bf16.mxu0 0
      %5168 = vmatpush1.bf16.msra.mxu0 0
      %5169 = vmatprep.subr.bf16.mxu0 0
      %5170 = vmatpush1.bf16.msra.mxu0 0
      %5171 = vmatprep.subr.bf16.mxu0 0
      %5172 = vmatpush1.bf16.msra.mxu0 0
      %5173 = vmatprep.subr.bf16.mxu0 0
      %5174 = vmatpush1.bf16.msra.mxu0 0
      %5175 = vmatprep.subr.bf16.mxu0 0
      %5176 = vmatpush1.bf16.msra.mxu0 0
      %5177 = vmatprep.subr.bf16.mxu0 0
      %5178 = vmatpush1.bf16.msra.mxu0 0
      %5179 = vmatprep.subr.bf16.mxu0 0
      %5180 = vmatpush1.bf16.msra.mxu0 0
      %5181 = vmatprep.subr.bf16.mxu0 0
      %5182 = vmatpush1.bf16.msra.mxu0 0
      %5183 = vmatprep.subr.bf16.mxu0 0
      %5184 = vmatpush1.bf16.msra.mxu0 0
      %5185 = vmatprep.subr.bf16.mxu0 0
      %5186 = vmatpush1.bf16.msra.mxu0 0
      %5187 = vmatprep.subr.bf16.mxu0 0
      %5188 = vmatpush1.bf16.msra.mxu0 0
      %5189 = vmatprep.mubr.bf16.mxu0 0
      %5190 = vmatmul.mubr.bf16.gmra.mrb[0].mxu0 %v2631
      %v5191 = vpop.f32.mrb[0].mxu0
      %v5192 = vadd.f32 0.0, %v5191
      %v5193 = vpop.f32.mrb[0].mxu0
      %v5194 = vpop.f32.mrb[0].mxu0
      %v5195 = vadd.f32 0.0, %v5194
      %v5196 = vpop.f32.mrb[0].mxu0
      %5197 = vmatprep.mubr.bf16.mxu0 0
      %5198 = vmatmul.mubr.bf16.gmra.mrb[0].mxu0 %v2634
      %v5199 = vpop.f32.mrb[0].mxu0
      %v5200 = vadd.f32 0.0, %v5199
      %v5201 = vpop.f32.mrb[0].mxu0
      %v5202 = vpop.f32.mrb[0].mxu0
      %v5203 = vadd.f32 0.0, %v5202
      %v5204 = vpop.f32.mrb[0].mxu0
      %5205 = vmatprep.mubr.bf16.mxu0 0
      %5206 = vmatmul.mubr.bf16.gmra.mrb[0].mxu0 %v2637
      %v5207 = vpop.f32.mrb[0].mxu0
      %v5208 = vadd.f32 0.0, %v5207
      %v5209 = vpop.f32.mrb[0].mxu0
      %v5210 = vpop.f32.mrb[0].mxu0
      %v5211 = vadd.f32 0.0, %v5210
      %v5212 = vpop.f32.mrb[0].mxu0
      %5213 = vmatprep.mubr.bf16.mxu0 0
      %5214 = vmatmul.mubr.bf16.gmra.mrb[0].mxu0 %v2640
      %v5215 = vpop.f32.mrb[0].mxu0
      %v5216 = vadd.f32 0.0, %v5215
      %v5217 = vpop.f32.mrb[0].mxu0
      %v5218 = vpop.f32.mrb[0].mxu0
      %v5219 = vadd.f32 0.0, %v5218
      %v5220 = vpop.f32.mrb[0].mxu0
      %5221 = vmatprep.mubr.bf16.mxu0 0
      %5222 = vmatmul.mubr.bf16.gmra.mrb[0].mxu0 %v2643
      %v5223 = vpop.f32.mrb[0].mxu0
      %v5224 = vadd.f32 0.0, %v5223
      %v5225 = vpop.f32.mrb[0].mxu0
      %v5226 = vpop.f32.mrb[0].mxu0
      %v5227 = vadd.f32 0.0, %v5226
      %v5228 = vpop.f32.mrb[0].mxu0
      %5229 = vmatprep.mubr.bf16.mxu0 0
      %5230 = vmatmul.mubr.bf16.gmra.mrb[0].mxu0 %v2646
      %v5231 = vpop.f32.mrb[0].mxu0
      %v5232 = vadd.f32 0.0, %v5231
      %v5233 = vpop.f32.mrb[0].mxu0
      %v5234 = vpop.f32.mrb[0].mxu0
      %v5235 = vadd.f32 0.0, %v5234
      %v5236 = vpop.f32.mrb[0].mxu0
      %5237 = vmatprep.mubr.bf16.mxu0 0
      %5238 = vmatmul.mubr.bf16.gmra.mrb[0].mxu0 %v2649
      %v5239 = vpop.f32.mrb[0].mxu0
      %v5240 = vadd.f32 0.0, %v5239
      %v5241 = vpop.f32.mrb[0].mxu0
      %v5242 = vpop.f32.mrb[0].mxu0
      %v5243 = vadd.f32 0.0, %v5242
      %v5244 = vpop.f32.mrb[0].mxu0
      %5245 = vmatprep.mubr.bf16.mxu0 0
      %5246 = vmatmul.mubr.bf16.gmra.mrb[0].mxu0 %v2652
      %v5247 = vpop.f32.mrb[0].mxu0
      %v5248 = vadd.f32 0.0, %v5247
      %v5249 = vpop.f32.mrb[0].mxu0
      %v5250 = vpop.f32.mrb[0].mxu0
      %v5251 = vadd.f32 0.0, %v5250
      %v5252 = vpop.f32.mrb[0].mxu0
      %5253 = vmatprep.mubr.bf16.mxu0 0
      %5254 = vmatmul.mubr.bf16.gmra.mrb[0].mxu0 %v2655
      %v5255 = vpop.f32.mrb[0].mxu0
      %v5256 = vadd.f32 0.0, %v5255
      %v5257 = vpop.f32.mrb[0].mxu0
      %v5258 = vpop.f32.mrb[0].mxu0
      %v5259 = vadd.f32 0.0, %v5258
      %v5260 = vpop.f32.mrb[0].mxu0
      %5261 = vmatprep.mubr.bf16.mxu0 0
      %5262 = vmatmul.mubr.bf16.gmra.mrb[0].mxu0 %v2658
      %v5263 = vpop.f32.mrb[0].mxu0
      %v5264 = vadd.f32 0.0, %v5263
      %v5265 = vpop.f32.mrb[0].mxu0
      %v5266 = vpop.f32.mrb[0].mxu0
      %v5267 = vadd.f32 0.0, %v5266
      %v5268 = vpop.f32.mrb[0].mxu0
      %5269 = vmatprep.mubr.bf16.mxu0 0
      %5270 = vmatmul.mubr.bf16.gmra.mrb[0].mxu0 %v2661
      %v5271 = vpop.f32.mrb[0].mxu0
      %v5272 = vadd.f32 0.0, %v5271
      %v5273 = vpop.f32.mrb[0].mxu0
      %v5274 = vpop.f32.mrb[0].mxu0
      %v5275 = vadd.f32 0.0, %v5274
      %v5276 = vpop.f32.mrb[0].mxu0
      %5277 = vmatprep.mubr.bf16.mxu0 0
      %5278 = vmatmul.mubr.bf16.gmra.mrb[0].mxu0 %v2664
      %v5279 = vpop.f32.mrb[0].mxu0
      %v5280 = vadd.f32 0.0, %v5279
      %v5281 = vpop.f32.mrb[0].mxu0
      %v5282 = vpop.f32.mrb[0].mxu0
      %v5283 = vadd.f32 0.0, %v5282
      %v5284 = vpop.f32.mrb[0].mxu0
      %5285 = vmatprep.mubr.bf16.mxu0 0
      %5286 = vmatmul.mubr.bf16.gmra.mrb[0].mxu0 %v2667
      %v5287 = vpop.f32.mrb[0].mxu0
      %v5288 = vadd.f32 0.0, %v5287
      %v5289 = vpop.f32.mrb[0].mxu0
      %v5290 = vpop.f32.mrb[0].mxu0
      %v5291 = vadd.f32 0.0, %v5290
      %v5292 = vpop.f32.mrb[0].mxu0
      %5293 = vmatprep.mubr.bf16.mxu0 0
      %5294 = vmatmul.mubr.bf16.gmra.mrb[0].mxu0 %v2670
      %v5295 = vpop.f32.mrb[0].mxu0
      %v5296 = vadd.f32 0.0, %v5295
      %v5297 = vpop.f32.mrb[0].mxu0
      %v5298 = vpop.f32.mrb[0].mxu0
      %v5299 = vadd.f32 0.0, %v5298
      %v5300 = vpop.f32.mrb[0].mxu0
      %5301 = vmatprep.mubr.bf16.mxu0 0
      %5302 = vmatmul.mubr.bf16.gmra.mrb[0].mxu0 %v3956
      %v5303 = vpop.f32.mrb[0].mxu0
      %v5304 = vadd.f32 0.0, %v5303
      %v5305 = vpop.f32.mrb[0].mxu0
      %v5306 = vpop.f32.mrb[0].mxu0
      %v5307 = vadd.f32 0.0, %v5306
      %v5308 = vpop.f32.mrb[0].mxu0
      %5309 = vmatprep.mubr.bf16.mxu0 0
      %5310 = vmatmul.mubr.bf16.gmra.mrb[0].mxu0 %v5152
      %v5311 = vpop.f32.mrb[0].mxu0
      %v5312 = vadd.f32 0.0, %v5311
      %v5313 = vpop.f32.mrb[0].mxu0
      %v5314 = vpop.f32.mrb[0].mxu0
      %v5315 = vadd.f32 0.0, %v5314
      %v5316 = vpop.f32.mrb[0].mxu0
      %5317 = vdwg.mxu0
      %v5318 = vunpack.c.l.b16 %v5132
      %v5319 = vunpack.c.l.b16 %v5135
      %v5320 = vpack.c.b16 %v5319, %v5318
      %v5322 = vsel %vm480, %v5320, 0
      %v5325 = vsel %vm529, %v5145, 0
      %5327 = vmatprep.subr.bf16.mxu0 0
      %5328 = vmatpush1.bf16.msra.mxu0 %v5325
      %5329 = vmatprep.subr.bf16.mxu0 0
      %5330 = vmatpush1.bf16.msra.mxu0 0
      %5331 = vmatprep.subr.bf16.mxu0 0
      %5332 = vmatpush1.bf16.msra.mxu0 0
      %5333 = vmatprep.subr.bf16.mxu0 0
      %5334 = vmatpush1.bf16.msra.mxu0 0
      %5335 = vmatprep.subr.bf16.mxu0 0
      %5336 = vmatpush1.bf16.msra.mxu0 0
      %5337 = vmatprep.subr.bf16.mxu0 0
      %5338 = vmatpush1.bf16.msra.mxu0 0
      %5339 = vmatprep.subr.bf16.mxu0 0
      %5340 = vmatpush1.bf16.msra.mxu0 0
      %5341 = vmatprep.subr.bf16.mxu0 0
      %5342 = vmatpush1.bf16.msra.mxu0 0
      %5343 = vmatprep.subr.bf16.mxu0 0
      %5344 = vmatpush1.bf16.msra.mxu0 0
      %5345 = vmatprep.subr.bf16.mxu0 0
      %5346 = vmatpush1.bf16.msra.mxu0 0
      %5347 = vmatprep.subr.bf16.mxu0 0
      %5348 = vmatpush1.bf16.msra.mxu0 0
      %5349 = vmatprep.subr.bf16.mxu0 0
      %5350 = vmatpush1.bf16.msra.mxu0 0
      %5351 = vmatprep.subr.bf16.mxu0 0
      %5352 = vmatpush1.bf16.msra.mxu0 0
      %5353 = vmatprep.subr.bf16.mxu0 0
      %5354 = vmatpush1.bf16.msra.mxu0 0
      %5355 = vmatprep.subr.bf16.mxu0 0
      %5356 = vmatpush1.bf16.msra.mxu0 0
      %5357 = vmatprep.subr.bf16.mxu0 0
      %5358 = vmatpush1.bf16.msra.mxu0 0
      %5359 = vmatprep.mubr.bf16.mxu0 0
      %5360 = vmatmul.mubr.bf16.gmra.mrb[0].mxu0 %v2891
      %v5361 = vpop.f32.mrb[0].mxu0
      %v5362 = vadd.f32 %v5192, %v5361
      %v5363 = vpop.f32.mrb[0].mxu0
      %v5364 = vpop.f32.mrb[0].mxu0
      %v5365 = vadd.f32 %v5195, %v5364
      %v5366 = vpop.f32.mrb[0].mxu0
      %5367 = vmatprep.mubr.bf16.mxu0 0
      %5368 = vmatmul.mubr.bf16.gmra.mrb[0].mxu0 %v2894
      %v5369 = vpop.f32.mrb[0].mxu0
      %v5370 = vadd.f32 %v5200, %v5369
      %v5371 = vpop.f32.mrb[0].mxu0
      %v5372 = vpop.f32.mrb[0].mxu0
      %v5373 = vadd.f32 %v5203, %v5372
      %v5374 = vpop.f32.mrb[0].mxu0
      %5375 = vmatprep.mubr.bf16.mxu0 0
      %5376 = vmatmul.mubr.bf16.gmra.mrb[0].mxu0 %v2897
      %v5377 = vpop.f32.mrb[0].mxu0
      %v5378 = vadd.f32 %v5208, %v5377
      %v5379 = vpop.f32.mrb[0].mxu0
      %v5380 = vpop.f32.mrb[0].mxu0
      %v5381 = vadd.f32 %v5211, %v5380
      %v5382 = vpop.f32.mrb[0].mxu0
      %5383 = vmatprep.mubr.bf16.mxu0 0
      %5384 = vmatmul.mubr.bf16.gmra.mrb[0].mxu0 %v2900
      %v5385 = vpop.f32.mrb[0].mxu0
      %v5386 = vadd.f32 %v5216, %v5385
      %v5387 = vpop.f32.mrb[0].mxu0
      %v5388 = vpop.f32.mrb[0].mxu0
      %v5389 = vadd.f32 %v5219, %v5388
      %v5390 = vpop.f32.mrb[0].mxu0
      %5391 = vmatprep.mubr.bf16.mxu0 0
      %5392 = vmatmul.mubr.bf16.gmra.mrb[0].mxu0 %v2903
      %v5393 = vpop.f32.mrb[0].mxu0
      %v5394 = vadd.f32 %v5224, %v5393
      %v5395 = vpop.f32.mrb[0].mxu0
      %v5396 = vpop.f32.mrb[0].mxu0
      %v5397 = vadd.f32 %v5227, %v5396
      %v5398 = vpop.f32.mrb[0].mxu0
      %5399 = vmatprep.mubr.bf16.mxu0 0
      %5400 = vmatmul.mubr.bf16.gmra.mrb[0].mxu0 %v2906
      %v5401 = vpop.f32.mrb[0].mxu0
      %v5402 = vadd.f32 %v5232, %v5401
      %v5403 = vpop.f32.mrb[0].mxu0
      %v5404 = vpop.f32.mrb[0].mxu0
      %v5405 = vadd.f32 %v5235, %v5404
      %v5406 = vpop.f32.mrb[0].mxu0
      %5407 = vmatprep.mubr.bf16.mxu0 0
      %5408 = vmatmul.mubr.bf16.gmra.mrb[0].mxu0 %v2909
      %v5409 = vpop.f32.mrb[0].mxu0
      %v5410 = vadd.f32 %v5240, %v5409
      %v5411 = vpop.f32.mrb[0].mxu0
      %v5412 = vpop.f32.mrb[0].mxu0
      %v5413 = vadd.f32 %v5243, %v5412
      %v5414 = vpop.f32.mrb[0].mxu0
      %5415 = vmatprep.mubr.bf16.mxu0 0
      %5416 = vmatmul.mubr.bf16.gmra.mrb[0].mxu0 %v2912
      %v5417 = vpop.f32.mrb[0].mxu0
      %v5418 = vadd.f32 %v5248, %v5417
      %v5419 = vpop.f32.mrb[0].mxu0
      %v5420 = vpop.f32.mrb[0].mxu0
      %v5421 = vadd.f32 %v5251, %v5420
      %v5422 = vpop.f32.mrb[0].mxu0
      %5423 = vmatprep.mubr.bf16.mxu0 0
      %5424 = vmatmul.mubr.bf16.gmra.mrb[0].mxu0 %v2915
      %v5425 = vpop.f32.mrb[0].mxu0
      %v5426 = vadd.f32 %v5256, %v5425
      %v5427 = vpop.f32.mrb[0].mxu0
      %v5428 = vpop.f32.mrb[0].mxu0
      %v5429 = vadd.f32 %v5259, %v5428
      %v5430 = vpop.f32.mrb[0].mxu0
      %5431 = vmatprep.mubr.bf16.mxu0 0
      %5432 = vmatmul.mubr.bf16.gmra.mrb[0].mxu0 %v2918
      %v5433 = vpop.f32.mrb[0].mxu0
      %v5434 = vadd.f32 %v5264, %v5433
      %v5435 = vpop.f32.mrb[0].mxu0
      %v5436 = vpop.f32.mrb[0].mxu0
      %v5437 = vadd.f32 %v5267, %v5436
      %v5438 = vpop.f32.mrb[0].mxu0
      %5439 = vmatprep.mubr.bf16.mxu0 0
      %5440 = vmatmul.mubr.bf16.gmra.mrb[0].mxu0 %v2921
      %v5441 = vpop.f32.mrb[0].mxu0
      %v5442 = vadd.f32 %v5272, %v5441
      %v5443 = vpop.f32.mrb[0].mxu0
      %v5444 = vpop.f32.mrb[0].mxu0
      %v5445 = vadd.f32 %v5275, %v5444
      %v5446 = vpop.f32.mrb[0].mxu0
      %5447 = vmatprep.mubr.bf16.mxu0 0
      %5448 = vmatmul.mubr.bf16.gmra.mrb[0].mxu0 %v2924
      %v5449 = vpop.f32.mrb[0].mxu0
      %v5450 = vadd.f32 %v5280, %v5449
      %v5451 = vpop.f32.mrb[0].mxu0
      %v5452 = vpop.f32.mrb[0].mxu0
      %v5453 = vadd.f32 %v5283, %v5452
      %v5454 = vpop.f32.mrb[0].mxu0
      %5455 = vmatprep.mubr.bf16.mxu0 0
      %5456 = vmatmul.mubr.bf16.gmra.mrb[0].mxu0 %v2927
      %v5457 = vpop.f32.mrb[0].mxu0
      %v5458 = vadd.f32 %v5288, %v5457
      %v5459 = vpop.f32.mrb[0].mxu0
      %v5460 = vpop.f32.mrb[0].mxu0
      %v5461 = vadd.f32 %v5291, %v5460
      %v5462 = vpop.f32.mrb[0].mxu0
      %5463 = vmatprep.mubr.bf16.mxu0 0
      %5464 = vmatmul.mubr.bf16.gmra.mrb[0].mxu0 %v2930
      %v5465 = vpop.f32.mrb[0].mxu0
      %v5466 = vadd.f32 %v5296, %v5465
      %v5467 = vpop.f32.mrb[0].mxu0
      %v5468 = vpop.f32.mrb[0].mxu0
      %v5469 = vadd.f32 %v5299, %v5468
      %v5470 = vpop.f32.mrb[0].mxu0
      %5471 = vmatprep.mubr.bf16.mxu0 0
      %5472 = vmatmul.mubr.bf16.gmra.mrb[0].mxu0 %v4126
      %v5473 = vpop.f32.mrb[0].mxu0
      %v5474 = vadd.f32 %v5304, %v5473
      %v5475 = vpop.f32.mrb[0].mxu0
      %v5476 = vpop.f32.mrb[0].mxu0
      %v5477 = vadd.f32 %v5307, %v5476
      %v5478 = vpop.f32.mrb[0].mxu0
      %5479 = vmatprep.mubr.bf16.mxu0 0
      %5480 = vmatmul.mubr.bf16.gmra.mrb[0].mxu0 %v5322
      %v5481 = vpop.f32.mrb[0].mxu0
      %v5482 = vadd.f32 %v5312, %v5481
      %v5483 = vpop.f32.mrb[0].mxu0
      %v5484 = vpop.f32.mrb[0].mxu0
      %v5485 = vadd.f32 %v5315, %v5484
      %v5486 = vpop.f32.mrb[0].mxu0
      %5487 = vdwg.mxu0
      %v5488 = vadd.f32 %v5096, %v5362
      %v5489 = vadd.f32 %v5097, %v5365
      %v5490 = vadd.f32 %v5098, %v5370
      %v5491 = vadd.f32 %v5099, %v5373
      %v5492 = vadd.f32 %v5100, %v5378
      %v5493 = vadd.f32 %v5101, %v5381
      %v5494 = vadd.f32 %v5102, %v5386
      %v5495 = vadd.f32 %v5103, %v5389
      %v5496 = vadd.f32 %v5104, %v5394
      %v5497 = vadd.f32 %v5105, %v5397
      %v5498 = vadd.f32 %v5106, %v5402
      %v5499 = vadd.f32 %v5107, %v5405
      %v5500 = vadd.f32 %v5108, %v5410
      %v5501 = vadd.f32 %v5109, %v5413
      %v5502 = vadd.f32 %v5110, %v5418
      %v5503 = vadd.f32 %v5111, %v5421
      %v5504 = vadd.f32 %v5112, %v5426
      %v5505 = vadd.f32 %v5113, %v5429
      %v5506 = vadd.f32 %v5114, %v5434
      %v5507 = vadd.f32 %v5115, %v5437
      %v5508 = vadd.f32 %v5116, %v5442
      %v5509 = vadd.f32 %v5117, %v5445
      %v5510 = vadd.f32 %v5118, %v5450
      %v5511 = vadd.f32 %v5119, %v5453
      %v5512 = vadd.f32 %v5120, %v5458
      %v5513 = vadd.f32 %v5121, %v5461
      %v5514 = vadd.f32 %v5122, %v5466
      %v5515 = vadd.f32 %v5123, %v5469
      %v5516 = vadd.f32 %v5124, %v5474
      %v5517 = vadd.f32 %v5125, %v5477
      %v5518 = vadd.f32 %v5126, %v5482
      %v5519 = vadd.f32 %v5127, %v5485
      %v5520 = vpack.c.bf16 %v5489, %v5488
      %v5521 = vpack.c.bf16 %v5491, %v5490
      %v5522 = vpack.c.bf16 %v5493, %v5492
      %v5523 = vpack.c.bf16 %v5495, %v5494
      %v5524 = vpack.c.bf16 %v5497, %v5496
      %v5525 = vpack.c.bf16 %v5499, %v5498
      %v5526 = vpack.c.bf16 %v5501, %v5500
      %v5527 = vpack.c.bf16 %v5503, %v5502
      %v5528 = vpack.c.bf16 %v5505, %v5504
      %v5529 = vpack.c.bf16 %v5507, %v5506
      %v5530 = vpack.c.bf16 %v5509, %v5508
      %v5531 = vpack.c.bf16 %v5511, %v5510
      %v5532 = vpack.c.bf16 %v5513, %v5512
      %v5533 = vpack.c.bf16 %v5515, %v5514
      %v5534 = vpack.c.bf16 %v5517, %v5516
      %v5535 = vpack.c.bf16 %v5519, %v5518
      %v5552 = vunpack.c.l.b16 %v5520
      %v5553 = vunpack.c.h.b16 %v5520
      %v5554 = vunpack.c.l.b16 %v5521
      %v5555 = vunpack.c.h.b16 %v5521
      %v5556 = vunpack.c.l.b16 %v5522
      %v5557 = vunpack.c.h.b16 %v5522
      %v5558 = vunpack.c.l.b16 %v5523
      %v5559 = vunpack.c.h.b16 %v5523
      %v5560 = vunpack.c.l.b16 %v5524
      %v5561 = vunpack.c.h.b16 %v5524
      %v5562 = vunpack.c.l.b16 %v5525
      %v5563 = vunpack.c.h.b16 %v5525
      %v5564 = vunpack.c.l.b16 %v5526
      %v5565 = vunpack.c.h.b16 %v5526
      %v5566 = vunpack.c.l.b16 %v5527
      %v5567 = vunpack.c.h.b16 %v5527
      %v5568 = vunpack.c.l.b16 %v5528
      %v5569 = vunpack.c.h.b16 %v5528
      %v5570 = vunpack.c.l.b16 %v5529
      %v5571 = vunpack.c.h.b16 %v5529
      %v5572 = vunpack.c.l.b16 %v5530
      %v5573 = vunpack.c.h.b16 %v5530
      %v5574 = vunpack.c.l.b16 %v5531
      %v5575 = vunpack.c.h.b16 %v5531
      %v5576 = vunpack.c.l.b16 %v5532
      %v5577 = vunpack.c.h.b16 %v5532
      %v5578 = vunpack.c.l.b16 %v5533
      %v5579 = vunpack.c.h.b16 %v5533
      %v5580 = vunpack.c.l.b16 %v5534
      %v5581 = vunpack.c.h.b16 %v5534
      %v5582 = vunpack.c.l.b16 %v5535
      %v5583 = vunpack.c.h.b16 %v5535
      %v5584 = vpack.c.b16 %v5552, %v5552
      %v5585 = vpack.c.b16 %v5553, %v5553
      %v5586 = vpack.c.b16 %v5554, %v5554
      %v5587 = vpack.c.b16 %v5555, %v5555
      %v5588 = vpack.c.b16 %v5556, %v5556
      %v5589 = vpack.c.b16 %v5557, %v5557
      %v5590 = vpack.c.b16 %v5558, %v5558
      %v5591 = vpack.c.b16 %v5559, %v5559
      %v5592 = vpack.c.b16 %v5560, %v5560
      %v5593 = vpack.c.b16 %v5561, %v5561
      %v5594 = vpack.c.b16 %v5562, %v5562
      %v5595 = vpack.c.b16 %v5563, %v5563
      %v5596 = vpack.c.b16 %v5564, %v5564
      %v5597 = vpack.c.b16 %v5565, %v5565
      %v5598 = vpack.c.b16 %v5566, %v5566
      %v5599 = vpack.c.b16 %v5567, %v5567
      %v5600 = vpack.c.b16 %v5568, %v5568
      %v5601 = vpack.c.b16 %v5569, %v5569
      %v5602 = vpack.c.b16 %v5570, %v5570
      %v5603 = vpack.c.b16 %v5571, %v5571
      %v5604 = vpack.c.b16 %v5572, %v5572
      %v5605 = vpack.c.b16 %v5573, %v5573
      %v5606 = vpack.c.b16 %v5574, %v5574
      %v5607 = vpack.c.b16 %v5575, %v5575
      %v5608 = vpack.c.b16 %v5576, %v5576
      %v5609 = vpack.c.b16 %v5577, %v5577
      %v5610 = vpack.c.b16 %v5578, %v5578
      %v5611 = vpack.c.b16 %v5579, %v5579
      %v5612 = vpack.c.b16 %v5580, %v5580
      %v5613 = vpack.c.b16 %v5581, %v5581
      %v5614 = vpack.c.b16 %v5582, %v5582
      %v5615 = vpack.c.b16 %v5583, %v5583
      %vm5648 = vcmask 27648
      %5649 = vst.msk [vmem:[%s282] sm:$0xf] %vm5648, %v5584
      %5650 = vst.msk [vmem:[%s282 + $0x4] sm:$0xf] %vm5648, %v5585
      %5651 = vst.msk [vmem:[%s282 + $0x8] sm:$0xf] %vm5648, %v5586
      %5652 = vst.msk [vmem:[%s282 + $0xc] sm:$0xf] %vm5648, %v5587
      %5653 = vst.msk [vmem:[%s282 + $0x10] sm:$0xf] %vm5648, %v5588
      %5654 = vst.msk [vmem:[%s282 + $0x14] sm:$0xf] %vm5648, %v5589
      %5655 = vst.msk [vmem:[%s282 + $0x18] sm:$0xf] %vm5648, %v5590
      %5656 = vst.msk [vmem:[%s282 + $0x1c] sm:$0xf] %vm5648, %v5591
      %5657 = vst.msk [vmem:[%s282 + $0x20] sm:$0xf] %vm5648, %v5592
      %5658 = vst.msk [vmem:[%s282 + $0x24] sm:$0xf] %vm5648, %v5593
      %5659 = vst.msk [vmem:[%s282 + $0x28] sm:$0xf] %vm5648, %v5594
      %5660 = vst.msk [vmem:[%s282 + $0x2c] sm:$0xf] %vm5648, %v5595
      %5661 = vst.msk [vmem:[%s282 + $0x30] sm:$0xf] %vm5648, %v5596
      %5662 = vst.msk [vmem:[%s282 + $0x34] sm:$0xf] %vm5648, %v5597
      %5663 = vst.msk [vmem:[%s282 + $0x38] sm:$0xf] %vm5648, %v5598
      %5664 = vst.msk [vmem:[%s282 + $0x3c] sm:$0xf] %vm5648, %v5599
      %5665 = vst.msk [vmem:[%s282 + $0x40] sm:$0xf] %vm5648, %v5600
      %5666 = vst.msk [vmem:[%s282 + $0x44] sm:$0xf] %vm5648, %v5601
      %5667 = vst.msk [vmem:[%s282 + $0x48] sm:$0xf] %vm5648, %v5602
      %5668 = vst.msk [vmem:[%s282 + $0x4c] sm:$0xf] %vm5648, %v5603
      %5669 = vst.msk [vmem:[%s282 + $0x50] sm:$0xf] %vm5648, %v5604
      %5670 = vst.msk [vmem:[%s282 + $0x54] sm:$0xf] %vm5648, %v5605
      %5671 = vst.msk [vmem:[%s282 + $0x58] sm:$0xf] %vm5648, %v5606
      %5672 = vst.msk [vmem:[%s282 + $0x5c] sm:$0xf] %vm5648, %v5607
      %5673 = vst.msk [vmem:[%s282 + $0x60] sm:$0xf] %vm5648, %v5608
      %5674 = vst.msk [vmem:[%s282 + $0x64] sm:$0xf] %vm5648, %v5609
      %5675 = vst.msk [vmem:[%s282 + $0x68] sm:$0xf] %vm5648, %v5610
      %5676 = vst.msk [vmem:[%s282 + $0x6c] sm:$0xf] %vm5648, %v5611
      %5677 = vst.msk [vmem:[%s282 + $0x70] sm:$0xf] %vm5648, %v5612
      %5678 = vst.msk [vmem:[%s282 + $0x74] sm:$0xf] %vm5648, %v5613
      %5679 = vst.msk [vmem:[%s282 + $0x78] sm:$0xf] %vm5648, %v5614
      %5680 = vst.msk [vmem:[%s282 + $0x7c] sm:$0xf] %vm5648, %v5615
      %v5681 = vsel %vm480, %v5488, 0.0
      %v5682 = vsel %vm480, %v5489, 0.0
      %v5683 = vadd.f32 %v5681, %v5682
      %v5684 = vsel %vm480, %v5490, 0.0
      %v5685 = vadd.f32 %v5683, %v5684
      %v5686 = vsel %vm480, %v5491, 0.0
      %v5687 = vadd.f32 %v5685, %v5686
      %v5688 = vsel %vm480, %v5492, 0.0
      %v5689 = vadd.f32 %v5687, %v5688
      %v5690 = vsel %vm480, %v5493, 0.0
      %v5691 = vadd.f32 %v5689, %v5690
      %v5692 = vsel %vm480, %v5494, 0.0
      %v5693 = vadd.f32 %v5691, %v5692
      %v5694 = vsel %vm480, %v5495, 0.0
      %v5695 = vadd.f32 %v5693, %v5694
      %v5696 = vsel %vm480, %v5496, 0.0
      %v5697 = vadd.f32 %v5695, %v5696
      %v5698 = vsel %vm480, %v5497, 0.0
      %v5699 = vadd.f32 %v5697, %v5698
      %v5700 = vsel %vm480, %v5498, 0.0
      %v5701 = vadd.f32 %v5699, %v5700
      %v5702 = vsel %vm480, %v5499, 0.0
      %v5703 = vadd.f32 %v5701, %v5702
      %v5704 = vsel %vm480, %v5500, 0.0
      %v5705 = vadd.f32 %v5703, %v5704
      %v5706 = vsel %vm480, %v5501, 0.0
      %v5707 = vadd.f32 %v5705, %v5706
      %v5708 = vsel %vm480, %v5502, 0.0
      %v5709 = vadd.f32 %v5707, %v5708
      %v5710 = vsel %vm480, %v5503, 0.0
      %v5711 = vadd.f32 %v5709, %v5710
      %v5712 = vsel %vm480, %v5504, 0.0
      %v5713 = vadd.f32 %v5711, %v5712
      %v5714 = vsel %vm480, %v5505, 0.0
      %v5715 = vadd.f32 %v5713, %v5714
      %v5716 = vsel %vm480, %v5506, 0.0
      %v5717 = vadd.f32 %v5715, %v5716
      %v5718 = vsel %vm480, %v5507, 0.0
      %v5719 = vadd.f32 %v5717, %v5718
      %v5720 = vsel %vm480, %v5508, 0.0
      %v5721 = vadd.f32 %v5719, %v5720
      %v5722 = vsel %vm480, %v5509, 0.0
      %v5723 = vadd.f32 %v5721, %v5722
      %v5724 = vsel %vm480, %v5510, 0.0
      %v5725 = vadd.f32 %v5723, %v5724
      %v5726 = vsel %vm480, %v5511, 0.0
      %v5727 = vadd.f32 %v5725, %v5726
      %v5728 = vsel %vm480, %v5512, 0.0
      %v5729 = vadd.f32 %v5727, %v5728
      %v5730 = vsel %vm480, %v5513, 0.0
      %v5731 = vadd.f32 %v5729, %v5730
      %v5732 = vsel %vm480, %v5514, 0.0
      %v5733 = vadd.f32 %v5731, %v5732
      %v5734 = vsel %vm480, %v5515, 0.0
      %v5735 = vadd.f32 %v5733, %v5734
      %v5736 = vsel %vm480, %v5516, 0.0
      %v5737 = vadd.f32 %v5735, %v5736
      %v5738 = vsel %vm480, %v5517, 0.0
      %v5739 = vadd.f32 %v5737, %v5738
      %v5740 = vsel %vm480, %v5518, 0.0
      %v5741 = vadd.f32 %v5739, %v5740
      %v5742 = vsel %vm480, %v5519, 0.0
      %v5743 = vadd.f32 %v5741, %v5742
      %v5744 = vrot.slane %v5743, 4
      %v5745 = vadd.f32 %v5743, %v5744
      %v5746 = vrot.slane %v5745, 2
      %v5747 = vadd.f32 %v5745, %v5746
      %v5748 = vrot.slane %v5747, 1
      %v5749 = vadd.f32 %v5747, %v5748
      %vm5750 = vcmask 24576
      %5751 = vst.msk [vmem:[%s285] sm:$0x1] %vm5750, %v5749
      %v5752 = vmul.f32 %v5488, %v5488
      %v5753 = vmul.f32 %v5489, %v5489
      %v5754 = vmul.f32 %v5490, %v5490
      %v5755 = vmul.f32 %v5491, %v5491
      %v5756 = vmul.f32 %v5492, %v5492
      %v5757 = vmul.f32 %v5493, %v5493
      %v5758 = vmul.f32 %v5494, %v5494
      %v5759 = vmul.f32 %v5495, %v5495
      %v5760 = vmul.f32 %v5496, %v5496
      %v5761 = vmul.f32 %v5497, %v5497
      %v5762 = vmul.f32 %v5498, %v5498
      %v5763 = vmul.f32 %v5499, %v5499
      %v5764 = vmul.f32 %v5500, %v5500
      %v5765 = vmul.f32 %v5501, %v5501
      %v5766 = vmul.f32 %v5502, %v5502
      %v5767 = vmul.f32 %v5503, %v5503
      %v5768 = vmul.f32 %v5504, %v5504
      %v5769 = vmul.f32 %v5505, %v5505
      %v5770 = vmul.f32 %v5506, %v5506
      %v5771 = vmul.f32 %v5507, %v5507
      %v5772 = vmul.f32 %v5508, %v5508
      %v5773 = vmul.f32 %v5509, %v5509
      %v5774 = vmul.f32 %v5510, %v5510
      %v5775 = vmul.f32 %v5511, %v5511
      %v5776 = vmul.f32 %v5512, %v5512
      %v5777 = vmul.f32 %v5513, %v5513
      %v5778 = vmul.f32 %v5514, %v5514
      %v5779 = vmul.f32 %v5515, %v5515
      %v5780 = vmul.f32 %v5516, %v5516
      %v5781 = vmul.f32 %v5517, %v5517
      %v5782 = vmul.f32 %v5518, %v5518
      %v5783 = vmul.f32 %v5519, %v5519
      %v5784 = vsel %vm480, %v5752, 0.0
      %v5785 = vsel %vm480, %v5753, 0.0
      %v5786 = vadd.f32 %v5784, %v5785
      %v5787 = vsel %vm480, %v5754, 0.0
      %v5788 = vadd.f32 %v5786, %v5787
      %v5789 = vsel %vm480, %v5755, 0.0
      %v5790 = vadd.f32 %v5788, %v5789
      %v5791 = vsel %vm480, %v5756, 0.0
      %v5792 = vadd.f32 %v5790, %v5791
      %v5793 = vsel %vm480, %v5757, 0.0
      %v5794 = vadd.f32 %v5792, %v5793
      %v5795 = vsel %vm480, %v5758, 0.0
      %v5796 = vadd.f32 %v5794, %v5795
      %v5797 = vsel %vm480, %v5759, 0.0
      %v5798 = vadd.f32 %v5796, %v5797
      %v5799 = vsel %vm480, %v5760, 0.0
      %v5800 = vadd.f32 %v5798, %v5799
      %v5801 = vsel %vm480, %v5761, 0.0
      %v5802 = vadd.f32 %v5800, %v5801
      %v5803 = vsel %vm480, %v5762, 0.0
      %v5804 = vadd.f32 %v5802, %v5803
      %v5805 = vsel %vm480, %v5763, 0.0
      %v5806 = vadd.f32 %v5804, %v5805
      %v5807 = vsel %vm480, %v5764, 0.0
      %v5808 = vadd.f32 %v5806, %v5807
      %v5809 = vsel %vm480, %v5765, 0.0
      %v5810 = vadd.f32 %v5808, %v5809
      %v5811 = vsel %vm480, %v5766, 0.0
      %v5812 = vadd.f32 %v5810, %v5811
      %v5813 = vsel %vm480, %v5767, 0.0
      %v5814 = vadd.f32 %v5812, %v5813
      %v5815 = vsel %vm480, %v5768, 0.0
      %v5816 = vadd.f32 %v5814, %v5815
      %v5817 = vsel %vm480, %v5769, 0.0
      %v5818 = vadd.f32 %v5816, %v5817
      %v5819 = vsel %vm480, %v5770, 0.0
      %v5820 = vadd.f32 %v5818, %v5819
      %v5821 = vsel %vm480, %v5771, 0.0
      %v5822 = vadd.f32 %v5820, %v5821
      %v5823 = vsel %vm480, %v5772, 0.0
      %v5824 = vadd.f32 %v5822, %v5823
      %v5825 = vsel %vm480, %v5773, 0.0
      %v5826 = vadd.f32 %v5824, %v5825
      %v5827 = vsel %vm480, %v5774, 0.0
      %v5828 = vadd.f32 %v5826, %v5827
      %v5829 = vsel %vm480, %v5775, 0.0
      %v5830 = vadd.f32 %v5828, %v5829
      %v5831 = vsel %vm480, %v5776, 0.0
      %v5832 = vadd.f32 %v5830, %v5831
      %v5833 = vsel %vm480, %v5777, 0.0
      %v5834 = vadd.f32 %v5832, %v5833
      %v5835 = vsel %vm480, %v5778, 0.0
      %v5836 = vadd.f32 %v5834, %v5835
      %v5837 = vsel %vm480, %v5779, 0.0
      %v5838 = vadd.f32 %v5836, %v5837
      %v5839 = vsel %vm480, %v5780, 0.0
      %v5840 = vadd.f32 %v5838, %v5839
      %v5841 = vsel %vm480, %v5781, 0.0
      %v5842 = vadd.f32 %v5840, %v5841
      %v5843 = vsel %vm480, %v5782, 0.0
      %v5844 = vadd.f32 %v5842, %v5843
      %v5845 = vsel %vm480, %v5783, 0.0
      %v5846 = vadd.f32 %v5844, %v5845
      %v5847 = vrot.slane %v5846, 4
      %v5848 = vadd.f32 %v5846, %v5847
      %v5849 = vrot.slane %v5848, 2
      %v5850 = vadd.f32 %v5848, %v5849
      %v5851 = vrot.slane %v5850, 1
      %v5852 = vadd.f32 %v5850, %v5851
      %5853 = vst.msk [vmem:[%s288] sm:$0x1] %vm5750, %v5852
      %p5854 = scmp.lt.s32.totalorder %s18, 1
      %s5855 = scalar_select %p5854, %s18, 1
      %s5856 = smul.addr %s5855, 32
      %s5857 = smul.addr %s5856, 4
      %s5858 = scalar_lea.vmem %s4, %s5857
      %p5859 = scmp.lt.s32.totalorder %s18, 1
      %s5860 = scalar_select %p5859, %s18, 1
      %s5861 = scalar_lea.vmem %s5, %s5860
      %p5862 = scmp.lt.s32.totalorder %s18, 1
      %s5863 = scalar_select %p5862, %s18, 1
      %s5864 = scalar_lea.vmem %s6, %s5863
      // Predicated region
      $region37: #{upblock_forward.5} parent=35 // pred_check
        %p5865 = pneg %p130
      $region38: #{upblock_forward.5} parent=35 // pred_check_branch
        %5867 = sbr.rel (%p5865) target = $region40
      $region39: #{upblock_forward.5} parent=35 // pred_region
        _
      $region40: #{upblock_forward.5} parent=35 // pred_fallthru
        _
      // Predicated region
      $region41: #{upblock_forward.5} parent=35 // pred_check
        %p5868 = pneg %p156
      $region42: #{upblock_forward.5} parent=35 // pred_check_branch
        %5870 = sbr.rel (%p5868) target = $region44
      $region43: #{upblock_forward.5} parent=35 // pred_region
        _
      $region44: #{upblock_forward.5} parent=35 // pred_fallthru
        _
      // Predicated region
      $region45: #{upblock_forward.5} parent=35 // pred_check
        %p5871 = pneg %p182
      $region46: #{upblock_forward.5} parent=35 // pred_check_branch
        %5873 = sbr.rel (%p5871) target = $region48
      $region47: #{upblock_forward.5} parent=35 // pred_region
        _
      $region48: #{upblock_forward.5} parent=35 // pred_fallthru
        _
    $region36: #{upblock_forward.5} parent=5 // pred_fallthru
      _
    %p5874 = scmp.le.s32.totalorder 2, %s13
    // Predicated region
    $region49: #{upblock_forward.5} parent=5 // pred_check
      %p5875 = pneg %p5874
    $region50: #{upblock_forward.5} parent=5 // pred_check_branch
      %5877 = sbr.rel (%p5875) target = $region52
    $region51: #{upblock_forward.5} parent=5 // pred_region
      %s5878 = ssub.s32 %s13, 2
      // Predicated region
      $region53: #{upblock_forward.5} parent=51 // pred_check
        %p5879 = pneg %p136
      $region54: #{upblock_forward.5} parent=51 // pred_check_branch
        %5881 = sbr.rel (%p5879) target = $region56
      $region55: #{upblock_forward.5} parent=51 // pred_region
        %p5882 = scmp.lt.s32.totalorder %s19, 1
        %s5883 = scalar_select %p5882, %s19, 1
        %s5884 = smul.addr %s5883, 32
        %s5885 = smul.addr %s5884, 4
        %s5886 = scalar_lea.vmem %s4, %s5885
      $region56: #{upblock_forward.5} parent=51 // pred_fallthru
        _
      // Predicated region
      $region57: #{upblock_forward.5} parent=51 // pred_check
        %p5887 = pneg %p162
      $region58: #{upblock_forward.5} parent=51 // pred_check_branch
        %5889 = sbr.rel (%p5887) target = $region60
      $region59: #{upblock_forward.5} parent=51 // pred_region
        %p5890 = scmp.lt.s32.totalorder %s19, 1
        %s5891 = scalar_select %p5890, %s19, 1
        %s5892 = scalar_lea.vmem %s5, %s5891
      $region60: #{upblock_forward.5} parent=51 // pred_fallthru
        _
      // Predicated region
      $region61: #{upblock_forward.5} parent=51 // pred_check
        %p5893 = pneg %p188
      $region62: #{upblock_forward.5} parent=51 // pred_check_branch
        %5895 = sbr.rel (%p5893) target = $region64
      $region63: #{upblock_forward.5} parent=51 // pred_region
        %p5896 = scmp.lt.s32.totalorder %s19, 1
        %s5897 = scalar_select %p5896, %s19, 1
        %s5898 = scalar_lea.vmem %s6, %s5897
      $region64: #{upblock_forward.5} parent=51 // pred_fallthru
        _
    $region52: #{upblock_forward.5} parent=5 // pred_fallthru
      _
  $region6: #{upblock_forward.5} parent=0 // loop_footer
    %s17 = sadd.s32 1, %s13
  $region7: #{upblock_forward.5} parent=0 // loop_footer_branch
    %12 = sbr.rel target = $region3
  $region8: #{upblock_forward.5} parent=0 // loop_exit
    _

</llo_original>
